<compile_context>
chip_gen: v5e
topology: v5e:2x2
jax: 0.10.0
libtpu: 0.0.40
codegen_flags: <defaults>
</compile_context>

<pallas_src>
import functools

import jax
import jax.numpy as jnp
from jax.experimental import pallas as pl
from jax.experimental.pallas import tpu as pltpu


# ----------------------------------------------------------------------------
# Fused kernel: encoder conv -> VQ (+ folded post_quant) -> decoder conv
# ----------------------------------------------------------------------------
def vqgan_fused_kernel(xp_ref, encw_ref, encb_ref, e_ref, e2_ref,
                       epost_ref, postb_ref, decw_ref, decb_ref,
                       dec_ref, idx_ref, loss_ref, zqp_ref):
    # xp_ref   : (1, H+2, W+2, Cin) bf16   padded NHWC image (VMEM resident)
    # encw_ref : (9, Cin, D)        bf16   encoder taps (quant_conv folded in)
    # encb_ref : (1, D)             f32
    # e_ref    : (Kp, D)            bf16   padded codebook
    # e2_ref   : (1, Kp)            f32    ||e||^2 (padded rows = +huge)
    # epost_ref: (Kp, D)            bf16   codebook @ post_quant_conv weight
    # postb_ref: (1, D)             f32
    # decw_ref : (9, Cout, D)       bf16   decoder taps, pre-transposed
    # decb_ref : (Cout, 1)          f32
    # dec_ref  : (1, Cout, H*W)     f32    lane-dense decoder output
    # idx_ref  : (H*W, 1)           i32
    # loss_ref : (1, 1, 1)          f32    per-image loss partial sum
    # zqp_ref  : (H+2, W+2, D)      f32    VMEM scratch: zero-padded z_q
    H = xp_ref.shape[1] - 2
    W = xp_ref.shape[2] - 2
    Cin = xp_ref.shape[3]
    HW = H * W
    D = encw_ref.shape[2]
    Kp = e_ref.shape[0]
    Cout = dec_ref.shape[1]

    # ---- encoder 3x3 "same" conv (+ folded 1x1 quant_conv) ----
    # 9 taps unrolled as static slices of the VMEM-resident padded block.
    h = jnp.zeros((HW, D), jnp.float32)
    for t in range(9):
        dy, dx = divmod(t, 3)
        patch = xp_ref[0, dy:dy + H, dx:dx + W, :].reshape(HW, Cin)
        h = h + jnp.dot(patch, encw_ref[t], preferred_element_type=jnp.float32)
    h = h + encb_ref[...]                                        # (HW, D) f32

    # ---- vector quantization ----
    # cross[p, k] = <h_p, e_k>   (NT matmul, bf16 operands, f32 accumulation)
    hb = h.astype(jnp.bfloat16)
    cross = jax.lax.dot_general(
        hb, e_ref[...], (((1,), (1,)), ((), ())),
        preferred_element_type=jnp.float32)                      # (HW, Kp)
    # ||h||^2 is constant per row -> dropped from the argmin.
    d = e2_ref[...] - 2.0 * cross                                # (HW, Kp)

    d_min = jnp.min(d, axis=1, keepdims=True)                    # (HW, 1)
    iota = jax.lax.broadcasted_iota(jnp.int32, d.shape, 1)
    masked = jnp.where(d <= d_min, iota, Kp)
    idx = jnp.min(masked, axis=1, keepdims=True)                 # first argmin
    one_hot = (masked == idx).astype(jnp.bfloat16)               # exact in bf16

    # commitment loss partial sum (algebraic):
    #   ||z_q - z||^2 = (||e||^2 - 2<z,e>)_min + ||z||^2 = d_min + ||z||^2
    z2 = jnp.sum(h * h, axis=1, keepdims=True)
    loss_ref[0] = jnp.sum(d_min + z2, axis=0, keepdims=True)     # (1, 1)

    idx_ref[...] = idx.astype(jnp.int32)

    # post_quant_conv folded: z_q_post = one_hot @ (E @ W_post) + b_post
    zq = (jnp.dot(one_hot, epost_ref[...], preferred_element_type=jnp.float32)
          + postb_ref[...])                                      # (HW, D) f32

    # ---- decoder 3x3 "same" conv, zero-padded entirely in VMEM ----
    zqp_ref[...] = jnp.zeros_like(zqp_ref)            # border must be 0 each step
    zqp_ref[1:H + 1, 1:W + 1, :] = zq.reshape(H, W, D)

    # Accumulate transposed -> (Cout, HW): lane-dense output store, and the
    # wrapper only needs a metadata reshape (no XLA transpose).
    acc = jnp.zeros((Cout, HW), jnp.float32)
    for t in range(9):
        dy, dx = divmod(t, 3)
        patch = zqp_ref[dy:dy + H, dx:dx + W, :].reshape(HW, D).astype(jnp.bfloat16)
        acc = acc + jax.lax.dot_general(
            decw_ref[t], patch, (((1,), (1,)), ((), ())),
            preferred_element_type=jnp.float32)                  # (Cout, HW)
    dec_ref[0] = acc + decb_ref[...]


# ----------------------------------------------------------------------------
# VQGAN module (forward pass only)
# ----------------------------------------------------------------------------
class VQGANPallas:
    def __init__(self, key, image_channels=3, latent_dim=32,
                 num_codebook_vectors=64, beta=0.25):
        self.beta = beta
        self.latent_dim = latent_dim
        self.num_codebook_vectors = num_codebook_vectors
        D = latent_dim
        Cin = image_channels
        ks = jax.random.split(key, 8)
        s = 0.02

        # encoder stand-in: Conv2d(image_channels, latent_dim, 3, padding=1)
        enc_w = s * jax.random.normal(ks[0], (3, 3, Cin, D), jnp.float32)
        enc_b = jnp.zeros((D,), jnp.float32)
        # quant_conv: Conv2d(latent_dim, latent_dim, 1) -- folded into encoder
        quant_w = s * jax.random.normal(ks[1], (D, D), jnp.float32)
        quant_b = 0.01 * jax.random.normal(ks[2], (D,), jnp.float32)
        encq_w = (enc_w.reshape(9 * Cin, D) @ quant_w).reshape(9, Cin, D)
        self.encq_w = encq_w.astype(jnp.bfloat16)
        self.encq_b = (enc_b @ quant_w + quant_b).reshape(1, D).astype(jnp.float32)

        # codebook (nn.Embedding-style uniform(-1/K, 1/K)), padded to 128 rows
        K = num_codebook_vectors
        codebook = jax.random.uniform(
            ks[3], (K, D), jnp.float32, minval=-1.0 / K, maxval=1.0 / K)
        Kp = ((K + 127) // 128) * 128
        self.Kp = Kp
        cb_pad = jnp.zeros((Kp, D), jnp.float32).at[:K].set(codebook)
        self.codebook_bf16 = cb_pad.astype(jnp.bfloat16)
        e2 = jnp.sum(codebook * codebook, axis=1)
        self.e2_pad = jnp.full((1, Kp), 1e30, jnp.float32).at[0, :K].set(e2)

        # post_quant_conv: Conv2d(latent_dim, latent_dim, 1) -- folded into the
        # codebook gather via e_post = E @ W_post (exact, linear).
        post_w = s * jax.random.normal(ks[4], (D, D), jnp.float32)
        post_b = 0.01 * jax.random.normal(ks[5], (D,), jnp.float32)
        self.epost = (cb_pad @ post_w).astype(jnp.bfloat16)
        self.post_b = post_b.reshape(1, D).astype(jnp.float32)

        # decoder stand-ins; weights stored tap-major and pre-transposed to
        # (9, Cout, D) so the kernel accumulates the lane-dense (Cout, HW) form.
        deci_w = s * jax.random.normal(ks[6], (3, 3, D, Cin), jnp.float32
                                       ).reshape(9, D, Cin)
        self.deci_w = jnp.transpose(deci_w, (0, 2, 1)).astype(jnp.bfloat16)
        self.deci_b = jnp.zeros((Cin, 1), jnp.float32)
        decm_w = s * jax.random.normal(ks[7], (3, 3, D, 1), jnp.float32
                                       ).reshape(9, D, 1)
        self.decm_w = jnp.transpose(decm_w, (0, 2, 1)).astype(jnp.bfloat16)
        self.decm_b = jnp.zeros((1, 1), jnp.float32)

    @functools.partial(jax.jit, static_argnums=(0, 2))
    def __call__(self, imgs_nchw, is_mask=False):
        # NCHW -> NHWC (channels on the 128-lane axis inside the kernel)
        x = jnp.transpose(imgs_nchw.astype(jnp.float32), (0, 2, 3, 1))
        N, H, W, Cin = x.shape
        D = self.latent_dim
        HW = H * W
        Kp = self.Kp

        # 1px zero pad once in XLA (tiny); all 9 taps are fused in-kernel.
        xp = jnp.pad(x.astype(jnp.bfloat16), ((0, 0), (1, 1), (1, 1), (0, 0)))

        if is_mask:
            decw, decb = self.decm_w, self.decm_b
        else:
            decw, decb = self.deci_w, self.deci_b
        Cout = decw.shape[1]

        dec, idx, losses = pl.pallas_call(
            vqgan_fused_kernel,
            grid=(N,),
            out_shape=(
                jax.ShapeDtypeStruct((N, Cout, HW), jnp.float32),
                jax.ShapeDtypeStruct((N * HW, 1), jnp.int32),
                jax.ShapeDtypeStruct((N, 1, 1), jnp.float32),
            ),
            in_specs=[
                pl.BlockSpec((1, H + 2, W + 2, Cin), lambda n: (n, 0, 0, 0)),
                pl.BlockSpec((9, Cin, D), lambda n: (0, 0, 0)),
                pl.BlockSpec((1, D), lambda n: (0, 0)),
                pl.BlockSpec((Kp, D), lambda n: (0, 0)),
                pl.BlockSpec((1, Kp), lambda n: (0, 0)),
                pl.BlockSpec((Kp, D), lambda n: (0, 0)),
                pl.BlockSpec((1, D), lambda n: (0, 0)),
                pl.BlockSpec((9, Cout, D), lambda n: (0, 0, 0)),
                pl.BlockSpec((Cout, 1), lambda n: (0, 0)),
            ],
            out_specs=(
                pl.BlockSpec((1, Cout, HW), lambda n: (n, 0, 0)),
                pl.BlockSpec((HW, 1), lambda n: (n, 0)),
                pl.BlockSpec((1, 1, 1), lambda n: (n, 0, 0)),
            ),
            scratch_shapes=[pltpu.VMEM((H + 2, W + 2, D), jnp.float32)],
            compiler_params=pltpu.CompilerParams(
                dimension_semantics=("parallel",)),
        )(xp, self.encq_w, self.encq_b, self.codebook_bf16, self.e2_pad,
          self.epost, self.post_b, decw, decb)

        # Kernel already emitted (N, Cout, H*W): pure-metadata reshape to NCHW.
        decoded_images = dec.reshape(N, Cout, H, W)
        codebook_indices = idx.reshape(N * HW)
        # loss = mse(sg(z_q), z) + beta*mse(z_q, sg(z)) == (1+beta)*mse(z_q, z)
        q_loss = (1.0 + self.beta) * jnp.sum(losses) / (N * HW * D)
        return decoded_images, codebook_indices, q_loss


if __name__ == "__main__":
    key = jax.random.PRNGKey(0)
    pkey, xkey = jax.random.split(key)

    model = VQGANPallas(pkey, image_channels=3, latent_dim=32,
                        num_codebook_vectors=64, beta=0.25)

    imgs = jax.random.normal(xkey, (2, 3, 16, 16), jnp.float32)  # NCHW like PyTorch

    decoded, indices, q_loss = model(imgs, is_mask=False)
    jax.block_until_ready((decoded, indices, q_loss))
    assert decoded.shape == (2, 3, 16, 16)
    assert indices.shape == (2 * 16 * 16,)
    assert q_loss.shape == ()
    assert int(indices.min()) >= 0 and int(indices.max()) < 64
    assert bool(jnp.isfinite(q_loss))

    decoded_m, indices_m, q_loss_m = model(imgs, is_mask=True)
    jax.block_until_ready((decoded_m, indices_m, q_loss_m))
    assert decoded_m.shape == (2, 1, 16, 16)

    print("KERNEL_OK")
</pallas_src>

<mosaic_0001>
module attributes {stable_mosaic.version = 11 : i64} {
  func.func @vqgan_fused_kernel(%arg0: i32, %arg1: memref<1x18x18x3xbf16, #tpu.memory_space<vmem>>, %arg2: memref<9x3x32xbf16, #tpu.memory_space<vmem>>, %arg3: memref<1x32xf32, #tpu.memory_space<vmem>>, %arg4: memref<128x32xbf16, #tpu.memory_space<vmem>>, %arg5: memref<1x128xf32, #tpu.memory_space<vmem>>, %arg6: memref<128x32xbf16, #tpu.memory_space<vmem>>, %arg7: memref<1x32xf32, #tpu.memory_space<vmem>>, %arg8: memref<9x3x32xbf16, #tpu.memory_space<vmem>>, %arg9: memref<3x1xf32, #tpu.memory_space<vmem>>, %arg10: memref<1x3x256xf32, #tpu.memory_space<vmem>>, %arg11: memref<256x1xi32, #tpu.memory_space<vmem>>, %arg12: memref<1x1x1xf32, #tpu.memory_space<vmem>>, %arg13: memref<18x18x32xf32, #tpu.memory_space<vmem>>) attributes {dimension_semantics = [#tpu.dimension_semantics<parallel>], iteration_bounds = array<i64: 2>, scalar_prefetch = 0 : i64, scratch_operands = 1 : i64, tpu.core_type = #tpu.core_type<tc>, window_params = [{transform_indices = @transform_0, window_bounds = array<i64: 1, 18, 18, 3>}, {pipeline_mode = #tpu.pipeline_mode<synchronous>, transform_indices = @transform_1, window_bounds = array<i64: 9, 3, 32>}, {pipeline_mode = #tpu.pipeline_mode<synchronous>, transform_indices = @transform_2, window_bounds = array<i64: 1, 32>}, {pipeline_mode = #tpu.pipeline_mode<synchronous>, transform_indices = @transform_3, window_bounds = array<i64: 128, 32>}, {pipeline_mode = #tpu.pipeline_mode<synchronous>, transform_indices = @transform_4, window_bounds = array<i64: 1, 128>}, {pipeline_mode = #tpu.pipeline_mode<synchronous>, transform_indices = @transform_5, window_bounds = array<i64: 128, 32>}, {pipeline_mode = #tpu.pipeline_mode<synchronous>, transform_indices = @transform_6, window_bounds = array<i64: 1, 32>}, {pipeline_mode = #tpu.pipeline_mode<synchronous>, transform_indices = @transform_7, window_bounds = array<i64: 9, 3, 32>}, {pipeline_mode = #tpu.pipeline_mode<synchronous>, transform_indices = @transform_8, window_bounds = array<i64: 3, 1>}, {transform_indices = @transform_9, window_bounds = array<i64: 1, 3, 256>}, {transform_indices = @transform_10, window_bounds = array<i64: 256, 1>}, {transform_indices = @transform_11, window_bounds = array<i64: 1, 1, 1>}]} {
    %cst = arith.constant 0.000000e+00 : f32
    %0 = vector.broadcast %cst : f32 to vector<256x32xf32>
    %c0 = arith.constant 0 : index
    %c0_0 = arith.constant 0 : index
    %c0_1 = arith.constant 0 : index
    %c0_2 = arith.constant 0 : index
    %1 = vector.load %arg1[%c0, %c0_0, %c0_1, %c0_2] : memref<1x18x18x3xbf16, #tpu.memory_space<vmem>>, vector<1x16x16x3xbf16>
    %2 = vector.shape_cast %1 : vector<1x16x16x3xbf16> to vector<16x16x3xbf16>
    %3 = vector.shape_cast %2 : vector<16x16x3xbf16> to vector<256x3xbf16>
    %c0_3 = arith.constant 0 : index
    %c0_4 = arith.constant 0 : index
    %c0_5 = arith.constant 0 : index
    %4 = vector.load %arg2[%c0_3, %c0_4, %c0_5] : memref<9x3x32xbf16, #tpu.memory_space<vmem>>, vector<1x3x32xbf16>
    %5 = vector.shape_cast %4 : vector<1x3x32xbf16> to vector<3x32xbf16>
    %cst_6 = arith.constant dense<0.000000e+00> : vector<256x32xf32>
    %6 = tpu.matmul %3, %5, %cst_6 {dimension_numbers = #tpu.dot_dimension_numbers<[1], [0], [0], [1], [0, 0, 1, 1], [], []>} : vector<256x3xbf16>, vector<3x32xbf16>, vector<256x32xf32> -> vector<256x32xf32>
    %7 = arith.addf %0, %6 : vector<256x32xf32>
    %c0_7 = arith.constant 0 : index
    %c0_8 = arith.constant 0 : index
    %c1 = arith.constant 1 : index
    %c0_9 = arith.constant 0 : index
    %8 = vector.load %arg1[%c0_7, %c0_8, %c1, %c0_9] : memref<1x18x18x3xbf16, #tpu.memory_space<vmem>>, vector<1x16x16x3xbf16>
    %9 = vector.shape_cast %8 : vector<1x16x16x3xbf16> to vector<16x16x3xbf16>
    %10 = vector.shape_cast %9 : vector<16x16x3xbf16> to vector<256x3xbf16>
    %c1_10 = arith.constant 1 : index
    %c0_11 = arith.constant 0 : index
    %c0_12 = arith.constant 0 : index
    %11 = vector.load %arg2[%c1_10, %c0_11, %c0_12] : memref<9x3x32xbf16, #tpu.memory_space<vmem>>, vector<1x3x32xbf16>
    %12 = vector.shape_cast %11 : vector<1x3x32xbf16> to vector<3x32xbf16>
    %cst_13 = arith.constant dense<0.000000e+00> : vector<256x32xf32>
    %13 = tpu.matmul %10, %12, %cst_13 {dimension_numbers = #tpu.dot_dimension_numbers<[1], [0], [0], [1], [0, 0, 1, 1], [], []>} : vector<256x3xbf16>, vector<3x32xbf16>, vector<256x32xf32> -> vector<256x32xf32>
    %14 = arith.addf %7, %13 : vector<256x32xf32>
    %c0_14 = arith.constant 0 : index
    %c0_15 = arith.constant 0 : index
    %c2 = arith.constant 2 : index
    %c0_16 = arith.constant 0 : index
    %15 = vector.load %arg1[%c0_14, %c0_15, %c2, %c0_16] : memref<1x18x18x3xbf16, #tpu.memory_space<vmem>>, vector<1x16x16x3xbf16>
    %16 = vector.shape_cast %15 : vector<1x16x16x3xbf16> to vector<16x16x3xbf16>
    %17 = vector.shape_cast %16 : vector<16x16x3xbf16> to vector<256x3xbf16>
    %c2_17 = arith.constant 2 : index
    %c0_18 = arith.constant 0 : index
    %c0_19 = arith.constant 0 : index
    %18 = vector.load %arg2[%c2_17, %c0_18, %c0_19] : memref<9x3x32xbf16, #tpu.memory_space<vmem>>, vector<1x3x32xbf16>
    %19 = vector.shape_cast %18 : vector<1x3x32xbf16> to vector<3x32xbf16>
    %cst_20 = arith.constant dense<0.000000e+00> : vector<256x32xf32>
    %20 = tpu.matmul %17, %19, %cst_20 {dimension_numbers = #tpu.dot_dimension_numbers<[1], [0], [0], [1], [0, 0, 1, 1], [], []>} : vector<256x3xbf16>, vector<3x32xbf16>, vector<256x32xf32> -> vector<256x32xf32>
    %21 = arith.addf %14, %20 : vector<256x32xf32>
    %c0_21 = arith.constant 0 : index
    %c1_22 = arith.constant 1 : index
    %c0_23 = arith.constant 0 : index
    %c0_24 = arith.constant 0 : index
    %22 = vector.load %arg1[%c0_21, %c1_22, %c0_23, %c0_24] : memref<1x18x18x3xbf16, #tpu.memory_space<vmem>>, vector<1x16x16x3xbf16>
    %23 = vector.shape_cast %22 : vector<1x16x16x3xbf16> to vector<16x16x3xbf16>
    %24 = vector.shape_cast %23 : vector<16x16x3xbf16> to vector<256x3xbf16>
    %c3 = arith.constant 3 : index
    %c0_25 = arith.constant 0 : index
    %c0_26 = arith.constant 0 : index
    %25 = vector.load %arg2[%c3, %c0_25, %c0_26] : memref<9x3x32xbf16, #tpu.memory_space<vmem>>, vector<1x3x32xbf16>
    %26 = vector.shape_cast %25 : vector<1x3x32xbf16> to vector<3x32xbf16>
    %cst_27 = arith.constant dense<0.000000e+00> : vector<256x32xf32>
    %27 = tpu.matmul %24, %26, %cst_27 {dimension_numbers = #tpu.dot_dimension_numbers<[1], [0], [0], [1], [0, 0, 1, 1], [], []>} : vector<256x3xbf16>, vector<3x32xbf16>, vector<256x32xf32> -> vector<256x32xf32>
    %28 = arith.addf %21, %27 : vector<256x32xf32>
    %c0_28 = arith.constant 0 : index
    %c1_29 = arith.constant 1 : index
    %c1_30 = arith.constant 1 : index
    %c0_31 = arith.constant 0 : index
    %29 = vector.load %arg1[%c0_28, %c1_29, %c1_30, %c0_31] : memref<1x18x18x3xbf16, #tpu.memory_space<vmem>>, vector<1x16x16x3xbf16>
    %30 = vector.shape_cast %29 : vector<1x16x16x3xbf16> to vector<16x16x3xbf16>
    %31 = vector.shape_cast %30 : vector<16x16x3xbf16> to vector<256x3xbf16>
    %c4 = arith.constant 4 : index
    %c0_32 = arith.constant 0 : index
    %c0_33 = arith.constant 0 : index
    %32 = vector.load %arg2[%c4, %c0_32, %c0_33] : memref<9x3x32xbf16, #tpu.memory_space<vmem>>, vector<1x3x32xbf16>
    %33 = vector.shape_cast %32 : vector<1x3x32xbf16> to vector<3x32xbf16>
    %cst_34 = arith.constant dense<0.000000e+00> : vector<256x32xf32>
    %34 = tpu.matmul %31, %33, %cst_34 {dimension_numbers = #tpu.dot_dimension_numbers<[1], [0], [0], [1], [0, 0, 1, 1], [], []>} : vector<256x3xbf16>, vector<3x32xbf16>, vector<256x32xf32> -> vector<256x32xf32>
    %35 = arith.addf %28, %34 : vector<256x32xf32>
    %c0_35 = arith.constant 0 : index
    %c1_36 = arith.constant 1 : index
    %c2_37 = arith.constant 2 : index
    %c0_38 = arith.constant 0 : index
    %36 = vector.load %arg1[%c0_35, %c1_36, %c2_37, %c0_38] : memref<1x18x18x3xbf16, #tpu.memory_space<vmem>>, vector<1x16x16x3xbf16>
    %37 = vector.shape_cast %36 : vector<1x16x16x3xbf16> to vector<16x16x3xbf16>
    %38 = vector.shape_cast %37 : vector<16x16x3xbf16> to vector<256x3xbf16>
    %c5 = arith.constant 5 : index
    %c0_39 = arith.constant 0 : index
    %c0_40 = arith.constant 0 : index
    %39 = vector.load %arg2[%c5, %c0_39, %c0_40] : memref<9x3x32xbf16, #tpu.memory_space<vmem>>, vector<1x3x32xbf16>
    %40 = vector.shape_cast %39 : vector<1x3x32xbf16> to vector<3x32xbf16>
    %cst_41 = arith.constant dense<0.000000e+00> : vector<256x32xf32>
    %41 = tpu.matmul %38, %40, %cst_41 {dimension_numbers = #tpu.dot_dimension_numbers<[1], [0], [0], [1], [0, 0, 1, 1], [], []>} : vector<256x3xbf16>, vector<3x32xbf16>, vector<256x32xf32> -> vector<256x32xf32>
    %42 = arith.addf %35, %41 : vector<256x32xf32>
    %c0_42 = arith.constant 0 : index
    %c2_43 = arith.constant 2 : index
    %c0_44 = arith.constant 0 : index
    %c0_45 = arith.constant 0 : index
    %43 = vector.load %arg1[%c0_42, %c2_43, %c0_44, %c0_45] : memref<1x18x18x3xbf16, #tpu.memory_space<vmem>>, vector<1x16x16x3xbf16>
    %44 = vector.shape_cast %43 : vector<1x16x16x3xbf16> to vector<16x16x3xbf16>
    %45 = vector.shape_cast %44 : vector<16x16x3xbf16> to vector<256x3xbf16>
    %c6 = arith.constant 6 : index
    %c0_46 = arith.constant 0 : index
    %c0_47 = arith.constant 0 : index
    %46 = vector.load %arg2[%c6, %c0_46, %c0_47] : memref<9x3x32xbf16, #tpu.memory_space<vmem>>, vector<1x3x32xbf16>
    %47 = vector.shape_cast %46 : vector<1x3x32xbf16> to vector<3x32xbf16>
    %cst_48 = arith.constant dense<0.000000e+00> : vector<256x32xf32>
    %48 = tpu.matmul %45, %47, %cst_48 {dimension_numbers = #tpu.dot_dimension_numbers<[1], [0], [0], [1], [0, 0, 1, 1], [], []>} : vector<256x3xbf16>, vector<3x32xbf16>, vector<256x32xf32> -> vector<256x32xf32>
    %49 = arith.addf %42, %48 : vector<256x32xf32>
    %c0_49 = arith.constant 0 : index
    %c2_50 = arith.constant 2 : index
    %c1_51 = arith.constant 1 : index
    %c0_52 = arith.constant 0 : index
    %50 = vector.load %arg1[%c0_49, %c2_50, %c1_51, %c0_52] : memref<1x18x18x3xbf16, #tpu.memory_space<vmem>>, vector<1x16x16x3xbf16>
    %51 = vector.shape_cast %50 : vector<1x16x16x3xbf16> to vector<16x16x3xbf16>
    %52 = vector.shape_cast %51 : vector<16x16x3xbf16> to vector<256x3xbf16>
    %c7 = arith.constant 7 : index
    %c0_53 = arith.constant 0 : index
    %c0_54 = arith.constant 0 : index
    %53 = vector.load %arg2[%c7, %c0_53, %c0_54] : memref<9x3x32xbf16, #tpu.memory_space<vmem>>, vector<1x3x32xbf16>
    %54 = vector.shape_cast %53 : vector<1x3x32xbf16> to vector<3x32xbf16>
    %cst_55 = arith.constant dense<0.000000e+00> : vector<256x32xf32>
    %55 = tpu.matmul %52, %54, %cst_55 {dimension_numbers = #tpu.dot_dimension_numbers<[1], [0], [0], [1], [0, 0, 1, 1], [], []>} : vector<256x3xbf16>, vector<3x32xbf16>, vector<256x32xf32> -> vector<256x32xf32>
    %56 = arith.addf %49, %55 : vector<256x32xf32>
    %c0_56 = arith.constant 0 : index
    %c2_57 = arith.constant 2 : index
    %c2_58 = arith.constant 2 : index
    %c0_59 = arith.constant 0 : index
    %57 = vector.load %arg1[%c0_56, %c2_57, %c2_58, %c0_59] : memref<1x18x18x3xbf16, #tpu.memory_space<vmem>>, vector<1x16x16x3xbf16>
    %58 = vector.shape_cast %57 : vector<1x16x16x3xbf16> to vector<16x16x3xbf16>
    %59 = vector.shape_cast %58 : vector<16x16x3xbf16> to vector<256x3xbf16>
    %c8 = arith.constant 8 : index
    %c0_60 = arith.constant 0 : index
    %c0_61 = arith.constant 0 : index
    %60 = vector.load %arg2[%c8, %c0_60, %c0_61] : memref<9x3x32xbf16, #tpu.memory_space<vmem>>, vector<1x3x32xbf16>
    %61 = vector.shape_cast %60 : vector<1x3x32xbf16> to vector<3x32xbf16>
    %cst_62 = arith.constant dense<0.000000e+00> : vector<256x32xf32>
    %62 = tpu.matmul %59, %61, %cst_62 {dimension_numbers = #tpu.dot_dimension_numbers<[1], [0], [0], [1], [0, 0, 1, 1], [], []>} : vector<256x3xbf16>, vector<3x32xbf16>, vector<256x32xf32> -> vector<256x32xf32>
    %63 = arith.addf %56, %62 : vector<256x32xf32>
    %c0_63 = arith.constant 0 : index
    %c0_64 = arith.constant 0 : index
    %64 = vector.load %arg3[%c0_63, %c0_64] : memref<1x32xf32, #tpu.memory_space<vmem>>, vector<1x32xf32>
    %65 = vector.broadcast %64 : vector<1x32xf32> to vector<256x32xf32>
    %66 = arith.addf %63, %65 : vector<256x32xf32>
    %67 = arith.truncf %66 : vector<256x32xf32> to vector<256x32xbf16>
    %c0_65 = arith.constant 0 : index
    %c0_66 = arith.constant 0 : index
    %68 = vector.load %arg4[%c0_65, %c0_66] : memref<128x32xbf16, #tpu.memory_space<vmem>>, vector<128x32xbf16>
    %cst_67 = arith.constant dense<0.000000e+00> : vector<256x128xf32>
    %69 = tpu.matmul %67, %68, %cst_67 {dimension_numbers = #tpu.dot_dimension_numbers<[1], [1], [0], [0], [0, 0, 1, 0], [], []>} : vector<256x32xbf16>, vector<128x32xbf16>, vector<256x128xf32> -> vector<256x128xf32>
    %c0_68 = arith.constant 0 : index
    %c0_69 = arith.constant 0 : index
    %70 = vector.load %arg5[%c0_68, %c0_69] : memref<1x128xf32, #tpu.memory_space<vmem>>, vector<1x128xf32>
    %cst_70 = arith.constant 2.000000e+00 : f32
    %71 = vector.broadcast %cst_70 : f32 to vector<256x128xf32>
    %72 = arith.mulf %71, %69 : vector<256x128xf32>
    %73 = vector.broadcast %70 : vector<1x128xf32> to vector<256x128xf32>
    %74 = arith.subf %73, %72 : vector<256x128xf32>
    %cst_71 = arith.constant dense<0x7F800000> : vector<256xf32>
    %75 = vector.multi_reduction <minimumf>, %74, %cst_71 [1] : vector<256x128xf32> to vector<256xf32>
    %76 = vector.shape_cast %75 : vector<256xf32> to vector<256x1xf32>
    %77 = tpu.iota {dimensions = array<i32: 1>} : vector<256x128xi32>
    %78 = vector.broadcast %76 : vector<256x1xf32> to vector<256x128xf32>
    %79 = arith.cmpf ole, %74, %78 : vector<256x128xf32>
    %c128_i32 = arith.constant 128 : i32
    %80 = vector.broadcast %c128_i32 : i32 to vector<256x128xi32>
    %81 = arith.select %79, %77, %80 : vector<256x128xi1>, vector<256x128xi32>
    %cst_72 = arith.constant dense<2147483647> : vector<256xi32>
    %82 = vector.multi_reduction <minsi>, %81, %cst_72 [1] : vector<256x128xi32> to vector<256xi32>
    %83 = vector.shape_cast %82 : vector<256xi32> to vector<256x1xi32>
    %84 = vector.broadcast %83 : vector<256x1xi32> to vector<256x128xi32>
    %85 = arith.cmpi eq, %81, %84 : vector<256x128xi32>
    %86 = arith.extui %85 : vector<256x128xi1> to vector<256x128xi32>
    %87 = arith.sitofp %86 : vector<256x128xi32> to vector<256x128xf32>
    %88 = arith.truncf %87 : vector<256x128xf32> to vector<256x128xbf16>
    %89 = arith.mulf %66, %66 : vector<256x32xf32>
    %cst_73 = arith.constant dense<0.000000e+00> : vector<256xf32>
    %90 = vector.multi_reduction <add>, %89, %cst_73 [1] : vector<256x32xf32> to vector<256xf32>
    %91 = vector.shape_cast %90 : vector<256xf32> to vector<256x1xf32>
    %92 = arith.addf %76, %91 : vector<256x1xf32>
    %cst_74 = arith.constant dense<0.000000e+00> : vector<1xf32>
    %93 = vector.multi_reduction <add>, %92, %cst_74 [0] : vector<256x1xf32> to vector<1xf32>
    %94 = vector.shape_cast %93 : vector<1xf32> to vector<1x1xf32>
    %c0_75 = arith.constant 0 : index
    %c0_76 = arith.constant 0 : index
    %c0_77 = arith.constant 0 : index
    %95 = vector.load %arg12[%c0_75, %c0_76, %c0_77] : memref<1x1x1xf32, #tpu.memory_space<vmem>>, vector<1x1x1xf32>
    %96 = vector.shape_cast %95 : vector<1x1x1xf32> to vector<1x1xf32>
    %97 = vector.shape_cast %94 : vector<1x1xf32> to vector<1x1x1xf32>
    tpu.vector_store %arg12[%c0_75, %c0_76, %c0_77], %97 {strides = array<i32>} : memref<1x1x1xf32, #tpu.memory_space<vmem>>, vector<1x1x1xf32>,
    %c0_78 = arith.constant 0 : index
    %c0_79 = arith.constant 0 : index
    %98 = vector.load %arg11[%c0_78, %c0_79] : memref<256x1xi32, #tpu.memory_space<vmem>>, vector<256x1xi32>
    tpu.vector_store %arg11[%c0_78, %c0_79], %83 {strides = array<i32>} : memref<256x1xi32, #tpu.memory_space<vmem>>, vector<256x1xi32>,
    %c0_80 = arith.constant 0 : index
    %c0_81 = arith.constant 0 : index
    %99 = vector.load %arg6[%c0_80, %c0_81] : memref<128x32xbf16, #tpu.memory_space<vmem>>, vector<128x32xbf16>
    %cst_82 = arith.constant dense<0.000000e+00> : vector<256x32xf32>
    %100 = tpu.matmul %88, %99, %cst_82 {dimension_numbers = #tpu.dot_dimension_numbers<[1], [0], [0], [1], [0, 0, 1, 1], [], []>} : vector<256x128xbf16>, vector<128x32xbf16>, vector<256x32xf32> -> vector<256x32xf32>
    %c0_83 = arith.constant 0 : index
    %c0_84 = arith.constant 0 : index
    %101 = vector.load %arg7[%c0_83, %c0_84] : memref<1x32xf32, #tpu.memory_space<vmem>>, vector<1x32xf32>
    %102 = vector.broadcast %101 : vector<1x32xf32> to vector<256x32xf32>
    %103 = arith.addf %100, %102 : vector<256x32xf32>
    %cst_85 = arith.constant 0.000000e+00 : f32
    %104 = vector.broadcast %cst_85 : f32 to vector<18x18x32xf32>
    %c0_86 = arith.constant 0 : index
    %c0_87 = arith.constant 0 : index
    %c0_88 = arith.constant 0 : index
    %105 = vector.load %arg13[%c0_86, %c0_87, %c0_88] : memref<18x18x32xf32, #tpu.memory_space<vmem>>, vector<18x18x32xf32>
    tpu.vector_store %arg13[%c0_86, %c0_87, %c0_88], %104 {strides = array<i32>} : memref<18x18x32xf32, #tpu.memory_space<vmem>>, vector<18x18x32xf32>,
    %106 = vector.shape_cast %103 : vector<256x32xf32> to vector<16x16x32xf32>
    %c1_89 = arith.constant 1 : index
    %c1_90 = arith.constant 1 : index
    %c0_91 = arith.constant 0 : index
    %107 = vector.load %arg13[%c1_89, %c1_90, %c0_91] : memref<18x18x32xf32, #tpu.memory_space<vmem>>, vector<16x16x32xf32>
    tpu.vector_store %arg13[%c1_89, %c1_90, %c0_91], %106 {strides = array<i32>} : memref<18x18x32xf32, #tpu.memory_space<vmem>>, vector<16x16x32xf32>,
    %cst_92 = arith.constant 0.000000e+00 : f32
    %108 = vector.broadcast %cst_92 : f32 to vector<3x256xf32>
    %c0_93 = arith.constant 0 : index
    %c0_94 = arith.constant 0 : index
    %c0_95 = arith.constant 0 : index
    %109 = vector.load %arg13[%c0_93, %c0_94, %c0_95] : memref<18x18x32xf32, #tpu.memory_space<vmem>>, vector<16x16x32xf32>
    %110 = vector.shape_cast %109 : vector<16x16x32xf32> to vector<256x32xf32>
    %111 = arith.truncf %110 : vector<256x32xf32> to vector<256x32xbf16>
    %c0_96 = arith.constant 0 : index
    %c0_97 = arith.constant 0 : index
    %c0_98 = arith.constant 0 : index
    %112 = vector.load %arg8[%c0_96, %c0_97, %c0_98] : memref<9x3x32xbf16, #tpu.memory_space<vmem>>, vector<1x3x32xbf16>
    %113 = vector.shape_cast %112 : vector<1x3x32xbf16> to vector<3x32xbf16>
    %cst_99 = arith.constant dense<0.000000e+00> : vector<3x256xf32>
    %114 = tpu.matmul %113, %111, %cst_99 {dimension_numbers = #tpu.dot_dimension_numbers<[1], [1], [0], [0], [0, 0, 1, 0], [], []>} : vector<3x32xbf16>, vector<256x32xbf16>, vector<3x256xf32> -> vector<3x256xf32>
    %115 = arith.addf %108, %114 : vector<3x256xf32>
    %c0_100 = arith.constant 0 : index
    %c1_101 = arith.constant 1 : index
    %c0_102 = arith.constant 0 : index
    %116 = vector.load %arg13[%c0_100, %c1_101, %c0_102] : memref<18x18x32xf32, #tpu.memory_space<vmem>>, vector<16x16x32xf32>
    %117 = vector.shape_cast %116 : vector<16x16x32xf32> to vector<256x32xf32>
    %118 = arith.truncf %117 : vector<256x32xf32> to vector<256x32xbf16>
    %c1_103 = arith.constant 1 : index
    %c0_104 = arith.constant 0 : index
    %c0_105 = arith.constant 0 : index
    %119 = vector.load %arg8[%c1_103, %c0_104, %c0_105] : memref<9x3x32xbf16, #tpu.memory_space<vmem>>, vector<1x3x32xbf16>
    %120 = vector.shape_cast %119 : vector<1x3x32xbf16> to vector<3x32xbf16>
    %cst_106 = arith.constant dense<0.000000e+00> : vector<3x256xf32>
    %121 = tpu.matmul %120, %118, %cst_106 {dimension_numbers = #tpu.dot_dimension_numbers<[1], [1], [0], [0], [0, 0, 1, 0], [], []>} : vector<3x32xbf16>, vector<256x32xbf16>, vector<3x256xf32> -> vector<3x256xf32>
    %122 = arith.addf %115, %121 : vector<3x256xf32>
    %c0_107 = arith.constant 0 : index
    %c2_108 = arith.constant 2 : index
    %c0_109 = arith.constant 0 : index
    %123 = vector.load %arg13[%c0_107, %c2_108, %c0_109] : memref<18x18x32xf32, #tpu.memory_space<vmem>>, vector<16x16x32xf32>
    %124 = vector.shape_cast %123 : vector<16x16x32xf32> to vector<256x32xf32>
    %125 = arith.truncf %124 : vector<256x32xf32> to vector<256x32xbf16>
    %c2_110 = arith.constant 2 : index
    %c0_111 = arith.constant 0 : index
    %c0_112 = arith.constant 0 : index
    %126 = vector.load %arg8[%c2_110, %c0_111, %c0_112] : memref<9x3x32xbf16, #tpu.memory_space<vmem>>, vector<1x3x32xbf16>
    %127 = vector.shape_cast %126 : vector<1x3x32xbf16> to vector<3x32xbf16>
    %cst_113 = arith.constant dense<0.000000e+00> : vector<3x256xf32>
    %128 = tpu.matmul %127, %125, %cst_113 {dimension_numbers = #tpu.dot_dimension_numbers<[1], [1], [0], [0], [0, 0, 1, 0], [], []>} : vector<3x32xbf16>, vector<256x32xbf16>, vector<3x256xf32> -> vector<3x256xf32>
    %129 = arith.addf %122, %128 : vector<3x256xf32>
    %c1_114 = arith.constant 1 : index
    %c0_115 = arith.constant 0 : index
    %c0_116 = arith.constant 0 : index
    %130 = vector.load %arg13[%c1_114, %c0_115, %c0_116] : memref<18x18x32xf32, #tpu.memory_space<vmem>>, vector<16x16x32xf32>
    %131 = vector.shape_cast %130 : vector<16x16x32xf32> to vector<256x32xf32>
    %132 = arith.truncf %131 : vector<256x32xf32> to vector<256x32xbf16>
    %c3_117 = arith.constant 3 : index
    %c0_118 = arith.constant 0 : index
    %c0_119 = arith.constant 0 : index
    %133 = vector.load %arg8[%c3_117, %c0_118, %c0_119] : memref<9x3x32xbf16, #tpu.memory_space<vmem>>, vector<1x3x32xbf16>
    %134 = vector.shape_cast %133 : vector<1x3x32xbf16> to vector<3x32xbf16>
    %cst_120 = arith.constant dense<0.000000e+00> : vector<3x256xf32>
    %135 = tpu.matmul %134, %132, %cst_120 {dimension_numbers = #tpu.dot_dimension_numbers<[1], [1], [0], [0], [0, 0, 1, 0], [], []>} : vector<3x32xbf16>, vector<256x32xbf16>, vector<3x256xf32> -> vector<3x256xf32>
    %136 = arith.addf %129, %135 : vector<3x256xf32>
    %c1_121 = arith.constant 1 : index
    %c1_122 = arith.constant 1 : index
    %c0_123 = arith.constant 0 : index
    %137 = vector.load %arg13[%c1_121, %c1_122, %c0_123] : memref<18x18x32xf32, #tpu.memory_space<vmem>>, vector<16x16x32xf32>
    %138 = vector.shape_cast %137 : vector<16x16x32xf32> to vector<256x32xf32>
    %139 = arith.truncf %138 : vector<256x32xf32> to vector<256x32xbf16>
    %c4_124 = arith.constant 4 : index
    %c0_125 = arith.constant 0 : index
    %c0_126 = arith.constant 0 : index
    %140 = vector.load %arg8[%c4_124, %c0_125, %c0_126] : memref<9x3x32xbf16, #tpu.memory_space<vmem>>, vector<1x3x32xbf16>
    %141 = vector.shape_cast %140 : vector<1x3x32xbf16> to vector<3x32xbf16>
    %cst_127 = arith.constant dense<0.000000e+00> : vector<3x256xf32>
    %142 = tpu.matmul %141, %139, %cst_127 {dimension_numbers = #tpu.dot_dimension_numbers<[1], [1], [0], [0], [0, 0, 1, 0], [], []>} : vector<3x32xbf16>, vector<256x32xbf16>, vector<3x256xf32> -> vector<3x256xf32>
    %143 = arith.addf %136, %142 : vector<3x256xf32>
    %c1_128 = arith.constant 1 : index
    %c2_129 = arith.constant 2 : index
    %c0_130 = arith.constant 0 : index
    %144 = vector.load %arg13[%c1_128, %c2_129, %c0_130] : memref<18x18x32xf32, #tpu.memory_space<vmem>>, vector<16x16x32xf32>
    %145 = vector.shape_cast %144 : vector<16x16x32xf32> to vector<256x32xf32>
    %146 = arith.truncf %145 : vector<256x32xf32> to vector<256x32xbf16>
    %c5_131 = arith.constant 5 : index
    %c0_132 = arith.constant 0 : index
    %c0_133 = arith.constant 0 : index
    %147 = vector.load %arg8[%c5_131, %c0_132, %c0_133] : memref<9x3x32xbf16, #tpu.memory_space<vmem>>, vector<1x3x32xbf16>
    %148 = vector.shape_cast %147 : vector<1x3x32xbf16> to vector<3x32xbf16>
    %cst_134 = arith.constant dense<0.000000e+00> : vector<3x256xf32>
    %149 = tpu.matmul %148, %146, %cst_134 {dimension_numbers = #tpu.dot_dimension_numbers<[1], [1], [0], [0], [0, 0, 1, 0], [], []>} : vector<3x32xbf16>, vector<256x32xbf16>, vector<3x256xf32> -> vector<3x256xf32>
    %150 = arith.addf %143, %149 : vector<3x256xf32>
    %c2_135 = arith.constant 2 : index
    %c0_136 = arith.constant 0 : index
    %c0_137 = arith.constant 0 : index
    %151 = vector.load %arg13[%c2_135, %c0_136, %c0_137] : memref<18x18x32xf32, #tpu.memory_space<vmem>>, vector<16x16x32xf32>
    %152 = vector.shape_cast %151 : vector<16x16x32xf32> to vector<256x32xf32>
    %153 = arith.truncf %152 : vector<256x32xf32> to vector<256x32xbf16>
    %c6_138 = arith.constant 6 : index
    %c0_139 = arith.constant 0 : index
    %c0_140 = arith.constant 0 : index
    %154 = vector.load %arg8[%c6_138, %c0_139, %c0_140] : memref<9x3x32xbf16, #tpu.memory_space<vmem>>, vector<1x3x32xbf16>
    %155 = vector.shape_cast %154 : vector<1x3x32xbf16> to vector<3x32xbf16>
    %cst_141 = arith.constant dense<0.000000e+00> : vector<3x256xf32>
    %156 = tpu.matmul %155, %153, %cst_141 {dimension_numbers = #tpu.dot_dimension_numbers<[1], [1], [0], [0], [0, 0, 1, 0], [], []>} : vector<3x32xbf16>, vector<256x32xbf16>, vector<3x256xf32> -> vector<3x256xf32>
    %157 = arith.addf %150, %156 : vector<3x256xf32>
    %c2_142 = arith.constant 2 : index
    %c1_143 = arith.constant 1 : index
    %c0_144 = arith.constant 0 : index
    %158 = vector.load %arg13[%c2_142, %c1_143, %c0_144] : memref<18x18x32xf32, #tpu.memory_space<vmem>>, vector<16x16x32xf32>
    %159 = vector.shape_cast %158 : vector<16x16x32xf32> to vector<256x32xf32>
    %160 = arith.truncf %159 : vector<256x32xf32> to vector<256x32xbf16>
    %c7_145 = arith.constant 7 : index
    %c0_146 = arith.constant 0 : index
    %c0_147 = arith.constant 0 : index
    %161 = vector.load %arg8[%c7_145, %c0_146, %c0_147] : memref<9x3x32xbf16, #tpu.memory_space<vmem>>, vector<1x3x32xbf16>
    %162 = vector.shape_cast %161 : vector<1x3x32xbf16> to vector<3x32xbf16>
    %cst_148 = arith.constant dense<0.000000e+00> : vector<3x256xf32>
    %163 = tpu.matmul %162, %160, %cst_148 {dimension_numbers = #tpu.dot_dimension_numbers<[1], [1], [0], [0], [0, 0, 1, 0], [], []>} : vector<3x32xbf16>, vector<256x32xbf16>, vector<3x256xf32> -> vector<3x256xf32>
    %164 = arith.addf %157, %163 : vector<3x256xf32>
    %c2_149 = arith.constant 2 : index
    %c2_150 = arith.constant 2 : index
    %c0_151 = arith.constant 0 : index
    %165 = vector.load %arg13[%c2_149, %c2_150, %c0_151] : memref<18x18x32xf32, #tpu.memory_space<vmem>>, vector<16x16x32xf32>
    %166 = vector.shape_cast %165 : vector<16x16x32xf32> to vector<256x32xf32>
    %167 = arith.truncf %166 : vector<256x32xf32> to vector<256x32xbf16>
    %c8_152 = arith.constant 8 : index
    %c0_153 = arith.constant 0 : index
    %c0_154 = arith.constant 0 : index
    %168 = vector.load %arg8[%c8_152, %c0_153, %c0_154] : memref<9x3x32xbf16, #tpu.memory_space<vmem>>, vector<1x3x32xbf16>
    %169 = vector.shape_cast %168 : vector<1x3x32xbf16> to vector<3x32xbf16>
    %cst_155 = arith.constant dense<0.000000e+00> : vector<3x256xf32>
    %170 = tpu.matmul %169, %167, %cst_155 {dimension_numbers = #tpu.dot_dimension_numbers<[1], [1], [0], [0], [0, 0, 1, 0], [], []>} : vector<3x32xbf16>, vector<256x32xbf16>, vector<3x256xf32> -> vector<3x256xf32>
    %171 = arith.addf %164, %170 : vector<3x256xf32>
    %c0_156 = arith.constant 0 : index
    %c0_157 = arith.constant 0 : index
    %172 = vector.load %arg9[%c0_156, %c0_157] : memref<3x1xf32, #tpu.memory_space<vmem>>, vector<3x1xf32>
    %173 = vector.broadcast %172 : vector<3x1xf32> to vector<3x256xf32>
    %174 = arith.addf %171, %173 : vector<3x256xf32>
    %c0_158 = arith.constant 0 : index
    %c0_159 = arith.constant 0 : index
    %c0_160 = arith.constant 0 : index
    %175 = vector.load %arg10[%c0_158, %c0_159, %c0_160] : memref<1x3x256xf32, #tpu.memory_space<vmem>>, vector<1x3x256xf32>
    %176 = vector.shape_cast %175 : vector<1x3x256xf32> to vector<3x256xf32>
    %177 = vector.shape_cast %174 : vector<3x256xf32> to vector<1x3x256xf32>
    tpu.vector_store %arg10[%c0_158, %c0_159, %c0_160], %177 {strides = array<i32>} : memref<1x3x256xf32, #tpu.memory_space<vmem>>, vector<1x3x256xf32>,
    return
  }
  func.func @transform_0(%arg0: i32) -> (i32, i32, i32, i32) {
    %c0_i32 = arith.constant 0 : i32
    %c0_i32_0 = arith.constant 0 : i32
    %c0_i32_1 = arith.constant 0 : i32
    %c0_i32_2 = arith.constant 0 : i32
    return %arg0, %c0_i32, %c0_i32_0, %c0_i32_1 : i32, i32, i32, i32
  }
  func.func @transform_1(%arg0: i32) -> (i32, i32, i32) {
    %c0_i32 = arith.constant 0 : i32
    %c0_i32_0 = arith.constant 0 : i32
    %c0_i32_1 = arith.constant 0 : i32
    %c0_i32_2 = arith.constant 0 : i32
    return %c0_i32, %c0_i32_0, %c0_i32_1 : i32, i32, i32
  }
  func.func @transform_2(%arg0: i32) -> (i32, i32) {
    %c0_i32 = arith.constant 0 : i32
    %c0_i32_0 = arith.constant 0 : i32
    %c0_i32_1 = arith.constant 0 : i32
    return %c0_i32, %c0_i32_0 : i32, i32
  }
  func.func @transform_3(%arg0: i32) -> (i32, i32) {
    %c0_i32 = arith.constant 0 : i32
    %c0_i32_0 = arith.constant 0 : i32
    %c0_i32_1 = arith.constant 0 : i32
    return %c0_i32, %c0_i32_0 : i32, i32
  }
  func.func @transform_4(%arg0: i32) -> (i32, i32) {
    %c0_i32 = arith.constant 0 : i32
    %c0_i32_0 = arith.constant 0 : i32
    %c0_i32_1 = arith.constant 0 : i32
    return %c0_i32, %c0_i32_0 : i32, i32
  }
  func.func @transform_5(%arg0: i32) -> (i32, i32) {
    %c0_i32 = arith.constant 0 : i32
    %c0_i32_0 = arith.constant 0 : i32
    %c0_i32_1 = arith.constant 0 : i32
    return %c0_i32, %c0_i32_0 : i32, i32
  }
  func.func @transform_6(%arg0: i32) -> (i32, i32) {
    %c0_i32 = arith.constant 0 : i32
    %c0_i32_0 = arith.constant 0 : i32
    %c0_i32_1 = arith.constant 0 : i32
    return %c0_i32, %c0_i32_0 : i32, i32
  }
  func.func @transform_7(%arg0: i32) -> (i32, i32, i32) {
    %c0_i32 = arith.constant 0 : i32
    %c0_i32_0 = arith.constant 0 : i32
    %c0_i32_1 = arith.constant 0 : i32
    %c0_i32_2 = arith.constant 0 : i32
    return %c0_i32, %c0_i32_0, %c0_i32_1 : i32, i32, i32
  }
  func.func @transform_8(%arg0: i32) -> (i32, i32) {
    %c0_i32 = arith.constant 0 : i32
    %c0_i32_0 = arith.constant 0 : i32
    %c0_i32_1 = arith.constant 0 : i32
    return %c0_i32, %c0_i32_0 : i32, i32
  }
  func.func @transform_9(%arg0: i32) -> (i32, i32, i32) {
    %c0_i32 = arith.constant 0 : i32
    %c0_i32_0 = arith.constant 0 : i32
    %c0_i32_1 = arith.constant 0 : i32
    return %arg0, %c0_i32, %c0_i32_0 : i32, i32, i32
  }
  func.func @transform_10(%arg0: i32) -> (i32, i32) {
    %c0_i32 = arith.constant 0 : i32
    %c0_i32_0 = arith.constant 0 : i32
    return %arg0, %c0_i32 : i32, i32
  }
  func.func @transform_11(%arg0: i32) -> (i32, i32, i32) {
    %c0_i32 = arith.constant 0 : i32
    %c0_i32_0 = arith.constant 0 : i32
    %c0_i32_1 = arith.constant 0 : i32
    return %arg0, %c0_i32, %c0_i32_0 : i32, i32, i32
  }
}

</mosaic_0001>

<llo_original>
// kernel: a_call__.1
$region0: #{a_call__.1}
  #allocation0 [shape = 'u32[]', space=smem, size = 0x4, offset = 0x4, fixed_abs, tag = 'smem constant byte address 0x4 - core index']
  #allocation1 [shape = 'u32[72,128]{1,0:T(1,128)}', space=vmem, size = 0x9000, scoped, tag = 'internal scratch']
  #allocation2 [shape = 'f32[18,18,32]{2,1,0:T(8,128)}', space=vmem, size = 0x36000, scoped, tag = 'scratch operand']
  %s0 = inlined_call_operand.vmem [shape: bf16[2,18,18,3], index: 0, kind: input, shape index: {}]
  %s1 = inlined_call_operand.vmem [shape: bf16[9,3,32], index: 1, kind: input, shape index: {}]
  %s2 = inlined_call_operand.vmem [shape: f32[1,32], index: 2, kind: input, shape index: {}]
  %s3 = inlined_call_operand.vmem [shape: bf16[128,32], index: 3, kind: input, shape index: {}]
  %s4 = inlined_call_operand.vmem [shape: f32[1,128], index: 4, kind: input, shape index: {}]
  %s5 = inlined_call_operand.vmem [shape: bf16[128,32], index: 5, kind: input, shape index: {}]
  %s6 = inlined_call_operand.vmem [shape: f32[1,32], index: 6, kind: input, shape index: {}]
  %s7 = inlined_call_operand.vmem [shape: bf16[9,3,32], index: 7, kind: input, shape index: {}]
  %s8 = inlined_call_operand.vmem [shape: f32[3,1], index: 8, kind: input, shape index: {}]
  %s9 = inlined_call_operand.vmem [shape: f32[2,3,256], index: 9, kind: output, shape index: {0}]
  %s10 = inlined_call_operand.vmem [shape: s32[512,1], index: 10, kind: output, shape index: {1}]
  %s11 = inlined_call_operand.vmem [shape: f32[2,1,1], index: 11, kind: output, shape index: {2}]
  %12 = xla_tuple %s9, %s10, %s11
  %s13 = sld [smem:[#allocation0]]
  $region85: #{a_call__.1} parent=0
    _
  %s15 = ssub.s32 1, %s13
  %s16 = scalar_select 0, %s15, %s13
  loop: start=0, step=1, limit=4
  $region2: #{a_call__.1} parent=0 // loop_pre_header
    _
  $region3: #{a_call__.1} parent=0 // loop_header
    %s18 = sphi 0, %s22
    %p19 = scmp.ge.s32.totalorder %s18, 4
    %s28 = sphi 0, %s30
    %s31 = sphi 0, %s28
    %s32 = sphi 0, %s31
    %s48 = sphi 0, %s32
    %s52 = sphi 0, %s52
    %s54 = sphi 0, %s52
    %s55 = sphi 0, %s54
    %s69 = sphi 0, %s55
    %s73 = sphi 0, %s73
    %s75 = sphi 0, %s73
    %s76 = sphi 0, %s75
    %s90 = sphi 0, %s76
    %s94 = sphi 0, %s94
    %s96 = sphi 0, %s94
    %s97 = sphi 0, %s96
    %s111 = sphi 0, %s97
    %s115 = sphi 0, %s115
    %s117 = sphi 0, %s115
    %s118 = sphi 0, %s117
    %s132 = sphi 0, %s118
    %s136 = sphi 0, %s136
    %s138 = sphi 0, %s136
    %s139 = sphi 0, %s138
    %s153 = sphi 0, %s139
    %s157 = sphi 0, %s157
    %s159 = sphi 0, %s157
    %s160 = sphi 0, %s159
    %s174 = sphi 0, %s160
    %s178 = sphi 0, %s178
    %s180 = sphi 0, %s178
    %s181 = sphi 0, %s180
    %s195 = sphi 0, %s181
    %s199 = sphi 0, %s199
    %s201 = sphi 0, %s199
    %s202 = sphi 0, %s201
    %s216 = sphi 0, %s202
    %s222 = sphi 0, %s224
    %s225 = sphi 0, %s222
    %s226 = sphi 0, %s225
    %s242 = sphi 0, %s226
    %s248 = sphi 0, %s250
    %s251 = sphi 0, %s248
    %s252 = sphi 0, %s251
    %s268 = sphi 0, %s252
    %s274 = sphi 0, %s276
    %s277 = sphi 0, %s274
    %s278 = sphi 0, %s277
    %s294 = sphi 0, %s278
  $region4: #{a_call__.1} parent=0 // loop_header_branch
    %21 = sbr.rel (%p19) target = $region8
  $region5: #{a_call__.1} parent=0 // loop_body
    %s23 = ssub.s32 %s18, 1
    %s24 = ssub.s32 %s18, 2
    %s25 = sadd.s32 %s18, 1
    %s26 = ssub.s32 %s18, %s25
    %p27 = scmp.eq.s32.totalorder %s26, 0
    %s29 = sadd.s32 %s28, 1
    %s30 = scalar_select %p27, %s28, %s29
    %p33 = pneg %p27
    %p34 = scmp.eq.s32.totalorder %s18, 1
    %p35 = por %p33, %p34
    %p36 = scmp.ne.s32.totalorder %s28, %s31
    %p37 = scmp.eq.s32.totalorder %s18, 0
    %p38 = por %p36, %p37
    %p39 = scmp.ne.s32.totalorder %s28, %s31
    %p40 = scmp.eq.s32.totalorder %s23, 1
    %p41 = por %p39, %p40
    %p42 = scmp.ne.s32.totalorder %s31, %s32
    %p43 = scmp.eq.s32.totalorder %s23, 0
    %p44 = por %p42, %p43
    %p45 = scmp.ne.s32.totalorder %s31, %s32
    %p46 = scmp.eq.s32.totalorder %s24, 1
    %p47 = por %p45, %p46
    %p49 = scmp.ne.s32.totalorder %s32, %s48
    %p50 = scmp.eq.s32.totalorder %s24, 0
    %p51 = por %p49, %p50
    %s53 = sadd.s32 %s52, 1
    %p56 = scmp.eq.s32.totalorder %s18, 1
    %p57 = scmp.ne.s32.totalorder %s52, %s54
    %p58 = scmp.eq.s32.totalorder %s18, 0
    %p59 = por %p57, %p58
    %p60 = scmp.ne.s32.totalorder %s52, %s54
    %p61 = scmp.eq.s32.totalorder %s23, 1
    %p62 = por %p60, %p61
    %p63 = scmp.ne.s32.totalorder %s54, %s55
    %p64 = scmp.eq.s32.totalorder %s23, 0
    %p65 = por %p63, %p64
    %p66 = scmp.ne.s32.totalorder %s54, %s55
    %p67 = scmp.eq.s32.totalorder %s24, 1
    %p68 = por %p66, %p67
    %p70 = scmp.ne.s32.totalorder %s55, %s69
    %p71 = scmp.eq.s32.totalorder %s24, 0
    %p72 = por %p70, %p71
    %s74 = sadd.s32 %s73, 1
    %p77 = scmp.eq.s32.totalorder %s18, 1
    %p78 = scmp.ne.s32.totalorder %s73, %s75
    %p79 = scmp.eq.s32.totalorder %s18, 0
    %p80 = por %p78, %p79
    %p81 = scmp.ne.s32.totalorder %s73, %s75
    %p82 = scmp.eq.s32.totalorder %s23, 1
    %p83 = por %p81, %p82
    %p84 = scmp.ne.s32.totalorder %s75, %s76
    %p85 = scmp.eq.s32.totalorder %s23, 0
    %p86 = por %p84, %p85
    %p87 = scmp.ne.s32.totalorder %s75, %s76
    %p88 = scmp.eq.s32.totalorder %s24, 1
    %p89 = por %p87, %p88
    %p91 = scmp.ne.s32.totalorder %s76, %s90
    %p92 = scmp.eq.s32.totalorder %s24, 0
    %p93 = por %p91, %p92
    %s95 = sadd.s32 %s94, 1
    %p98 = scmp.eq.s32.totalorder %s18, 1
    %p99 = scmp.ne.s32.totalorder %s94, %s96
    %p100 = scmp.eq.s32.totalorder %s18, 0
    %p101 = por %p99, %p100
    %p102 = scmp.ne.s32.totalorder %s94, %s96
    %p103 = scmp.eq.s32.totalorder %s23, 1
    %p104 = por %p102, %p103
    %p105 = scmp.ne.s32.totalorder %s96, %s97
    %p106 = scmp.eq.s32.totalorder %s23, 0
    %p107 = por %p105, %p106
    %p108 = scmp.ne.s32.totalorder %s96, %s97
    %p109 = scmp.eq.s32.totalorder %s24, 1
    %p110 = por %p108, %p109
    %p112 = scmp.ne.s32.totalorder %s97, %s111
    %p113 = scmp.eq.s32.totalorder %s24, 0
    %p114 = por %p112, %p113
    %s116 = sadd.s32 %s115, 1
    %p119 = scmp.eq.s32.totalorder %s18, 1
    %p120 = scmp.ne.s32.totalorder %s115, %s117
    %p121 = scmp.eq.s32.totalorder %s18, 0
    %p122 = por %p120, %p121
    %p123 = scmp.ne.s32.totalorder %s115, %s117
    %p124 = scmp.eq.s32.totalorder %s23, 1
    %p125 = por %p123, %p124
    %p126 = scmp.ne.s32.totalorder %s117, %s118
    %p127 = scmp.eq.s32.totalorder %s23, 0
    %p128 = por %p126, %p127
    %p129 = scmp.ne.s32.totalorder %s117, %s118
    %p130 = scmp.eq.s32.totalorder %s24, 1
    %p131 = por %p129, %p130
    %p133 = scmp.ne.s32.totalorder %s118, %s132
    %p134 = scmp.eq.s32.totalorder %s24, 0
    %p135 = por %p133, %p134
    %s137 = sadd.s32 %s136, 1
    %p140 = scmp.eq.s32.totalorder %s18, 1
    %p141 = scmp.ne.s32.totalorder %s136, %s138
    %p142 = scmp.eq.s32.totalorder %s18, 0
    %p143 = por %p141, %p142
    %p144 = scmp.ne.s32.totalorder %s136, %s138
    %p145 = scmp.eq.s32.totalorder %s23, 1
    %p146 = por %p144, %p145
    %p147 = scmp.ne.s32.totalorder %s138, %s139
    %p148 = scmp.eq.s32.totalorder %s23, 0
    %p149 = por %p147, %p148
    %p150 = scmp.ne.s32.totalorder %s138, %s139
    %p151 = scmp.eq.s32.totalorder %s24, 1
    %p152 = por %p150, %p151
    %p154 = scmp.ne.s32.totalorder %s139, %s153
    %p155 = scmp.eq.s32.totalorder %s24, 0
    %p156 = por %p154, %p155
    %s158 = sadd.s32 %s157, 1
    %p161 = scmp.eq.s32.totalorder %s18, 1
    %p162 = scmp.ne.s32.totalorder %s157, %s159
    %p163 = scmp.eq.s32.totalorder %s18, 0
    %p164 = por %p162, %p163
    %p165 = scmp.ne.s32.totalorder %s157, %s159
    %p166 = scmp.eq.s32.totalorder %s23, 1
    %p167 = por %p165, %p166
    %p168 = scmp.ne.s32.totalorder %s159, %s160
    %p169 = scmp.eq.s32.totalorder %s23, 0
    %p170 = por %p168, %p169
    %p171 = scmp.ne.s32.totalorder %s159, %s160
    %p172 = scmp.eq.s32.totalorder %s24, 1
    %p173 = por %p171, %p172
    %p175 = scmp.ne.s32.totalorder %s160, %s174
    %p176 = scmp.eq.s32.totalorder %s24, 0
    %p177 = por %p175, %p176
    %s179 = sadd.s32 %s178, 1
    %p182 = scmp.eq.s32.totalorder %s18, 1
    %p183 = scmp.ne.s32.totalorder %s178, %s180
    %p184 = scmp.eq.s32.totalorder %s18, 0
    %p185 = por %p183, %p184
    %p186 = scmp.ne.s32.totalorder %s178, %s180
    %p187 = scmp.eq.s32.totalorder %s23, 1
    %p188 = por %p186, %p187
    %p189 = scmp.ne.s32.totalorder %s180, %s181
    %p190 = scmp.eq.s32.totalorder %s23, 0
    %p191 = por %p189, %p190
    %p192 = scmp.ne.s32.totalorder %s180, %s181
    %p193 = scmp.eq.s32.totalorder %s24, 1
    %p194 = por %p192, %p193
    %p196 = scmp.ne.s32.totalorder %s181, %s195
    %p197 = scmp.eq.s32.totalorder %s24, 0
    %p198 = por %p196, %p197
    %s200 = sadd.s32 %s199, 1
    %p203 = scmp.eq.s32.totalorder %s18, 1
    %p204 = scmp.ne.s32.totalorder %s199, %s201
    %p205 = scmp.eq.s32.totalorder %s18, 0
    %p206 = por %p204, %p205
    %p207 = scmp.ne.s32.totalorder %s199, %s201
    %p208 = scmp.eq.s32.totalorder %s23, 1
    %p209 = por %p207, %p208
    %p210 = scmp.ne.s32.totalorder %s201, %s202
    %p211 = scmp.eq.s32.totalorder %s23, 0
    %p212 = por %p210, %p211
    %p213 = scmp.ne.s32.totalorder %s201, %s202
    %p214 = scmp.eq.s32.totalorder %s24, 1
    %p215 = por %p213, %p214
    %p217 = scmp.ne.s32.totalorder %s202, %s216
    %p218 = scmp.eq.s32.totalorder %s24, 0
    %p219 = por %p217, %p218
    %s220 = ssub.s32 %s18, %s25
    %p221 = scmp.eq.s32.totalorder %s220, 0
    %s223 = sadd.s32 %s222, 1
    %s224 = scalar_select %p221, %s222, %s223
    %p227 = pneg %p221
    %p228 = scmp.eq.s32.totalorder %s18, 1
    %p229 = por %p227, %p228
    %p230 = scmp.ne.s32.totalorder %s222, %s225
    %p231 = scmp.eq.s32.totalorder %s18, 0
    %p232 = por %p230, %p231
    %p233 = scmp.ne.s32.totalorder %s222, %s225
    %p234 = scmp.eq.s32.totalorder %s23, 1
    %p235 = por %p233, %p234
    %p236 = scmp.ne.s32.totalorder %s225, %s226
    %p237 = scmp.eq.s32.totalorder %s23, 0
    %p238 = por %p236, %p237
    %p239 = scmp.ne.s32.totalorder %s225, %s226
    %p240 = scmp.eq.s32.totalorder %s24, 1
    %p241 = por %p239, %p240
    %p243 = scmp.ne.s32.totalorder %s226, %s242
    %p244 = scmp.eq.s32.totalorder %s24, 0
    %p245 = por %p243, %p244
    %s246 = ssub.s32 %s18, %s25
    %p247 = scmp.eq.s32.totalorder %s246, 0
    %s249 = sadd.s32 %s248, 1
    %s250 = scalar_select %p247, %s248, %s249
    %p253 = pneg %p247
    %p254 = scmp.eq.s32.totalorder %s18, 1
    %p255 = por %p253, %p254
    %p256 = scmp.ne.s32.totalorder %s248, %s251
    %p257 = scmp.eq.s32.totalorder %s18, 0
    %p258 = por %p256, %p257
    %p259 = scmp.ne.s32.totalorder %s248, %s251
    %p260 = scmp.eq.s32.totalorder %s23, 1
    %p261 = por %p259, %p260
    %p262 = scmp.ne.s32.totalorder %s251, %s252
    %p263 = scmp.eq.s32.totalorder %s23, 0
    %p264 = por %p262, %p263
    %p265 = scmp.ne.s32.totalorder %s251, %s252
    %p266 = scmp.eq.s32.totalorder %s24, 1
    %p267 = por %p265, %p266
    %p269 = scmp.ne.s32.totalorder %s252, %s268
    %p270 = scmp.eq.s32.totalorder %s24, 0
    %p271 = por %p269, %p270
    %s272 = ssub.s32 %s18, %s25
    %p273 = scmp.eq.s32.totalorder %s272, 0
    %s275 = sadd.s32 %s274, 1
    %s276 = scalar_select %p273, %s274, %s275
    %p279 = pneg %p273
    %p280 = scmp.eq.s32.totalorder %s18, 1
    %p281 = por %p279, %p280
    %p282 = scmp.ne.s32.totalorder %s274, %s277
    %p283 = scmp.eq.s32.totalorder %s18, 0
    %p284 = por %p282, %p283
    %p285 = scmp.ne.s32.totalorder %s274, %s277
    %p286 = scmp.eq.s32.totalorder %s23, 1
    %p287 = por %p285, %p286
    %p288 = scmp.ne.s32.totalorder %s277, %s278
    %p289 = scmp.eq.s32.totalorder %s23, 0
    %p290 = por %p288, %p289
    %p291 = scmp.ne.s32.totalorder %s277, %s278
    %p292 = scmp.eq.s32.totalorder %s24, 1
    %p293 = por %p291, %p292
    %p295 = scmp.ne.s32.totalorder %s278, %s294
    %p296 = scmp.eq.s32.totalorder %s24, 0
    %p297 = por %p295, %p296
    %p298 = scmp.le.s32.totalorder 1, %s18
    %p299 = scmp.lt.s32.totalorder %s18, 3
    %p300 = pnand %p298, %p299
    %p301 = pneg %p300
    // Predicated region
    $region9: #{a_call__.1} parent=5 // pred_check
      _
    $region10: #{a_call__.1} parent=5 // pred_check_branch
      %303 = sbr.rel (%p300) target = $region12
    $region11: #{a_call__.1} parent=5 // pred_region
      %s304 = ssub.s32 %s18, 1
      // Predicated region
      $region13: #{a_call__.1} parent=11 // pred_check
        %p305 = pneg %p65
      $region14: #{a_call__.1} parent=11 // pred_check_branch
        %307 = sbr.rel (%p305) target = $region16
      $region15: #{a_call__.1} parent=11 // pred_region
        _
      $region16: #{a_call__.1} parent=11 // pred_fallthru
        _
      // Predicated region
      $region17: #{a_call__.1} parent=11 // pred_check
        %p308 = pneg %p86
      $region18: #{a_call__.1} parent=11 // pred_check_branch
        %310 = sbr.rel (%p308) target = $region20
      $region19: #{a_call__.1} parent=11 // pred_region
        _
      $region20: #{a_call__.1} parent=11 // pred_fallthru
        _
      // Predicated region
      $region21: #{a_call__.1} parent=11 // pred_check
        %p311 = pneg %p107
      $region22: #{a_call__.1} parent=11 // pred_check_branch
        %313 = sbr.rel (%p311) target = $region24
      $region23: #{a_call__.1} parent=11 // pred_region
        _
      $region24: #{a_call__.1} parent=11 // pred_fallthru
        _
      // Predicated region
      $region25: #{a_call__.1} parent=11 // pred_check
        %p314 = pneg %p128
      $region26: #{a_call__.1} parent=11 // pred_check_branch
        %316 = sbr.rel (%p314) target = $region28
      $region27: #{a_call__.1} parent=11 // pred_region
        _
      $region28: #{a_call__.1} parent=11 // pred_fallthru
        _
      // Predicated region
      $region29: #{a_call__.1} parent=11 // pred_check
        %p317 = pneg %p149
      $region30: #{a_call__.1} parent=11 // pred_check_branch
        %319 = sbr.rel (%p317) target = $region32
      $region31: #{a_call__.1} parent=11 // pred_region
        _
      $region32: #{a_call__.1} parent=11 // pred_fallthru
        _
      // Predicated region
      $region33: #{a_call__.1} parent=11 // pred_check
        %p320 = pneg %p170
      $region34: #{a_call__.1} parent=11 // pred_check_branch
        %322 = sbr.rel (%p320) target = $region36
      $region35: #{a_call__.1} parent=11 // pred_region
        _
      $region36: #{a_call__.1} parent=11 // pred_fallthru
        _
      // Predicated region
      $region37: #{a_call__.1} parent=11 // pred_check
        %p323 = pneg %p191
      $region38: #{a_call__.1} parent=11 // pred_check_branch
        %325 = sbr.rel (%p323) target = $region40
      $region39: #{a_call__.1} parent=11 // pred_region
        _
      $region40: #{a_call__.1} parent=11 // pred_fallthru
        _
      // Predicated region
      $region41: #{a_call__.1} parent=11 // pred_check
        %p326 = pneg %p212
      $region42: #{a_call__.1} parent=11 // pred_check_branch
        %328 = sbr.rel (%p326) target = $region44
      $region43: #{a_call__.1} parent=11 // pred_region
        _
      $region44: #{a_call__.1} parent=11 // pred_fallthru
        _
    $region12: #{a_call__.1} parent=5 // pred_fallthru
      _
    %p329 = scmp.lt.s32.totalorder %s18, 2
    // Predicated region
    $region45: #{a_call__.1} parent=5 // pred_check
      %p330 = pneg %p329
    $region46: #{a_call__.1} parent=5 // pred_check_branch
      %332 = sbr.rel (%p330) target = $region48
    $region47: #{a_call__.1} parent=5 // pred_region
      // Predicated region
      $region49: #{a_call__.1} parent=47 // pred_check
        %p333 = pneg %p38
      $region50: #{a_call__.1} parent=47 // pred_check_branch
        %335 = sbr.rel (%p333) target = $region52
      $region51: #{a_call__.1} parent=47 // pred_region
        %p336 = scmp.lt.s32.totalorder %s18, 1
        %s337 = scalar_select %p336, %s18, 1
        %s338 = smul.addr %s337, 54
        %s339 = smul.addr %s338, 4
        %s340 = scalar_lea.vmem %s0, %s339
      $region52: #{a_call__.1} parent=47 // pred_fallthru
        _
    $region48: #{a_call__.1} parent=5 // pred_fallthru
      _
    %p341 = scmp.le.s32.totalorder 1, %s18
    %p342 = scmp.lt.s32.totalorder %s18, 3
    %p343 = pnand %p341, %p342
    %p344 = pneg %p343
    // Predicated region
    $region53: #{a_call__.1} parent=5 // pred_check
      _
    $region54: #{a_call__.1} parent=5 // pred_check_branch
      %346 = sbr.rel (%p343) target = $region56
    $region55: #{a_call__.1} parent=5 // pred_region
      %s347 = ssub.s32 %s18, 1
      %p348 = scmp.lt.s32.totalorder %s23, 1
      %s349 = scalar_select %p348, %s23, 1
      %s350 = smul.addr %s349, 54
      %s351 = smul.addr %s350, 4
      %s352 = scalar_lea.vmem %s0, %s351
      %p353 = pneg %p44
      %p354 = pneg %p41
      %p355 = pneg %p65
      %p356 = pneg %p62
      %p357 = pneg %p86
      %p358 = pneg %p83
      %p359 = pneg %p107
      %p360 = pneg %p104
      %p361 = pneg %p128
      %p362 = pneg %p125
      %p363 = pneg %p149
      %p364 = pneg %p146
      %p365 = pneg %p170
      %p366 = pneg %p167
      %p367 = pneg %p191
      %p368 = pneg %p188
      %p369 = pneg %p212
      %p370 = pneg %p209
      %p371 = pneg %p238
      %p372 = pneg %p235
      %p373 = scmp.lt.s32.totalorder %s23, 1
      %s374 = scalar_select %p373, %s23, 1
      %s375 = smul.addr %s374, 2
      %s376 = smul.addr %s375, 4
      %s377 = scalar_lea.vmem %s9, %s376
      %p378 = pneg %p264
      %p379 = pneg %p261
      %s380 = smul.u32 32, %s23
      %p381 = scmp.lt.s32.totalorder %s380, 63
      %s382 = scalar_select %p381, %s380, 63
      %s383 = smul.addr %s382, 8
      %s384 = scalar_lea.vmem %s10, %s383
      %p385 = pneg %p290
      %p386 = pneg %p287
      %p387 = scmp.lt.s32.totalorder %s23, 1
      %s388 = scalar_select %p387, %s23, 1
      %s389 = scalar_lea.vmem %s11, %s388
      %p390 = scmp.lt.s32.totalorder %s23, 1
      %s391 = scalar_select %p390, %s23, 1
      %s392 = smul.addr %s391, 54
      %s393 = smul.addr %s392, 4
      %s394 = scalar_lea.vmem %s0, %s393
      %p395 = scmp.lt.s32.totalorder %s23, 1
      %s396 = scalar_select %p395, %s23, 1
      %s397 = smul.addr %s396, 2
      %s398 = smul.addr %s397, 4
      %s399 = scalar_lea.vmem %s9, %s398
      %s400 = smul.u32 32, %s23
      %p401 = scmp.lt.s32.totalorder %s400, 63
      %s402 = scalar_select %p401, %s400, 63
      %s403 = smul.addr %s402, 8
      %s404 = scalar_lea.vmem %s10, %s403
      %s405 = smul.u32 32, %s23
      %p406 = scmp.lt.s32.totalorder %s23, 1
      %s407 = scalar_select %p406, %s23, 1
      %s408 = scalar_lea.vmem %s11, %s407
      %v410 = vld [vmem:[%s394] sm:$0xf]
      %v411 = vld [vmem:[%s394 + $0x4] sm:$0xf]
      %v412 = vld [vmem:[%s394 + $0xc] sm:$0xf]
      %v413 = vld [vmem:[%s394 + $0x10] sm:$0xf]
      %v414 = vld [vmem:[%s394 + $0x18] sm:$0xf]
      %v415 = vld [vmem:[%s394 + $0x1c] sm:$0xf]
      %v416 = vld [vmem:[%s394 + $0x24] sm:$0xf]
      %v417 = vld [vmem:[%s394 + $0x28] sm:$0xf]
      %v418 = vld [vmem:[%s394 + $0x30] sm:$0xf]
      %v419 = vld [vmem:[%s394 + $0x34] sm:$0xf]
      %v420 = vld [vmem:[%s394 + $0x3c] sm:$0xf]
      %v421 = vld [vmem:[%s394 + $0x40] sm:$0xf]
      %v422 = vld [vmem:[%s394 + $0x48] sm:$0xf]
      %v423 = vld [vmem:[%s394 + $0x4c] sm:$0xf]
      %v424 = vld [vmem:[%s394 + $0x54] sm:$0xf]
      %v425 = vld [vmem:[%s394 + $0x58] sm:$0xf]
      %v426 = vld [vmem:[%s394 + $0x60] sm:$0xf]
      %v427 = vld [vmem:[%s394 + $0x64] sm:$0xf]
      %v428 = vld [vmem:[%s394 + $0x6c] sm:$0xf]
      %v429 = vld [vmem:[%s394 + $0x70] sm:$0xf]
      %v430 = vld [vmem:[%s394 + $0x78] sm:$0xf]
      %v431 = vld [vmem:[%s394 + $0x7c] sm:$0xf]
      %v432 = vld [vmem:[%s394 + $0x84] sm:$0xf]
      %v433 = vld [vmem:[%s394 + $0x88] sm:$0xf]
      %v434 = vld [vmem:[%s394 + $0x90] sm:$0xf]
      %v435 = vld [vmem:[%s394 + $0x94] sm:$0xf]
      %v436 = vld [vmem:[%s394 + $0x9c] sm:$0xf]
      %v437 = vld [vmem:[%s394 + $0xa0] sm:$0xf]
      %v438 = vld [vmem:[%s394 + $0xa8] sm:$0xf]
      %v439 = vld [vmem:[%s394 + $0xac] sm:$0xf]
      %v440 = vld [vmem:[%s394 + $0xb4] sm:$0xf]
      %v441 = vld [vmem:[%s394 + $0xb8] sm:$0xf]
      %v442 = vld [vmem:[%s1] sm:$0x3]
      %v443 = vld [vmem:[%s394 + $0x8] sm:$0x1]
      %v444 = vld [vmem:[%s394 + $0x14] sm:$0x1]
      %v445 = vld [vmem:[%s394 + $0x20] sm:$0x1]
      %v446 = vld [vmem:[%s394 + $0x2c] sm:$0x1]
      %v447 = vld [vmem:[%s394 + $0x38] sm:$0x1]
      %v448 = vld [vmem:[%s394 + $0x44] sm:$0x1]
      %v449 = vld [vmem:[%s394 + $0x50] sm:$0x1]
      %v450 = vld [vmem:[%s394 + $0x5c] sm:$0x1]
      %v451 = vld [vmem:[%s394 + $0x68] sm:$0x1]
      %v452 = vld [vmem:[%s394 + $0x74] sm:$0x1]
      %v453 = vld [vmem:[%s394 + $0x80] sm:$0x1]
      %v454 = vld [vmem:[%s394 + $0x8c] sm:$0x1]
      %v455 = vld [vmem:[%s394 + $0x98] sm:$0x1]
      %v456 = vld [vmem:[%s394 + $0xa4] sm:$0x1]
      %v457 = vld [vmem:[%s394 + $0xb0] sm:$0x1]
      %v458 = vld [vmem:[%s394 + $0xbc] sm:$0x1]
      %vm459 = vsmask.f32 3328
      %vm460 = vsmask.f32 7440
      %vm461 = vmor %vm459, %vm460
      %v463 = vshrl.u32 %v410, 16
      %v465 = vrot.slane %v463, 4
      %v466 = vshll.u32 %v410, 16
      %v468 = vrot.slane %v466, 5
      %v469 = vor.u32 %v465, %v468
      %v470 = vrot.slane %v469, 4
      %v472 = vshll.u32 %v411, 16
      %v474 = vrot.slane %v472, 5
      %v475 = vsel %vm461, %v470, %v474
      %v476 = vshrl.u32 %v411, 16
      %v478 = vrot.slane %v476, 4
      %v479 = vor.u32 %v478, %v474
      %v480 = vrot.slane %v479, 4
      %v482 = vshll.u32 %v443, 16
      %v484 = vrot.slane %v482, 5
      %v485 = vsel %vm461, %v480, %v484
      %v487 = vshrl.u32 %v412, 16
      %v489 = vrot.slane %v487, 4
      %v490 = vshll.u32 %v412, 16
      %v492 = vrot.slane %v490, 5
      %v493 = vor.u32 %v489, %v492
      %v494 = vrot.slane %v493, 4
      %v496 = vshll.u32 %v413, 16
      %v498 = vrot.slane %v496, 5
      %v499 = vsel %vm461, %v494, %v498
      %v500 = vshrl.u32 %v413, 16
      %v502 = vrot.slane %v500, 4
      %v503 = vor.u32 %v502, %v498
      %v504 = vrot.slane %v503, 4
      %v506 = vshll.u32 %v444, 16
      %v508 = vrot.slane %v506, 5
      %v509 = vsel %vm461, %v504, %v508
      %v511 = vshrl.u32 %v414, 16
      %v513 = vrot.slane %v511, 4
      %v514 = vshll.u32 %v414, 16
      %v516 = vrot.slane %v514, 5
      %v517 = vor.u32 %v513, %v516
      %v518 = vrot.slane %v517, 4
      %v520 = vshll.u32 %v415, 16
      %v522 = vrot.slane %v520, 5
      %v523 = vsel %vm461, %v518, %v522
      %v524 = vshrl.u32 %v415, 16
      %v526 = vrot.slane %v524, 4
      %v527 = vor.u32 %v526, %v522
      %v528 = vrot.slane %v527, 4
      %v530 = vshll.u32 %v445, 16
      %v532 = vrot.slane %v530, 5
      %v533 = vsel %vm461, %v528, %v532
      %v535 = vshrl.u32 %v416, 16
      %v537 = vrot.slane %v535, 4
      %v538 = vshll.u32 %v416, 16
      %v540 = vrot.slane %v538, 5
      %v541 = vor.u32 %v537, %v540
      %v542 = vrot.slane %v541, 4
      %v544 = vshll.u32 %v417, 16
      %v546 = vrot.slane %v544, 5
      %v547 = vsel %vm461, %v542, %v546
      %v548 = vshrl.u32 %v417, 16
      %v550 = vrot.slane %v548, 4
      %v551 = vor.u32 %v550, %v546
      %v552 = vrot.slane %v551, 4
      %v554 = vshll.u32 %v446, 16
      %v556 = vrot.slane %v554, 5
      %v557 = vsel %vm461, %v552, %v556
      %v559 = vshrl.u32 %v418, 16
      %v561 = vrot.slane %v559, 4
      %v562 = vshll.u32 %v418, 16
      %v564 = vrot.slane %v562, 5
      %v565 = vor.u32 %v561, %v564
      %v566 = vrot.slane %v565, 4
      %v568 = vshll.u32 %v419, 16
      %v570 = vrot.slane %v568, 5
      %v571 = vsel %vm461, %v566, %v570
      %v572 = vshrl.u32 %v419, 16
      %v574 = vrot.slane %v572, 4
      %v575 = vor.u32 %v574, %v570
      %v576 = vrot.slane %v575, 4
      %v578 = vshll.u32 %v447, 16
      %v580 = vrot.slane %v578, 5
      %v581 = vsel %vm461, %v576, %v580
      %v583 = vshrl.u32 %v420, 16
      %v585 = vrot.slane %v583, 4
      %v586 = vshll.u32 %v420, 16
      %v588 = vrot.slane %v586, 5
      %v589 = vor.u32 %v585, %v588
      %v590 = vrot.slane %v589, 4
      %v592 = vshll.u32 %v421, 16
      %v594 = vrot.slane %v592, 5
      %v595 = vsel %vm461, %v590, %v594
      %v596 = vshrl.u32 %v421, 16
      %v598 = vrot.slane %v596, 4
      %v599 = vor.u32 %v598, %v594
      %v600 = vrot.slane %v599, 4
      %v602 = vshll.u32 %v448, 16
      %v604 = vrot.slane %v602, 5
      %v605 = vsel %vm461, %v600, %v604
      %v607 = vshrl.u32 %v422, 16
      %v609 = vrot.slane %v607, 4
      %v610 = vshll.u32 %v422, 16
      %v612 = vrot.slane %v610, 5
      %v613 = vor.u32 %v609, %v612
      %v614 = vrot.slane %v613, 4
      %v616 = vshll.u32 %v423, 16
      %v618 = vrot.slane %v616, 5
      %v619 = vsel %vm461, %v614, %v618
      %v620 = vshrl.u32 %v423, 16
      %v622 = vrot.slane %v620, 4
      %v623 = vor.u32 %v622, %v618
      %v624 = vrot.slane %v623, 4
      %v626 = vshll.u32 %v449, 16
      %v628 = vrot.slane %v626, 5
      %v629 = vsel %vm461, %v624, %v628
      %v631 = vshrl.u32 %v424, 16
      %v633 = vrot.slane %v631, 4
      %v634 = vshll.u32 %v424, 16
      %v636 = vrot.slane %v634, 5
      %v637 = vor.u32 %v633, %v636
      %v638 = vrot.slane %v637, 4
      %v640 = vshll.u32 %v425, 16
      %v642 = vrot.slane %v640, 5
      %v643 = vsel %vm461, %v638, %v642
      %v644 = vshrl.u32 %v425, 16
      %v646 = vrot.slane %v644, 4
      %v647 = vor.u32 %v646, %v642
      %v648 = vrot.slane %v647, 4
      %v650 = vshll.u32 %v450, 16
      %v652 = vrot.slane %v650, 5
      %v653 = vsel %vm461, %v648, %v652
      %v655 = vshrl.u32 %v426, 16
      %v657 = vrot.slane %v655, 4
      %v658 = vshll.u32 %v426, 16
      %v660 = vrot.slane %v658, 5
      %v661 = vor.u32 %v657, %v660
      %v662 = vrot.slane %v661, 4
      %v664 = vshll.u32 %v427, 16
      %v666 = vrot.slane %v664, 5
      %v667 = vsel %vm461, %v662, %v666
      %v668 = vshrl.u32 %v427, 16
      %v670 = vrot.slane %v668, 4
      %v671 = vor.u32 %v670, %v666
      %v672 = vrot.slane %v671, 4
      %v674 = vshll.u32 %v451, 16
      %v676 = vrot.slane %v674, 5
      %v677 = vsel %vm461, %v672, %v676
      %v679 = vshrl.u32 %v428, 16
      %v681 = vrot.slane %v679, 4
      %v682 = vshll.u32 %v428, 16
      %v684 = vrot.slane %v682, 5
      %v685 = vor.u32 %v681, %v684
      %v686 = vrot.slane %v685, 4
      %v688 = vshll.u32 %v429, 16
      %v690 = vrot.slane %v688, 5
      %v691 = vsel %vm461, %v686, %v690
      %v692 = vshrl.u32 %v429, 16
      %v694 = vrot.slane %v692, 4
      %v695 = vor.u32 %v694, %v690
      %v696 = vrot.slane %v695, 4
      %v698 = vshll.u32 %v452, 16
      %v700 = vrot.slane %v698, 5
      %v701 = vsel %vm461, %v696, %v700
      %v703 = vshrl.u32 %v430, 16
      %v705 = vrot.slane %v703, 4
      %v706 = vshll.u32 %v430, 16
      %v708 = vrot.slane %v706, 5
      %v709 = vor.u32 %v705, %v708
      %v710 = vrot.slane %v709, 4
      %v712 = vshll.u32 %v431, 16
      %v714 = vrot.slane %v712, 5
      %v715 = vsel %vm461, %v710, %v714
      %v716 = vshrl.u32 %v431, 16
      %v718 = vrot.slane %v716, 4
      %v719 = vor.u32 %v718, %v714
      %v720 = vrot.slane %v719, 4
      %v722 = vshll.u32 %v453, 16
      %v724 = vrot.slane %v722, 5
      %v725 = vsel %vm461, %v720, %v724
      %v727 = vshrl.u32 %v432, 16
      %v729 = vrot.slane %v727, 4
      %v730 = vshll.u32 %v432, 16
      %v732 = vrot.slane %v730, 5
      %v733 = vor.u32 %v729, %v732
      %v734 = vrot.slane %v733, 4
      %v736 = vshll.u32 %v433, 16
      %v738 = vrot.slane %v736, 5
      %v739 = vsel %vm461, %v734, %v738
      %v740 = vshrl.u32 %v433, 16
      %v742 = vrot.slane %v740, 4
      %v743 = vor.u32 %v742, %v738
      %v744 = vrot.slane %v743, 4
      %v746 = vshll.u32 %v454, 16
      %v748 = vrot.slane %v746, 5
      %v749 = vsel %vm461, %v744, %v748
      %v751 = vshrl.u32 %v434, 16
      %v753 = vrot.slane %v751, 4
      %v754 = vshll.u32 %v434, 16
      %v756 = vrot.slane %v754, 5
      %v757 = vor.u32 %v753, %v756
      %v758 = vrot.slane %v757, 4
      %v760 = vshll.u32 %v435, 16
      %v762 = vrot.slane %v760, 5
      %v763 = vsel %vm461, %v758, %v762
      %v764 = vshrl.u32 %v435, 16
      %v766 = vrot.slane %v764, 4
      %v767 = vor.u32 %v766, %v762
      %v768 = vrot.slane %v767, 4
      %v770 = vshll.u32 %v455, 16
      %v772 = vrot.slane %v770, 5
      %v773 = vsel %vm461, %v768, %v772
      %v775 = vshrl.u32 %v436, 16
      %v777 = vrot.slane %v775, 4
      %v778 = vshll.u32 %v436, 16
      %v780 = vrot.slane %v778, 5
      %v781 = vor.u32 %v777, %v780
      %v782 = vrot.slane %v781, 4
      %v784 = vshll.u32 %v437, 16
      %v786 = vrot.slane %v784, 5
      %v787 = vsel %vm461, %v782, %v786
      %v788 = vshrl.u32 %v437, 16
      %v790 = vrot.slane %v788, 4
      %v791 = vor.u32 %v790, %v786
      %v792 = vrot.slane %v791, 4
      %v794 = vshll.u32 %v456, 16
      %v796 = vrot.slane %v794, 5
      %v797 = vsel %vm461, %v792, %v796
      %v799 = vshrl.u32 %v438, 16
      %v801 = vrot.slane %v799, 4
      %v802 = vshll.u32 %v438, 16
      %v804 = vrot.slane %v802, 5
      %v805 = vor.u32 %v801, %v804
      %v806 = vrot.slane %v805, 4
      %v808 = vshll.u32 %v439, 16
      %v810 = vrot.slane %v808, 5
      %v811 = vsel %vm461, %v806, %v810
      %v812 = vshrl.u32 %v439, 16
      %v814 = vrot.slane %v812, 4
      %v815 = vor.u32 %v814, %v810
      %v816 = vrot.slane %v815, 4
      %v818 = vshll.u32 %v457, 16
      %v820 = vrot.slane %v818, 5
      %v821 = vsel %vm461, %v816, %v820
      %v823 = vshrl.u32 %v440, 16
      %v825 = vrot.slane %v823, 4
      %v826 = vshll.u32 %v440, 16
      %v828 = vrot.slane %v826, 5
      %v829 = vor.u32 %v825, %v828
      %v830 = vrot.slane %v829, 4
      %v832 = vshll.u32 %v441, 16
      %v834 = vrot.slane %v832, 5
      %v835 = vsel %vm461, %v830, %v834
      %v836 = vshrl.u32 %v441, 16
      %v838 = vrot.slane %v836, 4
      %v839 = vor.u32 %v838, %v834
      %v840 = vrot.slane %v839, 4
      %v842 = vshll.u32 %v458, 16
      %v844 = vrot.slane %v842, 5
      %v845 = vsel %vm461, %v840, %v844
      %s846 = scalar_lea.vmem %s1, 2
      %v847 = vld [vmem:[%s846] sm:$0x3]
      %v848 = vunpack.c.l.b16 %v475
      %v849 = vunpack.c.l.b16 %v485
      %v850 = vunpack.c.l.b16 %v499
      %v851 = vunpack.c.l.b16 %v509
      %v852 = vunpack.c.l.b16 %v523
      %v853 = vunpack.c.l.b16 %v533
      %v854 = vunpack.c.l.b16 %v547
      %v855 = vunpack.c.l.b16 %v557
      %v856 = vunpack.c.l.b16 %v571
      %v857 = vunpack.c.l.b16 %v581
      %v858 = vunpack.c.l.b16 %v595
      %v859 = vunpack.c.l.b16 %v605
      %v860 = vunpack.c.l.b16 %v619
      %v861 = vunpack.c.l.b16 %v629
      %v862 = vunpack.c.l.b16 %v643
      %v863 = vunpack.c.l.b16 %v653
      %v864 = vunpack.c.l.b16 %v667
      %v865 = vunpack.c.l.b16 %v677
      %v866 = vunpack.c.l.b16 %v691
      %v867 = vunpack.c.l.b16 %v701
      %v868 = vunpack.c.l.b16 %v715
      %v869 = vunpack.c.l.b16 %v725
      %v870 = vunpack.c.l.b16 %v739
      %v871 = vunpack.c.l.b16 %v749
      %v872 = vunpack.c.l.b16 %v763
      %v873 = vunpack.c.l.b16 %v773
      %v874 = vunpack.c.l.b16 %v787
      %v875 = vunpack.c.l.b16 %v797
      %v876 = vunpack.c.l.b16 %v811
      %v877 = vunpack.c.l.b16 %v821
      %v878 = vunpack.c.l.b16 %v835
      %v879 = vunpack.c.l.b16 %v845
      %v880 = vpack.c.b16 %v849, %v848
      %v881 = vpack.c.b16 %v851, %v850
      %v882 = vpack.c.b16 %v853, %v852
      %v883 = vpack.c.b16 %v855, %v854
      %v884 = vpack.c.b16 %v857, %v856
      %v885 = vpack.c.b16 %v859, %v858
      %v886 = vpack.c.b16 %v861, %v860
      %v887 = vpack.c.b16 %v863, %v862
      %v888 = vpack.c.b16 %v865, %v864
      %v889 = vpack.c.b16 %v867, %v866
      %v890 = vpack.c.b16 %v869, %v868
      %v891 = vpack.c.b16 %v871, %v870
      %v892 = vpack.c.b16 %v873, %v872
      %v893 = vpack.c.b16 %v875, %v874
      %v894 = vpack.c.b16 %v877, %v876
      %v895 = vpack.c.b16 %v879, %v878
      %vm896 = vcmask 23552
      %v898 = vsel %vm896, %v880, 0
      %v901 = vsel %vm896, %v881, 0
      %v904 = vsel %vm896, %v882, 0
      %v907 = vsel %vm896, %v883, 0
      %v910 = vsel %vm896, %v884, 0
      %v913 = vsel %vm896, %v885, 0
      %v916 = vsel %vm896, %v886, 0
      %v919 = vsel %vm896, %v887, 0
      %v922 = vsel %vm896, %v888, 0
      %v925 = vsel %vm896, %v889, 0
      %v928 = vsel %vm896, %v890, 0
      %v931 = vsel %vm896, %v891, 0
      %v934 = vsel %vm896, %v892, 0
      %v937 = vsel %vm896, %v893, 0
      %v940 = vsel %vm896, %v894, 0
      %v943 = vsel %vm896, %v895, 0
      %vm945 = vcmask 1040384
      %vm946 = vcmask 1041408
      %v947 = vsel %vm945, 4294967295, 65535
      %v948 = vsel %vm946, %v947, 0
      %v950 = vand.u32 %v847, %v948
      %952 = vmatpush.bf16.msra.mxu0 0
      %953 = vmatpush.bf16.msra.mxu0 0
      %954 = vmatpush.bf16.msra.mxu0 0
      %955 = vmatpush.bf16.msra.mxu0 0
      %956 = vmatpush.bf16.msra.mxu0 0
      %957 = vmatpush.bf16.msra.mxu0 0
      %958 = vmatpush.bf16.msra.mxu0 0
      %959 = vmatpush.bf16.msra.mxu0 %v950
      %960 = vmatmul.bf16.gmra.mxu0 %v898
      %v961 = vpop.f32.mrf.mxu0
      %v962 = vadd.f32 0.0, %v961
      %v963 = vpop.f32.mrf.mxu0
      %v964 = vadd.f32 0.0, %v963
      %965 = vmatmul.bf16.gmra.mxu0 %v901
      %v966 = vpop.f32.mrf.mxu0
      %v967 = vadd.f32 0.0, %v966
      %v968 = vpop.f32.mrf.mxu0
      %v969 = vadd.f32 0.0, %v968
      %970 = vmatmul.bf16.gmra.mxu0 %v904
      %v971 = vpop.f32.mrf.mxu0
      %v972 = vadd.f32 0.0, %v971
      %v973 = vpop.f32.mrf.mxu0
      %v974 = vadd.f32 0.0, %v973
      %975 = vmatmul.bf16.gmra.mxu0 %v907
      %v976 = vpop.f32.mrf.mxu0
      %v977 = vadd.f32 0.0, %v976
      %v978 = vpop.f32.mrf.mxu0
      %v979 = vadd.f32 0.0, %v978
      %980 = vmatmul.bf16.gmra.mxu0 %v910
      %v981 = vpop.f32.mrf.mxu0
      %v982 = vadd.f32 0.0, %v981
      %v983 = vpop.f32.mrf.mxu0
      %v984 = vadd.f32 0.0, %v983
      %985 = vmatmul.bf16.gmra.mxu0 %v913
      %v986 = vpop.f32.mrf.mxu0
      %v987 = vadd.f32 0.0, %v986
      %v988 = vpop.f32.mrf.mxu0
      %v989 = vadd.f32 0.0, %v988
      %990 = vmatmul.bf16.gmra.mxu0 %v916
      %v991 = vpop.f32.mrf.mxu0
      %v992 = vadd.f32 0.0, %v991
      %v993 = vpop.f32.mrf.mxu0
      %v994 = vadd.f32 0.0, %v993
      %995 = vmatmul.bf16.gmra.mxu0 %v919
      %v996 = vpop.f32.mrf.mxu0
      %v997 = vadd.f32 0.0, %v996
      %v998 = vpop.f32.mrf.mxu0
      %v999 = vadd.f32 0.0, %v998
      %1000 = vmatmul.bf16.gmra.mxu0 %v922
      %v1001 = vpop.f32.mrf.mxu0
      %v1002 = vadd.f32 0.0, %v1001
      %v1003 = vpop.f32.mrf.mxu0
      %v1004 = vadd.f32 0.0, %v1003
      %1005 = vmatmul.bf16.gmra.mxu0 %v925
      %v1006 = vpop.f32.mrf.mxu0
      %v1007 = vadd.f32 0.0, %v1006
      %v1008 = vpop.f32.mrf.mxu0
      %v1009 = vadd.f32 0.0, %v1008
      %1010 = vmatmul.bf16.gmra.mxu0 %v928
      %v1011 = vpop.f32.mrf.mxu0
      %v1012 = vadd.f32 0.0, %v1011
      %v1013 = vpop.f32.mrf.mxu0
      %v1014 = vadd.f32 0.0, %v1013
      %1015 = vmatmul.bf16.gmra.mxu0 %v931
      %v1016 = vpop.f32.mrf.mxu0
      %v1017 = vadd.f32 0.0, %v1016
      %v1018 = vpop.f32.mrf.mxu0
      %v1019 = vadd.f32 0.0, %v1018
      %1020 = vmatmul.bf16.gmra.mxu0 %v934
      %v1021 = vpop.f32.mrf.mxu0
      %v1022 = vadd.f32 0.0, %v1021
      %v1023 = vpop.f32.mrf.mxu0
      %v1024 = vadd.f32 0.0, %v1023
      %1025 = vmatmul.bf16.gmra.mxu0 %v937
      %v1026 = vpop.f32.mrf.mxu0
      %v1027 = vadd.f32 0.0, %v1026
      %v1028 = vpop.f32.mrf.mxu0
      %v1029 = vadd.f32 0.0, %v1028
      %1030 = vmatmul.bf16.gmra.mxu0 %v940
      %v1031 = vpop.f32.mrf.mxu0
      %v1032 = vadd.f32 0.0, %v1031
      %v1033 = vpop.f32.mrf.mxu0
      %v1034 = vadd.f32 0.0, %v1033
      %1035 = vmatmul.bf16.gmra.mxu0 %v943
      %v1036 = vpop.f32.mrf.mxu0
      %v1037 = vadd.f32 0.0, %v1036
      %v1038 = vpop.f32.mrf.mxu0
      %v1039 = vadd.f32 0.0, %v1038
      %1040 = vdwg.mxu0
      %v1073 = vunpack.c.l.b16 %v410
      %v1074 = vunpack.c.l.b16 %v411
      %v1075 = vunpack.c.l.b16 %v412
      %v1076 = vunpack.c.l.b16 %v413
      %v1077 = vunpack.c.l.b16 %v414
      %v1078 = vunpack.c.l.b16 %v415
      %v1079 = vunpack.c.l.b16 %v416
      %v1080 = vunpack.c.l.b16 %v417
      %v1081 = vunpack.c.l.b16 %v418
      %v1082 = vunpack.c.l.b16 %v419
      %v1083 = vunpack.c.l.b16 %v420
      %v1084 = vunpack.c.l.b16 %v421
      %v1085 = vunpack.c.l.b16 %v422
      %v1086 = vunpack.c.l.b16 %v423
      %v1087 = vunpack.c.l.b16 %v424
      %v1088 = vunpack.c.l.b16 %v425
      %v1089 = vunpack.c.l.b16 %v426
      %v1090 = vunpack.c.l.b16 %v427
      %v1091 = vunpack.c.l.b16 %v428
      %v1092 = vunpack.c.l.b16 %v429
      %v1093 = vunpack.c.l.b16 %v430
      %v1094 = vunpack.c.l.b16 %v431
      %v1095 = vunpack.c.l.b16 %v432
      %v1096 = vunpack.c.l.b16 %v433
      %v1097 = vunpack.c.l.b16 %v434
      %v1098 = vunpack.c.l.b16 %v435
      %v1099 = vunpack.c.l.b16 %v436
      %v1100 = vunpack.c.l.b16 %v437
      %v1101 = vunpack.c.l.b16 %v438
      %v1102 = vunpack.c.l.b16 %v439
      %v1103 = vunpack.c.l.b16 %v440
      %v1104 = vunpack.c.l.b16 %v441
      %v1105 = vpack.c.b16 %v1074, %v1073
      %v1106 = vpack.c.b16 %v1076, %v1075
      %v1107 = vpack.c.b16 %v1078, %v1077
      %v1108 = vpack.c.b16 %v1080, %v1079
      %v1109 = vpack.c.b16 %v1082, %v1081
      %v1110 = vpack.c.b16 %v1084, %v1083
      %v1111 = vpack.c.b16 %v1086, %v1085
      %v1112 = vpack.c.b16 %v1088, %v1087
      %v1113 = vpack.c.b16 %v1090, %v1089
      %v1114 = vpack.c.b16 %v1092, %v1091
      %v1115 = vpack.c.b16 %v1094, %v1093
      %v1116 = vpack.c.b16 %v1096, %v1095
      %v1117 = vpack.c.b16 %v1098, %v1097
      %v1118 = vpack.c.b16 %v1100, %v1099
      %v1119 = vpack.c.b16 %v1102, %v1101
      %v1120 = vpack.c.b16 %v1104, %v1103
      %v1122 = vsel %vm896, %v1105, 0
      %v1125 = vsel %vm896, %v1106, 0
      %v1128 = vsel %vm896, %v1107, 0
      %v1131 = vsel %vm896, %v1108, 0
      %v1134 = vsel %vm896, %v1109, 0
      %v1137 = vsel %vm896, %v1110, 0
      %v1140 = vsel %vm896, %v1111, 0
      %v1143 = vsel %vm896, %v1112, 0
      %v1146 = vsel %vm896, %v1113, 0
      %v1149 = vsel %vm896, %v1114, 0
      %v1152 = vsel %vm896, %v1115, 0
      %v1155 = vsel %vm896, %v1116, 0
      %v1158 = vsel %vm896, %v1117, 0
      %v1161 = vsel %vm896, %v1118, 0
      %v1164 = vsel %vm896, %v1119, 0
      %v1167 = vsel %vm896, %v1120, 0
      %v1170 = vand.u32 %v442, %v948
      %1172 = vmatpush.bf16.msra.mxu0 0
      %1173 = vmatpush.bf16.msra.mxu0 0
      %1174 = vmatpush.bf16.msra.mxu0 0
      %1175 = vmatpush.bf16.msra.mxu0 0
      %1176 = vmatpush.bf16.msra.mxu0 0
      %1177 = vmatpush.bf16.msra.mxu0 0
      %1178 = vmatpush.bf16.msra.mxu0 0
      %1179 = vmatpush.bf16.msra.mxu0 %v1170
      %1180 = vmatmul.bf16.gmra.mxu0 %v1122
      %v1181 = vpop.f32.mrf.mxu0
      %v1182 = vadd.f32 %v962, %v1181
      %v1183 = vpop.f32.mrf.mxu0
      %v1184 = vadd.f32 %v964, %v1183
      %1185 = vmatmul.bf16.gmra.mxu0 %v1125
      %v1186 = vpop.f32.mrf.mxu0
      %v1187 = vadd.f32 %v967, %v1186
      %v1188 = vpop.f32.mrf.mxu0
      %v1189 = vadd.f32 %v969, %v1188
      %1190 = vmatmul.bf16.gmra.mxu0 %v1128
      %v1191 = vpop.f32.mrf.mxu0
      %v1192 = vadd.f32 %v972, %v1191
      %v1193 = vpop.f32.mrf.mxu0
      %v1194 = vadd.f32 %v974, %v1193
      %1195 = vmatmul.bf16.gmra.mxu0 %v1131
      %v1196 = vpop.f32.mrf.mxu0
      %v1197 = vadd.f32 %v977, %v1196
      %v1198 = vpop.f32.mrf.mxu0
      %v1199 = vadd.f32 %v979, %v1198
      %1200 = vmatmul.bf16.gmra.mxu0 %v1134
      %v1201 = vpop.f32.mrf.mxu0
      %v1202 = vadd.f32 %v982, %v1201
      %v1203 = vpop.f32.mrf.mxu0
      %v1204 = vadd.f32 %v984, %v1203
      %1205 = vmatmul.bf16.gmra.mxu0 %v1137
      %v1206 = vpop.f32.mrf.mxu0
      %v1207 = vadd.f32 %v987, %v1206
      %v1208 = vpop.f32.mrf.mxu0
      %v1209 = vadd.f32 %v989, %v1208
      %1210 = vmatmul.bf16.gmra.mxu0 %v1140
      %v1211 = vpop.f32.mrf.mxu0
      %v1212 = vadd.f32 %v992, %v1211
      %v1213 = vpop.f32.mrf.mxu0
      %v1214 = vadd.f32 %v994, %v1213
      %1215 = vmatmul.bf16.gmra.mxu0 %v1143
      %v1216 = vpop.f32.mrf.mxu0
      %v1217 = vadd.f32 %v997, %v1216
      %v1218 = vpop.f32.mrf.mxu0
      %v1219 = vadd.f32 %v999, %v1218
      %1220 = vmatmul.bf16.gmra.mxu0 %v1146
      %v1221 = vpop.f32.mrf.mxu0
      %v1222 = vadd.f32 %v1002, %v1221
      %v1223 = vpop.f32.mrf.mxu0
      %v1224 = vadd.f32 %v1004, %v1223
      %1225 = vmatmul.bf16.gmra.mxu0 %v1149
      %v1226 = vpop.f32.mrf.mxu0
      %v1227 = vadd.f32 %v1007, %v1226
      %v1228 = vpop.f32.mrf.mxu0
      %v1229 = vadd.f32 %v1009, %v1228
      %1230 = vmatmul.bf16.gmra.mxu0 %v1152
      %v1231 = vpop.f32.mrf.mxu0
      %v1232 = vadd.f32 %v1012, %v1231
      %v1233 = vpop.f32.mrf.mxu0
      %v1234 = vadd.f32 %v1014, %v1233
      %1235 = vmatmul.bf16.gmra.mxu0 %v1155
      %v1236 = vpop.f32.mrf.mxu0
      %v1237 = vadd.f32 %v1017, %v1236
      %v1238 = vpop.f32.mrf.mxu0
      %v1239 = vadd.f32 %v1019, %v1238
      %1240 = vmatmul.bf16.gmra.mxu0 %v1158
      %v1241 = vpop.f32.mrf.mxu0
      %v1242 = vadd.f32 %v1022, %v1241
      %v1243 = vpop.f32.mrf.mxu0
      %v1244 = vadd.f32 %v1024, %v1243
      %1245 = vmatmul.bf16.gmra.mxu0 %v1161
      %v1246 = vpop.f32.mrf.mxu0
      %v1247 = vadd.f32 %v1027, %v1246
      %v1248 = vpop.f32.mrf.mxu0
      %v1249 = vadd.f32 %v1029, %v1248
      %1250 = vmatmul.bf16.gmra.mxu0 %v1164
      %v1251 = vpop.f32.mrf.mxu0
      %v1252 = vadd.f32 %v1032, %v1251
      %v1253 = vpop.f32.mrf.mxu0
      %v1254 = vadd.f32 %v1034, %v1253
      %1255 = vmatmul.bf16.gmra.mxu0 %v1167
      %v1256 = vpop.f32.mrf.mxu0
      %v1257 = vadd.f32 %v1037, %v1256
      %v1258 = vpop.f32.mrf.mxu0
      %v1259 = vadd.f32 %v1039, %v1258
      %1260 = vdwg.mxu0
      %v1261 = vld [vmem:[%s394] sm:$0xe]
      %v1262 = vld [vmem:[%s394 + $0xc] sm:$0xe]
      %v1263 = vld [vmem:[%s394 + $0x18] sm:$0xe]
      %v1264 = vld [vmem:[%s394 + $0x24] sm:$0xe]
      %v1265 = vld [vmem:[%s394 + $0x30] sm:$0xe]
      %v1266 = vld [vmem:[%s394 + $0x3c] sm:$0xe]
      %v1267 = vld [vmem:[%s394 + $0x48] sm:$0xe]
      %v1268 = vld [vmem:[%s394 + $0x54] sm:$0xe]
      %v1269 = vld [vmem:[%s394 + $0x60] sm:$0xe]
      %v1270 = vld [vmem:[%s394 + $0x6c] sm:$0xe]
      %v1271 = vld [vmem:[%s394 + $0x78] sm:$0xe]
      %v1272 = vld [vmem:[%s394 + $0x84] sm:$0xe]
      %v1273 = vld [vmem:[%s394 + $0x90] sm:$0xe]
      %v1274 = vld [vmem:[%s394 + $0x9c] sm:$0xe]
      %v1275 = vld [vmem:[%s394 + $0xa8] sm:$0xe]
      %v1276 = vld [vmem:[%s394 + $0xb4] sm:$0xe]
      %vm1309 = vcmask 1042432
      %vm1310 = vcmask 1046532
      %vm1311 = vmor %vm1309, %vm1310
      %v1312 = vrot.slane %v1261, 5
      %v1313 = vrot.slane %v1312, 4
      %v1314 = vrot.slane %v411, 5
      %v1315 = vsel %vm1311, %v1313, %v1314
      %v1316 = vrot.slane %v1314, 4
      %v1317 = vrot.slane %v443, 5
      %v1318 = vsel %vm1311, %v1316, %v1317
      %v1319 = vrot.slane %v1262, 5
      %v1320 = vrot.slane %v1319, 4
      %v1321 = vrot.slane %v413, 5
      %v1322 = vsel %vm1311, %v1320, %v1321
      %v1323 = vrot.slane %v1321, 4
      %v1324 = vrot.slane %v444, 5
      %v1325 = vsel %vm1311, %v1323, %v1324
      %v1326 = vrot.slane %v1263, 5
      %v1327 = vrot.slane %v1326, 4
      %v1328 = vrot.slane %v415, 5
      %v1329 = vsel %vm1311, %v1327, %v1328
      %v1330 = vrot.slane %v1328, 4
      %v1331 = vrot.slane %v445, 5
      %v1332 = vsel %vm1311, %v1330, %v1331
      %v1333 = vrot.slane %v1264, 5
      %v1334 = vrot.slane %v1333, 4
      %v1335 = vrot.slane %v417, 5
      %v1336 = vsel %vm1311, %v1334, %v1335
      %v1337 = vrot.slane %v1335, 4
      %v1338 = vrot.slane %v446, 5
      %v1339 = vsel %vm1311, %v1337, %v1338
      %v1340 = vrot.slane %v1265, 5
      %v1341 = vrot.slane %v1340, 4
      %v1342 = vrot.slane %v419, 5
      %v1343 = vsel %vm1311, %v1341, %v1342
      %v1344 = vrot.slane %v1342, 4
      %v1345 = vrot.slane %v447, 5
      %v1346 = vsel %vm1311, %v1344, %v1345
      %v1347 = vrot.slane %v1266, 5
      %v1348 = vrot.slane %v1347, 4
      %v1349 = vrot.slane %v421, 5
      %v1350 = vsel %vm1311, %v1348, %v1349
      %v1351 = vrot.slane %v1349, 4
      %v1352 = vrot.slane %v448, 5
      %v1353 = vsel %vm1311, %v1351, %v1352
      %v1354 = vrot.slane %v1267, 5
      %v1355 = vrot.slane %v1354, 4
      %v1356 = vrot.slane %v423, 5
      %v1357 = vsel %vm1311, %v1355, %v1356
      %v1358 = vrot.slane %v1356, 4
      %v1359 = vrot.slane %v449, 5
      %v1360 = vsel %vm1311, %v1358, %v1359
      %v1361 = vrot.slane %v1268, 5
      %v1362 = vrot.slane %v1361, 4
      %v1363 = vrot.slane %v425, 5
      %v1364 = vsel %vm1311, %v1362, %v1363
      %v1365 = vrot.slane %v1363, 4
      %v1366 = vrot.slane %v450, 5
      %v1367 = vsel %vm1311, %v1365, %v1366
      %v1368 = vrot.slane %v1269, 5
      %v1369 = vrot.slane %v1368, 4
      %v1370 = vrot.slane %v427, 5
      %v1371 = vsel %vm1311, %v1369, %v1370
      %v1372 = vrot.slane %v1370, 4
      %v1373 = vrot.slane %v451, 5
      %v1374 = vsel %vm1311, %v1372, %v1373
      %v1375 = vrot.slane %v1270, 5
      %v1376 = vrot.slane %v1375, 4
      %v1377 = vrot.slane %v429, 5
      %v1378 = vsel %vm1311, %v1376, %v1377
      %v1379 = vrot.slane %v1377, 4
      %v1380 = vrot.slane %v452, 5
      %v1381 = vsel %vm1311, %v1379, %v1380
      %v1382 = vrot.slane %v1271, 5
      %v1383 = vrot.slane %v1382, 4
      %v1384 = vrot.slane %v431, 5
      %v1385 = vsel %vm1311, %v1383, %v1384
      %v1386 = vrot.slane %v1384, 4
      %v1387 = vrot.slane %v453, 5
      %v1388 = vsel %vm1311, %v1386, %v1387
      %v1389 = vrot.slane %v1272, 5
      %v1390 = vrot.slane %v1389, 4
      %v1391 = vrot.slane %v433, 5
      %v1392 = vsel %vm1311, %v1390, %v1391
      %v1393 = vrot.slane %v1391, 4
      %v1394 = vrot.slane %v454, 5
      %v1395 = vsel %vm1311, %v1393, %v1394
      %v1396 = vrot.slane %v1273, 5
      %v1397 = vrot.slane %v1396, 4
      %v1398 = vrot.slane %v435, 5
      %v1399 = vsel %vm1311, %v1397, %v1398
      %v1400 = vrot.slane %v1398, 4
      %v1401 = vrot.slane %v455, 5
      %v1402 = vsel %vm1311, %v1400, %v1401
      %v1403 = vrot.slane %v1274, 5
      %v1404 = vrot.slane %v1403, 4
      %v1405 = vrot.slane %v437, 5
      %v1406 = vsel %vm1311, %v1404, %v1405
      %v1407 = vrot.slane %v1405, 4
      %v1408 = vrot.slane %v456, 5
      %v1409 = vsel %vm1311, %v1407, %v1408
      %v1410 = vrot.slane %v1275, 5
      %v1411 = vrot.slane %v1410, 4
      %v1412 = vrot.slane %v439, 5
      %v1413 = vsel %vm1311, %v1411, %v1412
      %v1414 = vrot.slane %v1412, 4
      %v1415 = vrot.slane %v457, 5
      %v1416 = vsel %vm1311, %v1414, %v1415
      %v1417 = vrot.slane %v1276, 5
      %v1418 = vrot.slane %v1417, 4
      %v1419 = vrot.slane %v441, 5
      %v1420 = vsel %vm1311, %v1418, %v1419
      %v1421 = vrot.slane %v1419, 4
      %v1422 = vrot.slane %v458, 5
      %v1423 = vsel %vm1311, %v1421, %v1422
      %s1424 = scalar_lea.vmem %s1, 4
      %v1425 = vld [vmem:[%s1424] sm:$0x3]
      %v1426 = vunpack.c.l.b16 %v1315
      %v1427 = vunpack.c.l.b16 %v1318
      %v1428 = vunpack.c.l.b16 %v1322
      %v1429 = vunpack.c.l.b16 %v1325
      %v1430 = vunpack.c.l.b16 %v1329
      %v1431 = vunpack.c.l.b16 %v1332
      %v1432 = vunpack.c.l.b16 %v1336
      %v1433 = vunpack.c.l.b16 %v1339
      %v1434 = vunpack.c.l.b16 %v1343
      %v1435 = vunpack.c.l.b16 %v1346
      %v1436 = vunpack.c.l.b16 %v1350
      %v1437 = vunpack.c.l.b16 %v1353
      %v1438 = vunpack.c.l.b16 %v1357
      %v1439 = vunpack.c.l.b16 %v1360
      %v1440 = vunpack.c.l.b16 %v1364
      %v1441 = vunpack.c.l.b16 %v1367
      %v1442 = vunpack.c.l.b16 %v1371
      %v1443 = vunpack.c.l.b16 %v1374
      %v1444 = vunpack.c.l.b16 %v1378
      %v1445 = vunpack.c.l.b16 %v1381
      %v1446 = vunpack.c.l.b16 %v1385
      %v1447 = vunpack.c.l.b16 %v1388
      %v1448 = vunpack.c.l.b16 %v1392
      %v1449 = vunpack.c.l.b16 %v1395
      %v1450 = vunpack.c.l.b16 %v1399
      %v1451 = vunpack.c.l.b16 %v1402
      %v1452 = vunpack.c.l.b16 %v1406
      %v1453 = vunpack.c.l.b16 %v1409
      %v1454 = vunpack.c.l.b16 %v1413
      %v1455 = vunpack.c.l.b16 %v1416
      %v1456 = vunpack.c.l.b16 %v1420
      %v1457 = vunpack.c.l.b16 %v1423
      %v1458 = vpack.c.b16 %v1427, %v1426
      %v1459 = vpack.c.b16 %v1429, %v1428
      %v1460 = vpack.c.b16 %v1431, %v1430
      %v1461 = vpack.c.b16 %v1433, %v1432
      %v1462 = vpack.c.b16 %v1435, %v1434
      %v1463 = vpack.c.b16 %v1437, %v1436
      %v1464 = vpack.c.b16 %v1439, %v1438
      %v1465 = vpack.c.b16 %v1441, %v1440
      %v1466 = vpack.c.b16 %v1443, %v1442
      %v1467 = vpack.c.b16 %v1445, %v1444
      %v1468 = vpack.c.b16 %v1447, %v1446
      %v1469 = vpack.c.b16 %v1449, %v1448
      %v1470 = vpack.c.b16 %v1451, %v1450
      %v1471 = vpack.c.b16 %v1453, %v1452
      %v1472 = vpack.c.b16 %v1455, %v1454
      %v1473 = vpack.c.b16 %v1457, %v1456
      %v1475 = vsel %vm896, %v1458, 0
      %v1478 = vsel %vm896, %v1459, 0
      %v1481 = vsel %vm896, %v1460, 0
      %v1484 = vsel %vm896, %v1461, 0
      %v1487 = vsel %vm896, %v1462, 0
      %v1490 = vsel %vm896, %v1463, 0
      %v1493 = vsel %vm896, %v1464, 0
      %v1496 = vsel %vm896, %v1465, 0
      %v1499 = vsel %vm896, %v1466, 0
      %v1502 = vsel %vm896, %v1467, 0
      %v1505 = vsel %vm896, %v1468, 0
      %v1508 = vsel %vm896, %v1469, 0
      %v1511 = vsel %vm896, %v1470, 0
      %v1514 = vsel %vm896, %v1471, 0
      %v1517 = vsel %vm896, %v1472, 0
      %v1520 = vsel %vm896, %v1473, 0
      %v1523 = vand.u32 %v1425, %v948
      %1525 = vmatpush.bf16.msra.mxu0 0
      %1526 = vmatpush.bf16.msra.mxu0 0
      %1527 = vmatpush.bf16.msra.mxu0 0
      %1528 = vmatpush.bf16.msra.mxu0 0
      %1529 = vmatpush.bf16.msra.mxu0 0
      %1530 = vmatpush.bf16.msra.mxu0 0
      %1531 = vmatpush.bf16.msra.mxu0 0
      %1532 = vmatpush.bf16.msra.mxu0 %v1523
      %1533 = vmatmul.bf16.gmra.mxu0 %v1475
      %v1534 = vpop.f32.mrf.mxu0
      %v1535 = vadd.f32 0.0, %v1534
      %v1536 = vpop.f32.mrf.mxu0
      %v1537 = vadd.f32 0.0, %v1536
      %1538 = vmatmul.bf16.gmra.mxu0 %v1478
      %v1539 = vpop.f32.mrf.mxu0
      %v1540 = vadd.f32 0.0, %v1539
      %v1541 = vpop.f32.mrf.mxu0
      %v1542 = vadd.f32 0.0, %v1541
      %1543 = vmatmul.bf16.gmra.mxu0 %v1481
      %v1544 = vpop.f32.mrf.mxu0
      %v1545 = vadd.f32 0.0, %v1544
      %v1546 = vpop.f32.mrf.mxu0
      %v1547 = vadd.f32 0.0, %v1546
      %1548 = vmatmul.bf16.gmra.mxu0 %v1484
      %v1549 = vpop.f32.mrf.mxu0
      %v1550 = vadd.f32 0.0, %v1549
      %v1551 = vpop.f32.mrf.mxu0
      %v1552 = vadd.f32 0.0, %v1551
      %1553 = vmatmul.bf16.gmra.mxu0 %v1487
      %v1554 = vpop.f32.mrf.mxu0
      %v1555 = vadd.f32 0.0, %v1554
      %v1556 = vpop.f32.mrf.mxu0
      %v1557 = vadd.f32 0.0, %v1556
      %1558 = vmatmul.bf16.gmra.mxu0 %v1490
      %v1559 = vpop.f32.mrf.mxu0
      %v1560 = vadd.f32 0.0, %v1559
      %v1561 = vpop.f32.mrf.mxu0
      %v1562 = vadd.f32 0.0, %v1561
      %1563 = vmatmul.bf16.gmra.mxu0 %v1493
      %v1564 = vpop.f32.mrf.mxu0
      %v1565 = vadd.f32 0.0, %v1564
      %v1566 = vpop.f32.mrf.mxu0
      %v1567 = vadd.f32 0.0, %v1566
      %1568 = vmatmul.bf16.gmra.mxu0 %v1496
      %v1569 = vpop.f32.mrf.mxu0
      %v1570 = vadd.f32 0.0, %v1569
      %v1571 = vpop.f32.mrf.mxu0
      %v1572 = vadd.f32 0.0, %v1571
      %1573 = vmatmul.bf16.gmra.mxu0 %v1499
      %v1574 = vpop.f32.mrf.mxu0
      %v1575 = vadd.f32 0.0, %v1574
      %v1576 = vpop.f32.mrf.mxu0
      %v1577 = vadd.f32 0.0, %v1576
      %1578 = vmatmul.bf16.gmra.mxu0 %v1502
      %v1579 = vpop.f32.mrf.mxu0
      %v1580 = vadd.f32 0.0, %v1579
      %v1581 = vpop.f32.mrf.mxu0
      %v1582 = vadd.f32 0.0, %v1581
      %1583 = vmatmul.bf16.gmra.mxu0 %v1505
      %v1584 = vpop.f32.mrf.mxu0
      %v1585 = vadd.f32 0.0, %v1584
      %v1586 = vpop.f32.mrf.mxu0
      %v1587 = vadd.f32 0.0, %v1586
      %1588 = vmatmul.bf16.gmra.mxu0 %v1508
      %v1589 = vpop.f32.mrf.mxu0
      %v1590 = vadd.f32 0.0, %v1589
      %v1591 = vpop.f32.mrf.mxu0
      %v1592 = vadd.f32 0.0, %v1591
      %1593 = vmatmul.bf16.gmra.mxu0 %v1511
      %v1594 = vpop.f32.mrf.mxu0
      %v1595 = vadd.f32 0.0, %v1594
      %v1596 = vpop.f32.mrf.mxu0
      %v1597 = vadd.f32 0.0, %v1596
      %1598 = vmatmul.bf16.gmra.mxu0 %v1514
      %v1599 = vpop.f32.mrf.mxu0
      %v1600 = vadd.f32 0.0, %v1599
      %v1601 = vpop.f32.mrf.mxu0
      %v1602 = vadd.f32 0.0, %v1601
      %1603 = vmatmul.bf16.gmra.mxu0 %v1517
      %v1604 = vpop.f32.mrf.mxu0
      %v1605 = vadd.f32 0.0, %v1604
      %v1606 = vpop.f32.mrf.mxu0
      %v1607 = vadd.f32 0.0, %v1606
      %1608 = vmatmul.bf16.gmra.mxu0 %v1520
      %v1609 = vpop.f32.mrf.mxu0
      %v1610 = vadd.f32 0.0, %v1609
      %v1611 = vpop.f32.mrf.mxu0
      %v1612 = vadd.f32 0.0, %v1611
      %1613 = vdwg.mxu0
      %v1614 = vadd.f32 %v1182, %v1535
      %v1615 = vadd.f32 %v1184, %v1537
      %v1616 = vadd.f32 %v1187, %v1540
      %v1617 = vadd.f32 %v1189, %v1542
      %v1618 = vadd.f32 %v1192, %v1545
      %v1619 = vadd.f32 %v1194, %v1547
      %v1620 = vadd.f32 %v1197, %v1550
      %v1621 = vadd.f32 %v1199, %v1552
      %v1622 = vadd.f32 %v1202, %v1555
      %v1623 = vadd.f32 %v1204, %v1557
      %v1624 = vadd.f32 %v1207, %v1560
      %v1625 = vadd.f32 %v1209, %v1562
      %v1626 = vadd.f32 %v1212, %v1565
      %v1627 = vadd.f32 %v1214, %v1567
      %v1628 = vadd.f32 %v1217, %v1570
      %v1629 = vadd.f32 %v1219, %v1572
      %v1630 = vadd.f32 %v1222, %v1575
      %v1631 = vadd.f32 %v1224, %v1577
      %v1632 = vadd.f32 %v1227, %v1580
      %v1633 = vadd.f32 %v1229, %v1582
      %v1634 = vadd.f32 %v1232, %v1585
      %v1635 = vadd.f32 %v1234, %v1587
      %v1636 = vadd.f32 %v1237, %v1590
      %v1637 = vadd.f32 %v1239, %v1592
      %v1638 = vadd.f32 %v1242, %v1595
      %v1639 = vadd.f32 %v1244, %v1597
      %v1640 = vadd.f32 %v1247, %v1600
      %v1641 = vadd.f32 %v1249, %v1602
      %v1642 = vadd.f32 %v1252, %v1605
      %v1643 = vadd.f32 %v1254, %v1607
      %v1644 = vadd.f32 %v1257, %v1610
      %v1645 = vadd.f32 %v1259, %v1612
      %s1646 = scalar_lea.vmem %s394, 12
      %v1647 = vld [vmem:[%s1646] sm:$0xf]
      %v1648 = vld [vmem:[%s1646 + $0x4] sm:$0xf]
      %v1649 = vld [vmem:[%s1646 + $0xc] sm:$0xf]
      %v1650 = vld [vmem:[%s1646 + $0x10] sm:$0xf]
      %v1651 = vld [vmem:[%s1646 + $0x18] sm:$0xf]
      %v1652 = vld [vmem:[%s1646 + $0x1c] sm:$0xf]
      %v1653 = vld [vmem:[%s1646 + $0x24] sm:$0xf]
      %v1654 = vld [vmem:[%s1646 + $0x28] sm:$0xf]
      %v1655 = vld [vmem:[%s1646 + $0x30] sm:$0xf]
      %v1656 = vld [vmem:[%s1646 + $0x34] sm:$0xf]
      %v1657 = vld [vmem:[%s1646 + $0x3c] sm:$0xf]
      %v1658 = vld [vmem:[%s1646 + $0x40] sm:$0xf]
      %v1659 = vld [vmem:[%s1646 + $0x48] sm:$0xf]
      %v1660 = vld [vmem:[%s1646 + $0x4c] sm:$0xf]
      %v1661 = vld [vmem:[%s1646 + $0x54] sm:$0xf]
      %v1662 = vld [vmem:[%s1646 + $0x58] sm:$0xf]
      %v1663 = vld [vmem:[%s1646 + $0x60] sm:$0xf]
      %v1664 = vld [vmem:[%s1646 + $0x64] sm:$0xf]
      %v1665 = vld [vmem:[%s1646 + $0x6c] sm:$0xf]
      %v1666 = vld [vmem:[%s1646 + $0x70] sm:$0xf]
      %v1667 = vld [vmem:[%s1646 + $0x78] sm:$0xf]
      %v1668 = vld [vmem:[%s1646 + $0x7c] sm:$0xf]
      %v1669 = vld [vmem:[%s1646 + $0x84] sm:$0xf]
      %v1670 = vld [vmem:[%s1646 + $0x88] sm:$0xf]
      %v1671 = vld [vmem:[%s1646 + $0x90] sm:$0xf]
      %v1672 = vld [vmem:[%s1646 + $0x94] sm:$0xf]
      %v1673 = vld [vmem:[%s1646 + $0x9c] sm:$0xf]
      %v1674 = vld [vmem:[%s1646 + $0xa0] sm:$0xf]
      %v1675 = vld [vmem:[%s1646 + $0xa8] sm:$0xf]
      %v1676 = vld [vmem:[%s1646 + $0xac] sm:$0xf]
      %v1677 = vld [vmem:[%s1646 + $0xb4] sm:$0xf]
      %v1678 = vld [vmem:[%s1646 + $0xb8] sm:$0xf]
      %s1679 = scalar_lea.vmem %s1, 6
      %v1680 = vld [vmem:[%s1679] sm:$0x3]
      %v1713 = vunpack.c.l.b16 %v1647
      %v1714 = vunpack.c.l.b16 %v1648
      %v1715 = vunpack.c.l.b16 %v1649
      %v1716 = vunpack.c.l.b16 %v1650
      %v1717 = vunpack.c.l.b16 %v1651
      %v1718 = vunpack.c.l.b16 %v1652
      %v1719 = vunpack.c.l.b16 %v1653
      %v1720 = vunpack.c.l.b16 %v1654
      %v1721 = vunpack.c.l.b16 %v1655
      %v1722 = vunpack.c.l.b16 %v1656
      %v1723 = vunpack.c.l.b16 %v1657
      %v1724 = vunpack.c.l.b16 %v1658
      %v1725 = vunpack.c.l.b16 %v1659
      %v1726 = vunpack.c.l.b16 %v1660
      %v1727 = vunpack.c.l.b16 %v1661
      %v1728 = vunpack.c.l.b16 %v1662
      %v1729 = vunpack.c.l.b16 %v1663
      %v1730 = vunpack.c.l.b16 %v1664
      %v1731 = vunpack.c.l.b16 %v1665
      %v1732 = vunpack.c.l.b16 %v1666
      %v1733 = vunpack.c.l.b16 %v1667
      %v1734 = vunpack.c.l.b16 %v1668
      %v1735 = vunpack.c.l.b16 %v1669
      %v1736 = vunpack.c.l.b16 %v1670
      %v1737 = vunpack.c.l.b16 %v1671
      %v1738 = vunpack.c.l.b16 %v1672
      %v1739 = vunpack.c.l.b16 %v1673
      %v1740 = vunpack.c.l.b16 %v1674
      %v1741 = vunpack.c.l.b16 %v1675
      %v1742 = vunpack.c.l.b16 %v1676
      %v1743 = vunpack.c.l.b16 %v1677
      %v1744 = vunpack.c.l.b16 %v1678
      %v1745 = vpack.c.b16 %v1714, %v1713
      %v1746 = vpack.c.b16 %v1716, %v1715
      %v1747 = vpack.c.b16 %v1718, %v1717
      %v1748 = vpack.c.b16 %v1720, %v1719
      %v1749 = vpack.c.b16 %v1722, %v1721
      %v1750 = vpack.c.b16 %v1724, %v1723
      %v1751 = vpack.c.b16 %v1726, %v1725
      %v1752 = vpack.c.b16 %v1728, %v1727
      %v1753 = vpack.c.b16 %v1730, %v1729
      %v1754 = vpack.c.b16 %v1732, %v1731
      %v1755 = vpack.c.b16 %v1734, %v1733
      %v1756 = vpack.c.b16 %v1736, %v1735
      %v1757 = vpack.c.b16 %v1738, %v1737
      %v1758 = vpack.c.b16 %v1740, %v1739
      %v1759 = vpack.c.b16 %v1742, %v1741
      %v1760 = vpack.c.b16 %v1744, %v1743
      %v1762 = vsel %vm896, %v1745, 0
      %v1765 = vsel %vm896, %v1746, 0
      %v1768 = vsel %vm896, %v1747, 0
      %v1771 = vsel %vm896, %v1748, 0
      %v1774 = vsel %vm896, %v1749, 0
      %v1777 = vsel %vm896, %v1750, 0
      %v1780 = vsel %vm896, %v1751, 0
      %v1783 = vsel %vm896, %v1752, 0
      %v1786 = vsel %vm896, %v1753, 0
      %v1789 = vsel %vm896, %v1754, 0
      %v1792 = vsel %vm896, %v1755, 0
      %v1795 = vsel %vm896, %v1756, 0
      %v1798 = vsel %vm896, %v1757, 0
      %v1801 = vsel %vm896, %v1758, 0
      %v1804 = vsel %vm896, %v1759, 0
      %v1807 = vsel %vm896, %v1760, 0
      %v1810 = vand.u32 %v1680, %v948
      %1812 = vmatpush.bf16.msra.mxu0 0
      %1813 = vmatpush.bf16.msra.mxu0 0
      %1814 = vmatpush.bf16.msra.mxu0 0
      %1815 = vmatpush.bf16.msra.mxu0 0
      %1816 = vmatpush.bf16.msra.mxu0 0
      %1817 = vmatpush.bf16.msra.mxu0 0
      %1818 = vmatpush.bf16.msra.mxu0 0
      %1819 = vmatpush.bf16.msra.mxu0 %v1810
      %1820 = vmatmul.bf16.gmra.mxu0 %v1762
      %v1821 = vpop.f32.mrf.mxu0
      %v1822 = vadd.f32 0.0, %v1821
      %v1823 = vpop.f32.mrf.mxu0
      %v1824 = vadd.f32 0.0, %v1823
      %1825 = vmatmul.bf16.gmra.mxu0 %v1765
      %v1826 = vpop.f32.mrf.mxu0
      %v1827 = vadd.f32 0.0, %v1826
      %v1828 = vpop.f32.mrf.mxu0
      %v1829 = vadd.f32 0.0, %v1828
      %1830 = vmatmul.bf16.gmra.mxu0 %v1768
      %v1831 = vpop.f32.mrf.mxu0
      %v1832 = vadd.f32 0.0, %v1831
      %v1833 = vpop.f32.mrf.mxu0
      %v1834 = vadd.f32 0.0, %v1833
      %1835 = vmatmul.bf16.gmra.mxu0 %v1771
      %v1836 = vpop.f32.mrf.mxu0
      %v1837 = vadd.f32 0.0, %v1836
      %v1838 = vpop.f32.mrf.mxu0
      %v1839 = vadd.f32 0.0, %v1838
      %1840 = vmatmul.bf16.gmra.mxu0 %v1774
      %v1841 = vpop.f32.mrf.mxu0
      %v1842 = vadd.f32 0.0, %v1841
      %v1843 = vpop.f32.mrf.mxu0
      %v1844 = vadd.f32 0.0, %v1843
      %1845 = vmatmul.bf16.gmra.mxu0 %v1777
      %v1846 = vpop.f32.mrf.mxu0
      %v1847 = vadd.f32 0.0, %v1846
      %v1848 = vpop.f32.mrf.mxu0
      %v1849 = vadd.f32 0.0, %v1848
      %1850 = vmatmul.bf16.gmra.mxu0 %v1780
      %v1851 = vpop.f32.mrf.mxu0
      %v1852 = vadd.f32 0.0, %v1851
      %v1853 = vpop.f32.mrf.mxu0
      %v1854 = vadd.f32 0.0, %v1853
      %1855 = vmatmul.bf16.gmra.mxu0 %v1783
      %v1856 = vpop.f32.mrf.mxu0
      %v1857 = vadd.f32 0.0, %v1856
      %v1858 = vpop.f32.mrf.mxu0
      %v1859 = vadd.f32 0.0, %v1858
      %1860 = vmatmul.bf16.gmra.mxu0 %v1786
      %v1861 = vpop.f32.mrf.mxu0
      %v1862 = vadd.f32 0.0, %v1861
      %v1863 = vpop.f32.mrf.mxu0
      %v1864 = vadd.f32 0.0, %v1863
      %1865 = vmatmul.bf16.gmra.mxu0 %v1789
      %v1866 = vpop.f32.mrf.mxu0
      %v1867 = vadd.f32 0.0, %v1866
      %v1868 = vpop.f32.mrf.mxu0
      %v1869 = vadd.f32 0.0, %v1868
      %1870 = vmatmul.bf16.gmra.mxu0 %v1792
      %v1871 = vpop.f32.mrf.mxu0
      %v1872 = vadd.f32 0.0, %v1871
      %v1873 = vpop.f32.mrf.mxu0
      %v1874 = vadd.f32 0.0, %v1873
      %1875 = vmatmul.bf16.gmra.mxu0 %v1795
      %v1876 = vpop.f32.mrf.mxu0
      %v1877 = vadd.f32 0.0, %v1876
      %v1878 = vpop.f32.mrf.mxu0
      %v1879 = vadd.f32 0.0, %v1878
      %1880 = vmatmul.bf16.gmra.mxu0 %v1798
      %v1881 = vpop.f32.mrf.mxu0
      %v1882 = vadd.f32 0.0, %v1881
      %v1883 = vpop.f32.mrf.mxu0
      %v1884 = vadd.f32 0.0, %v1883
      %1885 = vmatmul.bf16.gmra.mxu0 %v1801
      %v1886 = vpop.f32.mrf.mxu0
      %v1887 = vadd.f32 0.0, %v1886
      %v1888 = vpop.f32.mrf.mxu0
      %v1889 = vadd.f32 0.0, %v1888
      %1890 = vmatmul.bf16.gmra.mxu0 %v1804
      %v1891 = vpop.f32.mrf.mxu0
      %v1892 = vadd.f32 0.0, %v1891
      %v1893 = vpop.f32.mrf.mxu0
      %v1894 = vadd.f32 0.0, %v1893
      %1895 = vmatmul.bf16.gmra.mxu0 %v1807
      %v1896 = vpop.f32.mrf.mxu0
      %v1897 = vadd.f32 0.0, %v1896
      %v1898 = vpop.f32.mrf.mxu0
      %v1899 = vadd.f32 0.0, %v1898
      %1900 = vdwg.mxu0
      %v1901 = vadd.f32 %v1614, %v1822
      %v1902 = vadd.f32 %v1615, %v1824
      %v1903 = vadd.f32 %v1616, %v1827
      %v1904 = vadd.f32 %v1617, %v1829
      %v1905 = vadd.f32 %v1618, %v1832
      %v1906 = vadd.f32 %v1619, %v1834
      %v1907 = vadd.f32 %v1620, %v1837
      %v1908 = vadd.f32 %v1621, %v1839
      %v1909 = vadd.f32 %v1622, %v1842
      %v1910 = vadd.f32 %v1623, %v1844
      %v1911 = vadd.f32 %v1624, %v1847
      %v1912 = vadd.f32 %v1625, %v1849
      %v1913 = vadd.f32 %v1626, %v1852
      %v1914 = vadd.f32 %v1627, %v1854
      %v1915 = vadd.f32 %v1628, %v1857
      %v1916 = vadd.f32 %v1629, %v1859
      %v1917 = vadd.f32 %v1630, %v1862
      %v1918 = vadd.f32 %v1631, %v1864
      %v1919 = vadd.f32 %v1632, %v1867
      %v1920 = vadd.f32 %v1633, %v1869
      %v1921 = vadd.f32 %v1634, %v1872
      %v1922 = vadd.f32 %v1635, %v1874
      %v1923 = vadd.f32 %v1636, %v1877
      %v1924 = vadd.f32 %v1637, %v1879
      %v1925 = vadd.f32 %v1638, %v1882
      %v1926 = vadd.f32 %v1639, %v1884
      %v1927 = vadd.f32 %v1640, %v1887
      %v1928 = vadd.f32 %v1641, %v1889
      %v1929 = vadd.f32 %v1642, %v1892
      %v1930 = vadd.f32 %v1643, %v1894
      %v1931 = vadd.f32 %v1644, %v1897
      %v1932 = vadd.f32 %v1645, %v1899
      %v1933 = vld [vmem:[%s1646] sm:$0xf]
      %v1934 = vld [vmem:[%s1646 + $0x4] sm:$0xf]
      %v1935 = vld [vmem:[%s1646 + $0x8] sm:$0x1]
      %v1936 = vld [vmem:[%s1646 + $0xc] sm:$0xf]
      %v1937 = vld [vmem:[%s1646 + $0x10] sm:$0xf]
      %v1938 = vld [vmem:[%s1646 + $0x14] sm:$0x1]
      %v1939 = vld [vmem:[%s1646 + $0x18] sm:$0xf]
      %v1940 = vld [vmem:[%s1646 + $0x1c] sm:$0xf]
      %v1941 = vld [vmem:[%s1646 + $0x20] sm:$0x1]
      %v1942 = vld [vmem:[%s1646 + $0x24] sm:$0xf]
      %v1943 = vld [vmem:[%s1646 + $0x28] sm:$0xf]
      %v1944 = vld [vmem:[%s1646 + $0x2c] sm:$0x1]
      %v1945 = vld [vmem:[%s1646 + $0x30] sm:$0xf]
      %v1946 = vld [vmem:[%s1646 + $0x34] sm:$0xf]
      %v1947 = vld [vmem:[%s1646 + $0x38] sm:$0x1]
      %v1948 = vld [vmem:[%s1646 + $0x3c] sm:$0xf]
      %v1949 = vld [vmem:[%s1646 + $0x40] sm:$0xf]
      %v1950 = vld [vmem:[%s1646 + $0x44] sm:$0x1]
      %v1951 = vld [vmem:[%s1646 + $0x48] sm:$0xf]
      %v1952 = vld [vmem:[%s1646 + $0x4c] sm:$0xf]
      %v1953 = vld [vmem:[%s1646 + $0x50] sm:$0x1]
      %v1954 = vld [vmem:[%s1646 + $0x54] sm:$0xf]
      %v1955 = vld [vmem:[%s1646 + $0x58] sm:$0xf]
      %v1956 = vld [vmem:[%s1646 + $0x5c] sm:$0x1]
      %v1957 = vld [vmem:[%s1646 + $0x60] sm:$0xf]
      %v1958 = vld [vmem:[%s1646 + $0x64] sm:$0xf]
      %v1959 = vld [vmem:[%s1646 + $0x68] sm:$0x1]
      %v1960 = vld [vmem:[%s1646 + $0x6c] sm:$0xf]
      %v1961 = vld [vmem:[%s1646 + $0x70] sm:$0xf]
      %v1962 = vld [vmem:[%s1646 + $0x74] sm:$0x1]
      %v1963 = vld [vmem:[%s1646 + $0x78] sm:$0xf]
      %v1964 = vld [vmem:[%s1646 + $0x7c] sm:$0xf]
      %v1965 = vld [vmem:[%s1646 + $0x80] sm:$0x1]
      %v1966 = vld [vmem:[%s1646 + $0x84] sm:$0xf]
      %v1967 = vld [vmem:[%s1646 + $0x88] sm:$0xf]
      %v1968 = vld [vmem:[%s1646 + $0x8c] sm:$0x1]
      %v1969 = vld [vmem:[%s1646 + $0x90] sm:$0xf]
      %v1970 = vld [vmem:[%s1646 + $0x94] sm:$0xf]
      %v1971 = vld [vmem:[%s1646 + $0x98] sm:$0x1]
      %v1972 = vld [vmem:[%s1646 + $0x9c] sm:$0xf]
      %v1973 = vld [vmem:[%s1646 + $0xa0] sm:$0xf]
      %v1974 = vld [vmem:[%s1646 + $0xa4] sm:$0x1]
      %v1975 = vld [vmem:[%s1646 + $0xa8] sm:$0xf]
      %v1976 = vld [vmem:[%s1646 + $0xac] sm:$0xf]
      %v1977 = vld [vmem:[%s1646 + $0xb0] sm:$0x1]
      %v1978 = vld [vmem:[%s1646 + $0xb4] sm:$0xf]
      %v1979 = vld [vmem:[%s1646 + $0xb8] sm:$0xf]
      %v1980 = vld [vmem:[%s1646 + $0xbc] sm:$0x1]
      %v1982 = vshrl.u32 %v1933, 16
      %v1984 = vrot.slane %v1982, 4
      %v1985 = vshll.u32 %v1933, 16
      %v1987 = vrot.slane %v1985, 5
      %v1988 = vor.u32 %v1984, %v1987
      %v1989 = vrot.slane %v1988, 4
      %v1991 = vshll.u32 %v1934, 16
      %v1993 = vrot.slane %v1991, 5
      %v1994 = vsel %vm461, %v1989, %v1993
      %v1995 = vshrl.u32 %v1934, 16
      %v1997 = vrot.slane %v1995, 4
      %v1998 = vor.u32 %v1997, %v1993
      %v1999 = vrot.slane %v1998, 4
      %v2001 = vshll.u32 %v1935, 16
      %v2003 = vrot.slane %v2001, 5
      %v2004 = vsel %vm461, %v1999, %v2003
      %v2006 = vshrl.u32 %v1936, 16
      %v2008 = vrot.slane %v2006, 4
      %v2009 = vshll.u32 %v1936, 16
      %v2011 = vrot.slane %v2009, 5
      %v2012 = vor.u32 %v2008, %v2011
      %v2013 = vrot.slane %v2012, 4
      %v2015 = vshll.u32 %v1937, 16
      %v2017 = vrot.slane %v2015, 5
      %v2018 = vsel %vm461, %v2013, %v2017
      %v2019 = vshrl.u32 %v1937, 16
      %v2021 = vrot.slane %v2019, 4
      %v2022 = vor.u32 %v2021, %v2017
      %v2023 = vrot.slane %v2022, 4
      %v2025 = vshll.u32 %v1938, 16
      %v2027 = vrot.slane %v2025, 5
      %v2028 = vsel %vm461, %v2023, %v2027
      %v2030 = vshrl.u32 %v1939, 16
      %v2032 = vrot.slane %v2030, 4
      %v2033 = vshll.u32 %v1939, 16
      %v2035 = vrot.slane %v2033, 5
      %v2036 = vor.u32 %v2032, %v2035
      %v2037 = vrot.slane %v2036, 4
      %v2039 = vshll.u32 %v1940, 16
      %v2041 = vrot.slane %v2039, 5
      %v2042 = vsel %vm461, %v2037, %v2041
      %v2043 = vshrl.u32 %v1940, 16
      %v2045 = vrot.slane %v2043, 4
      %v2046 = vor.u32 %v2045, %v2041
      %v2047 = vrot.slane %v2046, 4
      %v2049 = vshll.u32 %v1941, 16
      %v2051 = vrot.slane %v2049, 5
      %v2052 = vsel %vm461, %v2047, %v2051
      %v2054 = vshrl.u32 %v1942, 16
      %v2056 = vrot.slane %v2054, 4
      %v2057 = vshll.u32 %v1942, 16
      %v2059 = vrot.slane %v2057, 5
      %v2060 = vor.u32 %v2056, %v2059
      %v2061 = vrot.slane %v2060, 4
      %v2063 = vshll.u32 %v1943, 16
      %v2065 = vrot.slane %v2063, 5
      %v2066 = vsel %vm461, %v2061, %v2065
      %v2067 = vshrl.u32 %v1943, 16
      %v2069 = vrot.slane %v2067, 4
      %v2070 = vor.u32 %v2069, %v2065
      %v2071 = vrot.slane %v2070, 4
      %v2073 = vshll.u32 %v1944, 16
      %v2075 = vrot.slane %v2073, 5
      %v2076 = vsel %vm461, %v2071, %v2075
      %v2078 = vshrl.u32 %v1945, 16
      %v2080 = vrot.slane %v2078, 4
      %v2081 = vshll.u32 %v1945, 16
      %v2083 = vrot.slane %v2081, 5
      %v2084 = vor.u32 %v2080, %v2083
      %v2085 = vrot.slane %v2084, 4
      %v2087 = vshll.u32 %v1946, 16
      %v2089 = vrot.slane %v2087, 5
      %v2090 = vsel %vm461, %v2085, %v2089
      %v2091 = vshrl.u32 %v1946, 16
      %v2093 = vrot.slane %v2091, 4
      %v2094 = vor.u32 %v2093, %v2089
      %v2095 = vrot.slane %v2094, 4
      %v2097 = vshll.u32 %v1947, 16
      %v2099 = vrot.slane %v2097, 5
      %v2100 = vsel %vm461, %v2095, %v2099
      %v2102 = vshrl.u32 %v1948, 16
      %v2104 = vrot.slane %v2102, 4
      %v2105 = vshll.u32 %v1948, 16
      %v2107 = vrot.slane %v2105, 5
      %v2108 = vor.u32 %v2104, %v2107
      %v2109 = vrot.slane %v2108, 4
      %v2111 = vshll.u32 %v1949, 16
      %v2113 = vrot.slane %v2111, 5
      %v2114 = vsel %vm461, %v2109, %v2113
      %v2115 = vshrl.u32 %v1949, 16
      %v2117 = vrot.slane %v2115, 4
      %v2118 = vor.u32 %v2117, %v2113
      %v2119 = vrot.slane %v2118, 4
      %v2121 = vshll.u32 %v1950, 16
      %v2123 = vrot.slane %v2121, 5
      %v2124 = vsel %vm461, %v2119, %v2123
      %v2126 = vshrl.u32 %v1951, 16
      %v2128 = vrot.slane %v2126, 4
      %v2129 = vshll.u32 %v1951, 16
      %v2131 = vrot.slane %v2129, 5
      %v2132 = vor.u32 %v2128, %v2131
      %v2133 = vrot.slane %v2132, 4
      %v2135 = vshll.u32 %v1952, 16
      %v2137 = vrot.slane %v2135, 5
      %v2138 = vsel %vm461, %v2133, %v2137
      %v2139 = vshrl.u32 %v1952, 16
      %v2141 = vrot.slane %v2139, 4
      %v2142 = vor.u32 %v2141, %v2137
      %v2143 = vrot.slane %v2142, 4
      %v2145 = vshll.u32 %v1953, 16
      %v2147 = vrot.slane %v2145, 5
      %v2148 = vsel %vm461, %v2143, %v2147
      %v2150 = vshrl.u32 %v1954, 16
      %v2152 = vrot.slane %v2150, 4
      %v2153 = vshll.u32 %v1954, 16
      %v2155 = vrot.slane %v2153, 5
      %v2156 = vor.u32 %v2152, %v2155
      %v2157 = vrot.slane %v2156, 4
      %v2159 = vshll.u32 %v1955, 16
      %v2161 = vrot.slane %v2159, 5
      %v2162 = vsel %vm461, %v2157, %v2161
      %v2163 = vshrl.u32 %v1955, 16
      %v2165 = vrot.slane %v2163, 4
      %v2166 = vor.u32 %v2165, %v2161
      %v2167 = vrot.slane %v2166, 4
      %v2169 = vshll.u32 %v1956, 16
      %v2171 = vrot.slane %v2169, 5
      %v2172 = vsel %vm461, %v2167, %v2171
      %v2174 = vshrl.u32 %v1957, 16
      %v2176 = vrot.slane %v2174, 4
      %v2177 = vshll.u32 %v1957, 16
      %v2179 = vrot.slane %v2177, 5
      %v2180 = vor.u32 %v2176, %v2179
      %v2181 = vrot.slane %v2180, 4
      %v2183 = vshll.u32 %v1958, 16
      %v2185 = vrot.slane %v2183, 5
      %v2186 = vsel %vm461, %v2181, %v2185
      %v2187 = vshrl.u32 %v1958, 16
      %v2189 = vrot.slane %v2187, 4
      %v2190 = vor.u32 %v2189, %v2185
      %v2191 = vrot.slane %v2190, 4
      %v2193 = vshll.u32 %v1959, 16
      %v2195 = vrot.slane %v2193, 5
      %v2196 = vsel %vm461, %v2191, %v2195
      %v2198 = vshrl.u32 %v1960, 16
      %v2200 = vrot.slane %v2198, 4
      %v2201 = vshll.u32 %v1960, 16
      %v2203 = vrot.slane %v2201, 5
      %v2204 = vor.u32 %v2200, %v2203
      %v2205 = vrot.slane %v2204, 4
      %v2207 = vshll.u32 %v1961, 16
      %v2209 = vrot.slane %v2207, 5
      %v2210 = vsel %vm461, %v2205, %v2209
      %v2211 = vshrl.u32 %v1961, 16
      %v2213 = vrot.slane %v2211, 4
      %v2214 = vor.u32 %v2213, %v2209
      %v2215 = vrot.slane %v2214, 4
      %v2217 = vshll.u32 %v1962, 16
      %v2219 = vrot.slane %v2217, 5
      %v2220 = vsel %vm461, %v2215, %v2219
      %v2222 = vshrl.u32 %v1963, 16
      %v2224 = vrot.slane %v2222, 4
      %v2225 = vshll.u32 %v1963, 16
      %v2227 = vrot.slane %v2225, 5
      %v2228 = vor.u32 %v2224, %v2227
      %v2229 = vrot.slane %v2228, 4
      %v2231 = vshll.u32 %v1964, 16
      %v2233 = vrot.slane %v2231, 5
      %v2234 = vsel %vm461, %v2229, %v2233
      %v2235 = vshrl.u32 %v1964, 16
      %v2237 = vrot.slane %v2235, 4
      %v2238 = vor.u32 %v2237, %v2233
      %v2239 = vrot.slane %v2238, 4
      %v2241 = vshll.u32 %v1965, 16
      %v2243 = vrot.slane %v2241, 5
      %v2244 = vsel %vm461, %v2239, %v2243
      %v2246 = vshrl.u32 %v1966, 16
      %v2248 = vrot.slane %v2246, 4
      %v2249 = vshll.u32 %v1966, 16
      %v2251 = vrot.slane %v2249, 5
      %v2252 = vor.u32 %v2248, %v2251
      %v2253 = vrot.slane %v2252, 4
      %v2255 = vshll.u32 %v1967, 16
      %v2257 = vrot.slane %v2255, 5
      %v2258 = vsel %vm461, %v2253, %v2257
      %v2259 = vshrl.u32 %v1967, 16
      %v2261 = vrot.slane %v2259, 4
      %v2262 = vor.u32 %v2261, %v2257
      %v2263 = vrot.slane %v2262, 4
      %v2265 = vshll.u32 %v1968, 16
      %v2267 = vrot.slane %v2265, 5
      %v2268 = vsel %vm461, %v2263, %v2267
      %v2270 = vshrl.u32 %v1969, 16
      %v2272 = vrot.slane %v2270, 4
      %v2273 = vshll.u32 %v1969, 16
      %v2275 = vrot.slane %v2273, 5
      %v2276 = vor.u32 %v2272, %v2275
      %v2277 = vrot.slane %v2276, 4
      %v2279 = vshll.u32 %v1970, 16
      %v2281 = vrot.slane %v2279, 5
      %v2282 = vsel %vm461, %v2277, %v2281
      %v2283 = vshrl.u32 %v1970, 16
      %v2285 = vrot.slane %v2283, 4
      %v2286 = vor.u32 %v2285, %v2281
      %v2287 = vrot.slane %v2286, 4
      %v2289 = vshll.u32 %v1971, 16
      %v2291 = vrot.slane %v2289, 5
      %v2292 = vsel %vm461, %v2287, %v2291
      %v2294 = vshrl.u32 %v1972, 16
      %v2296 = vrot.slane %v2294, 4
      %v2297 = vshll.u32 %v1972, 16
      %v2299 = vrot.slane %v2297, 5
      %v2300 = vor.u32 %v2296, %v2299
      %v2301 = vrot.slane %v2300, 4
      %v2303 = vshll.u32 %v1973, 16
      %v2305 = vrot.slane %v2303, 5
      %v2306 = vsel %vm461, %v2301, %v2305
      %v2307 = vshrl.u32 %v1973, 16
      %v2309 = vrot.slane %v2307, 4
      %v2310 = vor.u32 %v2309, %v2305
      %v2311 = vrot.slane %v2310, 4
      %v2313 = vshll.u32 %v1974, 16
      %v2315 = vrot.slane %v2313, 5
      %v2316 = vsel %vm461, %v2311, %v2315
      %v2318 = vshrl.u32 %v1975, 16
      %v2320 = vrot.slane %v2318, 4
      %v2321 = vshll.u32 %v1975, 16
      %v2323 = vrot.slane %v2321, 5
      %v2324 = vor.u32 %v2320, %v2323
      %v2325 = vrot.slane %v2324, 4
      %v2327 = vshll.u32 %v1976, 16
      %v2329 = vrot.slane %v2327, 5
      %v2330 = vsel %vm461, %v2325, %v2329
      %v2331 = vshrl.u32 %v1976, 16
      %v2333 = vrot.slane %v2331, 4
      %v2334 = vor.u32 %v2333, %v2329
      %v2335 = vrot.slane %v2334, 4
      %v2337 = vshll.u32 %v1977, 16
      %v2339 = vrot.slane %v2337, 5
      %v2340 = vsel %vm461, %v2335, %v2339
      %v2342 = vshrl.u32 %v1978, 16
      %v2344 = vrot.slane %v2342, 4
      %v2345 = vshll.u32 %v1978, 16
      %v2347 = vrot.slane %v2345, 5
      %v2348 = vor.u32 %v2344, %v2347
      %v2349 = vrot.slane %v2348, 4
      %v2351 = vshll.u32 %v1979, 16
      %v2353 = vrot.slane %v2351, 5
      %v2354 = vsel %vm461, %v2349, %v2353
      %v2355 = vshrl.u32 %v1979, 16
      %v2357 = vrot.slane %v2355, 4
      %v2358 = vor.u32 %v2357, %v2353
      %v2359 = vrot.slane %v2358, 4
      %v2361 = vshll.u32 %v1980, 16
      %v2363 = vrot.slane %v2361, 5
      %v2364 = vsel %vm461, %v2359, %v2363
      %s2365 = scalar_lea.vmem %s1, 8
      %v2366 = vld [vmem:[%s2365] sm:$0x3]
      %v2367 = vunpack.c.l.b16 %v1994
      %v2368 = vunpack.c.l.b16 %v2004
      %v2369 = vunpack.c.l.b16 %v2018
      %v2370 = vunpack.c.l.b16 %v2028
      %v2371 = vunpack.c.l.b16 %v2042
      %v2372 = vunpack.c.l.b16 %v2052
      %v2373 = vunpack.c.l.b16 %v2066
      %v2374 = vunpack.c.l.b16 %v2076
      %v2375 = vunpack.c.l.b16 %v2090
      %v2376 = vunpack.c.l.b16 %v2100
      %v2377 = vunpack.c.l.b16 %v2114
      %v2378 = vunpack.c.l.b16 %v2124
      %v2379 = vunpack.c.l.b16 %v2138
      %v2380 = vunpack.c.l.b16 %v2148
      %v2381 = vunpack.c.l.b16 %v2162
      %v2382 = vunpack.c.l.b16 %v2172
      %v2383 = vunpack.c.l.b16 %v2186
      %v2384 = vunpack.c.l.b16 %v2196
      %v2385 = vunpack.c.l.b16 %v2210
      %v2386 = vunpack.c.l.b16 %v2220
      %v2387 = vunpack.c.l.b16 %v2234
      %v2388 = vunpack.c.l.b16 %v2244
      %v2389 = vunpack.c.l.b16 %v2258
      %v2390 = vunpack.c.l.b16 %v2268
      %v2391 = vunpack.c.l.b16 %v2282
      %v2392 = vunpack.c.l.b16 %v2292
      %v2393 = vunpack.c.l.b16 %v2306
      %v2394 = vunpack.c.l.b16 %v2316
      %v2395 = vunpack.c.l.b16 %v2330
      %v2396 = vunpack.c.l.b16 %v2340
      %v2397 = vunpack.c.l.b16 %v2354
      %v2398 = vunpack.c.l.b16 %v2364
      %v2399 = vpack.c.b16 %v2368, %v2367
      %v2400 = vpack.c.b16 %v2370, %v2369
      %v2401 = vpack.c.b16 %v2372, %v2371
      %v2402 = vpack.c.b16 %v2374, %v2373
      %v2403 = vpack.c.b16 %v2376, %v2375
      %v2404 = vpack.c.b16 %v2378, %v2377
      %v2405 = vpack.c.b16 %v2380, %v2379
      %v2406 = vpack.c.b16 %v2382, %v2381
      %v2407 = vpack.c.b16 %v2384, %v2383
      %v2408 = vpack.c.b16 %v2386, %v2385
      %v2409 = vpack.c.b16 %v2388, %v2387
      %v2410 = vpack.c.b16 %v2390, %v2389
      %v2411 = vpack.c.b16 %v2392, %v2391
      %v2412 = vpack.c.b16 %v2394, %v2393
      %v2413 = vpack.c.b16 %v2396, %v2395
      %v2414 = vpack.c.b16 %v2398, %v2397
      %v2416 = vsel %vm896, %v2399, 0
      %v2419 = vsel %vm896, %v2400, 0
      %v2422 = vsel %vm896, %v2401, 0
      %v2425 = vsel %vm896, %v2402, 0
      %v2428 = vsel %vm896, %v2403, 0
      %v2431 = vsel %vm896, %v2404, 0
      %v2434 = vsel %vm896, %v2405, 0
      %v2437 = vsel %vm896, %v2406, 0
      %v2440 = vsel %vm896, %v2407, 0
      %v2443 = vsel %vm896, %v2408, 0
      %v2446 = vsel %vm896, %v2409, 0
      %v2449 = vsel %vm896, %v2410, 0
      %v2452 = vsel %vm896, %v2411, 0
      %v2455 = vsel %vm896, %v2412, 0
      %v2458 = vsel %vm896, %v2413, 0
      %v2461 = vsel %vm896, %v2414, 0
      %v2464 = vand.u32 %v2366, %v948
      %2466 = vmatpush.bf16.msra.mxu0 0
      %2467 = vmatpush.bf16.msra.mxu0 0
      %2468 = vmatpush.bf16.msra.mxu0 0
      %2469 = vmatpush.bf16.msra.mxu0 0
      %2470 = vmatpush.bf16.msra.mxu0 0
      %2471 = vmatpush.bf16.msra.mxu0 0
      %2472 = vmatpush.bf16.msra.mxu0 0
      %2473 = vmatpush.bf16.msra.mxu0 %v2464
      %2474 = vmatmul.bf16.gmra.mxu0 %v2416
      %v2475 = vpop.f32.mrf.mxu0
      %v2476 = vadd.f32 0.0, %v2475
      %v2477 = vpop.f32.mrf.mxu0
      %v2478 = vadd.f32 0.0, %v2477
      %2479 = vmatmul.bf16.gmra.mxu0 %v2419
      %v2480 = vpop.f32.mrf.mxu0
      %v2481 = vadd.f32 0.0, %v2480
      %v2482 = vpop.f32.mrf.mxu0
      %v2483 = vadd.f32 0.0, %v2482
      %2484 = vmatmul.bf16.gmra.mxu0 %v2422
      %v2485 = vpop.f32.mrf.mxu0
      %v2486 = vadd.f32 0.0, %v2485
      %v2487 = vpop.f32.mrf.mxu0
      %v2488 = vadd.f32 0.0, %v2487
      %2489 = vmatmul.bf16.gmra.mxu0 %v2425
      %v2490 = vpop.f32.mrf.mxu0
      %v2491 = vadd.f32 0.0, %v2490
      %v2492 = vpop.f32.mrf.mxu0
      %v2493 = vadd.f32 0.0, %v2492
      %2494 = vmatmul.bf16.gmra.mxu0 %v2428
      %v2495 = vpop.f32.mrf.mxu0
      %v2496 = vadd.f32 0.0, %v2495
      %v2497 = vpop.f32.mrf.mxu0
      %v2498 = vadd.f32 0.0, %v2497
      %2499 = vmatmul.bf16.gmra.mxu0 %v2431
      %v2500 = vpop.f32.mrf.mxu0
      %v2501 = vadd.f32 0.0, %v2500
      %v2502 = vpop.f32.mrf.mxu0
      %v2503 = vadd.f32 0.0, %v2502
      %2504 = vmatmul.bf16.gmra.mxu0 %v2434
      %v2505 = vpop.f32.mrf.mxu0
      %v2506 = vadd.f32 0.0, %v2505
      %v2507 = vpop.f32.mrf.mxu0
      %v2508 = vadd.f32 0.0, %v2507
      %2509 = vmatmul.bf16.gmra.mxu0 %v2437
      %v2510 = vpop.f32.mrf.mxu0
      %v2511 = vadd.f32 0.0, %v2510
      %v2512 = vpop.f32.mrf.mxu0
      %v2513 = vadd.f32 0.0, %v2512
      %2514 = vmatmul.bf16.gmra.mxu0 %v2440
      %v2515 = vpop.f32.mrf.mxu0
      %v2516 = vadd.f32 0.0, %v2515
      %v2517 = vpop.f32.mrf.mxu0
      %v2518 = vadd.f32 0.0, %v2517
      %2519 = vmatmul.bf16.gmra.mxu0 %v2443
      %v2520 = vpop.f32.mrf.mxu0
      %v2521 = vadd.f32 0.0, %v2520
      %v2522 = vpop.f32.mrf.mxu0
      %v2523 = vadd.f32 0.0, %v2522
      %2524 = vmatmul.bf16.gmra.mxu0 %v2446
      %v2525 = vpop.f32.mrf.mxu0
      %v2526 = vadd.f32 0.0, %v2525
      %v2527 = vpop.f32.mrf.mxu0
      %v2528 = vadd.f32 0.0, %v2527
      %2529 = vmatmul.bf16.gmra.mxu0 %v2449
      %v2530 = vpop.f32.mrf.mxu0
      %v2531 = vadd.f32 0.0, %v2530
      %v2532 = vpop.f32.mrf.mxu0
      %v2533 = vadd.f32 0.0, %v2532
      %2534 = vmatmul.bf16.gmra.mxu0 %v2452
      %v2535 = vpop.f32.mrf.mxu0
      %v2536 = vadd.f32 0.0, %v2535
      %v2537 = vpop.f32.mrf.mxu0
      %v2538 = vadd.f32 0.0, %v2537
      %2539 = vmatmul.bf16.gmra.mxu0 %v2455
      %v2540 = vpop.f32.mrf.mxu0
      %v2541 = vadd.f32 0.0, %v2540
      %v2542 = vpop.f32.mrf.mxu0
      %v2543 = vadd.f32 0.0, %v2542
      %2544 = vmatmul.bf16.gmra.mxu0 %v2458
      %v2545 = vpop.f32.mrf.mxu0
      %v2546 = vadd.f32 0.0, %v2545
      %v2547 = vpop.f32.mrf.mxu0
      %v2548 = vadd.f32 0.0, %v2547
      %2549 = vmatmul.bf16.gmra.mxu0 %v2461
      %v2550 = vpop.f32.mrf.mxu0
      %v2551 = vadd.f32 0.0, %v2550
      %v2552 = vpop.f32.mrf.mxu0
      %v2553 = vadd.f32 0.0, %v2552
      %2554 = vdwg.mxu0
      %v2555 = vadd.f32 %v1901, %v2476
      %v2556 = vadd.f32 %v1902, %v2478
      %v2557 = vadd.f32 %v1903, %v2481
      %v2558 = vadd.f32 %v1904, %v2483
      %v2559 = vadd.f32 %v1905, %v2486
      %v2560 = vadd.f32 %v1906, %v2488
      %v2561 = vadd.f32 %v1907, %v2491
      %v2562 = vadd.f32 %v1908, %v2493
      %v2563 = vadd.f32 %v1909, %v2496
      %v2564 = vadd.f32 %v1910, %v2498
      %v2565 = vadd.f32 %v1911, %v2501
      %v2566 = vadd.f32 %v1912, %v2503
      %v2567 = vadd.f32 %v1913, %v2506
      %v2568 = vadd.f32 %v1914, %v2508
      %v2569 = vadd.f32 %v1915, %v2511
      %v2570 = vadd.f32 %v1916, %v2513
      %v2571 = vadd.f32 %v1917, %v2516
      %v2572 = vadd.f32 %v1918, %v2518
      %v2573 = vadd.f32 %v1919, %v2521
      %v2574 = vadd.f32 %v1920, %v2523
      %v2575 = vadd.f32 %v1921, %v2526
      %v2576 = vadd.f32 %v1922, %v2528
      %v2577 = vadd.f32 %v1923, %v2531
      %v2578 = vadd.f32 %v1924, %v2533
      %v2579 = vadd.f32 %v1925, %v2536
      %v2580 = vadd.f32 %v1926, %v2538
      %v2581 = vadd.f32 %v1927, %v2541
      %v2582 = vadd.f32 %v1928, %v2543
      %v2583 = vadd.f32 %v1929, %v2546
      %v2584 = vadd.f32 %v1930, %v2548
      %v2585 = vadd.f32 %v1931, %v2551
      %v2586 = vadd.f32 %v1932, %v2553
      %v2587 = vld [vmem:[%s1646] sm:$0xe]
      %v2588 = vld [vmem:[%s1646 + $0xc] sm:$0xe]
      %v2589 = vld [vmem:[%s1646 + $0x18] sm:$0xe]
      %v2590 = vld [vmem:[%s1646 + $0x24] sm:$0xe]
      %v2591 = vld [vmem:[%s1646 + $0x30] sm:$0xe]
      %v2592 = vld [vmem:[%s1646 + $0x3c] sm:$0xe]
      %v2593 = vld [vmem:[%s1646 + $0x48] sm:$0xe]
      %v2594 = vld [vmem:[%s1646 + $0x54] sm:$0xe]
      %v2595 = vld [vmem:[%s1646 + $0x60] sm:$0xe]
      %v2596 = vld [vmem:[%s1646 + $0x6c] sm:$0xe]
      %v2597 = vld [vmem:[%s1646 + $0x78] sm:$0xe]
      %v2598 = vld [vmem:[%s1646 + $0x84] sm:$0xe]
      %v2599 = vld [vmem:[%s1646 + $0x90] sm:$0xe]
      %v2600 = vld [vmem:[%s1646 + $0x9c] sm:$0xe]
      %v2601 = vld [vmem:[%s1646 + $0xa8] sm:$0xe]
      %v2602 = vld [vmem:[%s1646 + $0xb4] sm:$0xe]
      %v2651 = vrot.slane %v2587, 5
      %v2652 = vrot.slane %v2651, 4
      %v2653 = vrot.slane %v1934, 5
      %v2654 = vsel %vm1311, %v2652, %v2653
      %v2655 = vrot.slane %v2653, 4
      %v2656 = vrot.slane %v1935, 5
      %v2657 = vsel %vm1311, %v2655, %v2656
      %v2658 = vrot.slane %v2588, 5
      %v2659 = vrot.slane %v2658, 4
      %v2660 = vrot.slane %v1937, 5
      %v2661 = vsel %vm1311, %v2659, %v2660
      %v2662 = vrot.slane %v2660, 4
      %v2663 = vrot.slane %v1938, 5
      %v2664 = vsel %vm1311, %v2662, %v2663
      %v2665 = vrot.slane %v2589, 5
      %v2666 = vrot.slane %v2665, 4
      %v2667 = vrot.slane %v1940, 5
      %v2668 = vsel %vm1311, %v2666, %v2667
      %v2669 = vrot.slane %v2667, 4
      %v2670 = vrot.slane %v1941, 5
      %v2671 = vsel %vm1311, %v2669, %v2670
      %v2672 = vrot.slane %v2590, 5
      %v2673 = vrot.slane %v2672, 4
      %v2674 = vrot.slane %v1943, 5
      %v2675 = vsel %vm1311, %v2673, %v2674
      %v2676 = vrot.slane %v2674, 4
      %v2677 = vrot.slane %v1944, 5
      %v2678 = vsel %vm1311, %v2676, %v2677
      %v2679 = vrot.slane %v2591, 5
      %v2680 = vrot.slane %v2679, 4
      %v2681 = vrot.slane %v1946, 5
      %v2682 = vsel %vm1311, %v2680, %v2681
      %v2683 = vrot.slane %v2681, 4
      %v2684 = vrot.slane %v1947, 5
      %v2685 = vsel %vm1311, %v2683, %v2684
      %v2686 = vrot.slane %v2592, 5
      %v2687 = vrot.slane %v2686, 4
      %v2688 = vrot.slane %v1949, 5
      %v2689 = vsel %vm1311, %v2687, %v2688
      %v2690 = vrot.slane %v2688, 4
      %v2691 = vrot.slane %v1950, 5
      %v2692 = vsel %vm1311, %v2690, %v2691
      %v2693 = vrot.slane %v2593, 5
      %v2694 = vrot.slane %v2693, 4
      %v2695 = vrot.slane %v1952, 5
      %v2696 = vsel %vm1311, %v2694, %v2695
      %v2697 = vrot.slane %v2695, 4
      %v2698 = vrot.slane %v1953, 5
      %v2699 = vsel %vm1311, %v2697, %v2698
      %v2700 = vrot.slane %v2594, 5
      %v2701 = vrot.slane %v2700, 4
      %v2702 = vrot.slane %v1955, 5
      %v2703 = vsel %vm1311, %v2701, %v2702
      %v2704 = vrot.slane %v2702, 4
      %v2705 = vrot.slane %v1956, 5
      %v2706 = vsel %vm1311, %v2704, %v2705
      %v2707 = vrot.slane %v2595, 5
      %v2708 = vrot.slane %v2707, 4
      %v2709 = vrot.slane %v1958, 5
      %v2710 = vsel %vm1311, %v2708, %v2709
      %v2711 = vrot.slane %v2709, 4
      %v2712 = vrot.slane %v1959, 5
      %v2713 = vsel %vm1311, %v2711, %v2712
      %v2714 = vrot.slane %v2596, 5
      %v2715 = vrot.slane %v2714, 4
      %v2716 = vrot.slane %v1961, 5
      %v2717 = vsel %vm1311, %v2715, %v2716
      %v2718 = vrot.slane %v2716, 4
      %v2719 = vrot.slane %v1962, 5
      %v2720 = vsel %vm1311, %v2718, %v2719
      %v2721 = vrot.slane %v2597, 5
      %v2722 = vrot.slane %v2721, 4
      %v2723 = vrot.slane %v1964, 5
      %v2724 = vsel %vm1311, %v2722, %v2723
      %v2725 = vrot.slane %v2723, 4
      %v2726 = vrot.slane %v1965, 5
      %v2727 = vsel %vm1311, %v2725, %v2726
      %v2728 = vrot.slane %v2598, 5
      %v2729 = vrot.slane %v2728, 4
      %v2730 = vrot.slane %v1967, 5
      %v2731 = vsel %vm1311, %v2729, %v2730
      %v2732 = vrot.slane %v2730, 4
      %v2733 = vrot.slane %v1968, 5
      %v2734 = vsel %vm1311, %v2732, %v2733
      %v2735 = vrot.slane %v2599, 5
      %v2736 = vrot.slane %v2735, 4
      %v2737 = vrot.slane %v1970, 5
      %v2738 = vsel %vm1311, %v2736, %v2737
      %v2739 = vrot.slane %v2737, 4
      %v2740 = vrot.slane %v1971, 5
      %v2741 = vsel %vm1311, %v2739, %v2740
      %v2742 = vrot.slane %v2600, 5
      %v2743 = vrot.slane %v2742, 4
      %v2744 = vrot.slane %v1973, 5
      %v2745 = vsel %vm1311, %v2743, %v2744
      %v2746 = vrot.slane %v2744, 4
      %v2747 = vrot.slane %v1974, 5
      %v2748 = vsel %vm1311, %v2746, %v2747
      %v2749 = vrot.slane %v2601, 5
      %v2750 = vrot.slane %v2749, 4
      %v2751 = vrot.slane %v1976, 5
      %v2752 = vsel %vm1311, %v2750, %v2751
      %v2753 = vrot.slane %v2751, 4
      %v2754 = vrot.slane %v1977, 5
      %v2755 = vsel %vm1311, %v2753, %v2754
      %v2756 = vrot.slane %v2602, 5
      %v2757 = vrot.slane %v2756, 4
      %v2758 = vrot.slane %v1979, 5
      %v2759 = vsel %vm1311, %v2757, %v2758
      %v2760 = vrot.slane %v2758, 4
      %v2761 = vrot.slane %v1980, 5
      %v2762 = vsel %vm1311, %v2760, %v2761
      %s2763 = scalar_lea.vmem %s1, 10
      %v2764 = vld [vmem:[%s2763] sm:$0x3]
      %v2765 = vunpack.c.l.b16 %v2654
      %v2766 = vunpack.c.l.b16 %v2657
      %v2767 = vunpack.c.l.b16 %v2661
      %v2768 = vunpack.c.l.b16 %v2664
      %v2769 = vunpack.c.l.b16 %v2668
      %v2770 = vunpack.c.l.b16 %v2671
      %v2771 = vunpack.c.l.b16 %v2675
      %v2772 = vunpack.c.l.b16 %v2678
      %v2773 = vunpack.c.l.b16 %v2682
      %v2774 = vunpack.c.l.b16 %v2685
      %v2775 = vunpack.c.l.b16 %v2689
      %v2776 = vunpack.c.l.b16 %v2692
      %v2777 = vunpack.c.l.b16 %v2696
      %v2778 = vunpack.c.l.b16 %v2699
      %v2779 = vunpack.c.l.b16 %v2703
      %v2780 = vunpack.c.l.b16 %v2706
      %v2781 = vunpack.c.l.b16 %v2710
      %v2782 = vunpack.c.l.b16 %v2713
      %v2783 = vunpack.c.l.b16 %v2717
      %v2784 = vunpack.c.l.b16 %v2720
      %v2785 = vunpack.c.l.b16 %v2724
      %v2786 = vunpack.c.l.b16 %v2727
      %v2787 = vunpack.c.l.b16 %v2731
      %v2788 = vunpack.c.l.b16 %v2734
      %v2789 = vunpack.c.l.b16 %v2738
      %v2790 = vunpack.c.l.b16 %v2741
      %v2791 = vunpack.c.l.b16 %v2745
      %v2792 = vunpack.c.l.b16 %v2748
      %v2793 = vunpack.c.l.b16 %v2752
      %v2794 = vunpack.c.l.b16 %v2755
      %v2795 = vunpack.c.l.b16 %v2759
      %v2796 = vunpack.c.l.b16 %v2762
      %v2797 = vpack.c.b16 %v2766, %v2765
      %v2798 = vpack.c.b16 %v2768, %v2767
      %v2799 = vpack.c.b16 %v2770, %v2769
      %v2800 = vpack.c.b16 %v2772, %v2771
      %v2801 = vpack.c.b16 %v2774, %v2773
      %v2802 = vpack.c.b16 %v2776, %v2775
      %v2803 = vpack.c.b16 %v2778, %v2777
      %v2804 = vpack.c.b16 %v2780, %v2779
      %v2805 = vpack.c.b16 %v2782, %v2781
      %v2806 = vpack.c.b16 %v2784, %v2783
      %v2807 = vpack.c.b16 %v2786, %v2785
      %v2808 = vpack.c.b16 %v2788, %v2787
      %v2809 = vpack.c.b16 %v2790, %v2789
      %v2810 = vpack.c.b16 %v2792, %v2791
      %v2811 = vpack.c.b16 %v2794, %v2793
      %v2812 = vpack.c.b16 %v2796, %v2795
      %v2814 = vsel %vm896, %v2797, 0
      %v2817 = vsel %vm896, %v2798, 0
      %v2820 = vsel %vm896, %v2799, 0
      %v2823 = vsel %vm896, %v2800, 0
      %v2826 = vsel %vm896, %v2801, 0
      %v2829 = vsel %vm896, %v2802, 0
      %v2832 = vsel %vm896, %v2803, 0
      %v2835 = vsel %vm896, %v2804, 0
      %v2838 = vsel %vm896, %v2805, 0
      %v2841 = vsel %vm896, %v2806, 0
      %v2844 = vsel %vm896, %v2807, 0
      %v2847 = vsel %vm896, %v2808, 0
      %v2850 = vsel %vm896, %v2809, 0
      %v2853 = vsel %vm896, %v2810, 0
      %v2856 = vsel %vm896, %v2811, 0
      %v2859 = vsel %vm896, %v2812, 0
      %v2862 = vand.u32 %v2764, %v948
      %2864 = vmatpush.bf16.msra.mxu0 0
      %2865 = vmatpush.bf16.msra.mxu0 0
      %2866 = vmatpush.bf16.msra.mxu0 0
      %2867 = vmatpush.bf16.msra.mxu0 0
      %2868 = vmatpush.bf16.msra.mxu0 0
      %2869 = vmatpush.bf16.msra.mxu0 0
      %2870 = vmatpush.bf16.msra.mxu0 0
      %2871 = vmatpush.bf16.msra.mxu0 %v2862
      %2872 = vmatmul.bf16.gmra.mxu0 %v2814
      %v2873 = vpop.f32.mrf.mxu0
      %v2874 = vadd.f32 0.0, %v2873
      %v2875 = vpop.f32.mrf.mxu0
      %v2876 = vadd.f32 0.0, %v2875
      %2877 = vmatmul.bf16.gmra.mxu0 %v2817
      %v2878 = vpop.f32.mrf.mxu0
      %v2879 = vadd.f32 0.0, %v2878
      %v2880 = vpop.f32.mrf.mxu0
      %v2881 = vadd.f32 0.0, %v2880
      %2882 = vmatmul.bf16.gmra.mxu0 %v2820
      %v2883 = vpop.f32.mrf.mxu0
      %v2884 = vadd.f32 0.0, %v2883
      %v2885 = vpop.f32.mrf.mxu0
      %v2886 = vadd.f32 0.0, %v2885
      %2887 = vmatmul.bf16.gmra.mxu0 %v2823
      %v2888 = vpop.f32.mrf.mxu0
      %v2889 = vadd.f32 0.0, %v2888
      %v2890 = vpop.f32.mrf.mxu0
      %v2891 = vadd.f32 0.0, %v2890
      %2892 = vmatmul.bf16.gmra.mxu0 %v2826
      %v2893 = vpop.f32.mrf.mxu0
      %v2894 = vadd.f32 0.0, %v2893
      %v2895 = vpop.f32.mrf.mxu0
      %v2896 = vadd.f32 0.0, %v2895
      %2897 = vmatmul.bf16.gmra.mxu0 %v2829
      %v2898 = vpop.f32.mrf.mxu0
      %v2899 = vadd.f32 0.0, %v2898
      %v2900 = vpop.f32.mrf.mxu0
      %v2901 = vadd.f32 0.0, %v2900
      %2902 = vmatmul.bf16.gmra.mxu0 %v2832
      %v2903 = vpop.f32.mrf.mxu0
      %v2904 = vadd.f32 0.0, %v2903
      %v2905 = vpop.f32.mrf.mxu0
      %v2906 = vadd.f32 0.0, %v2905
      %2907 = vmatmul.bf16.gmra.mxu0 %v2835
      %v2908 = vpop.f32.mrf.mxu0
      %v2909 = vadd.f32 0.0, %v2908
      %v2910 = vpop.f32.mrf.mxu0
      %v2911 = vadd.f32 0.0, %v2910
      %2912 = vmatmul.bf16.gmra.mxu0 %v2838
      %v2913 = vpop.f32.mrf.mxu0
      %v2914 = vadd.f32 0.0, %v2913
      %v2915 = vpop.f32.mrf.mxu0
      %v2916 = vadd.f32 0.0, %v2915
      %2917 = vmatmul.bf16.gmra.mxu0 %v2841
      %v2918 = vpop.f32.mrf.mxu0
      %v2919 = vadd.f32 0.0, %v2918
      %v2920 = vpop.f32.mrf.mxu0
      %v2921 = vadd.f32 0.0, %v2920
      %2922 = vmatmul.bf16.gmra.mxu0 %v2844
      %v2923 = vpop.f32.mrf.mxu0
      %v2924 = vadd.f32 0.0, %v2923
      %v2925 = vpop.f32.mrf.mxu0
      %v2926 = vadd.f32 0.0, %v2925
      %2927 = vmatmul.bf16.gmra.mxu0 %v2847
      %v2928 = vpop.f32.mrf.mxu0
      %v2929 = vadd.f32 0.0, %v2928
      %v2930 = vpop.f32.mrf.mxu0
      %v2931 = vadd.f32 0.0, %v2930
      %2932 = vmatmul.bf16.gmra.mxu0 %v2850
      %v2933 = vpop.f32.mrf.mxu0
      %v2934 = vadd.f32 0.0, %v2933
      %v2935 = vpop.f32.mrf.mxu0
      %v2936 = vadd.f32 0.0, %v2935
      %2937 = vmatmul.bf16.gmra.mxu0 %v2853
      %v2938 = vpop.f32.mrf.mxu0
      %v2939 = vadd.f32 0.0, %v2938
      %v2940 = vpop.f32.mrf.mxu0
      %v2941 = vadd.f32 0.0, %v2940
      %2942 = vmatmul.bf16.gmra.mxu0 %v2856
      %v2943 = vpop.f32.mrf.mxu0
      %v2944 = vadd.f32 0.0, %v2943
      %v2945 = vpop.f32.mrf.mxu0
      %v2946 = vadd.f32 0.0, %v2945
      %2947 = vmatmul.bf16.gmra.mxu0 %v2859
      %v2948 = vpop.f32.mrf.mxu0
      %v2949 = vadd.f32 0.0, %v2948
      %v2950 = vpop.f32.mrf.mxu0
      %v2951 = vadd.f32 0.0, %v2950
      %2952 = vdwg.mxu0
      %v2953 = vadd.f32 %v2555, %v2874
      %v2954 = vadd.f32 %v2556, %v2876
      %v2955 = vadd.f32 %v2557, %v2879
      %v2956 = vadd.f32 %v2558, %v2881
      %v2957 = vadd.f32 %v2559, %v2884
      %v2958 = vadd.f32 %v2560, %v2886
      %v2959 = vadd.f32 %v2561, %v2889
      %v2960 = vadd.f32 %v2562, %v2891
      %v2961 = vadd.f32 %v2563, %v2894
      %v2962 = vadd.f32 %v2564, %v2896
      %v2963 = vadd.f32 %v2565, %v2899
      %v2964 = vadd.f32 %v2566, %v2901
      %v2965 = vadd.f32 %v2567, %v2904
      %v2966 = vadd.f32 %v2568, %v2906
      %v2967 = vadd.f32 %v2569, %v2909
      %v2968 = vadd.f32 %v2570, %v2911
      %v2969 = vadd.f32 %v2571, %v2914
      %v2970 = vadd.f32 %v2572, %v2916
      %v2971 = vadd.f32 %v2573, %v2919
      %v2972 = vadd.f32 %v2574, %v2921
      %v2973 = vadd.f32 %v2575, %v2924
      %v2974 = vadd.f32 %v2576, %v2926
      %v2975 = vadd.f32 %v2577, %v2929
      %v2976 = vadd.f32 %v2578, %v2931
      %v2977 = vadd.f32 %v2579, %v2934
      %v2978 = vadd.f32 %v2580, %v2936
      %v2979 = vadd.f32 %v2581, %v2939
      %v2980 = vadd.f32 %v2582, %v2941
      %v2981 = vadd.f32 %v2583, %v2944
      %v2982 = vadd.f32 %v2584, %v2946
      %v2983 = vadd.f32 %v2585, %v2949
      %v2984 = vadd.f32 %v2586, %v2951
      %s2985 = scalar_lea.vmem %s394, 24
      %v2986 = vld [vmem:[%s2985] sm:$0xf]
      %v2987 = vld [vmem:[%s2985 + $0x4] sm:$0xf]
      %v2988 = vld [vmem:[%s2985 + $0xc] sm:$0xf]
      %v2989 = vld [vmem:[%s2985 + $0x10] sm:$0xf]
      %v2990 = vld [vmem:[%s2985 + $0x18] sm:$0xf]
      %v2991 = vld [vmem:[%s2985 + $0x1c] sm:$0xf]
      %v2992 = vld [vmem:[%s2985 + $0x24] sm:$0xf]
      %v2993 = vld [vmem:[%s2985 + $0x28] sm:$0xf]
      %v2994 = vld [vmem:[%s2985 + $0x30] sm:$0xf]
      %v2995 = vld [vmem:[%s2985 + $0x34] sm:$0xf]
      %v2996 = vld [vmem:[%s2985 + $0x3c] sm:$0xf]
      %v2997 = vld [vmem:[%s2985 + $0x40] sm:$0xf]
      %v2998 = vld [vmem:[%s2985 + $0x48] sm:$0xf]
      %v2999 = vld [vmem:[%s2985 + $0x4c] sm:$0xf]
      %v3000 = vld [vmem:[%s2985 + $0x54] sm:$0xf]
      %v3001 = vld [vmem:[%s2985 + $0x58] sm:$0xf]
      %v3002 = vld [vmem:[%s2985 + $0x60] sm:$0xf]
      %v3003 = vld [vmem:[%s2985 + $0x64] sm:$0xf]
      %v3004 = vld [vmem:[%s2985 + $0x6c] sm:$0xf]
      %v3005 = vld [vmem:[%s2985 + $0x70] sm:$0xf]
      %v3006 = vld [vmem:[%s2985 + $0x78] sm:$0xf]
      %v3007 = vld [vmem:[%s2985 + $0x7c] sm:$0xf]
      %v3008 = vld [vmem:[%s2985 + $0x84] sm:$0xf]
      %v3009 = vld [vmem:[%s2985 + $0x88] sm:$0xf]
      %v3010 = vld [vmem:[%s2985 + $0x90] sm:$0xf]
      %v3011 = vld [vmem:[%s2985 + $0x94] sm:$0xf]
      %v3012 = vld [vmem:[%s2985 + $0x9c] sm:$0xf]
      %v3013 = vld [vmem:[%s2985 + $0xa0] sm:$0xf]
      %v3014 = vld [vmem:[%s2985 + $0xa8] sm:$0xf]
      %v3015 = vld [vmem:[%s2985 + $0xac] sm:$0xf]
      %v3016 = vld [vmem:[%s2985 + $0xb4] sm:$0xf]
      %v3017 = vld [vmem:[%s2985 + $0xb8] sm:$0xf]
      %s3018 = scalar_lea.vmem %s1, 12
      %v3019 = vld [vmem:[%s3018] sm:$0x3]
      %v3052 = vunpack.c.l.b16 %v2986
      %v3053 = vunpack.c.l.b16 %v2987
      %v3054 = vunpack.c.l.b16 %v2988
      %v3055 = vunpack.c.l.b16 %v2989
      %v3056 = vunpack.c.l.b16 %v2990
      %v3057 = vunpack.c.l.b16 %v2991
      %v3058 = vunpack.c.l.b16 %v2992
      %v3059 = vunpack.c.l.b16 %v2993
      %v3060 = vunpack.c.l.b16 %v2994
      %v3061 = vunpack.c.l.b16 %v2995
      %v3062 = vunpack.c.l.b16 %v2996
      %v3063 = vunpack.c.l.b16 %v2997
      %v3064 = vunpack.c.l.b16 %v2998
      %v3065 = vunpack.c.l.b16 %v2999
      %v3066 = vunpack.c.l.b16 %v3000
      %v3067 = vunpack.c.l.b16 %v3001
      %v3068 = vunpack.c.l.b16 %v3002
      %v3069 = vunpack.c.l.b16 %v3003
      %v3070 = vunpack.c.l.b16 %v3004
      %v3071 = vunpack.c.l.b16 %v3005
      %v3072 = vunpack.c.l.b16 %v3006
      %v3073 = vunpack.c.l.b16 %v3007
      %v3074 = vunpack.c.l.b16 %v3008
      %v3075 = vunpack.c.l.b16 %v3009
      %v3076 = vunpack.c.l.b16 %v3010
      %v3077 = vunpack.c.l.b16 %v3011
      %v3078 = vunpack.c.l.b16 %v3012
      %v3079 = vunpack.c.l.b16 %v3013
      %v3080 = vunpack.c.l.b16 %v3014
      %v3081 = vunpack.c.l.b16 %v3015
      %v3082 = vunpack.c.l.b16 %v3016
      %v3083 = vunpack.c.l.b16 %v3017
      %v3084 = vpack.c.b16 %v3053, %v3052
      %v3085 = vpack.c.b16 %v3055, %v3054
      %v3086 = vpack.c.b16 %v3057, %v3056
      %v3087 = vpack.c.b16 %v3059, %v3058
      %v3088 = vpack.c.b16 %v3061, %v3060
      %v3089 = vpack.c.b16 %v3063, %v3062
      %v3090 = vpack.c.b16 %v3065, %v3064
      %v3091 = vpack.c.b16 %v3067, %v3066
      %v3092 = vpack.c.b16 %v3069, %v3068
      %v3093 = vpack.c.b16 %v3071, %v3070
      %v3094 = vpack.c.b16 %v3073, %v3072
      %v3095 = vpack.c.b16 %v3075, %v3074
      %v3096 = vpack.c.b16 %v3077, %v3076
      %v3097 = vpack.c.b16 %v3079, %v3078
      %v3098 = vpack.c.b16 %v3081, %v3080
      %v3099 = vpack.c.b16 %v3083, %v3082
      %v3101 = vsel %vm896, %v3084, 0
      %v3104 = vsel %vm896, %v3085, 0
      %v3107 = vsel %vm896, %v3086, 0
      %v3110 = vsel %vm896, %v3087, 0
      %v3113 = vsel %vm896, %v3088, 0
      %v3116 = vsel %vm896, %v3089, 0
      %v3119 = vsel %vm896, %v3090, 0
      %v3122 = vsel %vm896, %v3091, 0
      %v3125 = vsel %vm896, %v3092, 0
      %v3128 = vsel %vm896, %v3093, 0
      %v3131 = vsel %vm896, %v3094, 0
      %v3134 = vsel %vm896, %v3095, 0
      %v3137 = vsel %vm896, %v3096, 0
      %v3140 = vsel %vm896, %v3097, 0
      %v3143 = vsel %vm896, %v3098, 0
      %v3146 = vsel %vm896, %v3099, 0
      %v3149 = vand.u32 %v3019, %v948
      %3151 = vmatpush.bf16.msra.mxu0 0
      %3152 = vmatpush.bf16.msra.mxu0 0
      %3153 = vmatpush.bf16.msra.mxu0 0
      %3154 = vmatpush.bf16.msra.mxu0 0
      %3155 = vmatpush.bf16.msra.mxu0 0
      %3156 = vmatpush.bf16.msra.mxu0 0
      %3157 = vmatpush.bf16.msra.mxu0 0
      %3158 = vmatpush.bf16.msra.mxu0 %v3149
      %3159 = vmatmul.bf16.gmra.mxu0 %v3101
      %v3160 = vpop.f32.mrf.mxu0
      %v3161 = vadd.f32 0.0, %v3160
      %v3162 = vpop.f32.mrf.mxu0
      %v3163 = vadd.f32 0.0, %v3162
      %3164 = vmatmul.bf16.gmra.mxu0 %v3104
      %v3165 = vpop.f32.mrf.mxu0
      %v3166 = vadd.f32 0.0, %v3165
      %v3167 = vpop.f32.mrf.mxu0
      %v3168 = vadd.f32 0.0, %v3167
      %3169 = vmatmul.bf16.gmra.mxu0 %v3107
      %v3170 = vpop.f32.mrf.mxu0
      %v3171 = vadd.f32 0.0, %v3170
      %v3172 = vpop.f32.mrf.mxu0
      %v3173 = vadd.f32 0.0, %v3172
      %3174 = vmatmul.bf16.gmra.mxu0 %v3110
      %v3175 = vpop.f32.mrf.mxu0
      %v3176 = vadd.f32 0.0, %v3175
      %v3177 = vpop.f32.mrf.mxu0
      %v3178 = vadd.f32 0.0, %v3177
      %3179 = vmatmul.bf16.gmra.mxu0 %v3113
      %v3180 = vpop.f32.mrf.mxu0
      %v3181 = vadd.f32 0.0, %v3180
      %v3182 = vpop.f32.mrf.mxu0
      %v3183 = vadd.f32 0.0, %v3182
      %3184 = vmatmul.bf16.gmra.mxu0 %v3116
      %v3185 = vpop.f32.mrf.mxu0
      %v3186 = vadd.f32 0.0, %v3185
      %v3187 = vpop.f32.mrf.mxu0
      %v3188 = vadd.f32 0.0, %v3187
      %3189 = vmatmul.bf16.gmra.mxu0 %v3119
      %v3190 = vpop.f32.mrf.mxu0
      %v3191 = vadd.f32 0.0, %v3190
      %v3192 = vpop.f32.mrf.mxu0
      %v3193 = vadd.f32 0.0, %v3192
      %3194 = vmatmul.bf16.gmra.mxu0 %v3122
      %v3195 = vpop.f32.mrf.mxu0
      %v3196 = vadd.f32 0.0, %v3195
      %v3197 = vpop.f32.mrf.mxu0
      %v3198 = vadd.f32 0.0, %v3197
      %3199 = vmatmul.bf16.gmra.mxu0 %v3125
      %v3200 = vpop.f32.mrf.mxu0
      %v3201 = vadd.f32 0.0, %v3200
      %v3202 = vpop.f32.mrf.mxu0
      %v3203 = vadd.f32 0.0, %v3202
      %3204 = vmatmul.bf16.gmra.mxu0 %v3128
      %v3205 = vpop.f32.mrf.mxu0
      %v3206 = vadd.f32 0.0, %v3205
      %v3207 = vpop.f32.mrf.mxu0
      %v3208 = vadd.f32 0.0, %v3207
      %3209 = vmatmul.bf16.gmra.mxu0 %v3131
      %v3210 = vpop.f32.mrf.mxu0
      %v3211 = vadd.f32 0.0, %v3210
      %v3212 = vpop.f32.mrf.mxu0
      %v3213 = vadd.f32 0.0, %v3212
      %3214 = vmatmul.bf16.gmra.mxu0 %v3134
      %v3215 = vpop.f32.mrf.mxu0
      %v3216 = vadd.f32 0.0, %v3215
      %v3217 = vpop.f32.mrf.mxu0
      %v3218 = vadd.f32 0.0, %v3217
      %3219 = vmatmul.bf16.gmra.mxu0 %v3137
      %v3220 = vpop.f32.mrf.mxu0
      %v3221 = vadd.f32 0.0, %v3220
      %v3222 = vpop.f32.mrf.mxu0
      %v3223 = vadd.f32 0.0, %v3222
      %3224 = vmatmul.bf16.gmra.mxu0 %v3140
      %v3225 = vpop.f32.mrf.mxu0
      %v3226 = vadd.f32 0.0, %v3225
      %v3227 = vpop.f32.mrf.mxu0
      %v3228 = vadd.f32 0.0, %v3227
      %3229 = vmatmul.bf16.gmra.mxu0 %v3143
      %v3230 = vpop.f32.mrf.mxu0
      %v3231 = vadd.f32 0.0, %v3230
      %v3232 = vpop.f32.mrf.mxu0
      %v3233 = vadd.f32 0.0, %v3232
      %3234 = vmatmul.bf16.gmra.mxu0 %v3146
      %v3235 = vpop.f32.mrf.mxu0
      %v3236 = vadd.f32 0.0, %v3235
      %v3237 = vpop.f32.mrf.mxu0
      %v3238 = vadd.f32 0.0, %v3237
      %3239 = vdwg.mxu0
      %v3240 = vadd.f32 %v2953, %v3161
      %v3241 = vadd.f32 %v2954, %v3163
      %v3242 = vadd.f32 %v2955, %v3166
      %v3243 = vadd.f32 %v2956, %v3168
      %v3244 = vadd.f32 %v2957, %v3171
      %v3245 = vadd.f32 %v2958, %v3173
      %v3246 = vadd.f32 %v2959, %v3176
      %v3247 = vadd.f32 %v2960, %v3178
      %v3248 = vadd.f32 %v2961, %v3181
      %v3249 = vadd.f32 %v2962, %v3183
      %v3250 = vadd.f32 %v2963, %v3186
      %v3251 = vadd.f32 %v2964, %v3188
      %v3252 = vadd.f32 %v2965, %v3191
      %v3253 = vadd.f32 %v2966, %v3193
      %v3254 = vadd.f32 %v2967, %v3196
      %v3255 = vadd.f32 %v2968, %v3198
      %v3256 = vadd.f32 %v2969, %v3201
      %v3257 = vadd.f32 %v2970, %v3203
      %v3258 = vadd.f32 %v2971, %v3206
      %v3259 = vadd.f32 %v2972, %v3208
      %v3260 = vadd.f32 %v2973, %v3211
      %v3261 = vadd.f32 %v2974, %v3213
      %v3262 = vadd.f32 %v2975, %v3216
      %v3263 = vadd.f32 %v2976, %v3218
      %v3264 = vadd.f32 %v2977, %v3221
      %v3265 = vadd.f32 %v2978, %v3223
      %v3266 = vadd.f32 %v2979, %v3226
      %v3267 = vadd.f32 %v2980, %v3228
      %v3268 = vadd.f32 %v2981, %v3231
      %v3269 = vadd.f32 %v2982, %v3233
      %v3270 = vadd.f32 %v2983, %v3236
      %v3271 = vadd.f32 %v2984, %v3238
      %v3272 = vld [vmem:[%s2985] sm:$0xf]
      %v3273 = vld [vmem:[%s2985 + $0x4] sm:$0xf]
      %v3274 = vld [vmem:[%s2985 + $0x8] sm:$0x1]
      %v3275 = vld [vmem:[%s2985 + $0xc] sm:$0xf]
      %v3276 = vld [vmem:[%s2985 + $0x10] sm:$0xf]
      %v3277 = vld [vmem:[%s2985 + $0x14] sm:$0x1]
      %v3278 = vld [vmem:[%s2985 + $0x18] sm:$0xf]
      %v3279 = vld [vmem:[%s2985 + $0x1c] sm:$0xf]
      %v3280 = vld [vmem:[%s2985 + $0x20] sm:$0x1]
      %v3281 = vld [vmem:[%s2985 + $0x24] sm:$0xf]
      %v3282 = vld [vmem:[%s2985 + $0x28] sm:$0xf]
      %v3283 = vld [vmem:[%s2985 + $0x2c] sm:$0x1]
      %v3284 = vld [vmem:[%s2985 + $0x30] sm:$0xf]
      %v3285 = vld [vmem:[%s2985 + $0x34] sm:$0xf]
      %v3286 = vld [vmem:[%s2985 + $0x38] sm:$0x1]
      %v3287 = vld [vmem:[%s2985 + $0x3c] sm:$0xf]
      %v3288 = vld [vmem:[%s2985 + $0x40] sm:$0xf]
      %v3289 = vld [vmem:[%s2985 + $0x44] sm:$0x1]
      %v3290 = vld [vmem:[%s2985 + $0x48] sm:$0xf]
      %v3291 = vld [vmem:[%s2985 + $0x4c] sm:$0xf]
      %v3292 = vld [vmem:[%s2985 + $0x50] sm:$0x1]
      %v3293 = vld [vmem:[%s2985 + $0x54] sm:$0xf]
      %v3294 = vld [vmem:[%s2985 + $0x58] sm:$0xf]
      %v3295 = vld [vmem:[%s2985 + $0x5c] sm:$0x1]
      %v3296 = vld [vmem:[%s2985 + $0x60] sm:$0xf]
      %v3297 = vld [vmem:[%s2985 + $0x64] sm:$0xf]
      %v3298 = vld [vmem:[%s2985 + $0x68] sm:$0x1]
      %v3299 = vld [vmem:[%s2985 + $0x6c] sm:$0xf]
      %v3300 = vld [vmem:[%s2985 + $0x70] sm:$0xf]
      %v3301 = vld [vmem:[%s2985 + $0x74] sm:$0x1]
      %v3302 = vld [vmem:[%s2985 + $0x78] sm:$0xf]
      %v3303 = vld [vmem:[%s2985 + $0x7c] sm:$0xf]
      %v3304 = vld [vmem:[%s2985 + $0x80] sm:$0x1]
      %v3305 = vld [vmem:[%s2985 + $0x84] sm:$0xf]
      %v3306 = vld [vmem:[%s2985 + $0x88] sm:$0xf]
      %v3307 = vld [vmem:[%s2985 + $0x8c] sm:$0x1]
      %v3308 = vld [vmem:[%s2985 + $0x90] sm:$0xf]
      %v3309 = vld [vmem:[%s2985 + $0x94] sm:$0xf]
      %v3310 = vld [vmem:[%s2985 + $0x98] sm:$0x1]
      %v3311 = vld [vmem:[%s2985 + $0x9c] sm:$0xf]
      %v3312 = vld [vmem:[%s2985 + $0xa0] sm:$0xf]
      %v3313 = vld [vmem:[%s2985 + $0xa4] sm:$0x1]
      %v3314 = vld [vmem:[%s2985 + $0xa8] sm:$0xf]
      %v3315 = vld [vmem:[%s2985 + $0xac] sm:$0xf]
      %v3316 = vld [vmem:[%s2985 + $0xb0] sm:$0x1]
      %v3317 = vld [vmem:[%s2985 + $0xb4] sm:$0xf]
      %v3318 = vld [vmem:[%s2985 + $0xb8] sm:$0xf]
      %v3319 = vld [vmem:[%s2985 + $0xbc] sm:$0x1]
      %v3321 = vshrl.u32 %v3272, 16
      %v3323 = vrot.slane %v3321, 4
      %v3324 = vshll.u32 %v3272, 16
      %v3326 = vrot.slane %v3324, 5
      %v3327 = vor.u32 %v3323, %v3326
      %v3328 = vrot.slane %v3327, 4
      %v3330 = vshll.u32 %v3273, 16
      %v3332 = vrot.slane %v3330, 5
      %v3333 = vsel %vm461, %v3328, %v3332
      %v3334 = vshrl.u32 %v3273, 16
      %v3336 = vrot.slane %v3334, 4
      %v3337 = vor.u32 %v3336, %v3332
      %v3338 = vrot.slane %v3337, 4
      %v3340 = vshll.u32 %v3274, 16
      %v3342 = vrot.slane %v3340, 5
      %v3343 = vsel %vm461, %v3338, %v3342
      %v3345 = vshrl.u32 %v3275, 16
      %v3347 = vrot.slane %v3345, 4
      %v3348 = vshll.u32 %v3275, 16
      %v3350 = vrot.slane %v3348, 5
      %v3351 = vor.u32 %v3347, %v3350
      %v3352 = vrot.slane %v3351, 4
      %v3354 = vshll.u32 %v3276, 16
      %v3356 = vrot.slane %v3354, 5
      %v3357 = vsel %vm461, %v3352, %v3356
      %v3358 = vshrl.u32 %v3276, 16
      %v3360 = vrot.slane %v3358, 4
      %v3361 = vor.u32 %v3360, %v3356
      %v3362 = vrot.slane %v3361, 4
      %v3364 = vshll.u32 %v3277, 16
      %v3366 = vrot.slane %v3364, 5
      %v3367 = vsel %vm461, %v3362, %v3366
      %v3369 = vshrl.u32 %v3278, 16
      %v3371 = vrot.slane %v3369, 4
      %v3372 = vshll.u32 %v3278, 16
      %v3374 = vrot.slane %v3372, 5
      %v3375 = vor.u32 %v3371, %v3374
      %v3376 = vrot.slane %v3375, 4
      %v3378 = vshll.u32 %v3279, 16
      %v3380 = vrot.slane %v3378, 5
      %v3381 = vsel %vm461, %v3376, %v3380
      %v3382 = vshrl.u32 %v3279, 16
      %v3384 = vrot.slane %v3382, 4
      %v3385 = vor.u32 %v3384, %v3380
      %v3386 = vrot.slane %v3385, 4
      %v3388 = vshll.u32 %v3280, 16
      %v3390 = vrot.slane %v3388, 5
      %v3391 = vsel %vm461, %v3386, %v3390
      %v3393 = vshrl.u32 %v3281, 16
      %v3395 = vrot.slane %v3393, 4
      %v3396 = vshll.u32 %v3281, 16
      %v3398 = vrot.slane %v3396, 5
      %v3399 = vor.u32 %v3395, %v3398
      %v3400 = vrot.slane %v3399, 4
      %v3402 = vshll.u32 %v3282, 16
      %v3404 = vrot.slane %v3402, 5
      %v3405 = vsel %vm461, %v3400, %v3404
      %v3406 = vshrl.u32 %v3282, 16
      %v3408 = vrot.slane %v3406, 4
      %v3409 = vor.u32 %v3408, %v3404
      %v3410 = vrot.slane %v3409, 4
      %v3412 = vshll.u32 %v3283, 16
      %v3414 = vrot.slane %v3412, 5
      %v3415 = vsel %vm461, %v3410, %v3414
      %v3417 = vshrl.u32 %v3284, 16
      %v3419 = vrot.slane %v3417, 4
      %v3420 = vshll.u32 %v3284, 16
      %v3422 = vrot.slane %v3420, 5
      %v3423 = vor.u32 %v3419, %v3422
      %v3424 = vrot.slane %v3423, 4
      %v3426 = vshll.u32 %v3285, 16
      %v3428 = vrot.slane %v3426, 5
      %v3429 = vsel %vm461, %v3424, %v3428
      %v3430 = vshrl.u32 %v3285, 16
      %v3432 = vrot.slane %v3430, 4
      %v3433 = vor.u32 %v3432, %v3428
      %v3434 = vrot.slane %v3433, 4
      %v3436 = vshll.u32 %v3286, 16
      %v3438 = vrot.slane %v3436, 5
      %v3439 = vsel %vm461, %v3434, %v3438
      %v3441 = vshrl.u32 %v3287, 16
      %v3443 = vrot.slane %v3441, 4
      %v3444 = vshll.u32 %v3287, 16
      %v3446 = vrot.slane %v3444, 5
      %v3447 = vor.u32 %v3443, %v3446
      %v3448 = vrot.slane %v3447, 4
      %v3450 = vshll.u32 %v3288, 16
      %v3452 = vrot.slane %v3450, 5
      %v3453 = vsel %vm461, %v3448, %v3452
      %v3454 = vshrl.u32 %v3288, 16
      %v3456 = vrot.slane %v3454, 4
      %v3457 = vor.u32 %v3456, %v3452
      %v3458 = vrot.slane %v3457, 4
      %v3460 = vshll.u32 %v3289, 16
      %v3462 = vrot.slane %v3460, 5
      %v3463 = vsel %vm461, %v3458, %v3462
      %v3465 = vshrl.u32 %v3290, 16
      %v3467 = vrot.slane %v3465, 4
      %v3468 = vshll.u32 %v3290, 16
      %v3470 = vrot.slane %v3468, 5
      %v3471 = vor.u32 %v3467, %v3470
      %v3472 = vrot.slane %v3471, 4
      %v3474 = vshll.u32 %v3291, 16
      %v3476 = vrot.slane %v3474, 5
      %v3477 = vsel %vm461, %v3472, %v3476
      %v3478 = vshrl.u32 %v3291, 16
      %v3480 = vrot.slane %v3478, 4
      %v3481 = vor.u32 %v3480, %v3476
      %v3482 = vrot.slane %v3481, 4
      %v3484 = vshll.u32 %v3292, 16
      %v3486 = vrot.slane %v3484, 5
      %v3487 = vsel %vm461, %v3482, %v3486
      %v3489 = vshrl.u32 %v3293, 16
      %v3491 = vrot.slane %v3489, 4
      %v3492 = vshll.u32 %v3293, 16
      %v3494 = vrot.slane %v3492, 5
      %v3495 = vor.u32 %v3491, %v3494
      %v3496 = vrot.slane %v3495, 4
      %v3498 = vshll.u32 %v3294, 16
      %v3500 = vrot.slane %v3498, 5
      %v3501 = vsel %vm461, %v3496, %v3500
      %v3502 = vshrl.u32 %v3294, 16
      %v3504 = vrot.slane %v3502, 4
      %v3505 = vor.u32 %v3504, %v3500
      %v3506 = vrot.slane %v3505, 4
      %v3508 = vshll.u32 %v3295, 16
      %v3510 = vrot.slane %v3508, 5
      %v3511 = vsel %vm461, %v3506, %v3510
      %v3513 = vshrl.u32 %v3296, 16
      %v3515 = vrot.slane %v3513, 4
      %v3516 = vshll.u32 %v3296, 16
      %v3518 = vrot.slane %v3516, 5
      %v3519 = vor.u32 %v3515, %v3518
      %v3520 = vrot.slane %v3519, 4
      %v3522 = vshll.u32 %v3297, 16
      %v3524 = vrot.slane %v3522, 5
      %v3525 = vsel %vm461, %v3520, %v3524
      %v3526 = vshrl.u32 %v3297, 16
      %v3528 = vrot.slane %v3526, 4
      %v3529 = vor.u32 %v3528, %v3524
      %v3530 = vrot.slane %v3529, 4
      %v3532 = vshll.u32 %v3298, 16
      %v3534 = vrot.slane %v3532, 5
      %v3535 = vsel %vm461, %v3530, %v3534
      %v3537 = vshrl.u32 %v3299, 16
      %v3539 = vrot.slane %v3537, 4
      %v3540 = vshll.u32 %v3299, 16
      %v3542 = vrot.slane %v3540, 5
      %v3543 = vor.u32 %v3539, %v3542
      %v3544 = vrot.slane %v3543, 4
      %v3546 = vshll.u32 %v3300, 16
      %v3548 = vrot.slane %v3546, 5
      %v3549 = vsel %vm461, %v3544, %v3548
      %v3550 = vshrl.u32 %v3300, 16
      %v3552 = vrot.slane %v3550, 4
      %v3553 = vor.u32 %v3552, %v3548
      %v3554 = vrot.slane %v3553, 4
      %v3556 = vshll.u32 %v3301, 16
      %v3558 = vrot.slane %v3556, 5
      %v3559 = vsel %vm461, %v3554, %v3558
      %v3561 = vshrl.u32 %v3302, 16
      %v3563 = vrot.slane %v3561, 4
      %v3564 = vshll.u32 %v3302, 16
      %v3566 = vrot.slane %v3564, 5
      %v3567 = vor.u32 %v3563, %v3566
      %v3568 = vrot.slane %v3567, 4
      %v3570 = vshll.u32 %v3303, 16
      %v3572 = vrot.slane %v3570, 5
      %v3573 = vsel %vm461, %v3568, %v3572
      %v3574 = vshrl.u32 %v3303, 16
      %v3576 = vrot.slane %v3574, 4
      %v3577 = vor.u32 %v3576, %v3572
      %v3578 = vrot.slane %v3577, 4
      %v3580 = vshll.u32 %v3304, 16
      %v3582 = vrot.slane %v3580, 5
      %v3583 = vsel %vm461, %v3578, %v3582
      %v3585 = vshrl.u32 %v3305, 16
      %v3587 = vrot.slane %v3585, 4
      %v3588 = vshll.u32 %v3305, 16
      %v3590 = vrot.slane %v3588, 5
      %v3591 = vor.u32 %v3587, %v3590
      %v3592 = vrot.slane %v3591, 4
      %v3594 = vshll.u32 %v3306, 16
      %v3596 = vrot.slane %v3594, 5
      %v3597 = vsel %vm461, %v3592, %v3596
      %v3598 = vshrl.u32 %v3306, 16
      %v3600 = vrot.slane %v3598, 4
      %v3601 = vor.u32 %v3600, %v3596
      %v3602 = vrot.slane %v3601, 4
      %v3604 = vshll.u32 %v3307, 16
      %v3606 = vrot.slane %v3604, 5
      %v3607 = vsel %vm461, %v3602, %v3606
      %v3609 = vshrl.u32 %v3308, 16
      %v3611 = vrot.slane %v3609, 4
      %v3612 = vshll.u32 %v3308, 16
      %v3614 = vrot.slane %v3612, 5
      %v3615 = vor.u32 %v3611, %v3614
      %v3616 = vrot.slane %v3615, 4
      %v3618 = vshll.u32 %v3309, 16
      %v3620 = vrot.slane %v3618, 5
      %v3621 = vsel %vm461, %v3616, %v3620
      %v3622 = vshrl.u32 %v3309, 16
      %v3624 = vrot.slane %v3622, 4
      %v3625 = vor.u32 %v3624, %v3620
      %v3626 = vrot.slane %v3625, 4
      %v3628 = vshll.u32 %v3310, 16
      %v3630 = vrot.slane %v3628, 5
      %v3631 = vsel %vm461, %v3626, %v3630
      %v3633 = vshrl.u32 %v3311, 16
      %v3635 = vrot.slane %v3633, 4
      %v3636 = vshll.u32 %v3311, 16
      %v3638 = vrot.slane %v3636, 5
      %v3639 = vor.u32 %v3635, %v3638
      %v3640 = vrot.slane %v3639, 4
      %v3642 = vshll.u32 %v3312, 16
      %v3644 = vrot.slane %v3642, 5
      %v3645 = vsel %vm461, %v3640, %v3644
      %v3646 = vshrl.u32 %v3312, 16
      %v3648 = vrot.slane %v3646, 4
      %v3649 = vor.u32 %v3648, %v3644
      %v3650 = vrot.slane %v3649, 4
      %v3652 = vshll.u32 %v3313, 16
      %v3654 = vrot.slane %v3652, 5
      %v3655 = vsel %vm461, %v3650, %v3654
      %v3657 = vshrl.u32 %v3314, 16
      %v3659 = vrot.slane %v3657, 4
      %v3660 = vshll.u32 %v3314, 16
      %v3662 = vrot.slane %v3660, 5
      %v3663 = vor.u32 %v3659, %v3662
      %v3664 = vrot.slane %v3663, 4
      %v3666 = vshll.u32 %v3315, 16
      %v3668 = vrot.slane %v3666, 5
      %v3669 = vsel %vm461, %v3664, %v3668
      %v3670 = vshrl.u32 %v3315, 16
      %v3672 = vrot.slane %v3670, 4
      %v3673 = vor.u32 %v3672, %v3668
      %v3674 = vrot.slane %v3673, 4
      %v3676 = vshll.u32 %v3316, 16
      %v3678 = vrot.slane %v3676, 5
      %v3679 = vsel %vm461, %v3674, %v3678
      %v3681 = vshrl.u32 %v3317, 16
      %v3683 = vrot.slane %v3681, 4
      %v3684 = vshll.u32 %v3317, 16
      %v3686 = vrot.slane %v3684, 5
      %v3687 = vor.u32 %v3683, %v3686
      %v3688 = vrot.slane %v3687, 4
      %v3690 = vshll.u32 %v3318, 16
      %v3692 = vrot.slane %v3690, 5
      %v3693 = vsel %vm461, %v3688, %v3692
      %v3694 = vshrl.u32 %v3318, 16
      %v3696 = vrot.slane %v3694, 4
      %v3697 = vor.u32 %v3696, %v3692
      %v3698 = vrot.slane %v3697, 4
      %v3700 = vshll.u32 %v3319, 16
      %v3702 = vrot.slane %v3700, 5
      %v3703 = vsel %vm461, %v3698, %v3702
      %s3704 = scalar_lea.vmem %s1, 14
      %v3705 = vld [vmem:[%s3704] sm:$0x3]
      %v3706 = vunpack.c.l.b16 %v3333
      %v3707 = vunpack.c.l.b16 %v3343
      %v3708 = vunpack.c.l.b16 %v3357
      %v3709 = vunpack.c.l.b16 %v3367
      %v3710 = vunpack.c.l.b16 %v3381
      %v3711 = vunpack.c.l.b16 %v3391
      %v3712 = vunpack.c.l.b16 %v3405
      %v3713 = vunpack.c.l.b16 %v3415
      %v3714 = vunpack.c.l.b16 %v3429
      %v3715 = vunpack.c.l.b16 %v3439
      %v3716 = vunpack.c.l.b16 %v3453
      %v3717 = vunpack.c.l.b16 %v3463
      %v3718 = vunpack.c.l.b16 %v3477
      %v3719 = vunpack.c.l.b16 %v3487
      %v3720 = vunpack.c.l.b16 %v3501
      %v3721 = vunpack.c.l.b16 %v3511
      %v3722 = vunpack.c.l.b16 %v3525
      %v3723 = vunpack.c.l.b16 %v3535
      %v3724 = vunpack.c.l.b16 %v3549
      %v3725 = vunpack.c.l.b16 %v3559
      %v3726 = vunpack.c.l.b16 %v3573
      %v3727 = vunpack.c.l.b16 %v3583
      %v3728 = vunpack.c.l.b16 %v3597
      %v3729 = vunpack.c.l.b16 %v3607
      %v3730 = vunpack.c.l.b16 %v3621
      %v3731 = vunpack.c.l.b16 %v3631
      %v3732 = vunpack.c.l.b16 %v3645
      %v3733 = vunpack.c.l.b16 %v3655
      %v3734 = vunpack.c.l.b16 %v3669
      %v3735 = vunpack.c.l.b16 %v3679
      %v3736 = vunpack.c.l.b16 %v3693
      %v3737 = vunpack.c.l.b16 %v3703
      %v3738 = vpack.c.b16 %v3707, %v3706
      %v3739 = vpack.c.b16 %v3709, %v3708
      %v3740 = vpack.c.b16 %v3711, %v3710
      %v3741 = vpack.c.b16 %v3713, %v3712
      %v3742 = vpack.c.b16 %v3715, %v3714
      %v3743 = vpack.c.b16 %v3717, %v3716
      %v3744 = vpack.c.b16 %v3719, %v3718
      %v3745 = vpack.c.b16 %v3721, %v3720
      %v3746 = vpack.c.b16 %v3723, %v3722
      %v3747 = vpack.c.b16 %v3725, %v3724
      %v3748 = vpack.c.b16 %v3727, %v3726
      %v3749 = vpack.c.b16 %v3729, %v3728
      %v3750 = vpack.c.b16 %v3731, %v3730
      %v3751 = vpack.c.b16 %v3733, %v3732
      %v3752 = vpack.c.b16 %v3735, %v3734
      %v3753 = vpack.c.b16 %v3737, %v3736
      %v3755 = vsel %vm896, %v3738, 0
      %v3758 = vsel %vm896, %v3739, 0
      %v3761 = vsel %vm896, %v3740, 0
      %v3764 = vsel %vm896, %v3741, 0
      %v3767 = vsel %vm896, %v3742, 0
      %v3770 = vsel %vm896, %v3743, 0
      %v3773 = vsel %vm896, %v3744, 0
      %v3776 = vsel %vm896, %v3745, 0
      %v3779 = vsel %vm896, %v3746, 0
      %v3782 = vsel %vm896, %v3747, 0
      %v3785 = vsel %vm896, %v3748, 0
      %v3788 = vsel %vm896, %v3749, 0
      %v3791 = vsel %vm896, %v3750, 0
      %v3794 = vsel %vm896, %v3751, 0
      %v3797 = vsel %vm896, %v3752, 0
      %v3800 = vsel %vm896, %v3753, 0
      %v3803 = vand.u32 %v3705, %v948
      %3805 = vmatpush.bf16.msra.mxu0 0
      %3806 = vmatpush.bf16.msra.mxu0 0
      %3807 = vmatpush.bf16.msra.mxu0 0
      %3808 = vmatpush.bf16.msra.mxu0 0
      %3809 = vmatpush.bf16.msra.mxu0 0
      %3810 = vmatpush.bf16.msra.mxu0 0
      %3811 = vmatpush.bf16.msra.mxu0 0
      %3812 = vmatpush.bf16.msra.mxu0 %v3803
      %3813 = vmatmul.bf16.gmra.mxu0 %v3755
      %v3814 = vpop.f32.mrf.mxu0
      %v3815 = vadd.f32 0.0, %v3814
      %v3816 = vpop.f32.mrf.mxu0
      %v3817 = vadd.f32 0.0, %v3816
      %3818 = vmatmul.bf16.gmra.mxu0 %v3758
      %v3819 = vpop.f32.mrf.mxu0
      %v3820 = vadd.f32 0.0, %v3819
      %v3821 = vpop.f32.mrf.mxu0
      %v3822 = vadd.f32 0.0, %v3821
      %3823 = vmatmul.bf16.gmra.mxu0 %v3761
      %v3824 = vpop.f32.mrf.mxu0
      %v3825 = vadd.f32 0.0, %v3824
      %v3826 = vpop.f32.mrf.mxu0
      %v3827 = vadd.f32 0.0, %v3826
      %3828 = vmatmul.bf16.gmra.mxu0 %v3764
      %v3829 = vpop.f32.mrf.mxu0
      %v3830 = vadd.f32 0.0, %v3829
      %v3831 = vpop.f32.mrf.mxu0
      %v3832 = vadd.f32 0.0, %v3831
      %3833 = vmatmul.bf16.gmra.mxu0 %v3767
      %v3834 = vpop.f32.mrf.mxu0
      %v3835 = vadd.f32 0.0, %v3834
      %v3836 = vpop.f32.mrf.mxu0
      %v3837 = vadd.f32 0.0, %v3836
      %3838 = vmatmul.bf16.gmra.mxu0 %v3770
      %v3839 = vpop.f32.mrf.mxu0
      %v3840 = vadd.f32 0.0, %v3839
      %v3841 = vpop.f32.mrf.mxu0
      %v3842 = vadd.f32 0.0, %v3841
      %3843 = vmatmul.bf16.gmra.mxu0 %v3773
      %v3844 = vpop.f32.mrf.mxu0
      %v3845 = vadd.f32 0.0, %v3844
      %v3846 = vpop.f32.mrf.mxu0
      %v3847 = vadd.f32 0.0, %v3846
      %3848 = vmatmul.bf16.gmra.mxu0 %v3776
      %v3849 = vpop.f32.mrf.mxu0
      %v3850 = vadd.f32 0.0, %v3849
      %v3851 = vpop.f32.mrf.mxu0
      %v3852 = vadd.f32 0.0, %v3851
      %3853 = vmatmul.bf16.gmra.mxu0 %v3779
      %v3854 = vpop.f32.mrf.mxu0
      %v3855 = vadd.f32 0.0, %v3854
      %v3856 = vpop.f32.mrf.mxu0
      %v3857 = vadd.f32 0.0, %v3856
      %3858 = vmatmul.bf16.gmra.mxu0 %v3782
      %v3859 = vpop.f32.mrf.mxu0
      %v3860 = vadd.f32 0.0, %v3859
      %v3861 = vpop.f32.mrf.mxu0
      %v3862 = vadd.f32 0.0, %v3861
      %3863 = vmatmul.bf16.gmra.mxu0 %v3785
      %v3864 = vpop.f32.mrf.mxu0
      %v3865 = vadd.f32 0.0, %v3864
      %v3866 = vpop.f32.mrf.mxu0
      %v3867 = vadd.f32 0.0, %v3866
      %3868 = vmatmul.bf16.gmra.mxu0 %v3788
      %v3869 = vpop.f32.mrf.mxu0
      %v3870 = vadd.f32 0.0, %v3869
      %v3871 = vpop.f32.mrf.mxu0
      %v3872 = vadd.f32 0.0, %v3871
      %3873 = vmatmul.bf16.gmra.mxu0 %v3791
      %v3874 = vpop.f32.mrf.mxu0
      %v3875 = vadd.f32 0.0, %v3874
      %v3876 = vpop.f32.mrf.mxu0
      %v3877 = vadd.f32 0.0, %v3876
      %3878 = vmatmul.bf16.gmra.mxu0 %v3794
      %v3879 = vpop.f32.mrf.mxu0
      %v3880 = vadd.f32 0.0, %v3879
      %v3881 = vpop.f32.mrf.mxu0
      %v3882 = vadd.f32 0.0, %v3881
      %3883 = vmatmul.bf16.gmra.mxu0 %v3797
      %v3884 = vpop.f32.mrf.mxu0
      %v3885 = vadd.f32 0.0, %v3884
      %v3886 = vpop.f32.mrf.mxu0
      %v3887 = vadd.f32 0.0, %v3886
      %3888 = vmatmul.bf16.gmra.mxu0 %v3800
      %v3889 = vpop.f32.mrf.mxu0
      %v3890 = vadd.f32 0.0, %v3889
      %v3891 = vpop.f32.mrf.mxu0
      %v3892 = vadd.f32 0.0, %v3891
      %3893 = vdwg.mxu0
      %v3894 = vadd.f32 %v3240, %v3815
      %v3895 = vadd.f32 %v3241, %v3817
      %v3896 = vadd.f32 %v3242, %v3820
      %v3897 = vadd.f32 %v3243, %v3822
      %v3898 = vadd.f32 %v3244, %v3825
      %v3899 = vadd.f32 %v3245, %v3827
      %v3900 = vadd.f32 %v3246, %v3830
      %v3901 = vadd.f32 %v3247, %v3832
      %v3902 = vadd.f32 %v3248, %v3835
      %v3903 = vadd.f32 %v3249, %v3837
      %v3904 = vadd.f32 %v3250, %v3840
      %v3905 = vadd.f32 %v3251, %v3842
      %v3906 = vadd.f32 %v3252, %v3845
      %v3907 = vadd.f32 %v3253, %v3847
      %v3908 = vadd.f32 %v3254, %v3850
      %v3909 = vadd.f32 %v3255, %v3852
      %v3910 = vadd.f32 %v3256, %v3855
      %v3911 = vadd.f32 %v3257, %v3857
      %v3912 = vadd.f32 %v3258, %v3860
      %v3913 = vadd.f32 %v3259, %v3862
      %v3914 = vadd.f32 %v3260, %v3865
      %v3915 = vadd.f32 %v3261, %v3867
      %v3916 = vadd.f32 %v3262, %v3870
      %v3917 = vadd.f32 %v3263, %v3872
      %v3918 = vadd.f32 %v3264, %v3875
      %v3919 = vadd.f32 %v3265, %v3877
      %v3920 = vadd.f32 %v3266, %v3880
      %v3921 = vadd.f32 %v3267, %v3882
      %v3922 = vadd.f32 %v3268, %v3885
      %v3923 = vadd.f32 %v3269, %v3887
      %v3924 = vadd.f32 %v3270, %v3890
      %v3925 = vadd.f32 %v3271, %v3892
      %v3926 = vld [vmem:[%s2985] sm:$0xe]
      %v3927 = vld [vmem:[%s2985 + $0xc] sm:$0xe]
      %v3928 = vld [vmem:[%s2985 + $0x18] sm:$0xe]
      %v3929 = vld [vmem:[%s2985 + $0x24] sm:$0xe]
      %v3930 = vld [vmem:[%s2985 + $0x30] sm:$0xe]
      %v3931 = vld [vmem:[%s2985 + $0x3c] sm:$0xe]
      %v3932 = vld [vmem:[%s2985 + $0x48] sm:$0xe]
      %v3933 = vld [vmem:[%s2985 + $0x54] sm:$0xe]
      %v3934 = vld [vmem:[%s2985 + $0x60] sm:$0xe]
      %v3935 = vld [vmem:[%s2985 + $0x6c] sm:$0xe]
      %v3936 = vld [vmem:[%s2985 + $0x78] sm:$0xe]
      %v3937 = vld [vmem:[%s2985 + $0x84] sm:$0xe]
      %v3938 = vld [vmem:[%s2985 + $0x90] sm:$0xe]
      %v3939 = vld [vmem:[%s2985 + $0x9c] sm:$0xe]
      %v3940 = vld [vmem:[%s2985 + $0xa8] sm:$0xe]
      %v3941 = vld [vmem:[%s2985 + $0xb4] sm:$0xe]
      %v3990 = vrot.slane %v3926, 5
      %v3991 = vrot.slane %v3990, 4
      %v3992 = vrot.slane %v3273, 5
      %v3993 = vsel %vm1311, %v3991, %v3992
      %v3994 = vrot.slane %v3992, 4
      %v3995 = vrot.slane %v3274, 5
      %v3996 = vsel %vm1311, %v3994, %v3995
      %v3997 = vrot.slane %v3927, 5
      %v3998 = vrot.slane %v3997, 4
      %v3999 = vrot.slane %v3276, 5
      %v4000 = vsel %vm1311, %v3998, %v3999
      %v4001 = vrot.slane %v3999, 4
      %v4002 = vrot.slane %v3277, 5
      %v4003 = vsel %vm1311, %v4001, %v4002
      %v4004 = vrot.slane %v3928, 5
      %v4005 = vrot.slane %v4004, 4
      %v4006 = vrot.slane %v3279, 5
      %v4007 = vsel %vm1311, %v4005, %v4006
      %v4008 = vrot.slane %v4006, 4
      %v4009 = vrot.slane %v3280, 5
      %v4010 = vsel %vm1311, %v4008, %v4009
      %v4011 = vrot.slane %v3929, 5
      %v4012 = vrot.slane %v4011, 4
      %v4013 = vrot.slane %v3282, 5
      %v4014 = vsel %vm1311, %v4012, %v4013
      %v4015 = vrot.slane %v4013, 4
      %v4016 = vrot.slane %v3283, 5
      %v4017 = vsel %vm1311, %v4015, %v4016
      %v4018 = vrot.slane %v3930, 5
      %v4019 = vrot.slane %v4018, 4
      %v4020 = vrot.slane %v3285, 5
      %v4021 = vsel %vm1311, %v4019, %v4020
      %v4022 = vrot.slane %v4020, 4
      %v4023 = vrot.slane %v3286, 5
      %v4024 = vsel %vm1311, %v4022, %v4023
      %v4025 = vrot.slane %v3931, 5
      %v4026 = vrot.slane %v4025, 4
      %v4027 = vrot.slane %v3288, 5
      %v4028 = vsel %vm1311, %v4026, %v4027
      %v4029 = vrot.slane %v4027, 4
      %v4030 = vrot.slane %v3289, 5
      %v4031 = vsel %vm1311, %v4029, %v4030
      %v4032 = vrot.slane %v3932, 5
      %v4033 = vrot.slane %v4032, 4
      %v4034 = vrot.slane %v3291, 5
      %v4035 = vsel %vm1311, %v4033, %v4034
      %v4036 = vrot.slane %v4034, 4
      %v4037 = vrot.slane %v3292, 5
      %v4038 = vsel %vm1311, %v4036, %v4037
      %v4039 = vrot.slane %v3933, 5
      %v4040 = vrot.slane %v4039, 4
      %v4041 = vrot.slane %v3294, 5
      %v4042 = vsel %vm1311, %v4040, %v4041
      %v4043 = vrot.slane %v4041, 4
      %v4044 = vrot.slane %v3295, 5
      %v4045 = vsel %vm1311, %v4043, %v4044
      %v4046 = vrot.slane %v3934, 5
      %v4047 = vrot.slane %v4046, 4
      %v4048 = vrot.slane %v3297, 5
      %v4049 = vsel %vm1311, %v4047, %v4048
      %v4050 = vrot.slane %v4048, 4
      %v4051 = vrot.slane %v3298, 5
      %v4052 = vsel %vm1311, %v4050, %v4051
      %v4053 = vrot.slane %v3935, 5
      %v4054 = vrot.slane %v4053, 4
      %v4055 = vrot.slane %v3300, 5
      %v4056 = vsel %vm1311, %v4054, %v4055
      %v4057 = vrot.slane %v4055, 4
      %v4058 = vrot.slane %v3301, 5
      %v4059 = vsel %vm1311, %v4057, %v4058
      %v4060 = vrot.slane %v3936, 5
      %v4061 = vrot.slane %v4060, 4
      %v4062 = vrot.slane %v3303, 5
      %v4063 = vsel %vm1311, %v4061, %v4062
      %v4064 = vrot.slane %v4062, 4
      %v4065 = vrot.slane %v3304, 5
      %v4066 = vsel %vm1311, %v4064, %v4065
      %v4067 = vrot.slane %v3937, 5
      %v4068 = vrot.slane %v4067, 4
      %v4069 = vrot.slane %v3306, 5
      %v4070 = vsel %vm1311, %v4068, %v4069
      %v4071 = vrot.slane %v4069, 4
      %v4072 = vrot.slane %v3307, 5
      %v4073 = vsel %vm1311, %v4071, %v4072
      %v4074 = vrot.slane %v3938, 5
      %v4075 = vrot.slane %v4074, 4
      %v4076 = vrot.slane %v3309, 5
      %v4077 = vsel %vm1311, %v4075, %v4076
      %v4078 = vrot.slane %v4076, 4
      %v4079 = vrot.slane %v3310, 5
      %v4080 = vsel %vm1311, %v4078, %v4079
      %v4081 = vrot.slane %v3939, 5
      %v4082 = vrot.slane %v4081, 4
      %v4083 = vrot.slane %v3312, 5
      %v4084 = vsel %vm1311, %v4082, %v4083
      %v4085 = vrot.slane %v4083, 4
      %v4086 = vrot.slane %v3313, 5
      %v4087 = vsel %vm1311, %v4085, %v4086
      %v4088 = vrot.slane %v3940, 5
      %v4089 = vrot.slane %v4088, 4
      %v4090 = vrot.slane %v3315, 5
      %v4091 = vsel %vm1311, %v4089, %v4090
      %v4092 = vrot.slane %v4090, 4
      %v4093 = vrot.slane %v3316, 5
      %v4094 = vsel %vm1311, %v4092, %v4093
      %v4095 = vrot.slane %v3941, 5
      %v4096 = vrot.slane %v4095, 4
      %v4097 = vrot.slane %v3318, 5
      %v4098 = vsel %vm1311, %v4096, %v4097
      %v4099 = vrot.slane %v4097, 4
      %v4100 = vrot.slane %v3319, 5
      %v4101 = vsel %vm1311, %v4099, %v4100
      %s4102 = scalar_lea.vmem %s1, 16
      %v4103 = vld [vmem:[%s4102] sm:$0x3]
      %v4104 = vunpack.c.l.b16 %v3993
      %v4105 = vunpack.c.l.b16 %v3996
      %v4106 = vunpack.c.l.b16 %v4000
      %v4107 = vunpack.c.l.b16 %v4003
      %v4108 = vunpack.c.l.b16 %v4007
      %v4109 = vunpack.c.l.b16 %v4010
      %v4110 = vunpack.c.l.b16 %v4014
      %v4111 = vunpack.c.l.b16 %v4017
      %v4112 = vunpack.c.l.b16 %v4021
      %v4113 = vunpack.c.l.b16 %v4024
      %v4114 = vunpack.c.l.b16 %v4028
      %v4115 = vunpack.c.l.b16 %v4031
      %v4116 = vunpack.c.l.b16 %v4035
      %v4117 = vunpack.c.l.b16 %v4038
      %v4118 = vunpack.c.l.b16 %v4042
      %v4119 = vunpack.c.l.b16 %v4045
      %v4120 = vunpack.c.l.b16 %v4049
      %v4121 = vunpack.c.l.b16 %v4052
      %v4122 = vunpack.c.l.b16 %v4056
      %v4123 = vunpack.c.l.b16 %v4059
      %v4124 = vunpack.c.l.b16 %v4063
      %v4125 = vunpack.c.l.b16 %v4066
      %v4126 = vunpack.c.l.b16 %v4070
      %v4127 = vunpack.c.l.b16 %v4073
      %v4128 = vunpack.c.l.b16 %v4077
      %v4129 = vunpack.c.l.b16 %v4080
      %v4130 = vunpack.c.l.b16 %v4084
      %v4131 = vunpack.c.l.b16 %v4087
      %v4132 = vunpack.c.l.b16 %v4091
      %v4133 = vunpack.c.l.b16 %v4094
      %v4134 = vunpack.c.l.b16 %v4098
      %v4135 = vunpack.c.l.b16 %v4101
      %v4136 = vpack.c.b16 %v4105, %v4104
      %v4137 = vpack.c.b16 %v4107, %v4106
      %v4138 = vpack.c.b16 %v4109, %v4108
      %v4139 = vpack.c.b16 %v4111, %v4110
      %v4140 = vpack.c.b16 %v4113, %v4112
      %v4141 = vpack.c.b16 %v4115, %v4114
      %v4142 = vpack.c.b16 %v4117, %v4116
      %v4143 = vpack.c.b16 %v4119, %v4118
      %v4144 = vpack.c.b16 %v4121, %v4120
      %v4145 = vpack.c.b16 %v4123, %v4122
      %v4146 = vpack.c.b16 %v4125, %v4124
      %v4147 = vpack.c.b16 %v4127, %v4126
      %v4148 = vpack.c.b16 %v4129, %v4128
      %v4149 = vpack.c.b16 %v4131, %v4130
      %v4150 = vpack.c.b16 %v4133, %v4132
      %v4151 = vpack.c.b16 %v4135, %v4134
      %v4153 = vsel %vm896, %v4136, 0
      %v4156 = vsel %vm896, %v4137, 0
      %v4159 = vsel %vm896, %v4138, 0
      %v4162 = vsel %vm896, %v4139, 0
      %v4165 = vsel %vm896, %v4140, 0
      %v4168 = vsel %vm896, %v4141, 0
      %v4171 = vsel %vm896, %v4142, 0
      %v4174 = vsel %vm896, %v4143, 0
      %v4177 = vsel %vm896, %v4144, 0
      %v4180 = vsel %vm896, %v4145, 0
      %v4183 = vsel %vm896, %v4146, 0
      %v4186 = vsel %vm896, %v4147, 0
      %v4189 = vsel %vm896, %v4148, 0
      %v4192 = vsel %vm896, %v4149, 0
      %v4195 = vsel %vm896, %v4150, 0
      %v4198 = vsel %vm896, %v4151, 0
      %v4201 = vand.u32 %v4103, %v948
      %4203 = vmatpush.bf16.msra.mxu0 0
      %4204 = vmatpush.bf16.msra.mxu0 0
      %4205 = vmatpush.bf16.msra.mxu0 0
      %4206 = vmatpush.bf16.msra.mxu0 0
      %4207 = vmatpush.bf16.msra.mxu0 0
      %4208 = vmatpush.bf16.msra.mxu0 0
      %4209 = vmatpush.bf16.msra.mxu0 0
      %4210 = vmatpush.bf16.msra.mxu0 %v4201
      %4211 = vmatmul.bf16.gmra.mxu0 %v4153
      %v4212 = vpop.f32.mrf.mxu0
      %v4213 = vadd.f32 0.0, %v4212
      %v4214 = vpop.f32.mrf.mxu0
      %v4215 = vadd.f32 0.0, %v4214
      %4216 = vmatmul.bf16.gmra.mxu0 %v4156
      %v4217 = vpop.f32.mrf.mxu0
      %v4218 = vadd.f32 0.0, %v4217
      %v4219 = vpop.f32.mrf.mxu0
      %v4220 = vadd.f32 0.0, %v4219
      %4221 = vmatmul.bf16.gmra.mxu0 %v4159
      %v4222 = vpop.f32.mrf.mxu0
      %v4223 = vadd.f32 0.0, %v4222
      %v4224 = vpop.f32.mrf.mxu0
      %v4225 = vadd.f32 0.0, %v4224
      %4226 = vmatmul.bf16.gmra.mxu0 %v4162
      %v4227 = vpop.f32.mrf.mxu0
      %v4228 = vadd.f32 0.0, %v4227
      %v4229 = vpop.f32.mrf.mxu0
      %v4230 = vadd.f32 0.0, %v4229
      %4231 = vmatmul.bf16.gmra.mxu0 %v4165
      %v4232 = vpop.f32.mrf.mxu0
      %v4233 = vadd.f32 0.0, %v4232
      %v4234 = vpop.f32.mrf.mxu0
      %v4235 = vadd.f32 0.0, %v4234
      %4236 = vmatmul.bf16.gmra.mxu0 %v4168
      %v4237 = vpop.f32.mrf.mxu0
      %v4238 = vadd.f32 0.0, %v4237
      %v4239 = vpop.f32.mrf.mxu0
      %v4240 = vadd.f32 0.0, %v4239
      %4241 = vmatmul.bf16.gmra.mxu0 %v4171
      %v4242 = vpop.f32.mrf.mxu0
      %v4243 = vadd.f32 0.0, %v4242
      %v4244 = vpop.f32.mrf.mxu0
      %v4245 = vadd.f32 0.0, %v4244
      %4246 = vmatmul.bf16.gmra.mxu0 %v4174
      %v4247 = vpop.f32.mrf.mxu0
      %v4248 = vadd.f32 0.0, %v4247
      %v4249 = vpop.f32.mrf.mxu0
      %v4250 = vadd.f32 0.0, %v4249
      %4251 = vmatmul.bf16.gmra.mxu0 %v4177
      %v4252 = vpop.f32.mrf.mxu0
      %v4253 = vadd.f32 0.0, %v4252
      %v4254 = vpop.f32.mrf.mxu0
      %v4255 = vadd.f32 0.0, %v4254
      %4256 = vmatmul.bf16.gmra.mxu0 %v4180
      %v4257 = vpop.f32.mrf.mxu0
      %v4258 = vadd.f32 0.0, %v4257
      %v4259 = vpop.f32.mrf.mxu0
      %v4260 = vadd.f32 0.0, %v4259
      %4261 = vmatmul.bf16.gmra.mxu0 %v4183
      %v4262 = vpop.f32.mrf.mxu0
      %v4263 = vadd.f32 0.0, %v4262
      %v4264 = vpop.f32.mrf.mxu0
      %v4265 = vadd.f32 0.0, %v4264
      %4266 = vmatmul.bf16.gmra.mxu0 %v4186
      %v4267 = vpop.f32.mrf.mxu0
      %v4268 = vadd.f32 0.0, %v4267
      %v4269 = vpop.f32.mrf.mxu0
      %v4270 = vadd.f32 0.0, %v4269
      %4271 = vmatmul.bf16.gmra.mxu0 %v4189
      %v4272 = vpop.f32.mrf.mxu0
      %v4273 = vadd.f32 0.0, %v4272
      %v4274 = vpop.f32.mrf.mxu0
      %v4275 = vadd.f32 0.0, %v4274
      %4276 = vmatmul.bf16.gmra.mxu0 %v4192
      %v4277 = vpop.f32.mrf.mxu0
      %v4278 = vadd.f32 0.0, %v4277
      %v4279 = vpop.f32.mrf.mxu0
      %v4280 = vadd.f32 0.0, %v4279
      %4281 = vmatmul.bf16.gmra.mxu0 %v4195
      %v4282 = vpop.f32.mrf.mxu0
      %v4283 = vadd.f32 0.0, %v4282
      %v4284 = vpop.f32.mrf.mxu0
      %v4285 = vadd.f32 0.0, %v4284
      %4286 = vmatmul.bf16.gmra.mxu0 %v4198
      %v4287 = vpop.f32.mrf.mxu0
      %v4288 = vadd.f32 0.0, %v4287
      %v4289 = vpop.f32.mrf.mxu0
      %v4290 = vadd.f32 0.0, %v4289
      %4291 = vdwg.mxu0
      %v4292 = vadd.f32 %v3894, %v4213
      %v4293 = vadd.f32 %v3895, %v4215
      %v4294 = vadd.f32 %v3896, %v4218
      %v4295 = vadd.f32 %v3897, %v4220
      %v4296 = vadd.f32 %v3898, %v4223
      %v4297 = vadd.f32 %v3899, %v4225
      %v4298 = vadd.f32 %v3900, %v4228
      %v4299 = vadd.f32 %v3901, %v4230
      %v4300 = vadd.f32 %v3902, %v4233
      %v4301 = vadd.f32 %v3903, %v4235
      %v4302 = vadd.f32 %v3904, %v4238
      %v4303 = vadd.f32 %v3905, %v4240
      %v4304 = vadd.f32 %v3906, %v4243
      %v4305 = vadd.f32 %v3907, %v4245
      %v4306 = vadd.f32 %v3908, %v4248
      %v4307 = vadd.f32 %v3909, %v4250
      %v4308 = vadd.f32 %v3910, %v4253
      %v4309 = vadd.f32 %v3911, %v4255
      %v4310 = vadd.f32 %v3912, %v4258
      %v4311 = vadd.f32 %v3913, %v4260
      %v4312 = vadd.f32 %v3914, %v4263
      %v4313 = vadd.f32 %v3915, %v4265
      %v4314 = vadd.f32 %v3916, %v4268
      %v4315 = vadd.f32 %v3917, %v4270
      %v4316 = vadd.f32 %v3918, %v4273
      %v4317 = vadd.f32 %v3919, %v4275
      %v4318 = vadd.f32 %v3920, %v4278
      %v4319 = vadd.f32 %v3921, %v4280
      %v4320 = vadd.f32 %v3922, %v4283
      %v4321 = vadd.f32 %v3923, %v4285
      %v4322 = vadd.f32 %v3924, %v4288
      %v4323 = vadd.f32 %v3925, %v4290
      %v4324 = vld [vmem:[%s2] sm:$0x1]
      %v4326 = vperm.slane %v4324, 0
      %v4328 = vadd.f32 %v4292, %v4326
      %v4329 = vadd.f32 %v4293, %v4326
      %v4330 = vadd.f32 %v4294, %v4326
      %v4331 = vadd.f32 %v4295, %v4326
      %v4332 = vadd.f32 %v4296, %v4326
      %v4333 = vadd.f32 %v4297, %v4326
      %v4334 = vadd.f32 %v4298, %v4326
      %v4335 = vadd.f32 %v4299, %v4326
      %v4336 = vadd.f32 %v4300, %v4326
      %v4337 = vadd.f32 %v4301, %v4326
      %v4338 = vadd.f32 %v4302, %v4326
      %v4339 = vadd.f32 %v4303, %v4326
      %v4340 = vadd.f32 %v4304, %v4326
      %v4341 = vadd.f32 %v4305, %v4326
      %v4342 = vadd.f32 %v4306, %v4326
      %v4343 = vadd.f32 %v4307, %v4326
      %v4344 = vadd.f32 %v4308, %v4326
      %v4345 = vadd.f32 %v4309, %v4326
      %v4346 = vadd.f32 %v4310, %v4326
      %v4347 = vadd.f32 %v4311, %v4326
      %v4348 = vadd.f32 %v4312, %v4326
      %v4349 = vadd.f32 %v4313, %v4326
      %v4350 = vadd.f32 %v4314, %v4326
      %v4351 = vadd.f32 %v4315, %v4326
      %v4352 = vadd.f32 %v4316, %v4326
      %v4353 = vadd.f32 %v4317, %v4326
      %v4354 = vadd.f32 %v4318, %v4326
      %v4355 = vadd.f32 %v4319, %v4326
      %v4356 = vadd.f32 %v4320, %v4326
      %v4357 = vadd.f32 %v4321, %v4326
      %v4358 = vadd.f32 %v4322, %v4326
      %v4359 = vadd.f32 %v4323, %v4326
      %v4360 = vpack.c.bf16 %v4329, %v4328
      %v4361 = vpack.c.bf16 %v4331, %v4330
      %v4362 = vpack.c.bf16 %v4333, %v4332
      %v4363 = vpack.c.bf16 %v4335, %v4334
      %v4364 = vpack.c.bf16 %v4337, %v4336
      %v4365 = vpack.c.bf16 %v4339, %v4338
      %v4366 = vpack.c.bf16 %v4341, %v4340
      %v4367 = vpack.c.bf16 %v4343, %v4342
      %v4368 = vpack.c.bf16 %v4345, %v4344
      %v4369 = vpack.c.bf16 %v4347, %v4346
      %v4370 = vpack.c.bf16 %v4349, %v4348
      %v4371 = vpack.c.bf16 %v4351, %v4350
      %v4372 = vpack.c.bf16 %v4353, %v4352
      %v4373 = vpack.c.bf16 %v4355, %v4354
      %v4374 = vpack.c.bf16 %v4357, %v4356
      %v4375 = vpack.c.bf16 %v4359, %v4358
      %v4376 = vld [vmem:[%s3] sm:$0xf]
      %v4377 = vld [vmem:[%s3 + $0x4] sm:$0xf]
      %v4378 = vld [vmem:[%s3 + $0x8] sm:$0xf]
      %v4379 = vld [vmem:[%s3 + $0xc] sm:$0xf]
      %v4380 = vld [vmem:[%s3 + $0x10] sm:$0xf]
      %v4381 = vld [vmem:[%s3 + $0x14] sm:$0xf]
      %v4382 = vld [vmem:[%s3 + $0x18] sm:$0xf]
      %v4383 = vld [vmem:[%s3 + $0x1c] sm:$0xf]
      %v4384 = vld [vmem:[%s3 + $0x20] sm:$0xf]
      %v4385 = vld [vmem:[%s3 + $0x24] sm:$0xf]
      %v4386 = vld [vmem:[%s3 + $0x28] sm:$0xf]
      %v4387 = vld [vmem:[%s3 + $0x2c] sm:$0xf]
      %v4388 = vld [vmem:[%s3 + $0x30] sm:$0xf]
      %v4389 = vld [vmem:[%s3 + $0x34] sm:$0xf]
      %v4390 = vld [vmem:[%s3 + $0x38] sm:$0xf]
      %v4391 = vld [vmem:[%s3 + $0x3c] sm:$0xf]
      %v4408 = vunpack.c.l.b16 %v4376
      %v4409 = vunpack.c.l.b16 %v4377
      %v4410 = vunpack.c.l.b16 %v4378
      %v4411 = vunpack.c.l.b16 %v4379
      %v4412 = vunpack.c.l.b16 %v4380
      %v4413 = vunpack.c.l.b16 %v4381
      %v4414 = vunpack.c.l.b16 %v4382
      %v4415 = vunpack.c.l.b16 %v4383
      %v4416 = vunpack.c.l.b16 %v4384
      %v4417 = vunpack.c.l.b16 %v4385
      %v4418 = vunpack.c.l.b16 %v4386
      %v4419 = vunpack.c.l.b16 %v4387
      %v4420 = vunpack.c.l.b16 %v4388
      %v4421 = vunpack.c.l.b16 %v4389
      %v4422 = vunpack.c.l.b16 %v4390
      %v4423 = vunpack.c.l.b16 %v4391
      %v4424 = vpack.c.b16 %v4409, %v4408
      %v4425 = vpack.c.b16 %v4411, %v4410
      %v4426 = vpack.c.b16 %v4413, %v4412
      %v4427 = vpack.c.b16 %v4415, %v4414
      %v4428 = vpack.c.b16 %v4417, %v4416
      %v4429 = vpack.c.b16 %v4419, %v4418
      %v4430 = vpack.c.b16 %v4421, %v4420
      %v4431 = vpack.c.b16 %v4423, %v4422
      %vm4432 = vcmask 261120
      %v4434 = vsel %vm4432, %v4360, 0
      %v4437 = vsel %vm4432, %v4361, 0
      %v4440 = vsel %vm4432, %v4362, 0
      %v4443 = vsel %vm4432, %v4363, 0
      %v4446 = vsel %vm4432, %v4364, 0
      %v4449 = vsel %vm4432, %v4365, 0
      %v4452 = vsel %vm4432, %v4366, 0
      %v4455 = vsel %vm4432, %v4367, 0
      %v4458 = vsel %vm4432, %v4368, 0
      %v4461 = vsel %vm4432, %v4369, 0
      %v4464 = vsel %vm4432, %v4370, 0
      %v4467 = vsel %vm4432, %v4371, 0
      %v4470 = vsel %vm4432, %v4372, 0
      %v4473 = vsel %vm4432, %v4373, 0
      %v4476 = vsel %vm4432, %v4374, 0
      %v4479 = vsel %vm4432, %v4375, 0
      %v4482 = vsel %vm4432, %v4424, 0
      %v4485 = vsel %vm4432, %v4425, 0
      %v4488 = vsel %vm4432, %v4426, 0
      %v4491 = vsel %vm4432, %v4427, 0
      %v4494 = vsel %vm4432, %v4428, 0
      %v4497 = vsel %vm4432, %v4429, 0
      %v4500 = vsel %vm4432, %v4430, 0
      %v4503 = vsel %vm4432, %v4431, 0
      %4505 = vmatpush.bf16.xpose.msra.mxu0 %v4503
      %4506 = vmatpush.bf16.xpose.msra.mxu0 %v4500
      %4507 = vmatpush.bf16.xpose.msra.mxu0 %v4497
      %4508 = vmatpush.bf16.xpose.msra.mxu0 %v4494
      %4509 = vmatpush.bf16.xpose.msra.mxu0 %v4491
      %4510 = vmatpush.bf16.xpose.msra.mxu0 %v4488
      %4511 = vmatpush.bf16.xpose.msra.mxu0 %v4485
      %4512 = vmatpush.bf16.xpose.msra.mxu0 %v4482
      %4513 = vmatmul.bf16.gmra.mxu0 %v4434
      %v4514 = vpop.f32.mrf.mxu0
      %v4515 = vadd.f32 0.0, %v4514
      %v4516 = vpop.f32.mrf.mxu0
      %v4517 = vadd.f32 0.0, %v4516
      %4518 = vmatmul.bf16.gmra.mxu0 %v4437
      %v4519 = vpop.f32.mrf.mxu0
      %v4520 = vadd.f32 0.0, %v4519
      %v4521 = vpop.f32.mrf.mxu0
      %v4522 = vadd.f32 0.0, %v4521
      %4523 = vmatmul.bf16.gmra.mxu0 %v4440
      %v4524 = vpop.f32.mrf.mxu0
      %v4525 = vadd.f32 0.0, %v4524
      %v4526 = vpop.f32.mrf.mxu0
      %v4527 = vadd.f32 0.0, %v4526
      %4528 = vmatmul.bf16.gmra.mxu0 %v4443
      %v4529 = vpop.f32.mrf.mxu0
      %v4530 = vadd.f32 0.0, %v4529
      %v4531 = vpop.f32.mrf.mxu0
      %v4532 = vadd.f32 0.0, %v4531
      %4533 = vmatmul.bf16.gmra.mxu0 %v4446
      %v4534 = vpop.f32.mrf.mxu0
      %v4535 = vadd.f32 0.0, %v4534
      %v4536 = vpop.f32.mrf.mxu0
      %v4537 = vadd.f32 0.0, %v4536
      %4538 = vmatmul.bf16.gmra.mxu0 %v4449
      %v4539 = vpop.f32.mrf.mxu0
      %v4540 = vadd.f32 0.0, %v4539
      %v4541 = vpop.f32.mrf.mxu0
      %v4542 = vadd.f32 0.0, %v4541
      %4543 = vmatmul.bf16.gmra.mxu0 %v4452
      %v4544 = vpop.f32.mrf.mxu0
      %v4545 = vadd.f32 0.0, %v4544
      %v4546 = vpop.f32.mrf.mxu0
      %v4547 = vadd.f32 0.0, %v4546
      %4548 = vmatmul.bf16.gmra.mxu0 %v4455
      %v4549 = vpop.f32.mrf.mxu0
      %v4550 = vadd.f32 0.0, %v4549
      %v4551 = vpop.f32.mrf.mxu0
      %v4552 = vadd.f32 0.0, %v4551
      %4553 = vmatmul.bf16.gmra.mxu0 %v4458
      %v4554 = vpop.f32.mrf.mxu0
      %v4555 = vadd.f32 0.0, %v4554
      %v4556 = vpop.f32.mrf.mxu0
      %v4557 = vadd.f32 0.0, %v4556
      %4558 = vmatmul.bf16.gmra.mxu0 %v4461
      %v4559 = vpop.f32.mrf.mxu0
      %v4560 = vadd.f32 0.0, %v4559
      %v4561 = vpop.f32.mrf.mxu0
      %v4562 = vadd.f32 0.0, %v4561
      %4563 = vmatmul.bf16.gmra.mxu0 %v4464
      %v4564 = vpop.f32.mrf.mxu0
      %v4565 = vadd.f32 0.0, %v4564
      %v4566 = vpop.f32.mrf.mxu0
      %v4567 = vadd.f32 0.0, %v4566
      %4568 = vmatmul.bf16.gmra.mxu0 %v4467
      %v4569 = vpop.f32.mrf.mxu0
      %v4570 = vadd.f32 0.0, %v4569
      %v4571 = vpop.f32.mrf.mxu0
      %v4572 = vadd.f32 0.0, %v4571
      %4573 = vmatmul.bf16.gmra.mxu0 %v4470
      %v4574 = vpop.f32.mrf.mxu0
      %v4575 = vadd.f32 0.0, %v4574
      %v4576 = vpop.f32.mrf.mxu0
      %v4577 = vadd.f32 0.0, %v4576
      %4578 = vmatmul.bf16.gmra.mxu0 %v4473
      %v4579 = vpop.f32.mrf.mxu0
      %v4580 = vadd.f32 0.0, %v4579
      %v4581 = vpop.f32.mrf.mxu0
      %v4582 = vadd.f32 0.0, %v4581
      %4583 = vmatmul.bf16.gmra.mxu0 %v4476
      %v4584 = vpop.f32.mrf.mxu0
      %v4585 = vadd.f32 0.0, %v4584
      %v4586 = vpop.f32.mrf.mxu0
      %v4587 = vadd.f32 0.0, %v4586
      %4588 = vmatmul.bf16.gmra.mxu0 %v4479
      %v4589 = vpop.f32.mrf.mxu0
      %v4590 = vadd.f32 0.0, %v4589
      %v4591 = vpop.f32.mrf.mxu0
      %v4592 = vadd.f32 0.0, %v4591
      %4593 = vdwg.mxu0
      %v4594 = vld [vmem:[%s4] sm:$0x1]
      %v4595 = vmul.f32 %v4515, 2.0
      %v4596 = vmul.f32 %v4517, 2.0
      %v4597 = vmul.f32 %v4520, 2.0
      %v4598 = vmul.f32 %v4522, 2.0
      %v4599 = vmul.f32 %v4525, 2.0
      %v4600 = vmul.f32 %v4527, 2.0
      %v4601 = vmul.f32 %v4530, 2.0
      %v4602 = vmul.f32 %v4532, 2.0
      %v4603 = vmul.f32 %v4535, 2.0
      %v4604 = vmul.f32 %v4537, 2.0
      %v4605 = vmul.f32 %v4540, 2.0
      %v4606 = vmul.f32 %v4542, 2.0
      %v4607 = vmul.f32 %v4545, 2.0
      %v4608 = vmul.f32 %v4547, 2.0
      %v4609 = vmul.f32 %v4550, 2.0
      %v4610 = vmul.f32 %v4552, 2.0
      %v4611 = vmul.f32 %v4555, 2.0
      %v4612 = vmul.f32 %v4557, 2.0
      %v4613 = vmul.f32 %v4560, 2.0
      %v4614 = vmul.f32 %v4562, 2.0
      %v4615 = vmul.f32 %v4565, 2.0
      %v4616 = vmul.f32 %v4567, 2.0
      %v4617 = vmul.f32 %v4570, 2.0
      %v4618 = vmul.f32 %v4572, 2.0
      %v4619 = vmul.f32 %v4575, 2.0
      %v4620 = vmul.f32 %v4577, 2.0
      %v4621 = vmul.f32 %v4580, 2.0
      %v4622 = vmul.f32 %v4582, 2.0
      %v4623 = vmul.f32 %v4585, 2.0
      %v4624 = vmul.f32 %v4587, 2.0
      %v4625 = vmul.f32 %v4590, 2.0
      %v4626 = vmul.f32 %v4592, 2.0
      %v4628 = vperm.slane %v4594, 0
      %v4630 = vsub.f32 %v4628, %v4595
      %v4631 = vsub.f32 %v4628, %v4596
      %v4632 = vsub.f32 %v4628, %v4597
      %v4633 = vsub.f32 %v4628, %v4598
      %v4634 = vsub.f32 %v4628, %v4599
      %v4635 = vsub.f32 %v4628, %v4600
      %v4636 = vsub.f32 %v4628, %v4601
      %v4637 = vsub.f32 %v4628, %v4602
      %v4638 = vsub.f32 %v4628, %v4603
      %v4639 = vsub.f32 %v4628, %v4604
      %v4640 = vsub.f32 %v4628, %v4605
      %v4641 = vsub.f32 %v4628, %v4606
      %v4642 = vsub.f32 %v4628, %v4607
      %v4643 = vsub.f32 %v4628, %v4608
      %v4644 = vsub.f32 %v4628, %v4609
      %v4645 = vsub.f32 %v4628, %v4610
      %v4646 = vsub.f32 %v4628, %v4611
      %v4647 = vsub.f32 %v4628, %v4612
      %v4648 = vsub.f32 %v4628, %v4613
      %v4649 = vsub.f32 %v4628, %v4614
      %v4650 = vsub.f32 %v4628, %v4615
      %v4651 = vsub.f32 %v4628, %v4616
      %v4652 = vsub.f32 %v4628, %v4617
      %v4653 = vsub.f32 %v4628, %v4618
      %v4654 = vsub.f32 %v4628, %v4619
      %v4655 = vsub.f32 %v4628, %v4620
      %v4656 = vsub.f32 %v4628, %v4621
      %v4657 = vsub.f32 %v4628, %v4622
      %v4658 = vsub.f32 %v4628, %v4623
      %v4659 = vsub.f32 %v4628, %v4624
      %v4660 = vsub.f32 %v4628, %v4625
      %v4661 = vsub.f32 %v4628, %v4626
      %4662 = vmin.xlane.f32.xlu0 %v4630
      %v4663 = vpop.xlane.xlu0 %4662
      %4664 = vmin.xlane.f32.xlu0 %v4631
      %v4665 = vpop.xlane.xlu0 %4664
      %4666 = vmin.xlane.f32.xlu0 %v4632
      %v4667 = vpop.xlane.xlu0 %4666
      %4668 = vmin.xlane.f32.xlu0 %v4633
      %v4669 = vpop.xlane.xlu0 %4668
      %4670 = vmin.xlane.f32.xlu0 %v4634
      %v4671 = vpop.xlane.xlu0 %4670
      %4672 = vmin.xlane.f32.xlu0 %v4635
      %v4673 = vpop.xlane.xlu0 %4672
      %4674 = vmin.xlane.f32.xlu0 %v4636
      %v4675 = vpop.xlane.xlu0 %4674
      %4676 = vmin.xlane.f32.xlu0 %v4637
      %v4677 = vpop.xlane.xlu0 %4676
      %4678 = vmin.xlane.f32.xlu0 %v4638
      %v4679 = vpop.xlane.xlu0 %4678
      %4680 = vmin.xlane.f32.xlu0 %v4639
      %v4681 = vpop.xlane.xlu0 %4680
      %4682 = vmin.xlane.f32.xlu0 %v4640
      %v4683 = vpop.xlane.xlu0 %4682
      %4684 = vmin.xlane.f32.xlu0 %v4641
      %v4685 = vpop.xlane.xlu0 %4684
      %4686 = vmin.xlane.f32.xlu0 %v4642
      %v4687 = vpop.xlane.xlu0 %4686
      %4688 = vmin.xlane.f32.xlu0 %v4643
      %v4689 = vpop.xlane.xlu0 %4688
      %4690 = vmin.xlane.f32.xlu0 %v4644
      %v4691 = vpop.xlane.xlu0 %4690
      %4692 = vmin.xlane.f32.xlu0 %v4645
      %v4693 = vpop.xlane.xlu0 %4692
      %4694 = vmin.xlane.f32.xlu0 %v4646
      %v4695 = vpop.xlane.xlu0 %4694
      %4696 = vmin.xlane.f32.xlu0 %v4647
      %v4697 = vpop.xlane.xlu0 %4696
      %4698 = vmin.xlane.f32.xlu0 %v4648
      %v4699 = vpop.xlane.xlu0 %4698
      %4700 = vmin.xlane.f32.xlu0 %v4649
      %v4701 = vpop.xlane.xlu0 %4700
      %4702 = vmin.xlane.f32.xlu0 %v4650
      %v4703 = vpop.xlane.xlu0 %4702
      %4704 = vmin.xlane.f32.xlu0 %v4651
      %v4705 = vpop.xlane.xlu0 %4704
      %4706 = vmin.xlane.f32.xlu0 %v4652
      %v4707 = vpop.xlane.xlu0 %4706
      %4708 = vmin.xlane.f32.xlu0 %v4653
      %v4709 = vpop.xlane.xlu0 %4708
      %4710 = vmin.xlane.f32.xlu0 %v4654
      %v4711 = vpop.xlane.xlu0 %4710
      %4712 = vmin.xlane.f32.xlu0 %v4655
      %v4713 = vpop.xlane.xlu0 %4712
      %4714 = vmin.xlane.f32.xlu0 %v4656
      %v4715 = vpop.xlane.xlu0 %4714
      %4716 = vmin.xlane.f32.xlu0 %v4657
      %v4717 = vpop.xlane.xlu0 %4716
      %4718 = vmin.xlane.f32.xlu0 %v4658
      %v4719 = vpop.xlane.xlu0 %4718
      %4720 = vmin.xlane.f32.xlu0 %v4659
      %v4721 = vpop.xlane.xlu0 %4720
      %4722 = vmin.xlane.f32.xlu0 %v4660
      %v4723 = vpop.xlane.xlu0 %4722
      %4724 = vmin.xlane.f32.xlu0 %v4661
      %v4725 = vpop.xlane.xlu0 %4724
      %v4726 = vlaneseq
      %v4727 = vand.u32 %v4726, 127
      %vm4728 = vcmp.le.f32.partialorder %v4630, %v4663
      %vm4729 = vcmp.le.f32.partialorder %v4631, %v4665
      %vm4730 = vcmp.le.f32.partialorder %v4632, %v4667
      %vm4731 = vcmp.le.f32.partialorder %v4633, %v4669
      %vm4732 = vcmp.le.f32.partialorder %v4634, %v4671
      %vm4733 = vcmp.le.f32.partialorder %v4635, %v4673
      %vm4734 = vcmp.le.f32.partialorder %v4636, %v4675
      %vm4735 = vcmp.le.f32.partialorder %v4637, %v4677
      %vm4736 = vcmp.le.f32.partialorder %v4638, %v4679
      %vm4737 = vcmp.le.f32.partialorder %v4639, %v4681
      %vm4738 = vcmp.le.f32.partialorder %v4640, %v4683
      %vm4739 = vcmp.le.f32.partialorder %v4641, %v4685
      %vm4740 = vcmp.le.f32.partialorder %v4642, %v4687
      %vm4741 = vcmp.le.f32.partialorder %v4643, %v4689
      %vm4742 = vcmp.le.f32.partialorder %v4644, %v4691
      %vm4743 = vcmp.le.f32.partialorder %v4645, %v4693
      %vm4744 = vcmp.le.f32.partialorder %v4646, %v4695
      %vm4745 = vcmp.le.f32.partialorder %v4647, %v4697
      %vm4746 = vcmp.le.f32.partialorder %v4648, %v4699
      %vm4747 = vcmp.le.f32.partialorder %v4649, %v4701
      %vm4748 = vcmp.le.f32.partialorder %v4650, %v4703
      %vm4749 = vcmp.le.f32.partialorder %v4651, %v4705
      %vm4750 = vcmp.le.f32.partialorder %v4652, %v4707
      %vm4751 = vcmp.le.f32.partialorder %v4653, %v4709
      %vm4752 = vcmp.le.f32.partialorder %v4654, %v4711
      %vm4753 = vcmp.le.f32.partialorder %v4655, %v4713
      %vm4754 = vcmp.le.f32.partialorder %v4656, %v4715
      %vm4755 = vcmp.le.f32.partialorder %v4657, %v4717
      %vm4756 = vcmp.le.f32.partialorder %v4658, %v4719
      %vm4757 = vcmp.le.f32.partialorder %v4659, %v4721
      %vm4758 = vcmp.le.f32.partialorder %v4660, %v4723
      %vm4759 = vcmp.le.f32.partialorder %v4661, %v4725
      %v4760 = vsel %vm4728, %v4727, 128
      %v4761 = vsel %vm4729, %v4727, 128
      %v4762 = vsel %vm4730, %v4727, 128
      %v4763 = vsel %vm4731, %v4727, 128
      %v4764 = vsel %vm4732, %v4727, 128
      %v4765 = vsel %vm4733, %v4727, 128
      %v4766 = vsel %vm4734, %v4727, 128
      %v4767 = vsel %vm4735, %v4727, 128
      %v4768 = vsel %vm4736, %v4727, 128
      %v4769 = vsel %vm4737, %v4727, 128
      %v4770 = vsel %vm4738, %v4727, 128
      %v4771 = vsel %vm4739, %v4727, 128
      %v4772 = vsel %vm4740, %v4727, 128
      %v4773 = vsel %vm4741, %v4727, 128
      %v4774 = vsel %vm4742, %v4727, 128
      %v4775 = vsel %vm4743, %v4727, 128
      %v4776 = vsel %vm4744, %v4727, 128
      %v4777 = vsel %vm4745, %v4727, 128
      %v4778 = vsel %vm4746, %v4727, 128
      %v4779 = vsel %vm4747, %v4727, 128
      %v4780 = vsel %vm4748, %v4727, 128
      %v4781 = vsel %vm4749, %v4727, 128
      %v4782 = vsel %vm4750, %v4727, 128
      %v4783 = vsel %vm4751, %v4727, 128
      %v4784 = vsel %vm4752, %v4727, 128
      %v4785 = vsel %vm4753, %v4727, 128
      %v4786 = vsel %vm4754, %v4727, 128
      %v4787 = vsel %vm4755, %v4727, 128
      %v4788 = vsel %vm4756, %v4727, 128
      %v4789 = vsel %vm4757, %v4727, 128
      %v4790 = vsel %vm4758, %v4727, 128
      %v4791 = vsel %vm4759, %v4727, 128
      %v4792 = vand.u32 %v4760, 65535
      %v4793 = vshra.s32 %v4760, 16
      %v4794 = vcvt.s32.f32 %v4792
      %v4795 = vcvt.s32.f32 %v4793
      %4796 = vmin.xlane.f32.xlu0 %v4795
      %v4797 = vpop.xlane.xlu0 %4796
      %vm4798 = vcmp.eq.f32.partialorder %v4795, %v4797
      %v4799 = vsel %vm4798, %v4794, inf
      %4800 = vmin.xlane.f32.xlu0 %v4799
      %v4801 = vpop.xlane.xlu0 %4800
      %v4802 = vcvt.f32.s32 %v4801
      %v4803 = vcvt.f32.s32 %v4797
      %v4804 = vshll.u32 %v4803, 16
      %v4805 = vadd.s32 %v4804, %v4802
      %v4806 = vand.u32 %v4761, 65535
      %v4807 = vshra.s32 %v4761, 16
      %v4808 = vcvt.s32.f32 %v4806
      %v4809 = vcvt.s32.f32 %v4807
      %4810 = vmin.xlane.f32.xlu0 %v4809
      %v4811 = vpop.xlane.xlu0 %4810
      %vm4812 = vcmp.eq.f32.partialorder %v4809, %v4811
      %v4813 = vsel %vm4812, %v4808, inf
      %4814 = vmin.xlane.f32.xlu0 %v4813
      %v4815 = vpop.xlane.xlu0 %4814
      %v4816 = vcvt.f32.s32 %v4815
      %v4817 = vcvt.f32.s32 %v4811
      %v4818 = vshll.u32 %v4817, 16
      %v4819 = vadd.s32 %v4818, %v4816
      %v4820 = vand.u32 %v4762, 65535
      %v4821 = vshra.s32 %v4762, 16
      %v4822 = vcvt.s32.f32 %v4820
      %v4823 = vcvt.s32.f32 %v4821
      %4824 = vmin.xlane.f32.xlu0 %v4823
      %v4825 = vpop.xlane.xlu0 %4824
      %vm4826 = vcmp.eq.f32.partialorder %v4823, %v4825
      %v4827 = vsel %vm4826, %v4822, inf
      %4828 = vmin.xlane.f32.xlu0 %v4827
      %v4829 = vpop.xlane.xlu0 %4828
      %v4830 = vcvt.f32.s32 %v4829
      %v4831 = vcvt.f32.s32 %v4825
      %v4832 = vshll.u32 %v4831, 16
      %v4833 = vadd.s32 %v4832, %v4830
      %v4834 = vand.u32 %v4763, 65535
      %v4835 = vshra.s32 %v4763, 16
      %v4836 = vcvt.s32.f32 %v4834
      %v4837 = vcvt.s32.f32 %v4835
      %4838 = vmin.xlane.f32.xlu0 %v4837
      %v4839 = vpop.xlane.xlu0 %4838
      %vm4840 = vcmp.eq.f32.partialorder %v4837, %v4839
      %v4841 = vsel %vm4840, %v4836, inf
      %4842 = vmin.xlane.f32.xlu0 %v4841
      %v4843 = vpop.xlane.xlu0 %4842
      %v4844 = vcvt.f32.s32 %v4843
      %v4845 = vcvt.f32.s32 %v4839
      %v4846 = vshll.u32 %v4845, 16
      %v4847 = vadd.s32 %v4846, %v4844
      %v4848 = vand.u32 %v4764, 65535
      %v4849 = vshra.s32 %v4764, 16
      %v4850 = vcvt.s32.f32 %v4848
      %v4851 = vcvt.s32.f32 %v4849
      %4852 = vmin.xlane.f32.xlu0 %v4851
      %v4853 = vpop.xlane.xlu0 %4852
      %vm4854 = vcmp.eq.f32.partialorder %v4851, %v4853
      %v4855 = vsel %vm4854, %v4850, inf
      %4856 = vmin.xlane.f32.xlu0 %v4855
      %v4857 = vpop.xlane.xlu0 %4856
      %v4858 = vcvt.f32.s32 %v4857
      %v4859 = vcvt.f32.s32 %v4853
      %v4860 = vshll.u32 %v4859, 16
      %v4861 = vadd.s32 %v4860, %v4858
      %v4862 = vand.u32 %v4765, 65535
      %v4863 = vshra.s32 %v4765, 16
      %v4864 = vcvt.s32.f32 %v4862
      %v4865 = vcvt.s32.f32 %v4863
      %4866 = vmin.xlane.f32.xlu0 %v4865
      %v4867 = vpop.xlane.xlu0 %4866
      %vm4868 = vcmp.eq.f32.partialorder %v4865, %v4867
      %v4869 = vsel %vm4868, %v4864, inf
      %4870 = vmin.xlane.f32.xlu0 %v4869
      %v4871 = vpop.xlane.xlu0 %4870
      %v4872 = vcvt.f32.s32 %v4871
      %v4873 = vcvt.f32.s32 %v4867
      %v4874 = vshll.u32 %v4873, 16
      %v4875 = vadd.s32 %v4874, %v4872
      %v4876 = vand.u32 %v4766, 65535
      %v4877 = vshra.s32 %v4766, 16
      %v4878 = vcvt.s32.f32 %v4876
      %v4879 = vcvt.s32.f32 %v4877
      %4880 = vmin.xlane.f32.xlu0 %v4879
      %v4881 = vpop.xlane.xlu0 %4880
      %vm4882 = vcmp.eq.f32.partialorder %v4879, %v4881
      %v4883 = vsel %vm4882, %v4878, inf
      %4884 = vmin.xlane.f32.xlu0 %v4883
      %v4885 = vpop.xlane.xlu0 %4884
      %v4886 = vcvt.f32.s32 %v4885
      %v4887 = vcvt.f32.s32 %v4881
      %v4888 = vshll.u32 %v4887, 16
      %v4889 = vadd.s32 %v4888, %v4886
      %v4890 = vand.u32 %v4767, 65535
      %v4891 = vshra.s32 %v4767, 16
      %v4892 = vcvt.s32.f32 %v4890
      %v4893 = vcvt.s32.f32 %v4891
      %4894 = vmin.xlane.f32.xlu0 %v4893
      %v4895 = vpop.xlane.xlu0 %4894
      %vm4896 = vcmp.eq.f32.partialorder %v4893, %v4895
      %v4897 = vsel %vm4896, %v4892, inf
      %4898 = vmin.xlane.f32.xlu0 %v4897
      %v4899 = vpop.xlane.xlu0 %4898
      %v4900 = vcvt.f32.s32 %v4899
      %v4901 = vcvt.f32.s32 %v4895
      %v4902 = vshll.u32 %v4901, 16
      %v4903 = vadd.s32 %v4902, %v4900
      %v4904 = vand.u32 %v4768, 65535
      %v4905 = vshra.s32 %v4768, 16
      %v4906 = vcvt.s32.f32 %v4904
      %v4907 = vcvt.s32.f32 %v4905
      %4908 = vmin.xlane.f32.xlu0 %v4907
      %v4909 = vpop.xlane.xlu0 %4908
      %vm4910 = vcmp.eq.f32.partialorder %v4907, %v4909
      %v4911 = vsel %vm4910, %v4906, inf
      %4912 = vmin.xlane.f32.xlu0 %v4911
      %v4913 = vpop.xlane.xlu0 %4912
      %v4914 = vcvt.f32.s32 %v4913
      %v4915 = vcvt.f32.s32 %v4909
      %v4916 = vshll.u32 %v4915, 16
      %v4917 = vadd.s32 %v4916, %v4914
      %v4918 = vand.u32 %v4769, 65535
      %v4919 = vshra.s32 %v4769, 16
      %v4920 = vcvt.s32.f32 %v4918
      %v4921 = vcvt.s32.f32 %v4919
      %4922 = vmin.xlane.f32.xlu0 %v4921
      %v4923 = vpop.xlane.xlu0 %4922
      %vm4924 = vcmp.eq.f32.partialorder %v4921, %v4923
      %v4925 = vsel %vm4924, %v4920, inf
      %4926 = vmin.xlane.f32.xlu0 %v4925
      %v4927 = vpop.xlane.xlu0 %4926
      %v4928 = vcvt.f32.s32 %v4927
      %v4929 = vcvt.f32.s32 %v4923
      %v4930 = vshll.u32 %v4929, 16
      %v4931 = vadd.s32 %v4930, %v4928
      %v4932 = vand.u32 %v4770, 65535
      %v4933 = vshra.s32 %v4770, 16
      %v4934 = vcvt.s32.f32 %v4932
      %v4935 = vcvt.s32.f32 %v4933
      %4936 = vmin.xlane.f32.xlu0 %v4935
      %v4937 = vpop.xlane.xlu0 %4936
      %vm4938 = vcmp.eq.f32.partialorder %v4935, %v4937
      %v4939 = vsel %vm4938, %v4934, inf
      %4940 = vmin.xlane.f32.xlu0 %v4939
      %v4941 = vpop.xlane.xlu0 %4940
      %v4942 = vcvt.f32.s32 %v4941
      %v4943 = vcvt.f32.s32 %v4937
      %v4944 = vshll.u32 %v4943, 16
      %v4945 = vadd.s32 %v4944, %v4942
      %v4946 = vand.u32 %v4771, 65535
      %v4947 = vshra.s32 %v4771, 16
      %v4948 = vcvt.s32.f32 %v4946
      %v4949 = vcvt.s32.f32 %v4947
      %4950 = vmin.xlane.f32.xlu0 %v4949
      %v4951 = vpop.xlane.xlu0 %4950
      %vm4952 = vcmp.eq.f32.partialorder %v4949, %v4951
      %v4953 = vsel %vm4952, %v4948, inf
      %4954 = vmin.xlane.f32.xlu0 %v4953
      %v4955 = vpop.xlane.xlu0 %4954
      %v4956 = vcvt.f32.s32 %v4955
      %v4957 = vcvt.f32.s32 %v4951
      %v4958 = vshll.u32 %v4957, 16
      %v4959 = vadd.s32 %v4958, %v4956
      %v4960 = vand.u32 %v4772, 65535
      %v4961 = vshra.s32 %v4772, 16
      %v4962 = vcvt.s32.f32 %v4960
      %v4963 = vcvt.s32.f32 %v4961
      %4964 = vmin.xlane.f32.xlu0 %v4963
      %v4965 = vpop.xlane.xlu0 %4964
      %vm4966 = vcmp.eq.f32.partialorder %v4963, %v4965
      %v4967 = vsel %vm4966, %v4962, inf
      %4968 = vmin.xlane.f32.xlu0 %v4967
      %v4969 = vpop.xlane.xlu0 %4968
      %v4970 = vcvt.f32.s32 %v4969
      %v4971 = vcvt.f32.s32 %v4965
      %v4972 = vshll.u32 %v4971, 16
      %v4973 = vadd.s32 %v4972, %v4970
      %v4974 = vand.u32 %v4773, 65535
      %v4975 = vshra.s32 %v4773, 16
      %v4976 = vcvt.s32.f32 %v4974
      %v4977 = vcvt.s32.f32 %v4975
      %4978 = vmin.xlane.f32.xlu0 %v4977
      %v4979 = vpop.xlane.xlu0 %4978
      %vm4980 = vcmp.eq.f32.partialorder %v4977, %v4979
      %v4981 = vsel %vm4980, %v4976, inf
      %4982 = vmin.xlane.f32.xlu0 %v4981
      %v4983 = vpop.xlane.xlu0 %4982
      %v4984 = vcvt.f32.s32 %v4983
      %v4985 = vcvt.f32.s32 %v4979
      %v4986 = vshll.u32 %v4985, 16
      %v4987 = vadd.s32 %v4986, %v4984
      %v4988 = vand.u32 %v4774, 65535
      %v4989 = vshra.s32 %v4774, 16
      %v4990 = vcvt.s32.f32 %v4988
      %v4991 = vcvt.s32.f32 %v4989
      %4992 = vmin.xlane.f32.xlu0 %v4991
      %v4993 = vpop.xlane.xlu0 %4992
      %vm4994 = vcmp.eq.f32.partialorder %v4991, %v4993
      %v4995 = vsel %vm4994, %v4990, inf
      %4996 = vmin.xlane.f32.xlu0 %v4995
      %v4997 = vpop.xlane.xlu0 %4996
      %v4998 = vcvt.f32.s32 %v4997
      %v4999 = vcvt.f32.s32 %v4993
      %v5000 = vshll.u32 %v4999, 16
      %v5001 = vadd.s32 %v5000, %v4998
      %v5002 = vand.u32 %v4775, 65535
      %v5003 = vshra.s32 %v4775, 16
      %v5004 = vcvt.s32.f32 %v5002
      %v5005 = vcvt.s32.f32 %v5003
      %5006 = vmin.xlane.f32.xlu0 %v5005
      %v5007 = vpop.xlane.xlu0 %5006
      %vm5008 = vcmp.eq.f32.partialorder %v5005, %v5007
      %v5009 = vsel %vm5008, %v5004, inf
      %5010 = vmin.xlane.f32.xlu0 %v5009
      %v5011 = vpop.xlane.xlu0 %5010
      %v5012 = vcvt.f32.s32 %v5011
      %v5013 = vcvt.f32.s32 %v5007
      %v5014 = vshll.u32 %v5013, 16
      %v5015 = vadd.s32 %v5014, %v5012
      %v5016 = vand.u32 %v4776, 65535
      %v5017 = vshra.s32 %v4776, 16
      %v5018 = vcvt.s32.f32 %v5016
      %v5019 = vcvt.s32.f32 %v5017
      %5020 = vmin.xlane.f32.xlu0 %v5019
      %v5021 = vpop.xlane.xlu0 %5020
      %vm5022 = vcmp.eq.f32.partialorder %v5019, %v5021
      %v5023 = vsel %vm5022, %v5018, inf
      %5024 = vmin.xlane.f32.xlu0 %v5023
      %v5025 = vpop.xlane.xlu0 %5024
      %v5026 = vcvt.f32.s32 %v5025
      %v5027 = vcvt.f32.s32 %v5021
      %v5028 = vshll.u32 %v5027, 16
      %v5029 = vadd.s32 %v5028, %v5026
      %v5030 = vand.u32 %v4777, 65535
      %v5031 = vshra.s32 %v4777, 16
      %v5032 = vcvt.s32.f32 %v5030
      %v5033 = vcvt.s32.f32 %v5031
      %5034 = vmin.xlane.f32.xlu0 %v5033
      %v5035 = vpop.xlane.xlu0 %5034
      %vm5036 = vcmp.eq.f32.partialorder %v5033, %v5035
      %v5037 = vsel %vm5036, %v5032, inf
      %5038 = vmin.xlane.f32.xlu0 %v5037
      %v5039 = vpop.xlane.xlu0 %5038
      %v5040 = vcvt.f32.s32 %v5039
      %v5041 = vcvt.f32.s32 %v5035
      %v5042 = vshll.u32 %v5041, 16
      %v5043 = vadd.s32 %v5042, %v5040
      %v5044 = vand.u32 %v4778, 65535
      %v5045 = vshra.s32 %v4778, 16
      %v5046 = vcvt.s32.f32 %v5044
      %v5047 = vcvt.s32.f32 %v5045
      %5048 = vmin.xlane.f32.xlu0 %v5047
      %v5049 = vpop.xlane.xlu0 %5048
      %vm5050 = vcmp.eq.f32.partialorder %v5047, %v5049
      %v5051 = vsel %vm5050, %v5046, inf
      %5052 = vmin.xlane.f32.xlu0 %v5051
      %v5053 = vpop.xlane.xlu0 %5052
      %v5054 = vcvt.f32.s32 %v5053
      %v5055 = vcvt.f32.s32 %v5049
      %v5056 = vshll.u32 %v5055, 16
      %v5057 = vadd.s32 %v5056, %v5054
      %v5058 = vand.u32 %v4779, 65535
      %v5059 = vshra.s32 %v4779, 16
      %v5060 = vcvt.s32.f32 %v5058
      %v5061 = vcvt.s32.f32 %v5059
      %5062 = vmin.xlane.f32.xlu0 %v5061
      %v5063 = vpop.xlane.xlu0 %5062
      %vm5064 = vcmp.eq.f32.partialorder %v5061, %v5063
      %v5065 = vsel %vm5064, %v5060, inf
      %5066 = vmin.xlane.f32.xlu0 %v5065
      %v5067 = vpop.xlane.xlu0 %5066
      %v5068 = vcvt.f32.s32 %v5067
      %v5069 = vcvt.f32.s32 %v5063
      %v5070 = vshll.u32 %v5069, 16
      %v5071 = vadd.s32 %v5070, %v5068
      %v5072 = vand.u32 %v4780, 65535
      %v5073 = vshra.s32 %v4780, 16
      %v5074 = vcvt.s32.f32 %v5072
      %v5075 = vcvt.s32.f32 %v5073
      %5076 = vmin.xlane.f32.xlu0 %v5075
      %v5077 = vpop.xlane.xlu0 %5076
      %vm5078 = vcmp.eq.f32.partialorder %v5075, %v5077
      %v5079 = vsel %vm5078, %v5074, inf
      %5080 = vmin.xlane.f32.xlu0 %v5079
      %v5081 = vpop.xlane.xlu0 %5080
      %v5082 = vcvt.f32.s32 %v5081
      %v5083 = vcvt.f32.s32 %v5077
      %v5084 = vshll.u32 %v5083, 16
      %v5085 = vadd.s32 %v5084, %v5082
      %v5086 = vand.u32 %v4781, 65535
      %v5087 = vshra.s32 %v4781, 16
      %v5088 = vcvt.s32.f32 %v5086
      %v5089 = vcvt.s32.f32 %v5087
      %5090 = vmin.xlane.f32.xlu0 %v5089
      %v5091 = vpop.xlane.xlu0 %5090
      %vm5092 = vcmp.eq.f32.partialorder %v5089, %v5091
      %v5093 = vsel %vm5092, %v5088, inf
      %5094 = vmin.xlane.f32.xlu0 %v5093
      %v5095 = vpop.xlane.xlu0 %5094
      %v5096 = vcvt.f32.s32 %v5095
      %v5097 = vcvt.f32.s32 %v5091
      %v5098 = vshll.u32 %v5097, 16
      %v5099 = vadd.s32 %v5098, %v5096
      %v5100 = vand.u32 %v4782, 65535
      %v5101 = vshra.s32 %v4782, 16
      %v5102 = vcvt.s32.f32 %v5100
      %v5103 = vcvt.s32.f32 %v5101
      %5104 = vmin.xlane.f32.xlu0 %v5103
      %v5105 = vpop.xlane.xlu0 %5104
      %vm5106 = vcmp.eq.f32.partialorder %v5103, %v5105
      %v5107 = vsel %vm5106, %v5102, inf
      %5108 = vmin.xlane.f32.xlu0 %v5107
      %v5109 = vpop.xlane.xlu0 %5108
      %v5110 = vcvt.f32.s32 %v5109
      %v5111 = vcvt.f32.s32 %v5105
      %v5112 = vshll.u32 %v5111, 16
      %v5113 = vadd.s32 %v5112, %v5110
      %v5114 = vand.u32 %v4783, 65535
      %v5115 = vshra.s32 %v4783, 16
      %v5116 = vcvt.s32.f32 %v5114
      %v5117 = vcvt.s32.f32 %v5115
      %5118 = vmin.xlane.f32.xlu0 %v5117
      %v5119 = vpop.xlane.xlu0 %5118
      %vm5120 = vcmp.eq.f32.partialorder %v5117, %v5119
      %v5121 = vsel %vm5120, %v5116, inf
      %5122 = vmin.xlane.f32.xlu0 %v5121
      %v5123 = vpop.xlane.xlu0 %5122
      %v5124 = vcvt.f32.s32 %v5123
      %v5125 = vcvt.f32.s32 %v5119
      %v5126 = vshll.u32 %v5125, 16
      %v5127 = vadd.s32 %v5126, %v5124
      %v5128 = vand.u32 %v4784, 65535
      %v5129 = vshra.s32 %v4784, 16
      %v5130 = vcvt.s32.f32 %v5128
      %v5131 = vcvt.s32.f32 %v5129
      %5132 = vmin.xlane.f32.xlu0 %v5131
      %v5133 = vpop.xlane.xlu0 %5132
      %vm5134 = vcmp.eq.f32.partialorder %v5131, %v5133
      %v5135 = vsel %vm5134, %v5130, inf
      %5136 = vmin.xlane.f32.xlu0 %v5135
      %v5137 = vpop.xlane.xlu0 %5136
      %v5138 = vcvt.f32.s32 %v5137
      %v5139 = vcvt.f32.s32 %v5133
      %v5140 = vshll.u32 %v5139, 16
      %v5141 = vadd.s32 %v5140, %v5138
      %v5142 = vand.u32 %v4785, 65535
      %v5143 = vshra.s32 %v4785, 16
      %v5144 = vcvt.s32.f32 %v5142
      %v5145 = vcvt.s32.f32 %v5143
      %5146 = vmin.xlane.f32.xlu0 %v5145
      %v5147 = vpop.xlane.xlu0 %5146
      %vm5148 = vcmp.eq.f32.partialorder %v5145, %v5147
      %v5149 = vsel %vm5148, %v5144, inf
      %5150 = vmin.xlane.f32.xlu0 %v5149
      %v5151 = vpop.xlane.xlu0 %5150
      %v5152 = vcvt.f32.s32 %v5151
      %v5153 = vcvt.f32.s32 %v5147
      %v5154 = vshll.u32 %v5153, 16
      %v5155 = vadd.s32 %v5154, %v5152
      %v5156 = vand.u32 %v4786, 65535
      %v5157 = vshra.s32 %v4786, 16
      %v5158 = vcvt.s32.f32 %v5156
      %v5159 = vcvt.s32.f32 %v5157
      %5160 = vmin.xlane.f32.xlu0 %v5159
      %v5161 = vpop.xlane.xlu0 %5160
      %vm5162 = vcmp.eq.f32.partialorder %v5159, %v5161
      %v5163 = vsel %vm5162, %v5158, inf
      %5164 = vmin.xlane.f32.xlu0 %v5163
      %v5165 = vpop.xlane.xlu0 %5164
      %v5166 = vcvt.f32.s32 %v5165
      %v5167 = vcvt.f32.s32 %v5161
      %v5168 = vshll.u32 %v5167, 16
      %v5169 = vadd.s32 %v5168, %v5166
      %v5170 = vand.u32 %v4787, 65535
      %v5171 = vshra.s32 %v4787, 16
      %v5172 = vcvt.s32.f32 %v5170
      %v5173 = vcvt.s32.f32 %v5171
      %5174 = vmin.xlane.f32.xlu0 %v5173
      %v5175 = vpop.xlane.xlu0 %5174
      %vm5176 = vcmp.eq.f32.partialorder %v5173, %v5175
      %v5177 = vsel %vm5176, %v5172, inf
      %5178 = vmin.xlane.f32.xlu0 %v5177
      %v5179 = vpop.xlane.xlu0 %5178
      %v5180 = vcvt.f32.s32 %v5179
      %v5181 = vcvt.f32.s32 %v5175
      %v5182 = vshll.u32 %v5181, 16
      %v5183 = vadd.s32 %v5182, %v5180
      %v5184 = vand.u32 %v4788, 65535
      %v5185 = vshra.s32 %v4788, 16
      %v5186 = vcvt.s32.f32 %v5184
      %v5187 = vcvt.s32.f32 %v5185
      %5188 = vmin.xlane.f32.xlu0 %v5187
      %v5189 = vpop.xlane.xlu0 %5188
      %vm5190 = vcmp.eq.f32.partialorder %v5187, %v5189
      %v5191 = vsel %vm5190, %v5186, inf
      %5192 = vmin.xlane.f32.xlu0 %v5191
      %v5193 = vpop.xlane.xlu0 %5192
      %v5194 = vcvt.f32.s32 %v5193
      %v5195 = vcvt.f32.s32 %v5189
      %v5196 = vshll.u32 %v5195, 16
      %v5197 = vadd.s32 %v5196, %v5194
      %v5198 = vand.u32 %v4789, 65535
      %v5199 = vshra.s32 %v4789, 16
      %v5200 = vcvt.s32.f32 %v5198
      %v5201 = vcvt.s32.f32 %v5199
      %5202 = vmin.xlane.f32.xlu0 %v5201
      %v5203 = vpop.xlane.xlu0 %5202
      %vm5204 = vcmp.eq.f32.partialorder %v5201, %v5203
      %v5205 = vsel %vm5204, %v5200, inf
      %5206 = vmin.xlane.f32.xlu0 %v5205
      %v5207 = vpop.xlane.xlu0 %5206
      %v5208 = vcvt.f32.s32 %v5207
      %v5209 = vcvt.f32.s32 %v5203
      %v5210 = vshll.u32 %v5209, 16
      %v5211 = vadd.s32 %v5210, %v5208
      %v5212 = vand.u32 %v4790, 65535
      %v5213 = vshra.s32 %v4790, 16
      %v5214 = vcvt.s32.f32 %v5212
      %v5215 = vcvt.s32.f32 %v5213
      %5216 = vmin.xlane.f32.xlu0 %v5215
      %v5217 = vpop.xlane.xlu0 %5216
      %vm5218 = vcmp.eq.f32.partialorder %v5215, %v5217
      %v5219 = vsel %vm5218, %v5214, inf
      %5220 = vmin.xlane.f32.xlu0 %v5219
      %v5221 = vpop.xlane.xlu0 %5220
      %v5222 = vcvt.f32.s32 %v5221
      %v5223 = vcvt.f32.s32 %v5217
      %v5224 = vshll.u32 %v5223, 16
      %v5225 = vadd.s32 %v5224, %v5222
      %v5226 = vand.u32 %v4791, 65535
      %v5227 = vshra.s32 %v4791, 16
      %v5228 = vcvt.s32.f32 %v5226
      %v5229 = vcvt.s32.f32 %v5227
      %5230 = vmin.xlane.f32.xlu0 %v5229
      %v5231 = vpop.xlane.xlu0 %5230
      %vm5232 = vcmp.eq.f32.partialorder %v5229, %v5231
      %v5233 = vsel %vm5232, %v5228, inf
      %5234 = vmin.xlane.f32.xlu0 %v5233
      %v5235 = vpop.xlane.xlu0 %5234
      %v5236 = vcvt.f32.s32 %v5235
      %v5237 = vcvt.f32.s32 %v5231
      %v5238 = vshll.u32 %v5237, 16
      %v5239 = vadd.s32 %v5238, %v5236
      %vm5240 = vcmp.eq.s32.totalorder %v4760, %v4805
      %vm5241 = vcmp.eq.s32.totalorder %v4761, %v4819
      %vm5242 = vcmp.eq.s32.totalorder %v4762, %v4833
      %vm5243 = vcmp.eq.s32.totalorder %v4763, %v4847
      %vm5244 = vcmp.eq.s32.totalorder %v4764, %v4861
      %vm5245 = vcmp.eq.s32.totalorder %v4765, %v4875
      %vm5246 = vcmp.eq.s32.totalorder %v4766, %v4889
      %vm5247 = vcmp.eq.s32.totalorder %v4767, %v4903
      %vm5248 = vcmp.eq.s32.totalorder %v4768, %v4917
      %vm5249 = vcmp.eq.s32.totalorder %v4769, %v4931
      %vm5250 = vcmp.eq.s32.totalorder %v4770, %v4945
      %vm5251 = vcmp.eq.s32.totalorder %v4771, %v4959
      %vm5252 = vcmp.eq.s32.totalorder %v4772, %v4973
      %vm5253 = vcmp.eq.s32.totalorder %v4773, %v4987
      %vm5254 = vcmp.eq.s32.totalorder %v4774, %v5001
      %vm5255 = vcmp.eq.s32.totalorder %v4775, %v5015
      %vm5256 = vcmp.eq.s32.totalorder %v4776, %v5029
      %vm5257 = vcmp.eq.s32.totalorder %v4777, %v5043
      %vm5258 = vcmp.eq.s32.totalorder %v4778, %v5057
      %vm5259 = vcmp.eq.s32.totalorder %v4779, %v5071
      %vm5260 = vcmp.eq.s32.totalorder %v4780, %v5085
      %vm5261 = vcmp.eq.s32.totalorder %v4781, %v5099
      %vm5262 = vcmp.eq.s32.totalorder %v4782, %v5113
      %vm5263 = vcmp.eq.s32.totalorder %v4783, %v5127
      %vm5264 = vcmp.eq.s32.totalorder %v4784, %v5141
      %vm5265 = vcmp.eq.s32.totalorder %v4785, %v5155
      %vm5266 = vcmp.eq.s32.totalorder %v4786, %v5169
      %vm5267 = vcmp.eq.s32.totalorder %v4787, %v5183
      %vm5268 = vcmp.eq.s32.totalorder %v4788, %v5197
      %vm5269 = vcmp.eq.s32.totalorder %v4789, %v5211
      %vm5270 = vcmp.eq.s32.totalorder %v4790, %v5225
      %vm5271 = vcmp.eq.s32.totalorder %v4791, %v5239
      %v5272 = vsel %vm5240, 1, 0
      %v5273 = vsel %vm5241, 1, 0
      %v5274 = vsel %vm5242, 1, 0
      %v5275 = vsel %vm5243, 1, 0
      %v5276 = vsel %vm5244, 1, 0
      %v5277 = vsel %vm5245, 1, 0
      %v5278 = vsel %vm5246, 1, 0
      %v5279 = vsel %vm5247, 1, 0
      %v5280 = vsel %vm5248, 1, 0
      %v5281 = vsel %vm5249, 1, 0
      %v5282 = vsel %vm5250, 1, 0
      %v5283 = vsel %vm5251, 1, 0
      %v5284 = vsel %vm5252, 1, 0
      %v5285 = vsel %vm5253, 1, 0
      %v5286 = vsel %vm5254, 1, 0
      %v5287 = vsel %vm5255, 1, 0
      %v5288 = vsel %vm5256, 1, 0
      %v5289 = vsel %vm5257, 1, 0
      %v5290 = vsel %vm5258, 1, 0
      %v5291 = vsel %vm5259, 1, 0
      %v5292 = vsel %vm5260, 1, 0
      %v5293 = vsel %vm5261, 1, 0
      %v5294 = vsel %vm5262, 1, 0
      %v5295 = vsel %vm5263, 1, 0
      %v5296 = vsel %vm5264, 1, 0
      %v5297 = vsel %vm5265, 1, 0
      %v5298 = vsel %vm5266, 1, 0
      %v5299 = vsel %vm5267, 1, 0
      %v5300 = vsel %vm5268, 1, 0
      %v5301 = vsel %vm5269, 1, 0
      %v5302 = vsel %vm5270, 1, 0
      %v5303 = vsel %vm5271, 1, 0
      %v5304 = vcvt.s32.f32 %v5272
      %v5305 = vcvt.s32.f32 %v5273
      %v5306 = vcvt.s32.f32 %v5274
      %v5307 = vcvt.s32.f32 %v5275
      %v5308 = vcvt.s32.f32 %v5276
      %v5309 = vcvt.s32.f32 %v5277
      %v5310 = vcvt.s32.f32 %v5278
      %v5311 = vcvt.s32.f32 %v5279
      %v5312 = vcvt.s32.f32 %v5280
      %v5313 = vcvt.s32.f32 %v5281
      %v5314 = vcvt.s32.f32 %v5282
      %v5315 = vcvt.s32.f32 %v5283
      %v5316 = vcvt.s32.f32 %v5284
      %v5317 = vcvt.s32.f32 %v5285
      %v5318 = vcvt.s32.f32 %v5286
      %v5319 = vcvt.s32.f32 %v5287
      %v5320 = vcvt.s32.f32 %v5288
      %v5321 = vcvt.s32.f32 %v5289
      %v5322 = vcvt.s32.f32 %v5290
      %v5323 = vcvt.s32.f32 %v5291
      %v5324 = vcvt.s32.f32 %v5292
      %v5325 = vcvt.s32.f32 %v5293
      %v5326 = vcvt.s32.f32 %v5294
      %v5327 = vcvt.s32.f32 %v5295
      %v5328 = vcvt.s32.f32 %v5296
      %v5329 = vcvt.s32.f32 %v5297
      %v5330 = vcvt.s32.f32 %v5298
      %v5331 = vcvt.s32.f32 %v5299
      %v5332 = vcvt.s32.f32 %v5300
      %v5333 = vcvt.s32.f32 %v5301
      %v5334 = vcvt.s32.f32 %v5302
      %v5335 = vcvt.s32.f32 %v5303
      %v5336 = vpack.c.bf16 %v5305, %v5304
      %v5337 = vpack.c.bf16 %v5307, %v5306
      %v5338 = vpack.c.bf16 %v5309, %v5308
      %v5339 = vpack.c.bf16 %v5311, %v5310
      %v5340 = vpack.c.bf16 %v5313, %v5312
      %v5341 = vpack.c.bf16 %v5315, %v5314
      %v5342 = vpack.c.bf16 %v5317, %v5316
      %v5343 = vpack.c.bf16 %v5319, %v5318
      %v5344 = vpack.c.bf16 %v5321, %v5320
      %v5345 = vpack.c.bf16 %v5323, %v5322
      %v5346 = vpack.c.bf16 %v5325, %v5324
      %v5347 = vpack.c.bf16 %v5327, %v5326
      %v5348 = vpack.c.bf16 %v5329, %v5328
      %v5349 = vpack.c.bf16 %v5331, %v5330
      %v5350 = vpack.c.bf16 %v5333, %v5332
      %v5351 = vpack.c.bf16 %v5335, %v5334
      %v5352 = vmul.f32 %v4328, %v4328
      %v5353 = vmul.f32 %v4329, %v4329
      %v5354 = vmul.f32 %v4330, %v4330
      %v5355 = vmul.f32 %v4331, %v4331
      %v5356 = vmul.f32 %v4332, %v4332
      %v5357 = vmul.f32 %v4333, %v4333
      %v5358 = vmul.f32 %v4334, %v4334
      %v5359 = vmul.f32 %v4335, %v4335
      %v5360 = vmul.f32 %v4336, %v4336
      %v5361 = vmul.f32 %v4337, %v4337
      %v5362 = vmul.f32 %v4338, %v4338
      %v5363 = vmul.f32 %v4339, %v4339
      %v5364 = vmul.f32 %v4340, %v4340
      %v5365 = vmul.f32 %v4341, %v4341
      %v5366 = vmul.f32 %v4342, %v4342
      %v5367 = vmul.f32 %v4343, %v4343
      %v5368 = vmul.f32 %v4344, %v4344
      %v5369 = vmul.f32 %v4345, %v4345
      %v5370 = vmul.f32 %v4346, %v4346
      %v5371 = vmul.f32 %v4347, %v4347
      %v5372 = vmul.f32 %v4348, %v4348
      %v5373 = vmul.f32 %v4349, %v4349
      %v5374 = vmul.f32 %v4350, %v4350
      %v5375 = vmul.f32 %v4351, %v4351
      %v5376 = vmul.f32 %v4352, %v4352
      %v5377 = vmul.f32 %v4353, %v4353
      %v5378 = vmul.f32 %v4354, %v4354
      %v5379 = vmul.f32 %v4355, %v4355
      %v5380 = vmul.f32 %v4356, %v4356
      %v5381 = vmul.f32 %v4357, %v4357
      %v5382 = vmul.f32 %v4358, %v4358
      %v5383 = vmul.f32 %v4359, %v4359
      %v5384 = vsel %vm4432, %v5352, 0.0
      %5385 = vadd.xlane.f32.xlu0 %v5384
      %v5386 = vpop.xlane.xlu0 %5385
      %v5387 = vsel %vm4432, %v5353, 0.0
      %5388 = vadd.xlane.f32.xlu0 %v5387
      %v5389 = vpop.xlane.xlu0 %5388
      %v5390 = vsel %vm4432, %v5354, 0.0
      %5391 = vadd.xlane.f32.xlu0 %v5390
      %v5392 = vpop.xlane.xlu0 %5391
      %v5393 = vsel %vm4432, %v5355, 0.0
      %5394 = vadd.xlane.f32.xlu0 %v5393
      %v5395 = vpop.xlane.xlu0 %5394
      %v5396 = vsel %vm4432, %v5356, 0.0
      %5397 = vadd.xlane.f32.xlu0 %v5396
      %v5398 = vpop.xlane.xlu0 %5397
      %v5399 = vsel %vm4432, %v5357, 0.0
      %5400 = vadd.xlane.f32.xlu0 %v5399
      %v5401 = vpop.xlane.xlu0 %5400
      %v5402 = vsel %vm4432, %v5358, 0.0
      %5403 = vadd.xlane.f32.xlu0 %v5402
      %v5404 = vpop.xlane.xlu0 %5403
      %v5405 = vsel %vm4432, %v5359, 0.0
      %5406 = vadd.xlane.f32.xlu0 %v5405
      %v5407 = vpop.xlane.xlu0 %5406
      %v5408 = vsel %vm4432, %v5360, 0.0
      %5409 = vadd.xlane.f32.xlu0 %v5408
      %v5410 = vpop.xlane.xlu0 %5409
      %v5411 = vsel %vm4432, %v5361, 0.0
      %5412 = vadd.xlane.f32.xlu0 %v5411
      %v5413 = vpop.xlane.xlu0 %5412
      %v5414 = vsel %vm4432, %v5362, 0.0
      %5415 = vadd.xlane.f32.xlu0 %v5414
      %v5416 = vpop.xlane.xlu0 %5415
      %v5417 = vsel %vm4432, %v5363, 0.0
      %5418 = vadd.xlane.f32.xlu0 %v5417
      %v5419 = vpop.xlane.xlu0 %5418
      %v5420 = vsel %vm4432, %v5364, 0.0
      %5421 = vadd.xlane.f32.xlu0 %v5420
      %v5422 = vpop.xlane.xlu0 %5421
      %v5423 = vsel %vm4432, %v5365, 0.0
      %5424 = vadd.xlane.f32.xlu0 %v5423
      %v5425 = vpop.xlane.xlu0 %5424
      %v5426 = vsel %vm4432, %v5366, 0.0
      %5427 = vadd.xlane.f32.xlu0 %v5426
      %v5428 = vpop.xlane.xlu0 %5427
      %v5429 = vsel %vm4432, %v5367, 0.0
      %5430 = vadd.xlane.f32.xlu0 %v5429
      %v5431 = vpop.xlane.xlu0 %5430
      %v5432 = vsel %vm4432, %v5368, 0.0
      %5433 = vadd.xlane.f32.xlu0 %v5432
      %v5434 = vpop.xlane.xlu0 %5433
      %v5435 = vsel %vm4432, %v5369, 0.0
      %5436 = vadd.xlane.f32.xlu0 %v5435
      %v5437 = vpop.xlane.xlu0 %5436
      %v5438 = vsel %vm4432, %v5370, 0.0
      %5439 = vadd.xlane.f32.xlu0 %v5438
      %v5440 = vpop.xlane.xlu0 %5439
      %v5441 = vsel %vm4432, %v5371, 0.0
      %5442 = vadd.xlane.f32.xlu0 %v5441
      %v5443 = vpop.xlane.xlu0 %5442
      %v5444 = vsel %vm4432, %v5372, 0.0
      %5445 = vadd.xlane.f32.xlu0 %v5444
      %v5446 = vpop.xlane.xlu0 %5445
      %v5447 = vsel %vm4432, %v5373, 0.0
      %5448 = vadd.xlane.f32.xlu0 %v5447
      %v5449 = vpop.xlane.xlu0 %5448
      %v5450 = vsel %vm4432, %v5374, 0.0
      %5451 = vadd.xlane.f32.xlu0 %v5450
      %v5452 = vpop.xlane.xlu0 %5451
      %v5453 = vsel %vm4432, %v5375, 0.0
      %5454 = vadd.xlane.f32.xlu0 %v5453
      %v5455 = vpop.xlane.xlu0 %5454
      %v5456 = vsel %vm4432, %v5376, 0.0
      %5457 = vadd.xlane.f32.xlu0 %v5456
      %v5458 = vpop.xlane.xlu0 %5457
      %v5459 = vsel %vm4432, %v5377, 0.0
      %5460 = vadd.xlane.f32.xlu0 %v5459
      %v5461 = vpop.xlane.xlu0 %5460
      %v5462 = vsel %vm4432, %v5378, 0.0
      %5463 = vadd.xlane.f32.xlu0 %v5462
      %v5464 = vpop.xlane.xlu0 %5463
      %v5465 = vsel %vm4432, %v5379, 0.0
      %5466 = vadd.xlane.f32.xlu0 %v5465
      %v5467 = vpop.xlane.xlu0 %5466
      %v5468 = vsel %vm4432, %v5380, 0.0
      %5469 = vadd.xlane.f32.xlu0 %v5468
      %v5470 = vpop.xlane.xlu0 %5469
      %v5471 = vsel %vm4432, %v5381, 0.0
      %5472 = vadd.xlane.f32.xlu0 %v5471
      %v5473 = vpop.xlane.xlu0 %5472
      %v5474 = vsel %vm4432, %v5382, 0.0
      %5475 = vadd.xlane.f32.xlu0 %v5474
      %v5476 = vpop.xlane.xlu0 %5475
      %v5477 = vsel %vm4432, %v5383, 0.0
      %5478 = vadd.xlane.f32.xlu0 %v5477
      %v5479 = vpop.xlane.xlu0 %5478
      %v5480 = vadd.f32 %v4663, %v5386
      %v5481 = vadd.f32 %v4665, %v5389
      %v5482 = vadd.f32 %v4667, %v5392
      %v5483 = vadd.f32 %v4669, %v5395
      %v5484 = vadd.f32 %v4671, %v5398
      %v5485 = vadd.f32 %v4673, %v5401
      %v5486 = vadd.f32 %v4675, %v5404
      %v5487 = vadd.f32 %v4677, %v5407
      %v5488 = vadd.f32 %v4679, %v5410
      %v5489 = vadd.f32 %v4681, %v5413
      %v5490 = vadd.f32 %v4683, %v5416
      %v5491 = vadd.f32 %v4685, %v5419
      %v5492 = vadd.f32 %v4687, %v5422
      %v5493 = vadd.f32 %v4689, %v5425
      %v5494 = vadd.f32 %v4691, %v5428
      %v5495 = vadd.f32 %v4693, %v5431
      %v5496 = vadd.f32 %v4695, %v5434
      %v5497 = vadd.f32 %v4697, %v5437
      %v5498 = vadd.f32 %v4699, %v5440
      %v5499 = vadd.f32 %v4701, %v5443
      %v5500 = vadd.f32 %v4703, %v5446
      %v5501 = vadd.f32 %v4705, %v5449
      %v5502 = vadd.f32 %v4707, %v5452
      %v5503 = vadd.f32 %v4709, %v5455
      %v5504 = vadd.f32 %v4711, %v5458
      %v5505 = vadd.f32 %v4713, %v5461
      %v5506 = vadd.f32 %v4715, %v5464
      %v5507 = vadd.f32 %v4717, %v5467
      %v5508 = vadd.f32 %v4719, %v5470
      %v5509 = vadd.f32 %v4721, %v5473
      %v5510 = vadd.f32 %v4723, %v5476
      %v5511 = vadd.f32 %v4725, %v5479
      %v5512 = vadd.f32 %v5480, %v5481
      %v5513 = vadd.f32 %v5512, %v5482
      %v5514 = vadd.f32 %v5513, %v5483
      %v5515 = vadd.f32 %v5514, %v5484
      %v5516 = vadd.f32 %v5515, %v5485
      %v5517 = vadd.f32 %v5516, %v5486
      %v5518 = vadd.f32 %v5517, %v5487
      %v5519 = vadd.f32 %v5518, %v5488
      %v5520 = vadd.f32 %v5519, %v5489
      %v5521 = vadd.f32 %v5520, %v5490
      %v5522 = vadd.f32 %v5521, %v5491
      %v5523 = vadd.f32 %v5522, %v5492
      %v5524 = vadd.f32 %v5523, %v5493
      %v5525 = vadd.f32 %v5524, %v5494
      %v5526 = vadd.f32 %v5525, %v5495
      %v5527 = vadd.f32 %v5526, %v5496
      %v5528 = vadd.f32 %v5527, %v5497
      %v5529 = vadd.f32 %v5528, %v5498
      %v5530 = vadd.f32 %v5529, %v5499
      %v5531 = vadd.f32 %v5530, %v5500
      %v5532 = vadd.f32 %v5531, %v5501
      %v5533 = vadd.f32 %v5532, %v5502
      %v5534 = vadd.f32 %v5533, %v5503
      %v5535 = vadd.f32 %v5534, %v5504
      %v5536 = vadd.f32 %v5535, %v5505
      %v5537 = vadd.f32 %v5536, %v5506
      %v5538 = vadd.f32 %v5537, %v5507
      %v5539 = vadd.f32 %v5538, %v5508
      %v5540 = vadd.f32 %v5539, %v5509
      %v5541 = vadd.f32 %v5540, %v5510
      %v5542 = vadd.f32 %v5541, %v5511
      %v5543 = vrot.slane %v5542, 4
      %v5544 = vadd.f32 %v5542, %v5543
      %v5545 = vrot.slane %v5544, 2
      %v5546 = vadd.f32 %v5544, %v5545
      %v5547 = vrot.slane %v5546, 1
      %v5548 = vadd.f32 %v5546, %v5547
      %vm5549 = vcmask 0
      %5550 = vst.msk [vmem:[%s408] sm:$0x1] %vm5549, %v5548
      %vm5551 = vcmask 7168
      %5552 = vst.msk [vmem:[%s404] sm:$0xff] %vm5551, %v4805
      %5553 = vst.msk [vmem:[%s404 + $0x8] sm:$0xff] %vm5551, %v4819
      %5554 = vst.msk [vmem:[%s404 + $0x10] sm:$0xff] %vm5551, %v4833
      %5555 = vst.msk [vmem:[%s404 + $0x18] sm:$0xff] %vm5551, %v4847
      %5556 = vst.msk [vmem:[%s404 + $0x20] sm:$0xff] %vm5551, %v4861
      %5557 = vst.msk [vmem:[%s404 + $0x28] sm:$0xff] %vm5551, %v4875
      %5558 = vst.msk [vmem:[%s404 + $0x30] sm:$0xff] %vm5551, %v4889
      %5559 = vst.msk [vmem:[%s404 + $0x38] sm:$0xff] %vm5551, %v4903
      %5560 = vst.msk [vmem:[%s404 + $0x40] sm:$0xff] %vm5551, %v4917
      %5561 = vst.msk [vmem:[%s404 + $0x48] sm:$0xff] %vm5551, %v4931
      %5562 = vst.msk [vmem:[%s404 + $0x50] sm:$0xff] %vm5551, %v4945
      %5563 = vst.msk [vmem:[%s404 + $0x58] sm:$0xff] %vm5551, %v4959
      %5564 = vst.msk [vmem:[%s404 + $0x60] sm:$0xff] %vm5551, %v4973
      %5565 = vst.msk [vmem:[%s404 + $0x68] sm:$0xff] %vm5551, %v4987
      %5566 = vst.msk [vmem:[%s404 + $0x70] sm:$0xff] %vm5551, %v5001
      %5567 = vst.msk [vmem:[%s404 + $0x78] sm:$0xff] %vm5551, %v5015
      %5568 = vst.msk [vmem:[%s404 + $0x80] sm:$0xff] %vm5551, %v5029
      %5569 = vst.msk [vmem:[%s404 + $0x88] sm:$0xff] %vm5551, %v5043
      %5570 = vst.msk [vmem:[%s404 + $0x90] sm:$0xff] %vm5551, %v5057
      %5571 = vst.msk [vmem:[%s404 + $0x98] sm:$0xff] %vm5551, %v5071
      %5572 = vst.msk [vmem:[%s404 + $0xa0] sm:$0xff] %vm5551, %v5085
      %5573 = vst.msk [vmem:[%s404 + $0xa8] sm:$0xff] %vm5551, %v5099
      %5574 = vst.msk [vmem:[%s404 + $0xb0] sm:$0xff] %vm5551, %v5113
      %5575 = vst.msk [vmem:[%s404 + $0xb8] sm:$0xff] %vm5551, %v5127
      %5576 = vst.msk [vmem:[%s404 + $0xc0] sm:$0xff] %vm5551, %v5141
      %5577 = vst.msk [vmem:[%s404 + $0xc8] sm:$0xff] %vm5551, %v5155
      %5578 = vst.msk [vmem:[%s404 + $0xd0] sm:$0xff] %vm5551, %v5169
      %5579 = vst.msk [vmem:[%s404 + $0xd8] sm:$0xff] %vm5551, %v5183
      %5580 = vst.msk [vmem:[%s404 + $0xe0] sm:$0xff] %vm5551, %v5197
      %5581 = vst.msk [vmem:[%s404 + $0xe8] sm:$0xff] %vm5551, %v5211
      %5582 = vst.msk [vmem:[%s404 + $0xf0] sm:$0xff] %vm5551, %v5225
      %5583 = vst.msk [vmem:[%s404 + $0xf8] sm:$0xff] %vm5551, %v5239
      %v5584 = vld [vmem:[%s5] sm:$0xf]
      %v5585 = vld [vmem:[%s5 + $0x4] sm:$0xf]
      %v5586 = vld [vmem:[%s5 + $0x8] sm:$0xf]
      %v5587 = vld [vmem:[%s5 + $0xc] sm:$0xf]
      %v5588 = vld [vmem:[%s5 + $0x10] sm:$0xf]
      %v5589 = vld [vmem:[%s5 + $0x14] sm:$0xf]
      %v5590 = vld [vmem:[%s5 + $0x18] sm:$0xf]
      %v5591 = vld [vmem:[%s5 + $0x1c] sm:$0xf]
      %v5592 = vld [vmem:[%s5 + $0x20] sm:$0xf]
      %v5593 = vld [vmem:[%s5 + $0x24] sm:$0xf]
      %v5594 = vld [vmem:[%s5 + $0x28] sm:$0xf]
      %v5595 = vld [vmem:[%s5 + $0x2c] sm:$0xf]
      %v5596 = vld [vmem:[%s5 + $0x30] sm:$0xf]
      %v5597 = vld [vmem:[%s5 + $0x34] sm:$0xf]
      %v5598 = vld [vmem:[%s5 + $0x38] sm:$0xf]
      %v5599 = vld [vmem:[%s5 + $0x3c] sm:$0xf]
      %v5600 = vld [vmem:[%s6] sm:$0x1]
      %v5602 = vperm.slane %v5600, 0
      %v5620 = vunpack.c.l.b16 %v5584
      %v5621 = vunpack.c.l.b16 %v5585
      %v5622 = vunpack.c.l.b16 %v5586
      %v5623 = vunpack.c.l.b16 %v5587
      %v5624 = vunpack.c.l.b16 %v5588
      %v5625 = vunpack.c.l.b16 %v5589
      %v5626 = vunpack.c.l.b16 %v5590
      %v5627 = vunpack.c.l.b16 %v5591
      %v5628 = vunpack.c.l.b16 %v5592
      %v5629 = vunpack.c.l.b16 %v5593
      %v5630 = vunpack.c.l.b16 %v5594
      %v5631 = vunpack.c.l.b16 %v5595
      %v5632 = vunpack.c.l.b16 %v5596
      %v5633 = vunpack.c.l.b16 %v5597
      %v5634 = vunpack.c.l.b16 %v5598
      %v5635 = vunpack.c.l.b16 %v5599
      %v5636 = vpack.c.b16 %v5621, %v5620
      %v5637 = vpack.c.b16 %v5623, %v5622
      %v5638 = vpack.c.b16 %v5625, %v5624
      %v5639 = vpack.c.b16 %v5627, %v5626
      %v5640 = vpack.c.b16 %v5629, %v5628
      %v5641 = vpack.c.b16 %v5631, %v5630
      %v5642 = vpack.c.b16 %v5633, %v5632
      %v5643 = vpack.c.b16 %v5635, %v5634
      %5652 = vmatpush.bf16.msra.mxu0 %v5643
      %5653 = vmatpush.bf16.msra.mxu0 %v5642
      %5654 = vmatpush.bf16.msra.mxu0 %v5641
      %5655 = vmatpush.bf16.msra.mxu0 %v5640
      %5656 = vmatpush.bf16.msra.mxu0 %v5639
      %5657 = vmatpush.bf16.msra.mxu0 %v5638
      %5658 = vmatpush.bf16.msra.mxu0 %v5637
      %5659 = vmatpush.bf16.msra.mxu0 %v5636
      %5660 = vmatmul.bf16.gmra.mxu0 %v5336
      %v5661 = vpop.f32.mrf.mxu0
      %v5662 = vadd.f32 %v5602, %v5661
      %v5663 = vpop.f32.mrf.mxu0
      %v5664 = vadd.f32 %v5602, %v5663
      %5665 = vmatmul.bf16.gmra.mxu0 %v5337
      %v5666 = vpop.f32.mrf.mxu0
      %v5667 = vadd.f32 %v5602, %v5666
      %v5668 = vpop.f32.mrf.mxu0
      %v5669 = vadd.f32 %v5602, %v5668
      %5670 = vmatmul.bf16.gmra.mxu0 %v5338
      %v5671 = vpop.f32.mrf.mxu0
      %v5672 = vadd.f32 %v5602, %v5671
      %v5673 = vpop.f32.mrf.mxu0
      %v5674 = vadd.f32 %v5602, %v5673
      %5675 = vmatmul.bf16.gmra.mxu0 %v5339
      %v5676 = vpop.f32.mrf.mxu0
      %v5677 = vadd.f32 %v5602, %v5676
      %v5678 = vpop.f32.mrf.mxu0
      %v5679 = vadd.f32 %v5602, %v5678
      %5680 = vmatmul.bf16.gmra.mxu0 %v5340
      %v5681 = vpop.f32.mrf.mxu0
      %v5682 = vadd.f32 %v5602, %v5681
      %v5683 = vpop.f32.mrf.mxu0
      %v5684 = vadd.f32 %v5602, %v5683
      %5685 = vmatmul.bf16.gmra.mxu0 %v5341
      %v5686 = vpop.f32.mrf.mxu0
      %v5687 = vadd.f32 %v5602, %v5686
      %v5688 = vpop.f32.mrf.mxu0
      %v5689 = vadd.f32 %v5602, %v5688
      %5690 = vmatmul.bf16.gmra.mxu0 %v5342
      %v5691 = vpop.f32.mrf.mxu0
      %v5692 = vadd.f32 %v5602, %v5691
      %v5693 = vpop.f32.mrf.mxu0
      %v5694 = vadd.f32 %v5602, %v5693
      %5695 = vmatmul.bf16.gmra.mxu0 %v5343
      %v5696 = vpop.f32.mrf.mxu0
      %v5697 = vadd.f32 %v5602, %v5696
      %v5698 = vpop.f32.mrf.mxu0
      %v5699 = vadd.f32 %v5602, %v5698
      %5700 = vmatmul.bf16.gmra.mxu0 %v5344
      %v5701 = vpop.f32.mrf.mxu0
      %v5702 = vadd.f32 %v5602, %v5701
      %v5703 = vpop.f32.mrf.mxu0
      %v5704 = vadd.f32 %v5602, %v5703
      %5705 = vmatmul.bf16.gmra.mxu0 %v5345
      %v5706 = vpop.f32.mrf.mxu0
      %v5707 = vadd.f32 %v5602, %v5706
      %v5708 = vpop.f32.mrf.mxu0
      %v5709 = vadd.f32 %v5602, %v5708
      %5710 = vmatmul.bf16.gmra.mxu0 %v5346
      %v5711 = vpop.f32.mrf.mxu0
      %v5712 = vadd.f32 %v5602, %v5711
      %v5713 = vpop.f32.mrf.mxu0
      %v5714 = vadd.f32 %v5602, %v5713
      %5715 = vmatmul.bf16.gmra.mxu0 %v5347
      %v5716 = vpop.f32.mrf.mxu0
      %v5717 = vadd.f32 %v5602, %v5716
      %v5718 = vpop.f32.mrf.mxu0
      %v5719 = vadd.f32 %v5602, %v5718
      %5720 = vmatmul.bf16.gmra.mxu0 %v5348
      %v5721 = vpop.f32.mrf.mxu0
      %v5722 = vadd.f32 %v5602, %v5721
      %v5723 = vpop.f32.mrf.mxu0
      %v5724 = vadd.f32 %v5602, %v5723
      %5725 = vmatmul.bf16.gmra.mxu0 %v5349
      %v5726 = vpop.f32.mrf.mxu0
      %v5727 = vadd.f32 %v5602, %v5726
      %v5728 = vpop.f32.mrf.mxu0
      %v5729 = vadd.f32 %v5602, %v5728
      %5730 = vmatmul.bf16.gmra.mxu0 %v5350
      %v5731 = vpop.f32.mrf.mxu0
      %v5732 = vadd.f32 %v5602, %v5731
      %v5733 = vpop.f32.mrf.mxu0
      %v5734 = vadd.f32 %v5602, %v5733
      %5735 = vmatmul.bf16.gmra.mxu0 %v5351
      %v5736 = vpop.f32.mrf.mxu0
      %v5737 = vadd.f32 %v5602, %v5736
      %v5738 = vpop.f32.mrf.mxu0
      %v5739 = vadd.f32 %v5602, %v5738
      %5740 = vdwg.mxu0
      %5741 = vst.msk [vmem:[#allocation2] sm:$0xff] %vm4432, 0.0
      %5742 = vst.msk [vmem:[#allocation2 + $0x8] sm:$0xff] %vm4432, 0.0
      %vm5743 = vcmask 254976
      %5744 = vst.msk [vmem:[#allocation2 + $0x10] sm:$0x3] %vm5743, 0.0
      %5745 = vst.msk [vmem:[#allocation2 + $0x18] sm:$0xff] %vm4432, 0.0
      %5746 = vst.msk [vmem:[#allocation2 + $0x20] sm:$0xff] %vm4432, 0.0
      %5747 = vst.msk [vmem:[#allocation2 + $0x28] sm:$0x3] %vm5743, 0.0
      %5748 = vst.msk [vmem:[#allocation2 + $0x30] sm:$0xff] %vm4432, 0.0
      %5749 = vst.msk [vmem:[#allocation2 + $0x38] sm:$0xff] %vm4432, 0.0
      %5750 = vst.msk [vmem:[#allocation2 + $0x40] sm:$0x3] %vm5743, 0.0
      %5751 = vst.msk [vmem:[#allocation2 + $0x48] sm:$0xff] %vm4432, 0.0
      %5752 = vst.msk [vmem:[#allocation2 + $0x50] sm:$0xff] %vm4432, 0.0
      %5753 = vst.msk [vmem:[#allocation2 + $0x58] sm:$0x3] %vm5743, 0.0
      %5754 = vst.msk [vmem:[#allocation2 + $0x60] sm:$0xff] %vm4432, 0.0
      %5755 = vst.msk [vmem:[#allocation2 + $0x68] sm:$0xff] %vm4432, 0.0
      %5756 = vst.msk [vmem:[#allocation2 + $0x70] sm:$0x3] %vm5743, 0.0
      %5757 = vst.msk [vmem:[#allocation2 + $0x78] sm:$0xff] %vm4432, 0.0
      %5758 = vst.msk [vmem:[#allocation2 + $0x80] sm:$0xff] %vm4432, 0.0
      %5759 = vst.msk [vmem:[#allocation2 + $0x88] sm:$0x3] %vm5743, 0.0
      %5760 = vst.msk [vmem:[#allocation2 + $0x90] sm:$0xff] %vm4432, 0.0
      %5761 = vst.msk [vmem:[#allocation2 + $0x98] sm:$0xff] %vm4432, 0.0
      %5762 = vst.msk [vmem:[#allocation2 + $0xa0] sm:$0x3] %vm5743, 0.0
      %5763 = vst.msk [vmem:[#allocation2 + $0xa8] sm:$0xff] %vm4432, 0.0
      %5764 = vst.msk [vmem:[#allocation2 + $0xb0] sm:$0xff] %vm4432, 0.0
      %5765 = vst.msk [vmem:[#allocation2 + $0xb8] sm:$0x3] %vm5743, 0.0
      %5766 = vst.msk [vmem:[#allocation2 + $0xc0] sm:$0xff] %vm4432, 0.0
      %5767 = vst.msk [vmem:[#allocation2 + $0xc8] sm:$0xff] %vm4432, 0.0
      %5768 = vst.msk [vmem:[#allocation2 + $0xd0] sm:$0x3] %vm5743, 0.0
      %5769 = vst.msk [vmem:[#allocation2 + $0xd8] sm:$0xff] %vm4432, 0.0
      %5770 = vst.msk [vmem:[#allocation2 + $0xe0] sm:$0xff] %vm4432, 0.0
      %5771 = vst.msk [vmem:[#allocation2 + $0xe8] sm:$0x3] %vm5743, 0.0
      %5772 = vst.msk [vmem:[#allocation2 + $0xf0] sm:$0xff] %vm4432, 0.0
      %5773 = vst.msk [vmem:[#allocation2 + $0xf8] sm:$0xff] %vm4432, 0.0
      %5774 = vst.msk [vmem:[#allocation2 + $0x100] sm:$0x3] %vm5743, 0.0
      %5775 = vst.msk [vmem:[#allocation2 + $0x108] sm:$0xff] %vm4432, 0.0
      %5776 = vst.msk [vmem:[#allocation2 + $0x110] sm:$0xff] %vm4432, 0.0
      %5777 = vst.msk [vmem:[#allocation2 + $0x118] sm:$0x3] %vm5743, 0.0
      %5778 = vst.msk [vmem:[#allocation2 + $0x120] sm:$0xff] %vm4432, 0.0
      %5779 = vst.msk [vmem:[#allocation2 + $0x128] sm:$0xff] %vm4432, 0.0
      %5780 = vst.msk [vmem:[#allocation2 + $0x130] sm:$0x3] %vm5743, 0.0
      %5781 = vst.msk [vmem:[#allocation2 + $0x138] sm:$0xff] %vm4432, 0.0
      %5782 = vst.msk [vmem:[#allocation2 + $0x140] sm:$0xff] %vm4432, 0.0
      %5783 = vst.msk [vmem:[#allocation2 + $0x148] sm:$0x3] %vm5743, 0.0
      %5784 = vst.msk [vmem:[#allocation2 + $0x150] sm:$0xff] %vm4432, 0.0
      %5785 = vst.msk [vmem:[#allocation2 + $0x158] sm:$0xff] %vm4432, 0.0
      %5786 = vst.msk [vmem:[#allocation2 + $0x160] sm:$0x3] %vm5743, 0.0
      %5787 = vst.msk [vmem:[#allocation2 + $0x168] sm:$0xff] %vm4432, 0.0
      %5788 = vst.msk [vmem:[#allocation2 + $0x170] sm:$0xff] %vm4432, 0.0
      %5789 = vst.msk [vmem:[#allocation2 + $0x178] sm:$0x3] %vm5743, 0.0
      %5790 = vst.msk [vmem:[#allocation2 + $0x180] sm:$0xff] %vm4432, 0.0
      %5791 = vst.msk [vmem:[#allocation2 + $0x188] sm:$0xff] %vm4432, 0.0
      %5792 = vst.msk [vmem:[#allocation2 + $0x190] sm:$0x3] %vm5743, 0.0
      %5793 = vst.msk [vmem:[#allocation2 + $0x198] sm:$0xff] %vm4432, 0.0
      %5794 = vst.msk [vmem:[#allocation2 + $0x1a0] sm:$0xff] %vm4432, 0.0
      %5795 = vst.msk [vmem:[#allocation2 + $0x1a8] sm:$0x3] %vm5743, 0.0
      %s5796 = scalar_lea.vmem [#allocation2], 24
      %5797 = vst.msk [vmem:[%s5796 + $0x1] sm:$0xff] %vm4432, %v5662
      %5798 = vst.msk [vmem:[%s5796 + $0x9] sm:$0xff] %vm4432, %v5664
      %5799 = vst.msk [vmem:[%s5796 + $0x19] sm:$0xff] %vm4432, %v5667
      %5800 = vst.msk [vmem:[%s5796 + $0x21] sm:$0xff] %vm4432, %v5669
      %5801 = vst.msk [vmem:[%s5796 + $0x31] sm:$0xff] %vm4432, %v5672
      %5802 = vst.msk [vmem:[%s5796 + $0x39] sm:$0xff] %vm4432, %v5674
      %5803 = vst.msk [vmem:[%s5796 + $0x49] sm:$0xff] %vm4432, %v5677
      %5804 = vst.msk [vmem:[%s5796 + $0x51] sm:$0xff] %vm4432, %v5679
      %5805 = vst.msk [vmem:[%s5796 + $0x61] sm:$0xff] %vm4432, %v5682
      %5806 = vst.msk [vmem:[%s5796 + $0x69] sm:$0xff] %vm4432, %v5684
      %5807 = vst.msk [vmem:[%s5796 + $0x79] sm:$0xff] %vm4432, %v5687
      %5808 = vst.msk [vmem:[%s5796 + $0x81] sm:$0xff] %vm4432, %v5689
      %5809 = vst.msk [vmem:[%s5796 + $0x91] sm:$0xff] %vm4432, %v5692
      %5810 = vst.msk [vmem:[%s5796 + $0x99] sm:$0xff] %vm4432, %v5694
      %5811 = vst.msk [vmem:[%s5796 + $0xa9] sm:$0xff] %vm4432, %v5697
      %5812 = vst.msk [vmem:[%s5796 + $0xb1] sm:$0xff] %vm4432, %v5699
      %5813 = vst.msk [vmem:[%s5796 + $0xc1] sm:$0xff] %vm4432, %v5702
      %5814 = vst.msk [vmem:[%s5796 + $0xc9] sm:$0xff] %vm4432, %v5704
      %5815 = vst.msk [vmem:[%s5796 + $0xd9] sm:$0xff] %vm4432, %v5707
      %5816 = vst.msk [vmem:[%s5796 + $0xe1] sm:$0xff] %vm4432, %v5709
      %5817 = vst.msk [vmem:[%s5796 + $0xf1] sm:$0xff] %vm4432, %v5712
      %5818 = vst.msk [vmem:[%s5796 + $0xf9] sm:$0xff] %vm4432, %v5714
      %5819 = vst.msk [vmem:[%s5796 + $0x109] sm:$0xff] %vm4432, %v5717
      %5820 = vst.msk [vmem:[%s5796 + $0x111] sm:$0xff] %vm4432, %v5719
      %5821 = vst.msk [vmem:[%s5796 + $0x121] sm:$0xff] %vm4432, %v5722
      %5822 = vst.msk [vmem:[%s5796 + $0x129] sm:$0xff] %vm4432, %v5724
      %5823 = vst.msk [vmem:[%s5796 + $0x139] sm:$0xff] %vm4432, %v5727
      %5824 = vst.msk [vmem:[%s5796 + $0x141] sm:$0xff] %vm4432, %v5729
      %5825 = vst.msk [vmem:[%s5796 + $0x151] sm:$0xff] %vm4432, %v5732
      %5826 = vst.msk [vmem:[%s5796 + $0x159] sm:$0xff] %vm4432, %v5734
      %5827 = vst.msk [vmem:[%s5796 + $0x169] sm:$0xff] %vm4432, %v5737
      %5828 = vst.msk [vmem:[%s5796 + $0x171] sm:$0xff] %vm4432, %v5739
      %v5829 = vld [vmem:[#allocation2] sm:$0xff]
      %v5830 = vld [vmem:[#allocation2 + $0x8] sm:$0xff]
      %v5831 = vld [vmem:[#allocation2 + $0x18] sm:$0xff]
      %v5832 = vld [vmem:[#allocation2 + $0x20] sm:$0xff]
      %v5833 = vld [vmem:[#allocation2 + $0x30] sm:$0xff]
      %v5834 = vld [vmem:[#allocation2 + $0x38] sm:$0xff]
      %v5835 = vld [vmem:[#allocation2 + $0x48] sm:$0xff]
      %v5836 = vld [vmem:[#allocation2 + $0x50] sm:$0xff]
      %v5837 = vld [vmem:[#allocation2 + $0x60] sm:$0xff]
      %v5838 = vld [vmem:[#allocation2 + $0x68] sm:$0xff]
      %v5839 = vld [vmem:[#allocation2 + $0x78] sm:$0xff]
      %v5840 = vld [vmem:[#allocation2 + $0x80] sm:$0xff]
      %v5841 = vld [vmem:[#allocation2 + $0x90] sm:$0xff]
      %v5842 = vld [vmem:[#allocation2 + $0x98] sm:$0xff]
      %v5843 = vld [vmem:[#allocation2 + $0xa8] sm:$0xff]
      %v5844 = vld [vmem:[#allocation2 + $0xb0] sm:$0xff]
      %v5845 = vld [vmem:[#allocation2 + $0xc0] sm:$0xff]
      %v5846 = vld [vmem:[#allocation2 + $0xc8] sm:$0xff]
      %v5847 = vld [vmem:[#allocation2 + $0xd8] sm:$0xff]
      %v5848 = vld [vmem:[#allocation2 + $0xe0] sm:$0xff]
      %v5849 = vld [vmem:[#allocation2 + $0xf0] sm:$0xff]
      %v5850 = vld [vmem:[#allocation2 + $0xf8] sm:$0xff]
      %v5851 = vld [vmem:[#allocation2 + $0x108] sm:$0xff]
      %v5852 = vld [vmem:[#allocation2 + $0x110] sm:$0xff]
      %v5853 = vld [vmem:[#allocation2 + $0x120] sm:$0xff]
      %v5854 = vld [vmem:[#allocation2 + $0x128] sm:$0xff]
      %v5855 = vld [vmem:[#allocation2 + $0x138] sm:$0xff]
      %v5856 = vld [vmem:[#allocation2 + $0x140] sm:$0xff]
      %v5857 = vld [vmem:[#allocation2 + $0x150] sm:$0xff]
      %v5858 = vld [vmem:[#allocation2 + $0x158] sm:$0xff]
      %v5859 = vld [vmem:[#allocation2 + $0x168] sm:$0xff]
      %v5860 = vld [vmem:[#allocation2 + $0x170] sm:$0xff]
      %v5861 = vpack.c.bf16 %v5830, %v5829
      %v5862 = vpack.c.bf16 %v5832, %v5831
      %v5863 = vpack.c.bf16 %v5834, %v5833
      %v5864 = vpack.c.bf16 %v5836, %v5835
      %v5865 = vpack.c.bf16 %v5838, %v5837
      %v5866 = vpack.c.bf16 %v5840, %v5839
      %v5867 = vpack.c.bf16 %v5842, %v5841
      %v5868 = vpack.c.bf16 %v5844, %v5843
      %v5869 = vpack.c.bf16 %v5846, %v5845
      %v5870 = vpack.c.bf16 %v5848, %v5847
      %v5871 = vpack.c.bf16 %v5850, %v5849
      %v5872 = vpack.c.bf16 %v5852, %v5851
      %v5873 = vpack.c.bf16 %v5854, %v5853
      %v5874 = vpack.c.bf16 %v5856, %v5855
      %v5875 = vpack.c.bf16 %v5858, %v5857
      %v5876 = vpack.c.bf16 %v5860, %v5859
      %v5877 = vld [vmem:[%s7] sm:$0x3]
      %v5878 = vld [vmem:[#allocation2 + $0x1] sm:$0xff]
      %v5879 = vld [vmem:[#allocation2 + $0x9] sm:$0xff]
      %v5880 = vld [vmem:[#allocation2 + $0x19] sm:$0xff]
      %v5881 = vld [vmem:[#allocation2 + $0x21] sm:$0xff]
      %v5882 = vld [vmem:[#allocation2 + $0x31] sm:$0xff]
      %v5883 = vld [vmem:[#allocation2 + $0x39] sm:$0xff]
      %v5884 = vld [vmem:[#allocation2 + $0x49] sm:$0xff]
      %v5885 = vld [vmem:[#allocation2 + $0x51] sm:$0xff]
      %v5886 = vld [vmem:[#allocation2 + $0x61] sm:$0xff]
      %v5887 = vld [vmem:[#allocation2 + $0x69] sm:$0xff]
      %v5888 = vld [vmem:[#allocation2 + $0x79] sm:$0xff]
      %v5889 = vld [vmem:[#allocation2 + $0x81] sm:$0xff]
      %v5890 = vld [vmem:[#allocation2 + $0x91] sm:$0xff]
      %v5891 = vld [vmem:[#allocation2 + $0x99] sm:$0xff]
      %v5892 = vld [vmem:[#allocation2 + $0xa9] sm:$0xff]
      %v5893 = vld [vmem:[#allocation2 + $0xb1] sm:$0xff]
      %v5894 = vld [vmem:[#allocation2 + $0xc1] sm:$0xff]
      %v5895 = vld [vmem:[#allocation2 + $0xc9] sm:$0xff]
      %v5896 = vld [vmem:[#allocation2 + $0xd9] sm:$0xff]
      %v5897 = vld [vmem:[#allocation2 + $0xe1] sm:$0xff]
      %v5898 = vld [vmem:[#allocation2 + $0xf1] sm:$0xff]
      %v5899 = vld [vmem:[#allocation2 + $0xf9] sm:$0xff]
      %v5900 = vld [vmem:[#allocation2 + $0x109] sm:$0xff]
      %v5901 = vld [vmem:[#allocation2 + $0x111] sm:$0xff]
      %v5902 = vld [vmem:[#allocation2 + $0x121] sm:$0xff]
      %v5903 = vld [vmem:[#allocation2 + $0x129] sm:$0xff]
      %v5904 = vld [vmem:[#allocation2 + $0x139] sm:$0xff]
      %v5905 = vld [vmem:[#allocation2 + $0x141] sm:$0xff]
      %v5906 = vld [vmem:[#allocation2 + $0x151] sm:$0xff]
      %v5907 = vld [vmem:[#allocation2 + $0x159] sm:$0xff]
      %v5908 = vld [vmem:[#allocation2 + $0x169] sm:$0xff]
      %v5909 = vld [vmem:[#allocation2 + $0x171] sm:$0xff]
      %v5910 = vpack.c.bf16 %v5879, %v5878
      %v5911 = vpack.c.bf16 %v5881, %v5880
      %v5912 = vpack.c.bf16 %v5883, %v5882
      %v5913 = vpack.c.bf16 %v5885, %v5884
      %v5914 = vpack.c.bf16 %v5887, %v5886
      %v5915 = vpack.c.bf16 %v5889, %v5888
      %v5916 = vpack.c.bf16 %v5891, %v5890
      %v5917 = vpack.c.bf16 %v5893, %v5892
      %v5918 = vpack.c.bf16 %v5895, %v5894
      %v5919 = vpack.c.bf16 %v5897, %v5896
      %v5920 = vpack.c.bf16 %v5899, %v5898
      %v5921 = vpack.c.bf16 %v5901, %v5900
      %v5922 = vpack.c.bf16 %v5903, %v5902
      %v5923 = vpack.c.bf16 %v5905, %v5904
      %v5924 = vpack.c.bf16 %v5907, %v5906
      %v5925 = vpack.c.bf16 %v5909, %v5908
      %s5926 = scalar_lea.vmem %s7, 2
      %v5927 = vld [vmem:[%s5926] sm:$0x3]
      %v5929 = vsel %vm4432, %v5927, 0
      %v5932 = vsel %vm4432, %v5910, 0
      %v5935 = vsel %vm4432, %v5911, 0
      %v5938 = vsel %vm4432, %v5912, 0
      %v5941 = vsel %vm4432, %v5913, 0
      %v5944 = vsel %vm4432, %v5914, 0
      %v5947 = vsel %vm4432, %v5915, 0
      %v5950 = vsel %vm4432, %v5916, 0
      %v5953 = vsel %vm4432, %v5917, 0
      %v5956 = vsel %vm4432, %v5918, 0
      %v5959 = vsel %vm4432, %v5919, 0
      %v5962 = vsel %vm4432, %v5920, 0
      %v5965 = vsel %vm4432, %v5921, 0
      %v5968 = vsel %vm4432, %v5922, 0
      %v5971 = vsel %vm4432, %v5923, 0
      %v5974 = vsel %vm4432, %v5924, 0
      %v5977 = vsel %vm4432, %v5925, 0
      %5979 = vmatpush.bf16.xpose.msra.mxu0 %v5953
      %5980 = vmatpush.bf16.xpose.msra.mxu0 %v5950
      %5981 = vmatpush.bf16.xpose.msra.mxu0 %v5947
      %5982 = vmatpush.bf16.xpose.msra.mxu0 %v5944
      %5983 = vmatpush.bf16.xpose.msra.mxu0 %v5941
      %5984 = vmatpush.bf16.xpose.msra.mxu0 %v5938
      %5985 = vmatpush.bf16.xpose.msra.mxu0 %v5935
      %5986 = vmatpush.bf16.xpose.msra.mxu0 %v5932
      %5987 = vmatmul.bf16.gmra.mxu0 %v5929
      %v5988 = vpop.f32.mrf.mxu0
      %v5989 = vadd.f32 0.0, %v5988
      %v5990 = vpop.f32.mrf.mxu0
      %5991 = vdwg.mxu0
      %5992 = vmatpush.bf16.xpose.msra.mxu0 %v5977
      %5993 = vmatpush.bf16.xpose.msra.mxu0 %v5974
      %5994 = vmatpush.bf16.xpose.msra.mxu0 %v5971
      %5995 = vmatpush.bf16.xpose.msra.mxu0 %v5968
      %5996 = vmatpush.bf16.xpose.msra.mxu0 %v5965
      %5997 = vmatpush.bf16.xpose.msra.mxu0 %v5962
      %5998 = vmatpush.bf16.xpose.msra.mxu0 %v5959
      %5999 = vmatpush.bf16.xpose.msra.mxu0 %v5956
      %6000 = vmatmul.bf16.gmra.mxu0 %v5929
      %v6001 = vpop.f32.mrf.mxu0
      %v6002 = vadd.f32 0.0, %v6001
      %v6003 = vpop.f32.mrf.mxu0
      %6004 = vdwg.mxu0
      %v6006 = vsel %vm4432, %v5877, 0
      %v6009 = vsel %vm4432, %v5861, 0
      %v6012 = vsel %vm4432, %v5862, 0
      %v6015 = vsel %vm4432, %v5863, 0
      %v6018 = vsel %vm4432, %v5864, 0
      %v6021 = vsel %vm4432, %v5865, 0
      %v6024 = vsel %vm4432, %v5866, 0
      %v6027 = vsel %vm4432, %v5867, 0
      %v6030 = vsel %vm4432, %v5868, 0
      %v6033 = vsel %vm4432, %v5869, 0
      %v6036 = vsel %vm4432, %v5870, 0
      %v6039 = vsel %vm4432, %v5871, 0
      %v6042 = vsel %vm4432, %v5872, 0
      %v6045 = vsel %vm4432, %v5873, 0
      %v6048 = vsel %vm4432, %v5874, 0
      %v6051 = vsel %vm4432, %v5875, 0
      %v6054 = vsel %vm4432, %v5876, 0
      %6056 = vmatpush.bf16.xpose.msra.mxu0 %v6030
      %6057 = vmatpush.bf16.xpose.msra.mxu0 %v6027
      %6058 = vmatpush.bf16.xpose.msra.mxu0 %v6024
      %6059 = vmatpush.bf16.xpose.msra.mxu0 %v6021
      %6060 = vmatpush.bf16.xpose.msra.mxu0 %v6018
      %6061 = vmatpush.bf16.xpose.msra.mxu0 %v6015
      %6062 = vmatpush.bf16.xpose.msra.mxu0 %v6012
      %6063 = vmatpush.bf16.xpose.msra.mxu0 %v6009
      %6064 = vmatmul.bf16.gmra.mxu0 %v6006
      %v6065 = vpop.f32.mrf.mxu0
      %v6066 = vadd.f32 %v5989, %v6065
      %v6067 = vpop.f32.mrf.mxu0
      %6068 = vdwg.mxu0
      %6069 = vmatpush.bf16.xpose.msra.mxu0 %v6054
      %6070 = vmatpush.bf16.xpose.msra.mxu0 %v6051
      %6071 = vmatpush.bf16.xpose.msra.mxu0 %v6048
      %6072 = vmatpush.bf16.xpose.msra.mxu0 %v6045
      %6073 = vmatpush.bf16.xpose.msra.mxu0 %v6042
      %6074 = vmatpush.bf16.xpose.msra.mxu0 %v6039
      %6075 = vmatpush.bf16.xpose.msra.mxu0 %v6036
      %6076 = vmatpush.bf16.xpose.msra.mxu0 %v6033
      %6077 = vmatmul.bf16.gmra.mxu0 %v6006
      %v6078 = vpop.f32.mrf.mxu0
      %v6079 = vadd.f32 %v6002, %v6078
      %v6080 = vpop.f32.mrf.mxu0
      %6081 = vdwg.mxu0
      %v6082 = vld [vmem:[#allocation2 + $0x2] sm:$0xff]
      %v6083 = vld [vmem:[#allocation2 + $0xa] sm:$0xff]
      %v6084 = vld [vmem:[#allocation2 + $0x1a] sm:$0xff]
      %v6085 = vld [vmem:[#allocation2 + $0x22] sm:$0xff]
      %v6086 = vld [vmem:[#allocation2 + $0x32] sm:$0xff]
      %v6087 = vld [vmem:[#allocation2 + $0x3a] sm:$0xff]
      %v6088 = vld [vmem:[#allocation2 + $0x4a] sm:$0xff]
      %v6089 = vld [vmem:[#allocation2 + $0x52] sm:$0xff]
      %v6090 = vld [vmem:[#allocation2 + $0x62] sm:$0xff]
      %v6091 = vld [vmem:[#allocation2 + $0x6a] sm:$0xff]
      %v6092 = vld [vmem:[#allocation2 + $0x7a] sm:$0xff]
      %v6093 = vld [vmem:[#allocation2 + $0x82] sm:$0xff]
      %v6094 = vld [vmem:[#allocation2 + $0x92] sm:$0xff]
      %v6095 = vld [vmem:[#allocation2 + $0x9a] sm:$0xff]
      %v6096 = vld [vmem:[#allocation2 + $0xaa] sm:$0xff]
      %v6097 = vld [vmem:[#allocation2 + $0xb2] sm:$0xff]
      %v6098 = vld [vmem:[#allocation2 + $0xc2] sm:$0xff]
      %v6099 = vld [vmem:[#allocation2 + $0xca] sm:$0xff]
      %v6100 = vld [vmem:[#allocation2 + $0xda] sm:$0xff]
      %v6101 = vld [vmem:[#allocation2 + $0xe2] sm:$0xff]
      %v6102 = vld [vmem:[#allocation2 + $0xf2] sm:$0xff]
      %v6103 = vld [vmem:[#allocation2 + $0xfa] sm:$0xff]
      %v6104 = vld [vmem:[#allocation2 + $0x10a] sm:$0xff]
      %v6105 = vld [vmem:[#allocation2 + $0x112] sm:$0xff]
      %v6106 = vld [vmem:[#allocation2 + $0x122] sm:$0xff]
      %v6107 = vld [vmem:[#allocation2 + $0x12a] sm:$0xff]
      %v6108 = vld [vmem:[#allocation2 + $0x13a] sm:$0xff]
      %v6109 = vld [vmem:[#allocation2 + $0x142] sm:$0xff]
      %v6110 = vld [vmem:[#allocation2 + $0x152] sm:$0xff]
      %v6111 = vld [vmem:[#allocation2 + $0x15a] sm:$0xff]
      %v6112 = vld [vmem:[#allocation2 + $0x16a] sm:$0xff]
      %v6113 = vld [vmem:[#allocation2 + $0x172] sm:$0xff]
      %v6114 = vpack.c.bf16 %v6083, %v6082
      %v6115 = vpack.c.bf16 %v6085, %v6084
      %v6116 = vpack.c.bf16 %v6087, %v6086
      %v6117 = vpack.c.bf16 %v6089, %v6088
      %v6118 = vpack.c.bf16 %v6091, %v6090
      %v6119 = vpack.c.bf16 %v6093, %v6092
      %v6120 = vpack.c.bf16 %v6095, %v6094
      %v6121 = vpack.c.bf16 %v6097, %v6096
      %v6122 = vpack.c.bf16 %v6099, %v6098
      %v6123 = vpack.c.bf16 %v6101, %v6100
      %v6124 = vpack.c.bf16 %v6103, %v6102
      %v6125 = vpack.c.bf16 %v6105, %v6104
      %v6126 = vpack.c.bf16 %v6107, %v6106
      %v6127 = vpack.c.bf16 %v6109, %v6108
      %v6128 = vpack.c.bf16 %v6111, %v6110
      %v6129 = vpack.c.bf16 %v6113, %v6112
      %s6130 = scalar_lea.vmem %s7, 4
      %v6131 = vld [vmem:[%s6130] sm:$0x3]
      %v6133 = vsel %vm4432, %v6131, 0
      %v6136 = vsel %vm4432, %v6114, 0
      %v6139 = vsel %vm4432, %v6115, 0
      %v6142 = vsel %vm4432, %v6116, 0
      %v6145 = vsel %vm4432, %v6117, 0
      %v6148 = vsel %vm4432, %v6118, 0
      %v6151 = vsel %vm4432, %v6119, 0
      %v6154 = vsel %vm4432, %v6120, 0
      %v6157 = vsel %vm4432, %v6121, 0
      %v6160 = vsel %vm4432, %v6122, 0
      %v6163 = vsel %vm4432, %v6123, 0
      %v6166 = vsel %vm4432, %v6124, 0
      %v6169 = vsel %vm4432, %v6125, 0
      %v6172 = vsel %vm4432, %v6126, 0
      %v6175 = vsel %vm4432, %v6127, 0
      %v6178 = vsel %vm4432, %v6128, 0
      %v6181 = vsel %vm4432, %v6129, 0
      %6183 = vmatpush.bf16.xpose.msra.mxu0 %v6157
      %6184 = vmatpush.bf16.xpose.msra.mxu0 %v6154
      %6185 = vmatpush.bf16.xpose.msra.mxu0 %v6151
      %6186 = vmatpush.bf16.xpose.msra.mxu0 %v6148
      %6187 = vmatpush.bf16.xpose.msra.mxu0 %v6145
      %6188 = vmatpush.bf16.xpose.msra.mxu0 %v6142
      %6189 = vmatpush.bf16.xpose.msra.mxu0 %v6139
      %6190 = vmatpush.bf16.xpose.msra.mxu0 %v6136
      %6191 = vmatmul.bf16.gmra.mxu0 %v6133
      %v6192 = vpop.f32.mrf.mxu0
      %v6193 = vadd.f32 0.0, %v6192
      %v6194 = vpop.f32.mrf.mxu0
      %6195 = vdwg.mxu0
      %6196 = vmatpush.bf16.xpose.msra.mxu0 %v6181
      %6197 = vmatpush.bf16.xpose.msra.mxu0 %v6178
      %6198 = vmatpush.bf16.xpose.msra.mxu0 %v6175
      %6199 = vmatpush.bf16.xpose.msra.mxu0 %v6172
      %6200 = vmatpush.bf16.xpose.msra.mxu0 %v6169
      %6201 = vmatpush.bf16.xpose.msra.mxu0 %v6166
      %6202 = vmatpush.bf16.xpose.msra.mxu0 %v6163
      %6203 = vmatpush.bf16.xpose.msra.mxu0 %v6160
      %6204 = vmatmul.bf16.gmra.mxu0 %v6133
      %v6205 = vpop.f32.mrf.mxu0
      %v6206 = vadd.f32 0.0, %v6205
      %v6207 = vpop.f32.mrf.mxu0
      %6208 = vdwg.mxu0
      %v6209 = vadd.f32 %v6066, %v6193
      %v6210 = vadd.f32 %v6079, %v6206
      %v6211 = vld [vmem:[%s5796] sm:$0xff]
      %v6212 = vld [vmem:[%s5796 + $0x8] sm:$0xff]
      %v6213 = vld [vmem:[%s5796 + $0x18] sm:$0xff]
      %v6214 = vld [vmem:[%s5796 + $0x20] sm:$0xff]
      %v6215 = vld [vmem:[%s5796 + $0x30] sm:$0xff]
      %v6216 = vld [vmem:[%s5796 + $0x38] sm:$0xff]
      %v6217 = vld [vmem:[%s5796 + $0x48] sm:$0xff]
      %v6218 = vld [vmem:[%s5796 + $0x50] sm:$0xff]
      %v6219 = vld [vmem:[%s5796 + $0x60] sm:$0xff]
      %v6220 = vld [vmem:[%s5796 + $0x68] sm:$0xff]
      %v6221 = vld [vmem:[%s5796 + $0x78] sm:$0xff]
      %v6222 = vld [vmem:[%s5796 + $0x80] sm:$0xff]
      %v6223 = vld [vmem:[%s5796 + $0x90] sm:$0xff]
      %v6224 = vld [vmem:[%s5796 + $0x98] sm:$0xff]
      %v6225 = vld [vmem:[%s5796 + $0xa8] sm:$0xff]
      %v6226 = vld [vmem:[%s5796 + $0xb0] sm:$0xff]
      %v6227 = vld [vmem:[%s5796 + $0xc0] sm:$0xff]
      %v6228 = vld [vmem:[%s5796 + $0xc8] sm:$0xff]
      %v6229 = vld [vmem:[%s5796 + $0xd8] sm:$0xff]
      %v6230 = vld [vmem:[%s5796 + $0xe0] sm:$0xff]
      %v6231 = vld [vmem:[%s5796 + $0xf0] sm:$0xff]
      %v6232 = vld [vmem:[%s5796 + $0xf8] sm:$0xff]
      %v6233 = vld [vmem:[%s5796 + $0x108] sm:$0xff]
      %v6234 = vld [vmem:[%s5796 + $0x110] sm:$0xff]
      %v6235 = vld [vmem:[%s5796 + $0x120] sm:$0xff]
      %v6236 = vld [vmem:[%s5796 + $0x128] sm:$0xff]
      %v6237 = vld [vmem:[%s5796 + $0x138] sm:$0xff]
      %v6238 = vld [vmem:[%s5796 + $0x140] sm:$0xff]
      %v6239 = vld [vmem:[%s5796 + $0x150] sm:$0xff]
      %v6240 = vld [vmem:[%s5796 + $0x158] sm:$0xff]
      %v6241 = vld [vmem:[%s5796 + $0x168] sm:$0xff]
      %v6242 = vld [vmem:[%s5796 + $0x170] sm:$0xff]
      %v6243 = vpack.c.bf16 %v6212, %v6211
      %v6244 = vpack.c.bf16 %v6214, %v6213
      %v6245 = vpack.c.bf16 %v6216, %v6215
      %v6246 = vpack.c.bf16 %v6218, %v6217
      %v6247 = vpack.c.bf16 %v6220, %v6219
      %v6248 = vpack.c.bf16 %v6222, %v6221
      %v6249 = vpack.c.bf16 %v6224, %v6223
      %v6250 = vpack.c.bf16 %v6226, %v6225
      %v6251 = vpack.c.bf16 %v6228, %v6227
      %v6252 = vpack.c.bf16 %v6230, %v6229
      %v6253 = vpack.c.bf16 %v6232, %v6231
      %v6254 = vpack.c.bf16 %v6234, %v6233
      %v6255 = vpack.c.bf16 %v6236, %v6235
      %v6256 = vpack.c.bf16 %v6238, %v6237
      %v6257 = vpack.c.bf16 %v6240, %v6239
      %v6258 = vpack.c.bf16 %v6242, %v6241
      %s6259 = scalar_lea.vmem %s7, 6
      %v6260 = vld [vmem:[%s6259] sm:$0x3]
      %v6262 = vsel %vm4432, %v6260, 0
      %v6265 = vsel %vm4432, %v6243, 0
      %v6268 = vsel %vm4432, %v6244, 0
      %v6271 = vsel %vm4432, %v6245, 0
      %v6274 = vsel %vm4432, %v6246, 0
      %v6277 = vsel %vm4432, %v6247, 0
      %v6280 = vsel %vm4432, %v6248, 0
      %v6283 = vsel %vm4432, %v6249, 0
      %v6286 = vsel %vm4432, %v6250, 0
      %v6289 = vsel %vm4432, %v6251, 0
      %v6292 = vsel %vm4432, %v6252, 0
      %v6295 = vsel %vm4432, %v6253, 0
      %v6298 = vsel %vm4432, %v6254, 0
      %v6301 = vsel %vm4432, %v6255, 0
      %v6304 = vsel %vm4432, %v6256, 0
      %v6307 = vsel %vm4432, %v6257, 0
      %v6310 = vsel %vm4432, %v6258, 0
      %6312 = vmatpush.bf16.xpose.msra.mxu0 %v6286
      %6313 = vmatpush.bf16.xpose.msra.mxu0 %v6283
      %6314 = vmatpush.bf16.xpose.msra.mxu0 %v6280
      %6315 = vmatpush.bf16.xpose.msra.mxu0 %v6277
      %6316 = vmatpush.bf16.xpose.msra.mxu0 %v6274
      %6317 = vmatpush.bf16.xpose.msra.mxu0 %v6271
      %6318 = vmatpush.bf16.xpose.msra.mxu0 %v6268
      %6319 = vmatpush.bf16.xpose.msra.mxu0 %v6265
      %6320 = vmatmul.bf16.gmra.mxu0 %v6262
      %v6321 = vpop.f32.mrf.mxu0
      %v6322 = vadd.f32 0.0, %v6321
      %v6323 = vpop.f32.mrf.mxu0
      %6324 = vdwg.mxu0
      %6325 = vmatpush.bf16.xpose.msra.mxu0 %v6310
      %6326 = vmatpush.bf16.xpose.msra.mxu0 %v6307
      %6327 = vmatpush.bf16.xpose.msra.mxu0 %v6304
      %6328 = vmatpush.bf16.xpose.msra.mxu0 %v6301
      %6329 = vmatpush.bf16.xpose.msra.mxu0 %v6298
      %6330 = vmatpush.bf16.xpose.msra.mxu0 %v6295
      %6331 = vmatpush.bf16.xpose.msra.mxu0 %v6292
      %6332 = vmatpush.bf16.xpose.msra.mxu0 %v6289
      %6333 = vmatmul.bf16.gmra.mxu0 %v6262
      %v6334 = vpop.f32.mrf.mxu0
      %v6335 = vadd.f32 0.0, %v6334
      %v6336 = vpop.f32.mrf.mxu0
      %6337 = vdwg.mxu0
      %v6338 = vadd.f32 %v6209, %v6322
      %v6339 = vadd.f32 %v6210, %v6335
      %v6340 = vld [vmem:[%s5796 + $0x1] sm:$0xff]
      %v6341 = vld [vmem:[%s5796 + $0x9] sm:$0xff]
      %v6342 = vld [vmem:[%s5796 + $0x19] sm:$0xff]
      %v6343 = vld [vmem:[%s5796 + $0x21] sm:$0xff]
      %v6344 = vld [vmem:[%s5796 + $0x31] sm:$0xff]
      %v6345 = vld [vmem:[%s5796 + $0x39] sm:$0xff]
      %v6346 = vld [vmem:[%s5796 + $0x49] sm:$0xff]
      %v6347 = vld [vmem:[%s5796 + $0x51] sm:$0xff]
      %v6348 = vld [vmem:[%s5796 + $0x61] sm:$0xff]
      %v6349 = vld [vmem:[%s5796 + $0x69] sm:$0xff]
      %v6350 = vld [vmem:[%s5796 + $0x79] sm:$0xff]
      %v6351 = vld [vmem:[%s5796 + $0x81] sm:$0xff]
      %v6352 = vld [vmem:[%s5796 + $0x91] sm:$0xff]
      %v6353 = vld [vmem:[%s5796 + $0x99] sm:$0xff]
      %v6354 = vld [vmem:[%s5796 + $0xa9] sm:$0xff]
      %v6355 = vld [vmem:[%s5796 + $0xb1] sm:$0xff]
      %v6356 = vld [vmem:[%s5796 + $0xc1] sm:$0xff]
      %v6357 = vld [vmem:[%s5796 + $0xc9] sm:$0xff]
      %v6358 = vld [vmem:[%s5796 + $0xd9] sm:$0xff]
      %v6359 = vld [vmem:[%s5796 + $0xe1] sm:$0xff]
      %v6360 = vld [vmem:[%s5796 + $0xf1] sm:$0xff]
      %v6361 = vld [vmem:[%s5796 + $0xf9] sm:$0xff]
      %v6362 = vld [vmem:[%s5796 + $0x109] sm:$0xff]
      %v6363 = vld [vmem:[%s5796 + $0x111] sm:$0xff]
      %v6364 = vld [vmem:[%s5796 + $0x121] sm:$0xff]
      %v6365 = vld [vmem:[%s5796 + $0x129] sm:$0xff]
      %v6366 = vld [vmem:[%s5796 + $0x139] sm:$0xff]
      %v6367 = vld [vmem:[%s5796 + $0x141] sm:$0xff]
      %v6368 = vld [vmem:[%s5796 + $0x151] sm:$0xff]
      %v6369 = vld [vmem:[%s5796 + $0x159] sm:$0xff]
      %v6370 = vld [vmem:[%s5796 + $0x169] sm:$0xff]
      %v6371 = vld [vmem:[%s5796 + $0x171] sm:$0xff]
      %v6372 = vpack.c.bf16 %v6341, %v6340
      %v6373 = vpack.c.bf16 %v6343, %v6342
      %v6374 = vpack.c.bf16 %v6345, %v6344
      %v6375 = vpack.c.bf16 %v6347, %v6346
      %v6376 = vpack.c.bf16 %v6349, %v6348
      %v6377 = vpack.c.bf16 %v6351, %v6350
      %v6378 = vpack.c.bf16 %v6353, %v6352
      %v6379 = vpack.c.bf16 %v6355, %v6354
      %v6380 = vpack.c.bf16 %v6357, %v6356
      %v6381 = vpack.c.bf16 %v6359, %v6358
      %v6382 = vpack.c.bf16 %v6361, %v6360
      %v6383 = vpack.c.bf16 %v6363, %v6362
      %v6384 = vpack.c.bf16 %v6365, %v6364
      %v6385 = vpack.c.bf16 %v6367, %v6366
      %v6386 = vpack.c.bf16 %v6369, %v6368
      %v6387 = vpack.c.bf16 %v6371, %v6370
      %s6388 = scalar_lea.vmem %s7, 8
      %v6389 = vld [vmem:[%s6388] sm:$0x3]
      %v6391 = vsel %vm4432, %v6389, 0
      %v6394 = vsel %vm4432, %v6372, 0
      %v6397 = vsel %vm4432, %v6373, 0
      %v6400 = vsel %vm4432, %v6374, 0
      %v6403 = vsel %vm4432, %v6375, 0
      %v6406 = vsel %vm4432, %v6376, 0
      %v6409 = vsel %vm4432, %v6377, 0
      %v6412 = vsel %vm4432, %v6378, 0
      %v6415 = vsel %vm4432, %v6379, 0
      %v6418 = vsel %vm4432, %v6380, 0
      %v6421 = vsel %vm4432, %v6381, 0
      %v6424 = vsel %vm4432, %v6382, 0
      %v6427 = vsel %vm4432, %v6383, 0
      %v6430 = vsel %vm4432, %v6384, 0
      %v6433 = vsel %vm4432, %v6385, 0
      %v6436 = vsel %vm4432, %v6386, 0
      %v6439 = vsel %vm4432, %v6387, 0
      %6441 = vmatpush.bf16.xpose.msra.mxu0 %v6415
      %6442 = vmatpush.bf16.xpose.msra.mxu0 %v6412
      %6443 = vmatpush.bf16.xpose.msra.mxu0 %v6409
      %6444 = vmatpush.bf16.xpose.msra.mxu0 %v6406
      %6445 = vmatpush.bf16.xpose.msra.mxu0 %v6403
      %6446 = vmatpush.bf16.xpose.msra.mxu0 %v6400
      %6447 = vmatpush.bf16.xpose.msra.mxu0 %v6397
      %6448 = vmatpush.bf16.xpose.msra.mxu0 %v6394
      %6449 = vmatmul.bf16.gmra.mxu0 %v6391
      %v6450 = vpop.f32.mrf.mxu0
      %v6451 = vadd.f32 0.0, %v6450
      %v6452 = vpop.f32.mrf.mxu0
      %6453 = vdwg.mxu0
      %6454 = vmatpush.bf16.xpose.msra.mxu0 %v6439
      %6455 = vmatpush.bf16.xpose.msra.mxu0 %v6436
      %6456 = vmatpush.bf16.xpose.msra.mxu0 %v6433
      %6457 = vmatpush.bf16.xpose.msra.mxu0 %v6430
      %6458 = vmatpush.bf16.xpose.msra.mxu0 %v6427
      %6459 = vmatpush.bf16.xpose.msra.mxu0 %v6424
      %6460 = vmatpush.bf16.xpose.msra.mxu0 %v6421
      %6461 = vmatpush.bf16.xpose.msra.mxu0 %v6418
      %6462 = vmatmul.bf16.gmra.mxu0 %v6391
      %v6463 = vpop.f32.mrf.mxu0
      %v6464 = vadd.f32 0.0, %v6463
      %v6465 = vpop.f32.mrf.mxu0
      %6466 = vdwg.mxu0
      %v6467 = vadd.f32 %v6338, %v6451
      %v6468 = vadd.f32 %v6339, %v6464
      %v6469 = vld [vmem:[%s5796 + $0x2] sm:$0xff]
      %v6470 = vld [vmem:[%s5796 + $0xa] sm:$0xff]
      %v6471 = vld [vmem:[%s5796 + $0x1a] sm:$0xff]
      %v6472 = vld [vmem:[%s5796 + $0x22] sm:$0xff]
      %v6473 = vld [vmem:[%s5796 + $0x32] sm:$0xff]
      %v6474 = vld [vmem:[%s5796 + $0x3a] sm:$0xff]
      %v6475 = vld [vmem:[%s5796 + $0x4a] sm:$0xff]
      %v6476 = vld [vmem:[%s5796 + $0x52] sm:$0xff]
      %v6477 = vld [vmem:[%s5796 + $0x62] sm:$0xff]
      %v6478 = vld [vmem:[%s5796 + $0x6a] sm:$0xff]
      %v6479 = vld [vmem:[%s5796 + $0x7a] sm:$0xff]
      %v6480 = vld [vmem:[%s5796 + $0x82] sm:$0xff]
      %v6481 = vld [vmem:[%s5796 + $0x92] sm:$0xff]
      %v6482 = vld [vmem:[%s5796 + $0x9a] sm:$0xff]
      %v6483 = vld [vmem:[%s5796 + $0xaa] sm:$0xff]
      %v6484 = vld [vmem:[%s5796 + $0xb2] sm:$0xff]
      %v6485 = vld [vmem:[%s5796 + $0xc2] sm:$0xff]
      %v6486 = vld [vmem:[%s5796 + $0xca] sm:$0xff]
      %v6487 = vld [vmem:[%s5796 + $0xda] sm:$0xff]
      %v6488 = vld [vmem:[%s5796 + $0xe2] sm:$0xff]
      %v6489 = vld [vmem:[%s5796 + $0xf2] sm:$0xff]
      %v6490 = vld [vmem:[%s5796 + $0xfa] sm:$0xff]
      %v6491 = vld [vmem:[%s5796 + $0x10a] sm:$0xff]
      %v6492 = vld [vmem:[%s5796 + $0x112] sm:$0xff]
      %v6493 = vld [vmem:[%s5796 + $0x122] sm:$0xff]
      %v6494 = vld [vmem:[%s5796 + $0x12a] sm:$0xff]
      %v6495 = vld [vmem:[%s5796 + $0x13a] sm:$0xff]
      %v6496 = vld [vmem:[%s5796 + $0x142] sm:$0xff]
      %v6497 = vld [vmem:[%s5796 + $0x152] sm:$0xff]
      %v6498 = vld [vmem:[%s5796 + $0x15a] sm:$0xff]
      %v6499 = vld [vmem:[%s5796 + $0x16a] sm:$0xff]
      %v6500 = vld [vmem:[%s5796 + $0x172] sm:$0xff]
      %v6501 = vpack.c.bf16 %v6470, %v6469
      %v6502 = vpack.c.bf16 %v6472, %v6471
      %v6503 = vpack.c.bf16 %v6474, %v6473
      %v6504 = vpack.c.bf16 %v6476, %v6475
      %v6505 = vpack.c.bf16 %v6478, %v6477
      %v6506 = vpack.c.bf16 %v6480, %v6479
      %v6507 = vpack.c.bf16 %v6482, %v6481
      %v6508 = vpack.c.bf16 %v6484, %v6483
      %v6509 = vpack.c.bf16 %v6486, %v6485
      %v6510 = vpack.c.bf16 %v6488, %v6487
      %v6511 = vpack.c.bf16 %v6490, %v6489
      %v6512 = vpack.c.bf16 %v6492, %v6491
      %v6513 = vpack.c.bf16 %v6494, %v6493
      %v6514 = vpack.c.bf16 %v6496, %v6495
      %v6515 = vpack.c.bf16 %v6498, %v6497
      %v6516 = vpack.c.bf16 %v6500, %v6499
      %s6517 = scalar_lea.vmem %s7, 10
      %v6518 = vld [vmem:[%s6517] sm:$0x3]
      %v6520 = vsel %vm4432, %v6518, 0
      %v6523 = vsel %vm4432, %v6501, 0
      %v6526 = vsel %vm4432, %v6502, 0
      %v6529 = vsel %vm4432, %v6503, 0
      %v6532 = vsel %vm4432, %v6504, 0
      %v6535 = vsel %vm4432, %v6505, 0
      %v6538 = vsel %vm4432, %v6506, 0
      %v6541 = vsel %vm4432, %v6507, 0
      %v6544 = vsel %vm4432, %v6508, 0
      %v6547 = vsel %vm4432, %v6509, 0
      %v6550 = vsel %vm4432, %v6510, 0
      %v6553 = vsel %vm4432, %v6511, 0
      %v6556 = vsel %vm4432, %v6512, 0
      %v6559 = vsel %vm4432, %v6513, 0
      %v6562 = vsel %vm4432, %v6514, 0
      %v6565 = vsel %vm4432, %v6515, 0
      %v6568 = vsel %vm4432, %v6516, 0
      %6570 = vmatpush.bf16.xpose.msra.mxu0 %v6544
      %6571 = vmatpush.bf16.xpose.msra.mxu0 %v6541
      %6572 = vmatpush.bf16.xpose.msra.mxu0 %v6538
      %6573 = vmatpush.bf16.xpose.msra.mxu0 %v6535
      %6574 = vmatpush.bf16.xpose.msra.mxu0 %v6532
      %6575 = vmatpush.bf16.xpose.msra.mxu0 %v6529
      %6576 = vmatpush.bf16.xpose.msra.mxu0 %v6526
      %6577 = vmatpush.bf16.xpose.msra.mxu0 %v6523
      %6578 = vmatmul.bf16.gmra.mxu0 %v6520
      %v6579 = vpop.f32.mrf.mxu0
      %v6580 = vadd.f32 0.0, %v6579
      %v6581 = vpop.f32.mrf.mxu0
      %6582 = vdwg.mxu0
      %6583 = vmatpush.bf16.xpose.msra.mxu0 %v6568
      %6584 = vmatpush.bf16.xpose.msra.mxu0 %v6565
      %6585 = vmatpush.bf16.xpose.msra.mxu0 %v6562
      %6586 = vmatpush.bf16.xpose.msra.mxu0 %v6559
      %6587 = vmatpush.bf16.xpose.msra.mxu0 %v6556
      %6588 = vmatpush.bf16.xpose.msra.mxu0 %v6553
      %6589 = vmatpush.bf16.xpose.msra.mxu0 %v6550
      %6590 = vmatpush.bf16.xpose.msra.mxu0 %v6547
      %6591 = vmatmul.bf16.gmra.mxu0 %v6520
      %v6592 = vpop.f32.mrf.mxu0
      %v6593 = vadd.f32 0.0, %v6592
      %v6594 = vpop.f32.mrf.mxu0
      %6595 = vdwg.mxu0
      %v6596 = vadd.f32 %v6467, %v6580
      %v6597 = vadd.f32 %v6468, %v6593
      %s6598 = scalar_lea.vmem [#allocation2], 48
      %v6599 = vld [vmem:[%s6598] sm:$0xff]
      %v6600 = vld [vmem:[%s6598 + $0x8] sm:$0xff]
      %v6601 = vld [vmem:[%s6598 + $0x18] sm:$0xff]
      %v6602 = vld [vmem:[%s6598 + $0x20] sm:$0xff]
      %v6603 = vld [vmem:[%s6598 + $0x30] sm:$0xff]
      %v6604 = vld [vmem:[%s6598 + $0x38] sm:$0xff]
      %v6605 = vld [vmem:[%s6598 + $0x48] sm:$0xff]
      %v6606 = vld [vmem:[%s6598 + $0x50] sm:$0xff]
      %v6607 = vld [vmem:[%s6598 + $0x60] sm:$0xff]
      %v6608 = vld [vmem:[%s6598 + $0x68] sm:$0xff]
      %v6609 = vld [vmem:[%s6598 + $0x78] sm:$0xff]
      %v6610 = vld [vmem:[%s6598 + $0x80] sm:$0xff]
      %v6611 = vld [vmem:[%s6598 + $0x90] sm:$0xff]
      %v6612 = vld [vmem:[%s6598 + $0x98] sm:$0xff]
      %v6613 = vld [vmem:[%s6598 + $0xa8] sm:$0xff]
      %v6614 = vld [vmem:[%s6598 + $0xb0] sm:$0xff]
      %v6615 = vld [vmem:[%s6598 + $0xc0] sm:$0xff]
      %v6616 = vld [vmem:[%s6598 + $0xc8] sm:$0xff]
      %v6617 = vld [vmem:[%s6598 + $0xd8] sm:$0xff]
      %v6618 = vld [vmem:[%s6598 + $0xe0] sm:$0xff]
      %v6619 = vld [vmem:[%s6598 + $0xf0] sm:$0xff]
      %v6620 = vld [vmem:[%s6598 + $0xf8] sm:$0xff]
      %v6621 = vld [vmem:[%s6598 + $0x108] sm:$0xff]
      %v6622 = vld [vmem:[%s6598 + $0x110] sm:$0xff]
      %v6623 = vld [vmem:[%s6598 + $0x120] sm:$0xff]
      %v6624 = vld [vmem:[%s6598 + $0x128] sm:$0xff]
      %v6625 = vld [vmem:[%s6598 + $0x138] sm:$0xff]
      %v6626 = vld [vmem:[%s6598 + $0x140] sm:$0xff]
      %v6627 = vld [vmem:[%s6598 + $0x150] sm:$0xff]
      %v6628 = vld [vmem:[%s6598 + $0x158] sm:$0xff]
      %v6629 = vld [vmem:[%s6598 + $0x168] sm:$0xff]
      %v6630 = vld [vmem:[%s6598 + $0x170] sm:$0xff]
      %v6631 = vpack.c.bf16 %v6600, %v6599
      %v6632 = vpack.c.bf16 %v6602, %v6601
      %v6633 = vpack.c.bf16 %v6604, %v6603
      %v6634 = vpack.c.bf16 %v6606, %v6605
      %v6635 = vpack.c.bf16 %v6608, %v6607
      %v6636 = vpack.c.bf16 %v6610, %v6609
      %v6637 = vpack.c.bf16 %v6612, %v6611
      %v6638 = vpack.c.bf16 %v6614, %v6613
      %v6639 = vpack.c.bf16 %v6616, %v6615
      %v6640 = vpack.c.bf16 %v6618, %v6617
      %v6641 = vpack.c.bf16 %v6620, %v6619
      %v6642 = vpack.c.bf16 %v6622, %v6621
      %v6643 = vpack.c.bf16 %v6624, %v6623
      %v6644 = vpack.c.bf16 %v6626, %v6625
      %v6645 = vpack.c.bf16 %v6628, %v6627
      %v6646 = vpack.c.bf16 %v6630, %v6629
      %s6647 = scalar_lea.vmem %s7, 12
      %v6648 = vld [vmem:[%s6647] sm:$0x3]
      %v6650 = vsel %vm4432, %v6648, 0
      %v6653 = vsel %vm4432, %v6631, 0
      %v6656 = vsel %vm4432, %v6632, 0
      %v6659 = vsel %vm4432, %v6633, 0
      %v6662 = vsel %vm4432, %v6634, 0
      %v6665 = vsel %vm4432, %v6635, 0
      %v6668 = vsel %vm4432, %v6636, 0
      %v6671 = vsel %vm4432, %v6637, 0
      %v6674 = vsel %vm4432, %v6638, 0
      %v6677 = vsel %vm4432, %v6639, 0
      %v6680 = vsel %vm4432, %v6640, 0
      %v6683 = vsel %vm4432, %v6641, 0
      %v6686 = vsel %vm4432, %v6642, 0
      %v6689 = vsel %vm4432, %v6643, 0
      %v6692 = vsel %vm4432, %v6644, 0
      %v6695 = vsel %vm4432, %v6645, 0
      %v6698 = vsel %vm4432, %v6646, 0
      %6700 = vmatpush.bf16.xpose.msra.mxu0 %v6674
      %6701 = vmatpush.bf16.xpose.msra.mxu0 %v6671
      %6702 = vmatpush.bf16.xpose.msra.mxu0 %v6668
      %6703 = vmatpush.bf16.xpose.msra.mxu0 %v6665
      %6704 = vmatpush.bf16.xpose.msra.mxu0 %v6662
      %6705 = vmatpush.bf16.xpose.msra.mxu0 %v6659
      %6706 = vmatpush.bf16.xpose.msra.mxu0 %v6656
      %6707 = vmatpush.bf16.xpose.msra.mxu0 %v6653
      %6708 = vmatmul.bf16.gmra.mxu0 %v6650
      %v6709 = vpop.f32.mrf.mxu0
      %v6710 = vadd.f32 0.0, %v6709
      %v6711 = vpop.f32.mrf.mxu0
      %6712 = vdwg.mxu0
      %6713 = vmatpush.bf16.xpose.msra.mxu0 %v6698
      %6714 = vmatpush.bf16.xpose.msra.mxu0 %v6695
      %6715 = vmatpush.bf16.xpose.msra.mxu0 %v6692
      %6716 = vmatpush.bf16.xpose.msra.mxu0 %v6689
      %6717 = vmatpush.bf16.xpose.msra.mxu0 %v6686
      %6718 = vmatpush.bf16.xpose.msra.mxu0 %v6683
      %6719 = vmatpush.bf16.xpose.msra.mxu0 %v6680
      %6720 = vmatpush.bf16.xpose.msra.mxu0 %v6677
      %6721 = vmatmul.bf16.gmra.mxu0 %v6650
      %v6722 = vpop.f32.mrf.mxu0
      %v6723 = vadd.f32 0.0, %v6722
      %v6724 = vpop.f32.mrf.mxu0
      %6725 = vdwg.mxu0
      %v6726 = vadd.f32 %v6596, %v6710
      %v6727 = vadd.f32 %v6597, %v6723
      %v6728 = vld [vmem:[%s6598 + $0x1] sm:$0xff]
      %v6729 = vld [vmem:[%s6598 + $0x9] sm:$0xff]
      %v6730 = vld [vmem:[%s6598 + $0x19] sm:$0xff]
      %v6731 = vld [vmem:[%s6598 + $0x21] sm:$0xff]
      %v6732 = vld [vmem:[%s6598 + $0x31] sm:$0xff]
      %v6733 = vld [vmem:[%s6598 + $0x39] sm:$0xff]
      %v6734 = vld [vmem:[%s6598 + $0x49] sm:$0xff]
      %v6735 = vld [vmem:[%s6598 + $0x51] sm:$0xff]
      %v6736 = vld [vmem:[%s6598 + $0x61] sm:$0xff]
      %v6737 = vld [vmem:[%s6598 + $0x69] sm:$0xff]
      %v6738 = vld [vmem:[%s6598 + $0x79] sm:$0xff]
      %v6739 = vld [vmem:[%s6598 + $0x81] sm:$0xff]
      %v6740 = vld [vmem:[%s6598 + $0x91] sm:$0xff]
      %v6741 = vld [vmem:[%s6598 + $0x99] sm:$0xff]
      %v6742 = vld [vmem:[%s6598 + $0xa9] sm:$0xff]
      %v6743 = vld [vmem:[%s6598 + $0xb1] sm:$0xff]
      %v6744 = vld [vmem:[%s6598 + $0xc1] sm:$0xff]
      %v6745 = vld [vmem:[%s6598 + $0xc9] sm:$0xff]
      %v6746 = vld [vmem:[%s6598 + $0xd9] sm:$0xff]
      %v6747 = vld [vmem:[%s6598 + $0xe1] sm:$0xff]
      %v6748 = vld [vmem:[%s6598 + $0xf1] sm:$0xff]
      %v6749 = vld [vmem:[%s6598 + $0xf9] sm:$0xff]
      %v6750 = vld [vmem:[%s6598 + $0x109] sm:$0xff]
      %v6751 = vld [vmem:[%s6598 + $0x111] sm:$0xff]
      %v6752 = vld [vmem:[%s6598 + $0x121] sm:$0xff]
      %v6753 = vld [vmem:[%s6598 + $0x129] sm:$0xff]
      %v6754 = vld [vmem:[%s6598 + $0x139] sm:$0xff]
      %v6755 = vld [vmem:[%s6598 + $0x141] sm:$0xff]
      %v6756 = vld [vmem:[%s6598 + $0x151] sm:$0xff]
      %v6757 = vld [vmem:[%s6598 + $0x159] sm:$0xff]
      %v6758 = vld [vmem:[%s6598 + $0x169] sm:$0xff]
      %v6759 = vld [vmem:[%s6598 + $0x171] sm:$0xff]
      %v6760 = vpack.c.bf16 %v6729, %v6728
      %v6761 = vpack.c.bf16 %v6731, %v6730
      %v6762 = vpack.c.bf16 %v6733, %v6732
      %v6763 = vpack.c.bf16 %v6735, %v6734
      %v6764 = vpack.c.bf16 %v6737, %v6736
      %v6765 = vpack.c.bf16 %v6739, %v6738
      %v6766 = vpack.c.bf16 %v6741, %v6740
      %v6767 = vpack.c.bf16 %v6743, %v6742
      %v6768 = vpack.c.bf16 %v6745, %v6744
      %v6769 = vpack.c.bf16 %v6747, %v6746
      %v6770 = vpack.c.bf16 %v6749, %v6748
      %v6771 = vpack.c.bf16 %v6751, %v6750
      %v6772 = vpack.c.bf16 %v6753, %v6752
      %v6773 = vpack.c.bf16 %v6755, %v6754
      %v6774 = vpack.c.bf16 %v6757, %v6756
      %v6775 = vpack.c.bf16 %v6759, %v6758
      %s6776 = scalar_lea.vmem %s7, 14
      %v6777 = vld [vmem:[%s6776] sm:$0x3]
      %v6779 = vsel %vm4432, %v6777, 0
      %v6782 = vsel %vm4432, %v6760, 0
      %v6785 = vsel %vm4432, %v6761, 0
      %v6788 = vsel %vm4432, %v6762, 0
      %v6791 = vsel %vm4432, %v6763, 0
      %v6794 = vsel %vm4432, %v6764, 0
      %v6797 = vsel %vm4432, %v6765, 0
      %v6800 = vsel %vm4432, %v6766, 0
      %v6803 = vsel %vm4432, %v6767, 0
      %v6806 = vsel %vm4432, %v6768, 0
      %v6809 = vsel %vm4432, %v6769, 0
      %v6812 = vsel %vm4432, %v6770, 0
      %v6815 = vsel %vm4432, %v6771, 0
      %v6818 = vsel %vm4432, %v6772, 0
      %v6821 = vsel %vm4432, %v6773, 0
      %v6824 = vsel %vm4432, %v6774, 0
      %v6827 = vsel %vm4432, %v6775, 0
      %6829 = vmatpush.bf16.xpose.msra.mxu0 %v6803
      %6830 = vmatpush.bf16.xpose.msra.mxu0 %v6800
      %6831 = vmatpush.bf16.xpose.msra.mxu0 %v6797
      %6832 = vmatpush.bf16.xpose.msra.mxu0 %v6794
      %6833 = vmatpush.bf16.xpose.msra.mxu0 %v6791
      %6834 = vmatpush.bf16.xpose.msra.mxu0 %v6788
      %6835 = vmatpush.bf16.xpose.msra.mxu0 %v6785
      %6836 = vmatpush.bf16.xpose.msra.mxu0 %v6782
      %6837 = vmatmul.bf16.gmra.mxu0 %v6779
      %v6838 = vpop.f32.mrf.mxu0
      %v6839 = vadd.f32 0.0, %v6838
      %v6840 = vpop.f32.mrf.mxu0
      %6841 = vdwg.mxu0
      %6842 = vmatpush.bf16.xpose.msra.mxu0 %v6827
      %6843 = vmatpush.bf16.xpose.msra.mxu0 %v6824
      %6844 = vmatpush.bf16.xpose.msra.mxu0 %v6821
      %6845 = vmatpush.bf16.xpose.msra.mxu0 %v6818
      %6846 = vmatpush.bf16.xpose.msra.mxu0 %v6815
      %6847 = vmatpush.bf16.xpose.msra.mxu0 %v6812
      %6848 = vmatpush.bf16.xpose.msra.mxu0 %v6809
      %6849 = vmatpush.bf16.xpose.msra.mxu0 %v6806
      %6850 = vmatmul.bf16.gmra.mxu0 %v6779
      %v6851 = vpop.f32.mrf.mxu0
      %v6852 = vadd.f32 0.0, %v6851
      %v6853 = vpop.f32.mrf.mxu0
      %6854 = vdwg.mxu0
      %v6855 = vadd.f32 %v6726, %v6839
      %v6856 = vadd.f32 %v6727, %v6852
      %v6857 = vld [vmem:[%s6598 + $0x2] sm:$0xff]
      %v6858 = vld [vmem:[%s6598 + $0xa] sm:$0xff]
      %v6859 = vld [vmem:[%s6598 + $0x1a] sm:$0xff]
      %v6860 = vld [vmem:[%s6598 + $0x22] sm:$0xff]
      %v6861 = vld [vmem:[%s6598 + $0x32] sm:$0xff]
      %v6862 = vld [vmem:[%s6598 + $0x3a] sm:$0xff]
      %v6863 = vld [vmem:[%s6598 + $0x4a] sm:$0xff]
      %v6864 = vld [vmem:[%s6598 + $0x52] sm:$0xff]
      %v6865 = vld [vmem:[%s6598 + $0x62] sm:$0xff]
      %v6866 = vld [vmem:[%s6598 + $0x6a] sm:$0xff]
      %v6867 = vld [vmem:[%s6598 + $0x7a] sm:$0xff]
      %v6868 = vld [vmem:[%s6598 + $0x82] sm:$0xff]
      %v6869 = vld [vmem:[%s6598 + $0x92] sm:$0xff]
      %v6870 = vld [vmem:[%s6598 + $0x9a] sm:$0xff]
      %v6871 = vld [vmem:[%s6598 + $0xaa] sm:$0xff]
      %v6872 = vld [vmem:[%s6598 + $0xb2] sm:$0xff]
      %v6873 = vld [vmem:[%s6598 + $0xc2] sm:$0xff]
      %v6874 = vld [vmem:[%s6598 + $0xca] sm:$0xff]
      %v6875 = vld [vmem:[%s6598 + $0xda] sm:$0xff]
      %v6876 = vld [vmem:[%s6598 + $0xe2] sm:$0xff]
      %v6877 = vld [vmem:[%s6598 + $0xf2] sm:$0xff]
      %v6878 = vld [vmem:[%s6598 + $0xfa] sm:$0xff]
      %v6879 = vld [vmem:[%s6598 + $0x10a] sm:$0xff]
      %v6880 = vld [vmem:[%s6598 + $0x112] sm:$0xff]
      %v6881 = vld [vmem:[%s6598 + $0x122] sm:$0xff]
      %v6882 = vld [vmem:[%s6598 + $0x12a] sm:$0xff]
      %v6883 = vld [vmem:[%s6598 + $0x13a] sm:$0xff]
      %v6884 = vld [vmem:[%s6598 + $0x142] sm:$0xff]
      %v6885 = vld [vmem:[%s6598 + $0x152] sm:$0xff]
      %v6886 = vld [vmem:[%s6598 + $0x15a] sm:$0xff]
      %v6887 = vld [vmem:[%s6598 + $0x16a] sm:$0xff]
      %v6888 = vld [vmem:[%s6598 + $0x172] sm:$0xff]
      %v6889 = vpack.c.bf16 %v6858, %v6857
      %v6890 = vpack.c.bf16 %v6860, %v6859
      %v6891 = vpack.c.bf16 %v6862, %v6861
      %v6892 = vpack.c.bf16 %v6864, %v6863
      %v6893 = vpack.c.bf16 %v6866, %v6865
      %v6894 = vpack.c.bf16 %v6868, %v6867
      %v6895 = vpack.c.bf16 %v6870, %v6869
      %v6896 = vpack.c.bf16 %v6872, %v6871
      %v6897 = vpack.c.bf16 %v6874, %v6873
      %v6898 = vpack.c.bf16 %v6876, %v6875
      %v6899 = vpack.c.bf16 %v6878, %v6877
      %v6900 = vpack.c.bf16 %v6880, %v6879
      %v6901 = vpack.c.bf16 %v6882, %v6881
      %v6902 = vpack.c.bf16 %v6884, %v6883
      %v6903 = vpack.c.bf16 %v6886, %v6885
      %v6904 = vpack.c.bf16 %v6888, %v6887
      %s6905 = scalar_lea.vmem %s7, 16
      %v6906 = vld [vmem:[%s6905] sm:$0x3]
      %v6908 = vsel %vm4432, %v6906, 0
      %v6911 = vsel %vm4432, %v6889, 0
      %v6914 = vsel %vm4432, %v6890, 0
      %v6917 = vsel %vm4432, %v6891, 0
      %v6920 = vsel %vm4432, %v6892, 0
      %v6923 = vsel %vm4432, %v6893, 0
      %v6926 = vsel %vm4432, %v6894, 0
      %v6929 = vsel %vm4432, %v6895, 0
      %v6932 = vsel %vm4432, %v6896, 0
      %v6935 = vsel %vm4432, %v6897, 0
      %v6938 = vsel %vm4432, %v6898, 0
      %v6941 = vsel %vm4432, %v6899, 0
      %v6944 = vsel %vm4432, %v6900, 0
      %v6947 = vsel %vm4432, %v6901, 0
      %v6950 = vsel %vm4432, %v6902, 0
      %v6953 = vsel %vm4432, %v6903, 0
      %v6956 = vsel %vm4432, %v6904, 0
      %6958 = vmatpush.bf16.xpose.msra.mxu0 %v6932
      %6959 = vmatpush.bf16.xpose.msra.mxu0 %v6929
      %6960 = vmatpush.bf16.xpose.msra.mxu0 %v6926
      %6961 = vmatpush.bf16.xpose.msra.mxu0 %v6923
      %6962 = vmatpush.bf16.xpose.msra.mxu0 %v6920
      %6963 = vmatpush.bf16.xpose.msra.mxu0 %v6917
      %6964 = vmatpush.bf16.xpose.msra.mxu0 %v6914
      %6965 = vmatpush.bf16.xpose.msra.mxu0 %v6911
      %6966 = vmatmul.bf16.gmra.mxu0 %v6908
      %v6967 = vpop.f32.mrf.mxu0
      %v6968 = vadd.f32 0.0, %v6967
      %v6969 = vpop.f32.mrf.mxu0
      %6970 = vdwg.mxu0
      %6971 = vmatpush.bf16.xpose.msra.mxu0 %v6956
      %6972 = vmatpush.bf16.xpose.msra.mxu0 %v6953
      %6973 = vmatpush.bf16.xpose.msra.mxu0 %v6950
      %6974 = vmatpush.bf16.xpose.msra.mxu0 %v6947
      %6975 = vmatpush.bf16.xpose.msra.mxu0 %v6944
      %6976 = vmatpush.bf16.xpose.msra.mxu0 %v6941
      %6977 = vmatpush.bf16.xpose.msra.mxu0 %v6938
      %6978 = vmatpush.bf16.xpose.msra.mxu0 %v6935
      %6979 = vmatmul.bf16.gmra.mxu0 %v6908
      %v6980 = vpop.f32.mrf.mxu0
      %v6981 = vadd.f32 0.0, %v6980
      %v6982 = vpop.f32.mrf.mxu0
      %6983 = vdwg.mxu0
      %v6984 = vadd.f32 %v6855, %v6968
      %v6985 = vadd.f32 %v6856, %v6981
      %v6986 = vld [vmem:[%s8] sm:$0x7]
      %6988 = vset.pattern.permute.xlu0 0
      %6989 = vperm.xlu0 %6988, %v6986
      %v6990 = vpop.permute.xlu0 %6989
      %v6992 = vadd.f32 %v6984, %v6990
      %v6993 = vadd.f32 %v6985, %v6990
      %v6996 = vrot.slane %v6993, 4
      %vm6997 = vcmask 1043456
      %v6998 = vsel %vm6997, %v6992, %v6996
      %7000 = vst [vmem:[%s399] sm:$0x77] %v6998
      %p7001 = scmp.lt.s32.totalorder %s23, 1
      %s7002 = scalar_select %p7001, %s23, 1
      %s7003 = smul.addr %s7002, 2
      %s7004 = smul.addr %s7003, 4
      %s7005 = scalar_lea.vmem %s9, %s7004
      %s7006 = smul.u32 32, %s23
      %p7007 = scmp.lt.s32.totalorder %s7006, 63
      %s7008 = scalar_select %p7007, %s7006, 63
      %s7009 = smul.addr %s7008, 8
      %s7010 = scalar_lea.vmem %s10, %s7009
      %p7011 = scmp.lt.s32.totalorder %s23, 1
      %s7012 = scalar_select %p7011, %s23, 1
      %s7013 = scalar_lea.vmem %s11, %s7012
      // Predicated region
      $region57: #{a_call__.1} parent=55 // pred_check
        %p7014 = pneg %p235
      $region58: #{a_call__.1} parent=55 // pred_check_branch
        %7016 = sbr.rel (%p7014) target = $region60
      $region59: #{a_call__.1} parent=55 // pred_region
        _
      $region60: #{a_call__.1} parent=55 // pred_fallthru
        _
      // Predicated region
      $region61: #{a_call__.1} parent=55 // pred_check
        %p7017 = pneg %p261
      $region62: #{a_call__.1} parent=55 // pred_check_branch
        %7019 = sbr.rel (%p7017) target = $region64
      $region63: #{a_call__.1} parent=55 // pred_region
        %s7020 = smul.u32 32, %s23
      $region64: #{a_call__.1} parent=55 // pred_fallthru
        _
      // Predicated region
      $region65: #{a_call__.1} parent=55 // pred_check
        %p7021 = pneg %p287
      $region66: #{a_call__.1} parent=55 // pred_check_branch
        %7023 = sbr.rel (%p7021) target = $region68
      $region67: #{a_call__.1} parent=55 // pred_region
        _
      $region68: #{a_call__.1} parent=55 // pred_fallthru
        _
    $region56: #{a_call__.1} parent=5 // pred_fallthru
      _
    %p7024 = scmp.le.s32.totalorder 2, %s18
    // Predicated region
    $region69: #{a_call__.1} parent=5 // pred_check
      %p7025 = pneg %p7024
    $region70: #{a_call__.1} parent=5 // pred_check_branch
      %7027 = sbr.rel (%p7025) target = $region72
    $region71: #{a_call__.1} parent=5 // pred_region
      %s7028 = ssub.s32 %s18, 2
      // Predicated region
      $region73: #{a_call__.1} parent=71 // pred_check
        %p7029 = pneg %p241
      $region74: #{a_call__.1} parent=71 // pred_check_branch
        %7031 = sbr.rel (%p7029) target = $region76
      $region75: #{a_call__.1} parent=71 // pred_region
        %p7032 = scmp.lt.s32.totalorder %s24, 1
        %s7033 = scalar_select %p7032, %s24, 1
        %s7034 = smul.addr %s7033, 2
        %s7035 = smul.addr %s7034, 4
        %s7036 = scalar_lea.vmem %s9, %s7035
      $region76: #{a_call__.1} parent=71 // pred_fallthru
        _
      // Predicated region
      $region77: #{a_call__.1} parent=71 // pred_check
        %p7037 = pneg %p267
      $region78: #{a_call__.1} parent=71 // pred_check_branch
        %7039 = sbr.rel (%p7037) target = $region80
      $region79: #{a_call__.1} parent=71 // pred_region
        %s7040 = smul.u32 32, %s24
        %p7041 = scmp.lt.s32.totalorder %s7040, 63
        %s7042 = scalar_select %p7041, %s7040, 63
        %s7043 = smul.addr %s7042, 8
        %s7044 = scalar_lea.vmem %s10, %s7043
      $region80: #{a_call__.1} parent=71 // pred_fallthru
        _
      // Predicated region
      $region81: #{a_call__.1} parent=71 // pred_check
        %p7045 = pneg %p293
      $region82: #{a_call__.1} parent=71 // pred_check_branch
        %7047 = sbr.rel (%p7045) target = $region84
      $region83: #{a_call__.1} parent=71 // pred_region
        %p7048 = scmp.lt.s32.totalorder %s24, 1
        %s7049 = scalar_select %p7048, %s24, 1
        %s7050 = scalar_lea.vmem %s11, %s7049
      $region84: #{a_call__.1} parent=71 // pred_fallthru
        _
    $region72: #{a_call__.1} parent=5 // pred_fallthru
      _
  $region6: #{a_call__.1} parent=0 // loop_footer
    %s22 = sadd.s32 1, %s18
  $region7: #{a_call__.1} parent=0 // loop_footer_branch
    %17 = sbr.rel target = $region3
  $region8: #{a_call__.1} parent=0 // loop_exit
    _

</llo_original>
